<compile_context>
chip_gen: v7x
topology: tpu7x:2x2x1
jax: 0.10.0
libtpu: 0.0.40
codegen_flags: <defaults>
</compile_context>

<pallas_src>
import math

import jax
import jax.numpy as jnp
from jax.experimental import pallas as pl
from jax.experimental.pallas import tpu as pltpu

NHEAD = 8
LN_EPS = 1e-5
NEG_INF = -1e30


def _layernorm(x, w, b):
    # x: (N, D), w/b: (1, D); biased variance like torch.nn.LayerNorm
    mu = jnp.mean(x, axis=-1, keepdims=True)
    var = jnp.mean((x - mu) ** 2, axis=-1, keepdims=True)
    return (x - mu) * jax.lax.rsqrt(var + LN_EPS) * w + b


def _mha(q_in, kv_in, w_q, b_q, w_kv, b_kv, w_o, b_o, bias):
    # q_in: (N, D) f32, kv_in: (M, D) f32
    # w_q: (D, D) bf16, w_kv: (D, 2D) bf16, w_o: (D, D) bf16 (all pre-transposed)
    # b_q: (1, D), b_kv: (1, 2D), b_o: (1, D) f32
    # bias: (N, M) additive mask (0 for same-batch pairs, -1e30 otherwise)
    d_model = q_in.shape[-1]
    dh = d_model // NHEAD
    scale = 1.0 / math.sqrt(dh)

    q = jnp.dot(q_in.astype(jnp.bfloat16), w_q,
                preferred_element_type=jnp.float32) + b_q          # (N, D)
    kv = jnp.dot(kv_in.astype(jnp.bfloat16), w_kv,
                 preferred_element_type=jnp.float32) + b_kv        # (M, 2D)
    k = kv[:, :d_model]
    v = kv[:, d_model:]

    ctx_parts = []
    for h in range(NHEAD):                      # static loop, NHEAD = 8
        lo = h * dh
        qh = q[:, lo:lo + dh]
        kh = k[:, lo:lo + dh]
        vh = v[:, lo:lo + dh]
        # (N, dh) x (M, dh) -> (N, M), contracting on the last dims (no explicit .T)
        s = jax.lax.dot_general(
            qh, kh, (((1,), (1,)), ((), ())),
            preferred_element_type=jnp.float32) * scale + bias
        s = s - jnp.max(s, axis=-1, keepdims=True)
        p = jnp.exp(s)
        p = p / jnp.sum(p, axis=-1, keepdims=True)
        ctx_parts.append(jnp.dot(p, vh, preferred_element_type=jnp.float32))
    ctx = jnp.concatenate(ctx_parts, axis=-1)                      # (N, D)
    # Single output projection for all heads.
    return jnp.dot(ctx.astype(jnp.bfloat16), w_o,
                   preferred_element_type=jnp.float32) + b_o


def decoder_stack_kernel(
        x_ref, mem_ref, sbias_ref, cbias_ref,
        sa_wq, sa_bq, sa_wkv, sa_bkv, sa_wo, sa_bo,
        ca_wq, ca_bq, ca_wkv, ca_bkv, ca_wo, ca_bo,
        l1_w, l1_b, l2_w, l2_b,
        n1_w, n1_b, n2_w, n2_b, n3_w, n3_b,
        out_ref, x_sc):
    layer = pl.program_id(0)

    @pl.when(layer == 0)
    def _():
        x_sc[...] = x_ref[...]

    x = x_sc[...]          # (N, D) f32, resident in VMEM across layers
    mem = mem_ref[...]     # (M, D) f32

    # self-attention block + residual + norm1
    sa = _mha(x, x, sa_wq[0], sa_bq[0], sa_wkv[0], sa_bkv[0],
              sa_wo[0], sa_bo[0], sbias_ref[...])
    x = _layernorm(x + sa, n1_w[0], n1_b[0])

    # cross-attention block + residual + norm2
    ca = _mha(x, mem, ca_wq[0], ca_bq[0], ca_wkv[0], ca_bkv[0],
              ca_wo[0], ca_bo[0], cbias_ref[...])
    x = _layernorm(x + ca, n2_w[0], n2_b[0])

    # feed-forward block + residual + norm3
    h = jnp.dot(x.astype(jnp.bfloat16), l1_w[0],
                preferred_element_type=jnp.float32) + l1_b[0]
    h = jnp.maximum(h, 0.0)
    ff = jnp.dot(h.astype(jnp.bfloat16), l2_w[0],
                 preferred_element_type=jnp.float32) + l2_b[0]
    x = _layernorm(x + ff, n3_w[0], n3_b[0])

    x_sc[...] = x

    @pl.when(layer == pl.num_programs(0) - 1)
    def _():
        out_ref[...] = x


def self_decoder_forward(x_sbd, mem_sbd, packed_params):
    """x_sbd, mem_sbd: (S, B, D) like PyTorch (batch_first=False)."""
    S, B, D = x_sbd.shape
    Sm = mem_sbd.shape[0]
    N, M = S * B, Sm * B
    L = packed_params[0].shape[0]

    # (S, B, D) -> (S*B, D); row r belongs to batch (r % B). Free contiguous reshape.
    x2 = x_sbd.reshape(N, D).astype(jnp.float32)
    m2 = mem_sbd.reshape(M, D).astype(jnp.float32)

    # Additive block-diagonal masks so attention never crosses batch elements.
    rb = jnp.arange(N, dtype=jnp.int32) % B
    mb = jnp.arange(M, dtype=jnp.int32) % B
    sbias = jnp.where(rb[:, None] == rb[None, :], 0.0, NEG_INF).astype(jnp.float32)
    cbias = jnp.where(rb[:, None] == mb[None, :], 0.0, NEG_INF).astype(jnp.float32)

    def full2d(a):
        return pl.BlockSpec(a.shape, lambda l: (0, 0))

    def per_layer(a):
        return pl.BlockSpec((1,) + a.shape[1:], lambda l: (l, 0, 0))

    in_specs = [full2d(x2), full2d(m2), full2d(sbias), full2d(cbias)]
    in_specs += [per_layer(p) for p in packed_params]

    out2 = pl.pallas_call(
        decoder_stack_kernel,
        out_shape=jax.ShapeDtypeStruct((N, D), jnp.float32),
        grid=(L,),
        in_specs=in_specs,
        out_specs=pl.BlockSpec((N, D), lambda l: (0, 0)),
        scratch_shapes=[pltpu.VMEM((N, D), jnp.float32)],
        compiler_params=pltpu.CompilerParams(
            dimension_semantics=("arbitrary",)),
    )(x2, m2, sbias, cbias, *packed_params)

    return out2.reshape(S, B, D)


# ----------------------------------------------------------------------------
# Parameter construction (PyTorch layout) and host-side packing for the kernel.
# ----------------------------------------------------------------------------

def init_layer_params(key, d_model, d_ff):
    """PyTorch-layout parameters for one nn.TransformerDecoderLayer."""
    ks = jax.random.split(key, 6)
    s = 0.02
    f32 = jnp.float32
    return dict(
        sa_in_w=jax.random.normal(ks[0], (3 * d_model, d_model), f32) * s,
        sa_in_b=jnp.zeros((3 * d_model,), f32),
        sa_out_w=jax.random.normal(ks[1], (d_model, d_model), f32) * s,
        sa_out_b=jnp.zeros((d_model,), f32),
        ca_in_w=jax.random.normal(ks[2], (3 * d_model, d_model), f32) * s,
        ca_in_b=jnp.zeros((3 * d_model,), f32),
        ca_out_w=jax.random.normal(ks[3], (d_model, d_model), f32) * s,
        ca_out_b=jnp.zeros((d_model,), f32),
        l1_w=jax.random.normal(ks[4], (d_ff, d_model), f32) * s,
        l1_b=jnp.zeros((d_ff,), f32),
        l2_w=jax.random.normal(ks[5], (d_model, d_ff), f32) * s,
        l2_b=jnp.zeros((d_model,), f32),
        n1_w=jnp.ones((d_model,), f32), n1_b=jnp.zeros((d_model,), f32),
        n2_w=jnp.ones((d_model,), f32), n2_b=jnp.zeros((d_model,), f32),
        n3_w=jnp.ones((d_model,), f32), n3_b=jnp.zeros((d_model,), f32),
    )


def _pack_layer(p, d_model):
    """Pre-transpose / split / cast one layer's params into kernel layout."""
    bf16, f32 = jnp.bfloat16, jnp.float32
    D = d_model

    def attn(in_w, in_b, out_w, out_b):
        w_q = in_w[:D, :].T.astype(bf16)               # (D, D)
        w_kv = in_w[D:, :].T.astype(bf16)              # (D, 2D)  [K | V]
        b_q = in_b[:D].reshape(1, D).astype(f32)
        b_kv = in_b[D:].reshape(1, 2 * D).astype(f32)
        w_o = out_w.T.astype(bf16)                     # (D, D)
        b_o = out_b.reshape(1, D).astype(f32)
        return (w_q, b_q, w_kv, b_kv, w_o, b_o)

    sa = attn(p['sa_in_w'], p['sa_in_b'], p['sa_out_w'], p['sa_out_b'])
    ca = attn(p['ca_in_w'], p['ca_in_b'], p['ca_out_w'], p['ca_out_b'])
    ffn = (p['l1_w'].T.astype(bf16), p['l1_b'].reshape(1, -1).astype(f32),
           p['l2_w'].T.astype(bf16), p['l2_b'].reshape(1, -1).astype(f32))
    norms = (p['n1_w'].reshape(1, -1), p['n1_b'].reshape(1, -1),
             p['n2_w'].reshape(1, -1), p['n2_b'].reshape(1, -1),
             p['n3_w'].reshape(1, -1), p['n3_b'].reshape(1, -1))
    return sa + ca + ffn + norms        # tuple of 22 arrays


def pack_layers(layers, d_model):
    """Stack per-layer packed params on a leading layer axis."""
    per_layer = [_pack_layer(p, d_model) for p in layers]
    n = len(per_layer[0])
    return tuple(jnp.stack([per_layer[i][j] for i in range(len(per_layer))], axis=0)
                 for j in range(n))


if __name__ == "__main__":
    hidden_size = 32        # must be divisible by nhead=8
    num_layers = 2
    dim_feedforward = 2048  # PyTorch TransformerDecoderLayer default
    S_tgt, S_mem, B = 8, 8, 2

    key = jax.random.PRNGKey(0)
    k_x, k_m, k_p = jax.random.split(key, 3)
    x = jax.random.normal(k_x, (S_tgt, B, hidden_size), jnp.float32)
    memory = jax.random.normal(k_m, (S_mem, B, hidden_size), jnp.float32)

    layer_keys = jax.random.split(k_p, num_layers)
    layers = [init_layer_params(layer_keys[i], hidden_size, dim_feedforward)
              for i in range(num_layers)]
    packed = pack_layers(layers, hidden_size)

    out = self_decoder_forward(x, memory, packed)
    out = jax.block_until_ready(out)

    assert out.shape == (S_tgt, B, hidden_size)
    assert bool(jnp.all(jnp.isfinite(out)))
    print("KERNEL_OK")
</pallas_src>

<mosaic_0001>
module attributes {stable_mosaic.version = 11 : i64} {
  func.func @decoder_stack_kernel(%arg0: i32, %arg1: memref<16x32xf32, #tpu.memory_space<vmem>>, %arg2: memref<16x32xf32, #tpu.memory_space<vmem>>, %arg3: memref<16x16xf32, #tpu.memory_space<vmem>>, %arg4: memref<16x16xf32, #tpu.memory_space<vmem>>, %arg5: memref<1x32x32xbf16, #tpu.memory_space<vmem>>, %arg6: memref<1x1x32xf32, #tpu.memory_space<vmem>>, %arg7: memref<1x32x64xbf16, #tpu.memory_space<vmem>>, %arg8: memref<1x1x64xf32, #tpu.memory_space<vmem>>, %arg9: memref<1x32x32xbf16, #tpu.memory_space<vmem>>, %arg10: memref<1x1x32xf32, #tpu.memory_space<vmem>>, %arg11: memref<1x32x32xbf16, #tpu.memory_space<vmem>>, %arg12: memref<1x1x32xf32, #tpu.memory_space<vmem>>, %arg13: memref<1x32x64xbf16, #tpu.memory_space<vmem>>, %arg14: memref<1x1x64xf32, #tpu.memory_space<vmem>>, %arg15: memref<1x32x32xbf16, #tpu.memory_space<vmem>>, %arg16: memref<1x1x32xf32, #tpu.memory_space<vmem>>, %arg17: memref<1x32x2048xbf16, #tpu.memory_space<vmem>>, %arg18: memref<1x1x2048xf32, #tpu.memory_space<vmem>>, %arg19: memref<1x2048x32xbf16, #tpu.memory_space<vmem>>, %arg20: memref<1x1x32xf32, #tpu.memory_space<vmem>>, %arg21: memref<1x1x32xf32, #tpu.memory_space<vmem>>, %arg22: memref<1x1x32xf32, #tpu.memory_space<vmem>>, %arg23: memref<1x1x32xf32, #tpu.memory_space<vmem>>, %arg24: memref<1x1x32xf32, #tpu.memory_space<vmem>>, %arg25: memref<1x1x32xf32, #tpu.memory_space<vmem>>, %arg26: memref<1x1x32xf32, #tpu.memory_space<vmem>>, %arg27: memref<16x32xf32, #tpu.memory_space<vmem>>, %arg28: memref<16x32xf32, #tpu.memory_space<vmem>>) attributes {dimension_semantics = [#tpu.dimension_semantics<arbitrary>], iteration_bounds = array<i64: 2>, scalar_prefetch = 0 : i64, scratch_operands = 1 : i64, tpu.core_type = #tpu.core_type<tc>, window_params = [{pipeline_mode = #tpu.pipeline_mode<synchronous>, transform_indices = @transform_0, window_bounds = array<i64: 16, 32>}, {pipeline_mode = #tpu.pipeline_mode<synchronous>, transform_indices = @transform_1, window_bounds = array<i64: 16, 32>}, {pipeline_mode = #tpu.pipeline_mode<synchronous>, transform_indices = @transform_2, window_bounds = array<i64: 16, 16>}, {pipeline_mode = #tpu.pipeline_mode<synchronous>, transform_indices = @transform_3, window_bounds = array<i64: 16, 16>}, {transform_indices = @transform_4, window_bounds = array<i64: 1, 32, 32>}, {transform_indices = @transform_5, window_bounds = array<i64: 1, 1, 32>}, {transform_indices = @transform_6, window_bounds = array<i64: 1, 32, 64>}, {transform_indices = @transform_7, window_bounds = array<i64: 1, 1, 64>}, {transform_indices = @transform_8, window_bounds = array<i64: 1, 32, 32>}, {transform_indices = @transform_9, window_bounds = array<i64: 1, 1, 32>}, {transform_indices = @transform_10, window_bounds = array<i64: 1, 32, 32>}, {transform_indices = @transform_11, window_bounds = array<i64: 1, 1, 32>}, {transform_indices = @transform_12, window_bounds = array<i64: 1, 32, 64>}, {transform_indices = @transform_13, window_bounds = array<i64: 1, 1, 64>}, {transform_indices = @transform_14, window_bounds = array<i64: 1, 32, 32>}, {transform_indices = @transform_15, window_bounds = array<i64: 1, 1, 32>}, {transform_indices = @transform_16, window_bounds = array<i64: 1, 32, 2048>}, {transform_indices = @transform_17, window_bounds = array<i64: 1, 1, 2048>}, {transform_indices = @transform_18, window_bounds = array<i64: 1, 2048, 32>}, {transform_indices = @transform_19, window_bounds = array<i64: 1, 1, 32>}, {transform_indices = @transform_20, window_bounds = array<i64: 1, 1, 32>}, {transform_indices = @transform_21, window_bounds = array<i64: 1, 1, 32>}, {transform_indices = @transform_22, window_bounds = array<i64: 1, 1, 32>}, {transform_indices = @transform_23, window_bounds = array<i64: 1, 1, 32>}, {transform_indices = @transform_24, window_bounds = array<i64: 1, 1, 32>}, {transform_indices = @transform_25, window_bounds = array<i64: 1, 1, 32>}, {pipeline_mode = #tpu.pipeline_mode<synchronous>, transform_indices = @transform_26, window_bounds = array<i64: 16, 32>}]} {
    %c0_i32 = arith.constant 0 : i32
    %0 = arith.cmpi eq, %arg0, %c0_i32 : i32
    %1 = arith.extui %0 : i1 to i32
    %c0_i32_0 = arith.constant 0 : i32
    %2 = arith.cmpi ne, %1, %c0_i32_0 : i32
    scf.if %2 {
      %c0_180 = arith.constant 0 : index
      %c0_181 = arith.constant 0 : index
      %436 = vector.load %arg1[%c0_180, %c0_181] : memref<16x32xf32, #tpu.memory_space<vmem>>, vector<16x32xf32>
      %c0_182 = arith.constant 0 : index
      %c0_183 = arith.constant 0 : index
      %437 = vector.load %arg28[%c0_182, %c0_183] : memref<16x32xf32, #tpu.memory_space<vmem>>, vector<16x32xf32>
      tpu.vector_store %arg28[%c0_182, %c0_183], %436 {strides = array<i32>} : memref<16x32xf32, #tpu.memory_space<vmem>>, vector<16x32xf32>,
    } else {
    }
    %c0 = arith.constant 0 : index
    %c0_1 = arith.constant 0 : index
    %3 = vector.load %arg28[%c0, %c0_1] : memref<16x32xf32, #tpu.memory_space<vmem>>, vector<16x32xf32>
    %c0_2 = arith.constant 0 : index
    %c0_3 = arith.constant 0 : index
    %4 = vector.load %arg2[%c0_2, %c0_3] : memref<16x32xf32, #tpu.memory_space<vmem>>, vector<16x32xf32>
    %c0_4 = arith.constant 0 : index
    %c0_5 = arith.constant 0 : index
    %c0_6 = arith.constant 0 : index
    %5 = vector.load %arg5[%c0_4, %c0_5, %c0_6] : memref<1x32x32xbf16, #tpu.memory_space<vmem>>, vector<1x32x32xbf16>
    %6 = vector.shape_cast %5 : vector<1x32x32xbf16> to vector<32x32xbf16>
    %c0_7 = arith.constant 0 : index
    %c0_8 = arith.constant 0 : index
    %c0_9 = arith.constant 0 : index
    %7 = vector.load %arg6[%c0_7, %c0_8, %c0_9] : memref<1x1x32xf32, #tpu.memory_space<vmem>>, vector<1x1x32xf32>
    %8 = vector.shape_cast %7 : vector<1x1x32xf32> to vector<1x32xf32>
    %c0_10 = arith.constant 0 : index
    %c0_11 = arith.constant 0 : index
    %c0_12 = arith.constant 0 : index
    %9 = vector.load %arg7[%c0_10, %c0_11, %c0_12] : memref<1x32x64xbf16, #tpu.memory_space<vmem>>, vector<1x32x64xbf16>
    %10 = vector.shape_cast %9 : vector<1x32x64xbf16> to vector<32x64xbf16>
    %c0_13 = arith.constant 0 : index
    %c0_14 = arith.constant 0 : index
    %c0_15 = arith.constant 0 : index
    %11 = vector.load %arg8[%c0_13, %c0_14, %c0_15] : memref<1x1x64xf32, #tpu.memory_space<vmem>>, vector<1x1x64xf32>
    %12 = vector.shape_cast %11 : vector<1x1x64xf32> to vector<1x64xf32>
    %c0_16 = arith.constant 0 : index
    %c0_17 = arith.constant 0 : index
    %c0_18 = arith.constant 0 : index
    %13 = vector.load %arg9[%c0_16, %c0_17, %c0_18] : memref<1x32x32xbf16, #tpu.memory_space<vmem>>, vector<1x32x32xbf16>
    %14 = vector.shape_cast %13 : vector<1x32x32xbf16> to vector<32x32xbf16>
    %c0_19 = arith.constant 0 : index
    %c0_20 = arith.constant 0 : index
    %c0_21 = arith.constant 0 : index
    %15 = vector.load %arg10[%c0_19, %c0_20, %c0_21] : memref<1x1x32xf32, #tpu.memory_space<vmem>>, vector<1x1x32xf32>
    %16 = vector.shape_cast %15 : vector<1x1x32xf32> to vector<1x32xf32>
    %c0_22 = arith.constant 0 : index
    %c0_23 = arith.constant 0 : index
    %17 = vector.load %arg3[%c0_22, %c0_23] : memref<16x16xf32, #tpu.memory_space<vmem>>, vector<16x16xf32>
    %18 = arith.truncf %3 : vector<16x32xf32> to vector<16x32xbf16>
    %cst = arith.constant dense<0.000000e+00> : vector<16x32xf32>
    %19 = tpu.matmul %18, %6, %cst {dimension_numbers = #tpu.dot_dimension_numbers<[1], [0], [0], [1], [0, 0, 1, 1], [], []>} : vector<16x32xbf16>, vector<32x32xbf16>, vector<16x32xf32> -> vector<16x32xf32>
    %20 = vector.broadcast %8 : vector<1x32xf32> to vector<16x32xf32>
    %21 = arith.addf %19, %20 : vector<16x32xf32>
    %22 = arith.truncf %3 : vector<16x32xf32> to vector<16x32xbf16>
    %cst_24 = arith.constant dense<0.000000e+00> : vector<16x64xf32>
    %23 = tpu.matmul %22, %10, %cst_24 {dimension_numbers = #tpu.dot_dimension_numbers<[1], [0], [0], [1], [0, 0, 1, 1], [], []>} : vector<16x32xbf16>, vector<32x64xbf16>, vector<16x64xf32> -> vector<16x64xf32>
    %24 = vector.broadcast %12 : vector<1x64xf32> to vector<16x64xf32>
    %25 = arith.addf %23, %24 : vector<16x64xf32>
    %26 = vector.extract_strided_slice %25 {offsets = [0, 0], sizes = [16, 32], strides = [1, 1]} : vector<16x64xf32> to vector<16x32xf32>
    %27 = vector.extract_strided_slice %25 {offsets = [0, 32], sizes = [16, 32], strides = [1, 1]} : vector<16x64xf32> to vector<16x32xf32>
    %28 = vector.extract_strided_slice %21 {offsets = [0, 0], sizes = [16, 4], strides = [1, 1]} : vector<16x32xf32> to vector<16x4xf32>
    %29 = vector.extract_strided_slice %26 {offsets = [0, 0], sizes = [16, 4], strides = [1, 1]} : vector<16x32xf32> to vector<16x4xf32>
    %30 = vector.extract_strided_slice %27 {offsets = [0, 0], sizes = [16, 4], strides = [1, 1]} : vector<16x32xf32> to vector<16x4xf32>
    %cst_25 = arith.constant dense<0.000000e+00> : vector<16x16xf32>
    %31 = tpu.matmul %28, %29, %cst_25 {dimension_numbers = #tpu.dot_dimension_numbers<[1], [1], [0], [0], [0, 0, 1, 0], [], []>} : vector<16x4xf32>, vector<16x4xf32>, vector<16x16xf32> -> vector<16x16xf32>
    %cst_26 = arith.constant 5.000000e-01 : f32
    %32 = vector.broadcast %cst_26 : f32 to vector<16x16xf32>
    %33 = arith.mulf %31, %32 : vector<16x16xf32>
    %34 = arith.addf %33, %17 : vector<16x16xf32>
    %cst_27 = arith.constant dense<0xFF800000> : vector<16xf32>
    %35 = vector.multi_reduction <maximumf>, %34, %cst_27 [1] : vector<16x16xf32> to vector<16xf32>
    %36 = vector.shape_cast %35 : vector<16xf32> to vector<16x1xf32>
    %37 = vector.broadcast %36 : vector<16x1xf32> to vector<16x16xf32>
    %38 = arith.subf %34, %37 : vector<16x16xf32>
    %39 = math.exp %38 : vector<16x16xf32>
    %cst_28 = arith.constant dense<0.000000e+00> : vector<16xf32>
    %40 = vector.multi_reduction <add>, %39, %cst_28 [1] : vector<16x16xf32> to vector<16xf32>
    %41 = vector.shape_cast %40 : vector<16xf32> to vector<16x1xf32>
    %42 = vector.broadcast %41 : vector<16x1xf32> to vector<16x16xf32>
    %43 = arith.divf %39, %42 : vector<16x16xf32>
    %cst_29 = arith.constant dense<0.000000e+00> : vector<16x4xf32>
    %44 = tpu.matmul %43, %30, %cst_29 {dimension_numbers = #tpu.dot_dimension_numbers<[1], [0], [0], [1], [0, 0, 1, 1], [], []>} : vector<16x16xf32>, vector<16x4xf32>, vector<16x4xf32> -> vector<16x4xf32>
    %45 = vector.extract_strided_slice %21 {offsets = [0, 4], sizes = [16, 4], strides = [1, 1]} : vector<16x32xf32> to vector<16x4xf32>
    %46 = vector.extract_strided_slice %26 {offsets = [0, 4], sizes = [16, 4], strides = [1, 1]} : vector<16x32xf32> to vector<16x4xf32>
    %47 = vector.extract_strided_slice %27 {offsets = [0, 4], sizes = [16, 4], strides = [1, 1]} : vector<16x32xf32> to vector<16x4xf32>
    %cst_30 = arith.constant dense<0.000000e+00> : vector<16x16xf32>
    %48 = tpu.matmul %45, %46, %cst_30 {dimension_numbers = #tpu.dot_dimension_numbers<[1], [1], [0], [0], [0, 0, 1, 0], [], []>} : vector<16x4xf32>, vector<16x4xf32>, vector<16x16xf32> -> vector<16x16xf32>
    %cst_31 = arith.constant 5.000000e-01 : f32
    %49 = vector.broadcast %cst_31 : f32 to vector<16x16xf32>
    %50 = arith.mulf %48, %49 : vector<16x16xf32>
    %51 = arith.addf %50, %17 : vector<16x16xf32>
    %cst_32 = arith.constant dense<0xFF800000> : vector<16xf32>
    %52 = vector.multi_reduction <maximumf>, %51, %cst_32 [1] : vector<16x16xf32> to vector<16xf32>
    %53 = vector.shape_cast %52 : vector<16xf32> to vector<16x1xf32>
    %54 = vector.broadcast %53 : vector<16x1xf32> to vector<16x16xf32>
    %55 = arith.subf %51, %54 : vector<16x16xf32>
    %56 = math.exp %55 : vector<16x16xf32>
    %cst_33 = arith.constant dense<0.000000e+00> : vector<16xf32>
    %57 = vector.multi_reduction <add>, %56, %cst_33 [1] : vector<16x16xf32> to vector<16xf32>
    %58 = vector.shape_cast %57 : vector<16xf32> to vector<16x1xf32>
    %59 = vector.broadcast %58 : vector<16x1xf32> to vector<16x16xf32>
    %60 = arith.divf %56, %59 : vector<16x16xf32>
    %cst_34 = arith.constant dense<0.000000e+00> : vector<16x4xf32>
    %61 = tpu.matmul %60, %47, %cst_34 {dimension_numbers = #tpu.dot_dimension_numbers<[1], [0], [0], [1], [0, 0, 1, 1], [], []>} : vector<16x16xf32>, vector<16x4xf32>, vector<16x4xf32> -> vector<16x4xf32>
    %62 = vector.extract_strided_slice %21 {offsets = [0, 8], sizes = [16, 4], strides = [1, 1]} : vector<16x32xf32> to vector<16x4xf32>
    %63 = vector.extract_strided_slice %26 {offsets = [0, 8], sizes = [16, 4], strides = [1, 1]} : vector<16x32xf32> to vector<16x4xf32>
    %64 = vector.extract_strided_slice %27 {offsets = [0, 8], sizes = [16, 4], strides = [1, 1]} : vector<16x32xf32> to vector<16x4xf32>
    %cst_35 = arith.constant dense<0.000000e+00> : vector<16x16xf32>
    %65 = tpu.matmul %62, %63, %cst_35 {dimension_numbers = #tpu.dot_dimension_numbers<[1], [1], [0], [0], [0, 0, 1, 0], [], []>} : vector<16x4xf32>, vector<16x4xf32>, vector<16x16xf32> -> vector<16x16xf32>
    %cst_36 = arith.constant 5.000000e-01 : f32
    %66 = vector.broadcast %cst_36 : f32 to vector<16x16xf32>
    %67 = arith.mulf %65, %66 : vector<16x16xf32>
    %68 = arith.addf %67, %17 : vector<16x16xf32>
    %cst_37 = arith.constant dense<0xFF800000> : vector<16xf32>
    %69 = vector.multi_reduction <maximumf>, %68, %cst_37 [1] : vector<16x16xf32> to vector<16xf32>
    %70 = vector.shape_cast %69 : vector<16xf32> to vector<16x1xf32>
    %71 = vector.broadcast %70 : vector<16x1xf32> to vector<16x16xf32>
    %72 = arith.subf %68, %71 : vector<16x16xf32>
    %73 = math.exp %72 : vector<16x16xf32>
    %cst_38 = arith.constant dense<0.000000e+00> : vector<16xf32>
    %74 = vector.multi_reduction <add>, %73, %cst_38 [1] : vector<16x16xf32> to vector<16xf32>
    %75 = vector.shape_cast %74 : vector<16xf32> to vector<16x1xf32>
    %76 = vector.broadcast %75 : vector<16x1xf32> to vector<16x16xf32>
    %77 = arith.divf %73, %76 : vector<16x16xf32>
    %cst_39 = arith.constant dense<0.000000e+00> : vector<16x4xf32>
    %78 = tpu.matmul %77, %64, %cst_39 {dimension_numbers = #tpu.dot_dimension_numbers<[1], [0], [0], [1], [0, 0, 1, 1], [], []>} : vector<16x16xf32>, vector<16x4xf32>, vector<16x4xf32> -> vector<16x4xf32>
    %79 = vector.extract_strided_slice %21 {offsets = [0, 12], sizes = [16, 4], strides = [1, 1]} : vector<16x32xf32> to vector<16x4xf32>
    %80 = vector.extract_strided_slice %26 {offsets = [0, 12], sizes = [16, 4], strides = [1, 1]} : vector<16x32xf32> to vector<16x4xf32>
    %81 = vector.extract_strided_slice %27 {offsets = [0, 12], sizes = [16, 4], strides = [1, 1]} : vector<16x32xf32> to vector<16x4xf32>
    %cst_40 = arith.constant dense<0.000000e+00> : vector<16x16xf32>
    %82 = tpu.matmul %79, %80, %cst_40 {dimension_numbers = #tpu.dot_dimension_numbers<[1], [1], [0], [0], [0, 0, 1, 0], [], []>} : vector<16x4xf32>, vector<16x4xf32>, vector<16x16xf32> -> vector<16x16xf32>
    %cst_41 = arith.constant 5.000000e-01 : f32
    %83 = vector.broadcast %cst_41 : f32 to vector<16x16xf32>
    %84 = arith.mulf %82, %83 : vector<16x16xf32>
    %85 = arith.addf %84, %17 : vector<16x16xf32>
    %cst_42 = arith.constant dense<0xFF800000> : vector<16xf32>
    %86 = vector.multi_reduction <maximumf>, %85, %cst_42 [1] : vector<16x16xf32> to vector<16xf32>
    %87 = vector.shape_cast %86 : vector<16xf32> to vector<16x1xf32>
    %88 = vector.broadcast %87 : vector<16x1xf32> to vector<16x16xf32>
    %89 = arith.subf %85, %88 : vector<16x16xf32>
    %90 = math.exp %89 : vector<16x16xf32>
    %cst_43 = arith.constant dense<0.000000e+00> : vector<16xf32>
    %91 = vector.multi_reduction <add>, %90, %cst_43 [1] : vector<16x16xf32> to vector<16xf32>
    %92 = vector.shape_cast %91 : vector<16xf32> to vector<16x1xf32>
    %93 = vector.broadcast %92 : vector<16x1xf32> to vector<16x16xf32>
    %94 = arith.divf %90, %93 : vector<16x16xf32>
    %cst_44 = arith.constant dense<0.000000e+00> : vector<16x4xf32>
    %95 = tpu.matmul %94, %81, %cst_44 {dimension_numbers = #tpu.dot_dimension_numbers<[1], [0], [0], [1], [0, 0, 1, 1], [], []>} : vector<16x16xf32>, vector<16x4xf32>, vector<16x4xf32> -> vector<16x4xf32>
    %96 = vector.extract_strided_slice %21 {offsets = [0, 16], sizes = [16, 4], strides = [1, 1]} : vector<16x32xf32> to vector<16x4xf32>
    %97 = vector.extract_strided_slice %26 {offsets = [0, 16], sizes = [16, 4], strides = [1, 1]} : vector<16x32xf32> to vector<16x4xf32>
    %98 = vector.extract_strided_slice %27 {offsets = [0, 16], sizes = [16, 4], strides = [1, 1]} : vector<16x32xf32> to vector<16x4xf32>
    %cst_45 = arith.constant dense<0.000000e+00> : vector<16x16xf32>
    %99 = tpu.matmul %96, %97, %cst_45 {dimension_numbers = #tpu.dot_dimension_numbers<[1], [1], [0], [0], [0, 0, 1, 0], [], []>} : vector<16x4xf32>, vector<16x4xf32>, vector<16x16xf32> -> vector<16x16xf32>
    %cst_46 = arith.constant 5.000000e-01 : f32
    %100 = vector.broadcast %cst_46 : f32 to vector<16x16xf32>
    %101 = arith.mulf %99, %100 : vector<16x16xf32>
    %102 = arith.addf %101, %17 : vector<16x16xf32>
    %cst_47 = arith.constant dense<0xFF800000> : vector<16xf32>
    %103 = vector.multi_reduction <maximumf>, %102, %cst_47 [1] : vector<16x16xf32> to vector<16xf32>
    %104 = vector.shape_cast %103 : vector<16xf32> to vector<16x1xf32>
    %105 = vector.broadcast %104 : vector<16x1xf32> to vector<16x16xf32>
    %106 = arith.subf %102, %105 : vector<16x16xf32>
    %107 = math.exp %106 : vector<16x16xf32>
    %cst_48 = arith.constant dense<0.000000e+00> : vector<16xf32>
    %108 = vector.multi_reduction <add>, %107, %cst_48 [1] : vector<16x16xf32> to vector<16xf32>
    %109 = vector.shape_cast %108 : vector<16xf32> to vector<16x1xf32>
    %110 = vector.broadcast %109 : vector<16x1xf32> to vector<16x16xf32>
    %111 = arith.divf %107, %110 : vector<16x16xf32>
    %cst_49 = arith.constant dense<0.000000e+00> : vector<16x4xf32>
    %112 = tpu.matmul %111, %98, %cst_49 {dimension_numbers = #tpu.dot_dimension_numbers<[1], [0], [0], [1], [0, 0, 1, 1], [], []>} : vector<16x16xf32>, vector<16x4xf32>, vector<16x4xf32> -> vector<16x4xf32>
    %113 = vector.extract_strided_slice %21 {offsets = [0, 20], sizes = [16, 4], strides = [1, 1]} : vector<16x32xf32> to vector<16x4xf32>
    %114 = vector.extract_strided_slice %26 {offsets = [0, 20], sizes = [16, 4], strides = [1, 1]} : vector<16x32xf32> to vector<16x4xf32>
    %115 = vector.extract_strided_slice %27 {offsets = [0, 20], sizes = [16, 4], strides = [1, 1]} : vector<16x32xf32> to vector<16x4xf32>
    %cst_50 = arith.constant dense<0.000000e+00> : vector<16x16xf32>
    %116 = tpu.matmul %113, %114, %cst_50 {dimension_numbers = #tpu.dot_dimension_numbers<[1], [1], [0], [0], [0, 0, 1, 0], [], []>} : vector<16x4xf32>, vector<16x4xf32>, vector<16x16xf32> -> vector<16x16xf32>
    %cst_51 = arith.constant 5.000000e-01 : f32
    %117 = vector.broadcast %cst_51 : f32 to vector<16x16xf32>
    %118 = arith.mulf %116, %117 : vector<16x16xf32>
    %119 = arith.addf %118, %17 : vector<16x16xf32>
    %cst_52 = arith.constant dense<0xFF800000> : vector<16xf32>
    %120 = vector.multi_reduction <maximumf>, %119, %cst_52 [1] : vector<16x16xf32> to vector<16xf32>
    %121 = vector.shape_cast %120 : vector<16xf32> to vector<16x1xf32>
    %122 = vector.broadcast %121 : vector<16x1xf32> to vector<16x16xf32>
    %123 = arith.subf %119, %122 : vector<16x16xf32>
    %124 = math.exp %123 : vector<16x16xf32>
    %cst_53 = arith.constant dense<0.000000e+00> : vector<16xf32>
    %125 = vector.multi_reduction <add>, %124, %cst_53 [1] : vector<16x16xf32> to vector<16xf32>
    %126 = vector.shape_cast %125 : vector<16xf32> to vector<16x1xf32>
    %127 = vector.broadcast %126 : vector<16x1xf32> to vector<16x16xf32>
    %128 = arith.divf %124, %127 : vector<16x16xf32>
    %cst_54 = arith.constant dense<0.000000e+00> : vector<16x4xf32>
    %129 = tpu.matmul %128, %115, %cst_54 {dimension_numbers = #tpu.dot_dimension_numbers<[1], [0], [0], [1], [0, 0, 1, 1], [], []>} : vector<16x16xf32>, vector<16x4xf32>, vector<16x4xf32> -> vector<16x4xf32>
    %130 = vector.extract_strided_slice %21 {offsets = [0, 24], sizes = [16, 4], strides = [1, 1]} : vector<16x32xf32> to vector<16x4xf32>
    %131 = vector.extract_strided_slice %26 {offsets = [0, 24], sizes = [16, 4], strides = [1, 1]} : vector<16x32xf32> to vector<16x4xf32>
    %132 = vector.extract_strided_slice %27 {offsets = [0, 24], sizes = [16, 4], strides = [1, 1]} : vector<16x32xf32> to vector<16x4xf32>
    %cst_55 = arith.constant dense<0.000000e+00> : vector<16x16xf32>
    %133 = tpu.matmul %130, %131, %cst_55 {dimension_numbers = #tpu.dot_dimension_numbers<[1], [1], [0], [0], [0, 0, 1, 0], [], []>} : vector<16x4xf32>, vector<16x4xf32>, vector<16x16xf32> -> vector<16x16xf32>
    %cst_56 = arith.constant 5.000000e-01 : f32
    %134 = vector.broadcast %cst_56 : f32 to vector<16x16xf32>
    %135 = arith.mulf %133, %134 : vector<16x16xf32>
    %136 = arith.addf %135, %17 : vector<16x16xf32>
    %cst_57 = arith.constant dense<0xFF800000> : vector<16xf32>
    %137 = vector.multi_reduction <maximumf>, %136, %cst_57 [1] : vector<16x16xf32> to vector<16xf32>
    %138 = vector.shape_cast %137 : vector<16xf32> to vector<16x1xf32>
    %139 = vector.broadcast %138 : vector<16x1xf32> to vector<16x16xf32>
    %140 = arith.subf %136, %139 : vector<16x16xf32>
    %141 = math.exp %140 : vector<16x16xf32>
    %cst_58 = arith.constant dense<0.000000e+00> : vector<16xf32>
    %142 = vector.multi_reduction <add>, %141, %cst_58 [1] : vector<16x16xf32> to vector<16xf32>
    %143 = vector.shape_cast %142 : vector<16xf32> to vector<16x1xf32>
    %144 = vector.broadcast %143 : vector<16x1xf32> to vector<16x16xf32>
    %145 = arith.divf %141, %144 : vector<16x16xf32>
    %cst_59 = arith.constant dense<0.000000e+00> : vector<16x4xf32>
    %146 = tpu.matmul %145, %132, %cst_59 {dimension_numbers = #tpu.dot_dimension_numbers<[1], [0], [0], [1], [0, 0, 1, 1], [], []>} : vector<16x16xf32>, vector<16x4xf32>, vector<16x4xf32> -> vector<16x4xf32>
    %147 = vector.extract_strided_slice %21 {offsets = [0, 28], sizes = [16, 4], strides = [1, 1]} : vector<16x32xf32> to vector<16x4xf32>
    %148 = vector.extract_strided_slice %26 {offsets = [0, 28], sizes = [16, 4], strides = [1, 1]} : vector<16x32xf32> to vector<16x4xf32>
    %149 = vector.extract_strided_slice %27 {offsets = [0, 28], sizes = [16, 4], strides = [1, 1]} : vector<16x32xf32> to vector<16x4xf32>
    %cst_60 = arith.constant dense<0.000000e+00> : vector<16x16xf32>
    %150 = tpu.matmul %147, %148, %cst_60 {dimension_numbers = #tpu.dot_dimension_numbers<[1], [1], [0], [0], [0, 0, 1, 0], [], []>} : vector<16x4xf32>, vector<16x4xf32>, vector<16x16xf32> -> vector<16x16xf32>
    %cst_61 = arith.constant 5.000000e-01 : f32
    %151 = vector.broadcast %cst_61 : f32 to vector<16x16xf32>
    %152 = arith.mulf %150, %151 : vector<16x16xf32>
    %153 = arith.addf %152, %17 : vector<16x16xf32>
    %cst_62 = arith.constant dense<0xFF800000> : vector<16xf32>
    %154 = vector.multi_reduction <maximumf>, %153, %cst_62 [1] : vector<16x16xf32> to vector<16xf32>
    %155 = vector.shape_cast %154 : vector<16xf32> to vector<16x1xf32>
    %156 = vector.broadcast %155 : vector<16x1xf32> to vector<16x16xf32>
    %157 = arith.subf %153, %156 : vector<16x16xf32>
    %158 = math.exp %157 : vector<16x16xf32>
    %cst_63 = arith.constant dense<0.000000e+00> : vector<16xf32>
    %159 = vector.multi_reduction <add>, %158, %cst_63 [1] : vector<16x16xf32> to vector<16xf32>
    %160 = vector.shape_cast %159 : vector<16xf32> to vector<16x1xf32>
    %161 = vector.broadcast %160 : vector<16x1xf32> to vector<16x16xf32>
    %162 = arith.divf %158, %161 : vector<16x16xf32>
    %cst_64 = arith.constant dense<0.000000e+00> : vector<16x4xf32>
    %163 = tpu.matmul %162, %149, %cst_64 {dimension_numbers = #tpu.dot_dimension_numbers<[1], [0], [0], [1], [0, 0, 1, 1], [], []>} : vector<16x16xf32>, vector<16x4xf32>, vector<16x4xf32> -> vector<16x4xf32>
    %164 = tpu.concatenate %44, %61, %78, %95, %112, %129, %146, %163 in 1 : vector<16x4xf32>, vector<16x4xf32>, vector<16x4xf32>, vector<16x4xf32>, vector<16x4xf32>, vector<16x4xf32>, vector<16x4xf32>, vector<16x4xf32> -> vector<16x32xf32>
    %165 = arith.truncf %164 : vector<16x32xf32> to vector<16x32xbf16>
    %cst_65 = arith.constant dense<0.000000e+00> : vector<16x32xf32>
    %166 = tpu.matmul %165, %14, %cst_65 {dimension_numbers = #tpu.dot_dimension_numbers<[1], [0], [0], [1], [0, 0, 1, 1], [], []>} : vector<16x32xbf16>, vector<32x32xbf16>, vector<16x32xf32> -> vector<16x32xf32>
    %167 = vector.broadcast %16 : vector<1x32xf32> to vector<16x32xf32>
    %168 = arith.addf %166, %167 : vector<16x32xf32>
    %169 = arith.addf %3, %168 : vector<16x32xf32>
    %c0_66 = arith.constant 0 : index
    %c0_67 = arith.constant 0 : index
    %c0_68 = arith.constant 0 : index
    %170 = vector.load %arg21[%c0_66, %c0_67, %c0_68] : memref<1x1x32xf32, #tpu.memory_space<vmem>>, vector<1x1x32xf32>
    %171 = vector.shape_cast %170 : vector<1x1x32xf32> to vector<1x32xf32>
    %c0_69 = arith.constant 0 : index
    %c0_70 = arith.constant 0 : index
    %c0_71 = arith.constant 0 : index
    %172 = vector.load %arg22[%c0_69, %c0_70, %c0_71] : memref<1x1x32xf32, #tpu.memory_space<vmem>>, vector<1x1x32xf32>
    %173 = vector.shape_cast %172 : vector<1x1x32xf32> to vector<1x32xf32>
    %cst_72 = arith.constant dense<0.000000e+00> : vector<16xf32>
    %174 = vector.multi_reduction <add>, %169, %cst_72 [1] : vector<16x32xf32> to vector<16xf32>
    %175 = vector.shape_cast %174 : vector<16xf32> to vector<16x1xf32>
    %cst_73 = arith.constant 3.200000e+01 : f32
    %176 = vector.broadcast %cst_73 : f32 to vector<16x1xf32>
    %177 = arith.divf %175, %176 : vector<16x1xf32>
    %178 = vector.broadcast %177 : vector<16x1xf32> to vector<16x32xf32>
    %179 = arith.subf %169, %178 : vector<16x32xf32>
    %180 = arith.mulf %179, %179 : vector<16x32xf32>
    %cst_74 = arith.constant dense<0.000000e+00> : vector<16xf32>
    %181 = vector.multi_reduction <add>, %180, %cst_74 [1] : vector<16x32xf32> to vector<16xf32>
    %182 = vector.shape_cast %181 : vector<16xf32> to vector<16x1xf32>
    %cst_75 = arith.constant 3.200000e+01 : f32
    %183 = vector.broadcast %cst_75 : f32 to vector<16x1xf32>
    %184 = arith.divf %182, %183 : vector<16x1xf32>
    %185 = vector.broadcast %177 : vector<16x1xf32> to vector<16x32xf32>
    %186 = arith.subf %169, %185 : vector<16x32xf32>
    %cst_76 = arith.constant 9.99999974E-6 : f32
    %187 = vector.broadcast %cst_76 : f32 to vector<16x1xf32>
    %188 = arith.addf %184, %187 : vector<16x1xf32>
    %189 = math.rsqrt %188 : vector<16x1xf32>
    %190 = vector.broadcast %189 : vector<16x1xf32> to vector<16x32xf32>
    %191 = arith.mulf %186, %190 : vector<16x32xf32>
    %192 = vector.broadcast %171 : vector<1x32xf32> to vector<16x32xf32>
    %193 = arith.mulf %191, %192 : vector<16x32xf32>
    %194 = vector.broadcast %173 : vector<1x32xf32> to vector<16x32xf32>
    %195 = arith.addf %193, %194 : vector<16x32xf32>
    %c0_77 = arith.constant 0 : index
    %c0_78 = arith.constant 0 : index
    %c0_79 = arith.constant 0 : index
    %196 = vector.load %arg11[%c0_77, %c0_78, %c0_79] : memref<1x32x32xbf16, #tpu.memory_space<vmem>>, vector<1x32x32xbf16>
    %197 = vector.shape_cast %196 : vector<1x32x32xbf16> to vector<32x32xbf16>
    %c0_80 = arith.constant 0 : index
    %c0_81 = arith.constant 0 : index
    %c0_82 = arith.constant 0 : index
    %198 = vector.load %arg12[%c0_80, %c0_81, %c0_82] : memref<1x1x32xf32, #tpu.memory_space<vmem>>, vector<1x1x32xf32>
    %199 = vector.shape_cast %198 : vector<1x1x32xf32> to vector<1x32xf32>
    %c0_83 = arith.constant 0 : index
    %c0_84 = arith.constant 0 : index
    %c0_85 = arith.constant 0 : index
    %200 = vector.load %arg13[%c0_83, %c0_84, %c0_85] : memref<1x32x64xbf16, #tpu.memory_space<vmem>>, vector<1x32x64xbf16>
    %201 = vector.shape_cast %200 : vector<1x32x64xbf16> to vector<32x64xbf16>
    %c0_86 = arith.constant 0 : index
    %c0_87 = arith.constant 0 : index
    %c0_88 = arith.constant 0 : index
    %202 = vector.load %arg14[%c0_86, %c0_87, %c0_88] : memref<1x1x64xf32, #tpu.memory_space<vmem>>, vector<1x1x64xf32>
    %203 = vector.shape_cast %202 : vector<1x1x64xf32> to vector<1x64xf32>
    %c0_89 = arith.constant 0 : index
    %c0_90 = arith.constant 0 : index
    %c0_91 = arith.constant 0 : index
    %204 = vector.load %arg15[%c0_89, %c0_90, %c0_91] : memref<1x32x32xbf16, #tpu.memory_space<vmem>>, vector<1x32x32xbf16>
    %205 = vector.shape_cast %204 : vector<1x32x32xbf16> to vector<32x32xbf16>
    %c0_92 = arith.constant 0 : index
    %c0_93 = arith.constant 0 : index
    %c0_94 = arith.constant 0 : index
    %206 = vector.load %arg16[%c0_92, %c0_93, %c0_94] : memref<1x1x32xf32, #tpu.memory_space<vmem>>, vector<1x1x32xf32>
    %207 = vector.shape_cast %206 : vector<1x1x32xf32> to vector<1x32xf32>
    %c0_95 = arith.constant 0 : index
    %c0_96 = arith.constant 0 : index
    %208 = vector.load %arg4[%c0_95, %c0_96] : memref<16x16xf32, #tpu.memory_space<vmem>>, vector<16x16xf32>
    %209 = arith.truncf %195 : vector<16x32xf32> to vector<16x32xbf16>
    %cst_97 = arith.constant dense<0.000000e+00> : vector<16x32xf32>
    %210 = tpu.matmul %209, %197, %cst_97 {dimension_numbers = #tpu.dot_dimension_numbers<[1], [0], [0], [1], [0, 0, 1, 1], [], []>} : vector<16x32xbf16>, vector<32x32xbf16>, vector<16x32xf32> -> vector<16x32xf32>
    %211 = vector.broadcast %199 : vector<1x32xf32> to vector<16x32xf32>
    %212 = arith.addf %210, %211 : vector<16x32xf32>
    %213 = arith.truncf %4 : vector<16x32xf32> to vector<16x32xbf16>
    %cst_98 = arith.constant dense<0.000000e+00> : vector<16x64xf32>
    %214 = tpu.matmul %213, %201, %cst_98 {dimension_numbers = #tpu.dot_dimension_numbers<[1], [0], [0], [1], [0, 0, 1, 1], [], []>} : vector<16x32xbf16>, vector<32x64xbf16>, vector<16x64xf32> -> vector<16x64xf32>
    %215 = vector.broadcast %203 : vector<1x64xf32> to vector<16x64xf32>
    %216 = arith.addf %214, %215 : vector<16x64xf32>
    %217 = vector.extract_strided_slice %216 {offsets = [0, 0], sizes = [16, 32], strides = [1, 1]} : vector<16x64xf32> to vector<16x32xf32>
    %218 = vector.extract_strided_slice %216 {offsets = [0, 32], sizes = [16, 32], strides = [1, 1]} : vector<16x64xf32> to vector<16x32xf32>
    %219 = vector.extract_strided_slice %212 {offsets = [0, 0], sizes = [16, 4], strides = [1, 1]} : vector<16x32xf32> to vector<16x4xf32>
    %220 = vector.extract_strided_slice %217 {offsets = [0, 0], sizes = [16, 4], strides = [1, 1]} : vector<16x32xf32> to vector<16x4xf32>
    %221 = vector.extract_strided_slice %218 {offsets = [0, 0], sizes = [16, 4], strides = [1, 1]} : vector<16x32xf32> to vector<16x4xf32>
    %cst_99 = arith.constant dense<0.000000e+00> : vector<16x16xf32>
    %222 = tpu.matmul %219, %220, %cst_99 {dimension_numbers = #tpu.dot_dimension_numbers<[1], [1], [0], [0], [0, 0, 1, 0], [], []>} : vector<16x4xf32>, vector<16x4xf32>, vector<16x16xf32> -> vector<16x16xf32>
    %cst_100 = arith.constant 5.000000e-01 : f32
    %223 = vector.broadcast %cst_100 : f32 to vector<16x16xf32>
    %224 = arith.mulf %222, %223 : vector<16x16xf32>
    %225 = arith.addf %224, %208 : vector<16x16xf32>
    %cst_101 = arith.constant dense<0xFF800000> : vector<16xf32>
    %226 = vector.multi_reduction <maximumf>, %225, %cst_101 [1] : vector<16x16xf32> to vector<16xf32>
    %227 = vector.shape_cast %226 : vector<16xf32> to vector<16x1xf32>
    %228 = vector.broadcast %227 : vector<16x1xf32> to vector<16x16xf32>
    %229 = arith.subf %225, %228 : vector<16x16xf32>
    %230 = math.exp %229 : vector<16x16xf32>
    %cst_102 = arith.constant dense<0.000000e+00> : vector<16xf32>
    %231 = vector.multi_reduction <add>, %230, %cst_102 [1] : vector<16x16xf32> to vector<16xf32>
    %232 = vector.shape_cast %231 : vector<16xf32> to vector<16x1xf32>
    %233 = vector.broadcast %232 : vector<16x1xf32> to vector<16x16xf32>
    %234 = arith.divf %230, %233 : vector<16x16xf32>
    %cst_103 = arith.constant dense<0.000000e+00> : vector<16x4xf32>
    %235 = tpu.matmul %234, %221, %cst_103 {dimension_numbers = #tpu.dot_dimension_numbers<[1], [0], [0], [1], [0, 0, 1, 1], [], []>} : vector<16x16xf32>, vector<16x4xf32>, vector<16x4xf32> -> vector<16x4xf32>
    %236 = vector.extract_strided_slice %212 {offsets = [0, 4], sizes = [16, 4], strides = [1, 1]} : vector<16x32xf32> to vector<16x4xf32>
    %237 = vector.extract_strided_slice %217 {offsets = [0, 4], sizes = [16, 4], strides = [1, 1]} : vector<16x32xf32> to vector<16x4xf32>
    %238 = vector.extract_strided_slice %218 {offsets = [0, 4], sizes = [16, 4], strides = [1, 1]} : vector<16x32xf32> to vector<16x4xf32>
    %cst_104 = arith.constant dense<0.000000e+00> : vector<16x16xf32>
    %239 = tpu.matmul %236, %237, %cst_104 {dimension_numbers = #tpu.dot_dimension_numbers<[1], [1], [0], [0], [0, 0, 1, 0], [], []>} : vector<16x4xf32>, vector<16x4xf32>, vector<16x16xf32> -> vector<16x16xf32>
    %cst_105 = arith.constant 5.000000e-01 : f32
    %240 = vector.broadcast %cst_105 : f32 to vector<16x16xf32>
    %241 = arith.mulf %239, %240 : vector<16x16xf32>
    %242 = arith.addf %241, %208 : vector<16x16xf32>
    %cst_106 = arith.constant dense<0xFF800000> : vector<16xf32>
    %243 = vector.multi_reduction <maximumf>, %242, %cst_106 [1] : vector<16x16xf32> to vector<16xf32>
    %244 = vector.shape_cast %243 : vector<16xf32> to vector<16x1xf32>
    %245 = vector.broadcast %244 : vector<16x1xf32> to vector<16x16xf32>
    %246 = arith.subf %242, %245 : vector<16x16xf32>
    %247 = math.exp %246 : vector<16x16xf32>
    %cst_107 = arith.constant dense<0.000000e+00> : vector<16xf32>
    %248 = vector.multi_reduction <add>, %247, %cst_107 [1] : vector<16x16xf32> to vector<16xf32>
    %249 = vector.shape_cast %248 : vector<16xf32> to vector<16x1xf32>
    %250 = vector.broadcast %249 : vector<16x1xf32> to vector<16x16xf32>
    %251 = arith.divf %247, %250 : vector<16x16xf32>
    %cst_108 = arith.constant dense<0.000000e+00> : vector<16x4xf32>
    %252 = tpu.matmul %251, %238, %cst_108 {dimension_numbers = #tpu.dot_dimension_numbers<[1], [0], [0], [1], [0, 0, 1, 1], [], []>} : vector<16x16xf32>, vector<16x4xf32>, vector<16x4xf32> -> vector<16x4xf32>
    %253 = vector.extract_strided_slice %212 {offsets = [0, 8], sizes = [16, 4], strides = [1, 1]} : vector<16x32xf32> to vector<16x4xf32>
    %254 = vector.extract_strided_slice %217 {offsets = [0, 8], sizes = [16, 4], strides = [1, 1]} : vector<16x32xf32> to vector<16x4xf32>
    %255 = vector.extract_strided_slice %218 {offsets = [0, 8], sizes = [16, 4], strides = [1, 1]} : vector<16x32xf32> to vector<16x4xf32>
    %cst_109 = arith.constant dense<0.000000e+00> : vector<16x16xf32>
    %256 = tpu.matmul %253, %254, %cst_109 {dimension_numbers = #tpu.dot_dimension_numbers<[1], [1], [0], [0], [0, 0, 1, 0], [], []>} : vector<16x4xf32>, vector<16x4xf32>, vector<16x16xf32> -> vector<16x16xf32>
    %cst_110 = arith.constant 5.000000e-01 : f32
    %257 = vector.broadcast %cst_110 : f32 to vector<16x16xf32>
    %258 = arith.mulf %256, %257 : vector<16x16xf32>
    %259 = arith.addf %258, %208 : vector<16x16xf32>
    %cst_111 = arith.constant dense<0xFF800000> : vector<16xf32>
    %260 = vector.multi_reduction <maximumf>, %259, %cst_111 [1] : vector<16x16xf32> to vector<16xf32>
    %261 = vector.shape_cast %260 : vector<16xf32> to vector<16x1xf32>
    %262 = vector.broadcast %261 : vector<16x1xf32> to vector<16x16xf32>
    %263 = arith.subf %259, %262 : vector<16x16xf32>
    %264 = math.exp %263 : vector<16x16xf32>
    %cst_112 = arith.constant dense<0.000000e+00> : vector<16xf32>
    %265 = vector.multi_reduction <add>, %264, %cst_112 [1] : vector<16x16xf32> to vector<16xf32>
    %266 = vector.shape_cast %265 : vector<16xf32> to vector<16x1xf32>
    %267 = vector.broadcast %266 : vector<16x1xf32> to vector<16x16xf32>
    %268 = arith.divf %264, %267 : vector<16x16xf32>
    %cst_113 = arith.constant dense<0.000000e+00> : vector<16x4xf32>
    %269 = tpu.matmul %268, %255, %cst_113 {dimension_numbers = #tpu.dot_dimension_numbers<[1], [0], [0], [1], [0, 0, 1, 1], [], []>} : vector<16x16xf32>, vector<16x4xf32>, vector<16x4xf32> -> vector<16x4xf32>
    %270 = vector.extract_strided_slice %212 {offsets = [0, 12], sizes = [16, 4], strides = [1, 1]} : vector<16x32xf32> to vector<16x4xf32>
    %271 = vector.extract_strided_slice %217 {offsets = [0, 12], sizes = [16, 4], strides = [1, 1]} : vector<16x32xf32> to vector<16x4xf32>
    %272 = vector.extract_strided_slice %218 {offsets = [0, 12], sizes = [16, 4], strides = [1, 1]} : vector<16x32xf32> to vector<16x4xf32>
    %cst_114 = arith.constant dense<0.000000e+00> : vector<16x16xf32>
    %273 = tpu.matmul %270, %271, %cst_114 {dimension_numbers = #tpu.dot_dimension_numbers<[1], [1], [0], [0], [0, 0, 1, 0], [], []>} : vector<16x4xf32>, vector<16x4xf32>, vector<16x16xf32> -> vector<16x16xf32>
    %cst_115 = arith.constant 5.000000e-01 : f32
    %274 = vector.broadcast %cst_115 : f32 to vector<16x16xf32>
    %275 = arith.mulf %273, %274 : vector<16x16xf32>
    %276 = arith.addf %275, %208 : vector<16x16xf32>
    %cst_116 = arith.constant dense<0xFF800000> : vector<16xf32>
    %277 = vector.multi_reduction <maximumf>, %276, %cst_116 [1] : vector<16x16xf32> to vector<16xf32>
    %278 = vector.shape_cast %277 : vector<16xf32> to vector<16x1xf32>
    %279 = vector.broadcast %278 : vector<16x1xf32> to vector<16x16xf32>
    %280 = arith.subf %276, %279 : vector<16x16xf32>
    %281 = math.exp %280 : vector<16x16xf32>
    %cst_117 = arith.constant dense<0.000000e+00> : vector<16xf32>
    %282 = vector.multi_reduction <add>, %281, %cst_117 [1] : vector<16x16xf32> to vector<16xf32>
    %283 = vector.shape_cast %282 : vector<16xf32> to vector<16x1xf32>
    %284 = vector.broadcast %283 : vector<16x1xf32> to vector<16x16xf32>
    %285 = arith.divf %281, %284 : vector<16x16xf32>
    %cst_118 = arith.constant dense<0.000000e+00> : vector<16x4xf32>
    %286 = tpu.matmul %285, %272, %cst_118 {dimension_numbers = #tpu.dot_dimension_numbers<[1], [0], [0], [1], [0, 0, 1, 1], [], []>} : vector<16x16xf32>, vector<16x4xf32>, vector<16x4xf32> -> vector<16x4xf32>
    %287 = vector.extract_strided_slice %212 {offsets = [0, 16], sizes = [16, 4], strides = [1, 1]} : vector<16x32xf32> to vector<16x4xf32>
    %288 = vector.extract_strided_slice %217 {offsets = [0, 16], sizes = [16, 4], strides = [1, 1]} : vector<16x32xf32> to vector<16x4xf32>
    %289 = vector.extract_strided_slice %218 {offsets = [0, 16], sizes = [16, 4], strides = [1, 1]} : vector<16x32xf32> to vector<16x4xf32>
    %cst_119 = arith.constant dense<0.000000e+00> : vector<16x16xf32>
    %290 = tpu.matmul %287, %288, %cst_119 {dimension_numbers = #tpu.dot_dimension_numbers<[1], [1], [0], [0], [0, 0, 1, 0], [], []>} : vector<16x4xf32>, vector<16x4xf32>, vector<16x16xf32> -> vector<16x16xf32>
    %cst_120 = arith.constant 5.000000e-01 : f32
    %291 = vector.broadcast %cst_120 : f32 to vector<16x16xf32>
    %292 = arith.mulf %290, %291 : vector<16x16xf32>
    %293 = arith.addf %292, %208 : vector<16x16xf32>
    %cst_121 = arith.constant dense<0xFF800000> : vector<16xf32>
    %294 = vector.multi_reduction <maximumf>, %293, %cst_121 [1] : vector<16x16xf32> to vector<16xf32>
    %295 = vector.shape_cast %294 : vector<16xf32> to vector<16x1xf32>
    %296 = vector.broadcast %295 : vector<16x1xf32> to vector<16x16xf32>
    %297 = arith.subf %293, %296 : vector<16x16xf32>
    %298 = math.exp %297 : vector<16x16xf32>
    %cst_122 = arith.constant dense<0.000000e+00> : vector<16xf32>
    %299 = vector.multi_reduction <add>, %298, %cst_122 [1] : vector<16x16xf32> to vector<16xf32>
    %300 = vector.shape_cast %299 : vector<16xf32> to vector<16x1xf32>
    %301 = vector.broadcast %300 : vector<16x1xf32> to vector<16x16xf32>
    %302 = arith.divf %298, %301 : vector<16x16xf32>
    %cst_123 = arith.constant dense<0.000000e+00> : vector<16x4xf32>
    %303 = tpu.matmul %302, %289, %cst_123 {dimension_numbers = #tpu.dot_dimension_numbers<[1], [0], [0], [1], [0, 0, 1, 1], [], []>} : vector<16x16xf32>, vector<16x4xf32>, vector<16x4xf32> -> vector<16x4xf32>
    %304 = vector.extract_strided_slice %212 {offsets = [0, 20], sizes = [16, 4], strides = [1, 1]} : vector<16x32xf32> to vector<16x4xf32>
    %305 = vector.extract_strided_slice %217 {offsets = [0, 20], sizes = [16, 4], strides = [1, 1]} : vector<16x32xf32> to vector<16x4xf32>
    %306 = vector.extract_strided_slice %218 {offsets = [0, 20], sizes = [16, 4], strides = [1, 1]} : vector<16x32xf32> to vector<16x4xf32>
    %cst_124 = arith.constant dense<0.000000e+00> : vector<16x16xf32>
    %307 = tpu.matmul %304, %305, %cst_124 {dimension_numbers = #tpu.dot_dimension_numbers<[1], [1], [0], [0], [0, 0, 1, 0], [], []>} : vector<16x4xf32>, vector<16x4xf32>, vector<16x16xf32> -> vector<16x16xf32>
    %cst_125 = arith.constant 5.000000e-01 : f32
    %308 = vector.broadcast %cst_125 : f32 to vector<16x16xf32>
    %309 = arith.mulf %307, %308 : vector<16x16xf32>
    %310 = arith.addf %309, %208 : vector<16x16xf32>
    %cst_126 = arith.constant dense<0xFF800000> : vector<16xf32>
    %311 = vector.multi_reduction <maximumf>, %310, %cst_126 [1] : vector<16x16xf32> to vector<16xf32>
    %312 = vector.shape_cast %311 : vector<16xf32> to vector<16x1xf32>
    %313 = vector.broadcast %312 : vector<16x1xf32> to vector<16x16xf32>
    %314 = arith.subf %310, %313 : vector<16x16xf32>
    %315 = math.exp %314 : vector<16x16xf32>
    %cst_127 = arith.constant dense<0.000000e+00> : vector<16xf32>
    %316 = vector.multi_reduction <add>, %315, %cst_127 [1] : vector<16x16xf32> to vector<16xf32>
    %317 = vector.shape_cast %316 : vector<16xf32> to vector<16x1xf32>
    %318 = vector.broadcast %317 : vector<16x1xf32> to vector<16x16xf32>
    %319 = arith.divf %315, %318 : vector<16x16xf32>
    %cst_128 = arith.constant dense<0.000000e+00> : vector<16x4xf32>
    %320 = tpu.matmul %319, %306, %cst_128 {dimension_numbers = #tpu.dot_dimension_numbers<[1], [0], [0], [1], [0, 0, 1, 1], [], []>} : vector<16x16xf32>, vector<16x4xf32>, vector<16x4xf32> -> vector<16x4xf32>
    %321 = vector.extract_strided_slice %212 {offsets = [0, 24], sizes = [16, 4], strides = [1, 1]} : vector<16x32xf32> to vector<16x4xf32>
    %322 = vector.extract_strided_slice %217 {offsets = [0, 24], sizes = [16, 4], strides = [1, 1]} : vector<16x32xf32> to vector<16x4xf32>
    %323 = vector.extract_strided_slice %218 {offsets = [0, 24], sizes = [16, 4], strides = [1, 1]} : vector<16x32xf32> to vector<16x4xf32>
    %cst_129 = arith.constant dense<0.000000e+00> : vector<16x16xf32>
    %324 = tpu.matmul %321, %322, %cst_129 {dimension_numbers = #tpu.dot_dimension_numbers<[1], [1], [0], [0], [0, 0, 1, 0], [], []>} : vector<16x4xf32>, vector<16x4xf32>, vector<16x16xf32> -> vector<16x16xf32>
    %cst_130 = arith.constant 5.000000e-01 : f32
    %325 = vector.broadcast %cst_130 : f32 to vector<16x16xf32>
    %326 = arith.mulf %324, %325 : vector<16x16xf32>
    %327 = arith.addf %326, %208 : vector<16x16xf32>
    %cst_131 = arith.constant dense<0xFF800000> : vector<16xf32>
    %328 = vector.multi_reduction <maximumf>, %327, %cst_131 [1] : vector<16x16xf32> to vector<16xf32>
    %329 = vector.shape_cast %328 : vector<16xf32> to vector<16x1xf32>
    %330 = vector.broadcast %329 : vector<16x1xf32> to vector<16x16xf32>
    %331 = arith.subf %327, %330 : vector<16x16xf32>
    %332 = math.exp %331 : vector<16x16xf32>
    %cst_132 = arith.constant dense<0.000000e+00> : vector<16xf32>
    %333 = vector.multi_reduction <add>, %332, %cst_132 [1] : vector<16x16xf32> to vector<16xf32>
    %334 = vector.shape_cast %333 : vector<16xf32> to vector<16x1xf32>
    %335 = vector.broadcast %334 : vector<16x1xf32> to vector<16x16xf32>
    %336 = arith.divf %332, %335 : vector<16x16xf32>
    %cst_133 = arith.constant dense<0.000000e+00> : vector<16x4xf32>
    %337 = tpu.matmul %336, %323, %cst_133 {dimension_numbers = #tpu.dot_dimension_numbers<[1], [0], [0], [1], [0, 0, 1, 1], [], []>} : vector<16x16xf32>, vector<16x4xf32>, vector<16x4xf32> -> vector<16x4xf32>
    %338 = vector.extract_strided_slice %212 {offsets = [0, 28], sizes = [16, 4], strides = [1, 1]} : vector<16x32xf32> to vector<16x4xf32>
    %339 = vector.extract_strided_slice %217 {offsets = [0, 28], sizes = [16, 4], strides = [1, 1]} : vector<16x32xf32> to vector<16x4xf32>
    %340 = vector.extract_strided_slice %218 {offsets = [0, 28], sizes = [16, 4], strides = [1, 1]} : vector<16x32xf32> to vector<16x4xf32>
    %cst_134 = arith.constant dense<0.000000e+00> : vector<16x16xf32>
    %341 = tpu.matmul %338, %339, %cst_134 {dimension_numbers = #tpu.dot_dimension_numbers<[1], [1], [0], [0], [0, 0, 1, 0], [], []>} : vector<16x4xf32>, vector<16x4xf32>, vector<16x16xf32> -> vector<16x16xf32>
    %cst_135 = arith.constant 5.000000e-01 : f32
    %342 = vector.broadcast %cst_135 : f32 to vector<16x16xf32>
    %343 = arith.mulf %341, %342 : vector<16x16xf32>
    %344 = arith.addf %343, %208 : vector<16x16xf32>
    %cst_136 = arith.constant dense<0xFF800000> : vector<16xf32>
    %345 = vector.multi_reduction <maximumf>, %344, %cst_136 [1] : vector<16x16xf32> to vector<16xf32>
    %346 = vector.shape_cast %345 : vector<16xf32> to vector<16x1xf32>
    %347 = vector.broadcast %346 : vector<16x1xf32> to vector<16x16xf32>
    %348 = arith.subf %344, %347 : vector<16x16xf32>
    %349 = math.exp %348 : vector<16x16xf32>
    %cst_137 = arith.constant dense<0.000000e+00> : vector<16xf32>
    %350 = vector.multi_reduction <add>, %349, %cst_137 [1] : vector<16x16xf32> to vector<16xf32>
    %351 = vector.shape_cast %350 : vector<16xf32> to vector<16x1xf32>
    %352 = vector.broadcast %351 : vector<16x1xf32> to vector<16x16xf32>
    %353 = arith.divf %349, %352 : vector<16x16xf32>
    %cst_138 = arith.constant dense<0.000000e+00> : vector<16x4xf32>
    %354 = tpu.matmul %353, %340, %cst_138 {dimension_numbers = #tpu.dot_dimension_numbers<[1], [0], [0], [1], [0, 0, 1, 1], [], []>} : vector<16x16xf32>, vector<16x4xf32>, vector<16x4xf32> -> vector<16x4xf32>
    %355 = tpu.concatenate %235, %252, %269, %286, %303, %320, %337, %354 in 1 : vector<16x4xf32>, vector<16x4xf32>, vector<16x4xf32>, vector<16x4xf32>, vector<16x4xf32>, vector<16x4xf32>, vector<16x4xf32>, vector<16x4xf32> -> vector<16x32xf32>
    %356 = arith.truncf %355 : vector<16x32xf32> to vector<16x32xbf16>
    %cst_139 = arith.constant dense<0.000000e+00> : vector<16x32xf32>
    %357 = tpu.matmul %356, %205, %cst_139 {dimension_numbers = #tpu.dot_dimension_numbers<[1], [0], [0], [1], [0, 0, 1, 1], [], []>} : vector<16x32xbf16>, vector<32x32xbf16>, vector<16x32xf32> -> vector<16x32xf32>
    %358 = vector.broadcast %207 : vector<1x32xf32> to vector<16x32xf32>
    %359 = arith.addf %357, %358 : vector<16x32xf32>
    %360 = arith.addf %195, %359 : vector<16x32xf32>
    %c0_140 = arith.constant 0 : index
    %c0_141 = arith.constant 0 : index
    %c0_142 = arith.constant 0 : index
    %361 = vector.load %arg23[%c0_140, %c0_141, %c0_142] : memref<1x1x32xf32, #tpu.memory_space<vmem>>, vector<1x1x32xf32>
    %362 = vector.shape_cast %361 : vector<1x1x32xf32> to vector<1x32xf32>
    %c0_143 = arith.constant 0 : index
    %c0_144 = arith.constant 0 : index
    %c0_145 = arith.constant 0 : index
    %363 = vector.load %arg24[%c0_143, %c0_144, %c0_145] : memref<1x1x32xf32, #tpu.memory_space<vmem>>, vector<1x1x32xf32>
    %364 = vector.shape_cast %363 : vector<1x1x32xf32> to vector<1x32xf32>
    %cst_146 = arith.constant dense<0.000000e+00> : vector<16xf32>
    %365 = vector.multi_reduction <add>, %360, %cst_146 [1] : vector<16x32xf32> to vector<16xf32>
    %366 = vector.shape_cast %365 : vector<16xf32> to vector<16x1xf32>
    %cst_147 = arith.constant 3.200000e+01 : f32
    %367 = vector.broadcast %cst_147 : f32 to vector<16x1xf32>
    %368 = arith.divf %366, %367 : vector<16x1xf32>
    %369 = vector.broadcast %368 : vector<16x1xf32> to vector<16x32xf32>
    %370 = arith.subf %360, %369 : vector<16x32xf32>
    %371 = arith.mulf %370, %370 : vector<16x32xf32>
    %cst_148 = arith.constant dense<0.000000e+00> : vector<16xf32>
    %372 = vector.multi_reduction <add>, %371, %cst_148 [1] : vector<16x32xf32> to vector<16xf32>
    %373 = vector.shape_cast %372 : vector<16xf32> to vector<16x1xf32>
    %cst_149 = arith.constant 3.200000e+01 : f32
    %374 = vector.broadcast %cst_149 : f32 to vector<16x1xf32>
    %375 = arith.divf %373, %374 : vector<16x1xf32>
    %376 = vector.broadcast %368 : vector<16x1xf32> to vector<16x32xf32>
    %377 = arith.subf %360, %376 : vector<16x32xf32>
    %cst_150 = arith.constant 9.99999974E-6 : f32
    %378 = vector.broadcast %cst_150 : f32 to vector<16x1xf32>
    %379 = arith.addf %375, %378 : vector<16x1xf32>
    %380 = math.rsqrt %379 : vector<16x1xf32>
    %381 = vector.broadcast %380 : vector<16x1xf32> to vector<16x32xf32>
    %382 = arith.mulf %377, %381 : vector<16x32xf32>
    %383 = vector.broadcast %362 : vector<1x32xf32> to vector<16x32xf32>
    %384 = arith.mulf %382, %383 : vector<16x32xf32>
    %385 = vector.broadcast %364 : vector<1x32xf32> to vector<16x32xf32>
    %386 = arith.addf %384, %385 : vector<16x32xf32>
    %387 = arith.truncf %386 : vector<16x32xf32> to vector<16x32xbf16>
    %c0_151 = arith.constant 0 : index
    %c0_152 = arith.constant 0 : index
    %c0_153 = arith.constant 0 : index
    %388 = vector.load %arg17[%c0_151, %c0_152, %c0_153] : memref<1x32x2048xbf16, #tpu.memory_space<vmem>>, vector<1x32x2048xbf16>
    %389 = vector.shape_cast %388 : vector<1x32x2048xbf16> to vector<32x2048xbf16>
    %cst_154 = arith.constant dense<0.000000e+00> : vector<16x2048xf32>
    %390 = tpu.matmul %387, %389, %cst_154 {dimension_numbers = #tpu.dot_dimension_numbers<[1], [0], [0], [1], [0, 0, 1, 1], [], []>} : vector<16x32xbf16>, vector<32x2048xbf16>, vector<16x2048xf32> -> vector<16x2048xf32>
    %c0_155 = arith.constant 0 : index
    %c0_156 = arith.constant 0 : index
    %c0_157 = arith.constant 0 : index
    %391 = vector.load %arg18[%c0_155, %c0_156, %c0_157] : memref<1x1x2048xf32, #tpu.memory_space<vmem>>, vector<1x1x2048xf32>
    %392 = vector.shape_cast %391 : vector<1x1x2048xf32> to vector<1x2048xf32>
    %393 = vector.broadcast %392 : vector<1x2048xf32> to vector<16x2048xf32>
    %394 = arith.addf %390, %393 : vector<16x2048xf32>
    %cst_158 = arith.constant 0.000000e+00 : f32
    %395 = vector.broadcast %cst_158 : f32 to vector<16x2048xf32>
    %396 = arith.maximumf %394, %395 : vector<16x2048xf32>
    %397 = arith.truncf %396 : vector<16x2048xf32> to vector<16x2048xbf16>
    %c0_159 = arith.constant 0 : index
    %c0_160 = arith.constant 0 : index
    %c0_161 = arith.constant 0 : index
    %398 = vector.load %arg19[%c0_159, %c0_160, %c0_161] : memref<1x2048x32xbf16, #tpu.memory_space<vmem>>, vector<1x2048x32xbf16>
    %399 = vector.shape_cast %398 : vector<1x2048x32xbf16> to vector<2048x32xbf16>
    %cst_162 = arith.constant dense<0.000000e+00> : vector<16x32xf32>
    %400 = tpu.matmul %397, %399, %cst_162 {dimension_numbers = #tpu.dot_dimension_numbers<[1], [0], [0], [1], [0, 0, 1, 1], [], []>} : vector<16x2048xbf16>, vector<2048x32xbf16>, vector<16x32xf32> -> vector<16x32xf32>
    %c0_163 = arith.constant 0 : index
    %c0_164 = arith.constant 0 : index
    %c0_165 = arith.constant 0 : index
    %401 = vector.load %arg20[%c0_163, %c0_164, %c0_165] : memref<1x1x32xf32, #tpu.memory_space<vmem>>, vector<1x1x32xf32>
    %402 = vector.shape_cast %401 : vector<1x1x32xf32> to vector<1x32xf32>
    %403 = vector.broadcast %402 : vector<1x32xf32> to vector<16x32xf32>
    %404 = arith.addf %400, %403 : vector<16x32xf32>
    %405 = arith.addf %386, %404 : vector<16x32xf32>
    %c0_166 = arith.constant 0 : index
    %c0_167 = arith.constant 0 : index
    %c0_168 = arith.constant 0 : index
    %406 = vector.load %arg25[%c0_166, %c0_167, %c0_168] : memref<1x1x32xf32, #tpu.memory_space<vmem>>, vector<1x1x32xf32>
    %407 = vector.shape_cast %406 : vector<1x1x32xf32> to vector<1x32xf32>
    %c0_169 = arith.constant 0 : index
    %c0_170 = arith.constant 0 : index
    %c0_171 = arith.constant 0 : index
    %408 = vector.load %arg26[%c0_169, %c0_170, %c0_171] : memref<1x1x32xf32, #tpu.memory_space<vmem>>, vector<1x1x32xf32>
    %409 = vector.shape_cast %408 : vector<1x1x32xf32> to vector<1x32xf32>
    %cst_172 = arith.constant dense<0.000000e+00> : vector<16xf32>
    %410 = vector.multi_reduction <add>, %405, %cst_172 [1] : vector<16x32xf32> to vector<16xf32>
    %411 = vector.shape_cast %410 : vector<16xf32> to vector<16x1xf32>
    %cst_173 = arith.constant 3.200000e+01 : f32
    %412 = vector.broadcast %cst_173 : f32 to vector<16x1xf32>
    %413 = arith.divf %411, %412 : vector<16x1xf32>
    %414 = vector.broadcast %413 : vector<16x1xf32> to vector<16x32xf32>
    %415 = arith.subf %405, %414 : vector<16x32xf32>
    %416 = arith.mulf %415, %415 : vector<16x32xf32>
    %cst_174 = arith.constant dense<0.000000e+00> : vector<16xf32>
    %417 = vector.multi_reduction <add>, %416, %cst_174 [1] : vector<16x32xf32> to vector<16xf32>
    %418 = vector.shape_cast %417 : vector<16xf32> to vector<16x1xf32>
    %cst_175 = arith.constant 3.200000e+01 : f32
    %419 = vector.broadcast %cst_175 : f32 to vector<16x1xf32>
    %420 = arith.divf %418, %419 : vector<16x1xf32>
    %421 = vector.broadcast %413 : vector<16x1xf32> to vector<16x32xf32>
    %422 = arith.subf %405, %421 : vector<16x32xf32>
    %cst_176 = arith.constant 9.99999974E-6 : f32
    %423 = vector.broadcast %cst_176 : f32 to vector<16x1xf32>
    %424 = arith.addf %420, %423 : vector<16x1xf32>
    %425 = math.rsqrt %424 : vector<16x1xf32>
    %426 = vector.broadcast %425 : vector<16x1xf32> to vector<16x32xf32>
    %427 = arith.mulf %422, %426 : vector<16x32xf32>
    %428 = vector.broadcast %407 : vector<1x32xf32> to vector<16x32xf32>
    %429 = arith.mulf %427, %428 : vector<16x32xf32>
    %430 = vector.broadcast %409 : vector<1x32xf32> to vector<16x32xf32>
    %431 = arith.addf %429, %430 : vector<16x32xf32>
    %c0_177 = arith.constant 0 : index
    %c0_178 = arith.constant 0 : index
    %432 = vector.load %arg28[%c0_177, %c0_178] : memref<16x32xf32, #tpu.memory_space<vmem>>, vector<16x32xf32>
    tpu.vector_store %arg28[%c0_177, %c0_178], %431 {strides = array<i32>} : memref<16x32xf32, #tpu.memory_space<vmem>>, vector<16x32xf32>,
    %c1_i32 = arith.constant 1 : i32
    %433 = arith.cmpi eq, %arg0, %c1_i32 : i32
    %434 = arith.extui %433 : i1 to i32
    %c0_i32_179 = arith.constant 0 : i32
    %435 = arith.cmpi ne, %434, %c0_i32_179 : i32
    scf.if %435 {
      %c0_180 = arith.constant 0 : index
      %c0_181 = arith.constant 0 : index
      %436 = vector.load %arg27[%c0_180, %c0_181] : memref<16x32xf32, #tpu.memory_space<vmem>>, vector<16x32xf32>
      tpu.vector_store %arg27[%c0_180, %c0_181], %431 {strides = array<i32>} : memref<16x32xf32, #tpu.memory_space<vmem>>, vector<16x32xf32>,
    } else {
    }
    return
  }
  func.func @transform_0(%arg0: i32) -> (i32, i32) {
    %c0_i32 = arith.constant 0 : i32
    %c0_i32_0 = arith.constant 0 : i32
    %c0_i32_1 = arith.constant 0 : i32
    return %c0_i32, %c0_i32_0 : i32, i32
  }
  func.func @transform_1(%arg0: i32) -> (i32, i32) {
    %c0_i32 = arith.constant 0 : i32
    %c0_i32_0 = arith.constant 0 : i32
    %c0_i32_1 = arith.constant 0 : i32
    return %c0_i32, %c0_i32_0 : i32, i32
  }
  func.func @transform_2(%arg0: i32) -> (i32, i32) {
    %c0_i32 = arith.constant 0 : i32
    %c0_i32_0 = arith.constant 0 : i32
    %c0_i32_1 = arith.constant 0 : i32
    return %c0_i32, %c0_i32_0 : i32, i32
  }
  func.func @transform_3(%arg0: i32) -> (i32, i32) {
    %c0_i32 = arith.constant 0 : i32
    %c0_i32_0 = arith.constant 0 : i32
    %c0_i32_1 = arith.constant 0 : i32
    return %c0_i32, %c0_i32_0 : i32, i32
  }
  func.func @transform_4(%arg0: i32) -> (i32, i32, i32) {
    %c0_i32 = arith.constant 0 : i32
    %c0_i32_0 = arith.constant 0 : i32
    %c0_i32_1 = arith.constant 0 : i32
    return %arg0, %c0_i32, %c0_i32_0 : i32, i32, i32
  }
  func.func @transform_5(%arg0: i32) -> (i32, i32, i32) {
    %c0_i32 = arith.constant 0 : i32
    %c0_i32_0 = arith.constant 0 : i32
    %c0_i32_1 = arith.constant 0 : i32
    return %arg0, %c0_i32, %c0_i32_0 : i32, i32, i32
  }
  func.func @transform_6(%arg0: i32) -> (i32, i32, i32) {
    %c0_i32 = arith.constant 0 : i32
    %c0_i32_0 = arith.constant 0 : i32
    %c0_i32_1 = arith.constant 0 : i32
    return %arg0, %c0_i32, %c0_i32_0 : i32, i32, i32
  }
  func.func @transform_7(%arg0: i32) -> (i32, i32, i32) {
    %c0_i32 = arith.constant 0 : i32
    %c0_i32_0 = arith.constant 0 : i32
    %c0_i32_1 = arith.constant 0 : i32
    return %arg0, %c0_i32, %c0_i32_0 : i32, i32, i32
  }
  func.func @transform_8(%arg0: i32) -> (i32, i32, i32) {
    %c0_i32 = arith.constant 0 : i32
    %c0_i32_0 = arith.constant 0 : i32
    %c0_i32_1 = arith.constant 0 : i32
    return %arg0, %c0_i32, %c0_i32_0 : i32, i32, i32
  }
  func.func @transform_9(%arg0: i32) -> (i32, i32, i32) {
    %c0_i32 = arith.constant 0 : i32
    %c0_i32_0 = arith.constant 0 : i32
    %c0_i32_1 = arith.constant 0 : i32
    return %arg0, %c0_i32, %c0_i32_0 : i32, i32, i32
  }
  func.func @transform_10(%arg0: i32) -> (i32, i32, i32) {
    %c0_i32 = arith.constant 0 : i32
    %c0_i32_0 = arith.constant 0 : i32
    %c0_i32_1 = arith.constant 0 : i32
    return %arg0, %c0_i32, %c0_i32_0 : i32, i32, i32
  }
  func.func @transform_11(%arg0: i32) -> (i32, i32, i32) {
    %c0_i32 = arith.constant 0 : i32
    %c0_i32_0 = arith.constant 0 : i32
    %c0_i32_1 = arith.constant 0 : i32
    return %arg0, %c0_i32, %c0_i32_0 : i32, i32, i32
  }
  func.func @transform_12(%arg0: i32) -> (i32, i32, i32) {
    %c0_i32 = arith.constant 0 : i32
    %c0_i32_0 = arith.constant 0 : i32
    %c0_i32_1 = arith.constant 0 : i32
    return %arg0, %c0_i32, %c0_i32_0 : i32, i32, i32
  }
  func.func @transform_13(%arg0: i32) -> (i32, i32, i32) {
    %c0_i32 = arith.constant 0 : i32
    %c0_i32_0 = arith.constant 0 : i32
    %c0_i32_1 = arith.constant 0 : i32
    return %arg0, %c0_i32, %c0_i32_0 : i32, i32, i32
  }
  func.func @transform_14(%arg0: i32) -> (i32, i32, i32) {
    %c0_i32 = arith.constant 0 : i32
    %c0_i32_0 = arith.constant 0 : i32
    %c0_i32_1 = arith.constant 0 : i32
    return %arg0, %c0_i32, %c0_i32_0 : i32, i32, i32
  }
  func.func @transform_15(%arg0: i32) -> (i32, i32, i32) {
    %c0_i32 = arith.constant 0 : i32
    %c0_i32_0 = arith.constant 0 : i32
    %c0_i32_1 = arith.constant 0 : i32
    return %arg0, %c0_i32, %c0_i32_0 : i32, i32, i32
  }
  func.func @transform_16(%arg0: i32) -> (i32, i32, i32) {
    %c0_i32 = arith.constant 0 : i32
    %c0_i32_0 = arith.constant 0 : i32
    %c0_i32_1 = arith.constant 0 : i32
    return %arg0, %c0_i32, %c0_i32_0 : i32, i32, i32
  }
  func.func @transform_17(%arg0: i32) -> (i32, i32, i32) {
    %c0_i32 = arith.constant 0 : i32
    %c0_i32_0 = arith.constant 0 : i32
    %c0_i32_1 = arith.constant 0 : i32
    return %arg0, %c0_i32, %c0_i32_0 : i32, i32, i32
  }
  func.func @transform_18(%arg0: i32) -> (i32, i32, i32) {
    %c0_i32 = arith.constant 0 : i32
    %c0_i32_0 = arith.constant 0 : i32
    %c0_i32_1 = arith.constant 0 : i32
    return %arg0, %c0_i32, %c0_i32_0 : i32, i32, i32
  }
  func.func @transform_19(%arg0: i32) -> (i32, i32, i32) {
    %c0_i32 = arith.constant 0 : i32
    %c0_i32_0 = arith.constant 0 : i32
    %c0_i32_1 = arith.constant 0 : i32
    return %arg0, %c0_i32, %c0_i32_0 : i32, i32, i32
  }
  func.func @transform_20(%arg0: i32) -> (i32, i32, i32) {
    %c0_i32 = arith.constant 0 : i32
    %c0_i32_0 = arith.constant 0 : i32
    %c0_i32_1 = arith.constant 0 : i32
    return %arg0, %c0_i32, %c0_i32_0 : i32, i32, i32
  }
  func.func @transform_21(%arg0: i32) -> (i32, i32, i32) {
    %c0_i32 = arith.constant 0 : i32
    %c0_i32_0 = arith.constant 0 : i32
    %c0_i32_1 = arith.constant 0 : i32
    return %arg0, %c0_i32, %c0_i32_0 : i32, i32, i32
  }
  func.func @transform_22(%arg0: i32) -> (i32, i32, i32) {
    %c0_i32 = arith.constant 0 : i32
    %c0_i32_0 = arith.constant 0 : i32
    %c0_i32_1 = arith.constant 0 : i32
    return %arg0, %c0_i32, %c0_i32_0 : i32, i32, i32
  }
  func.func @transform_23(%arg0: i32) -> (i32, i32, i32) {
    %c0_i32 = arith.constant 0 : i32
    %c0_i32_0 = arith.constant 0 : i32
    %c0_i32_1 = arith.constant 0 : i32
    return %arg0, %c0_i32, %c0_i32_0 : i32, i32, i32
  }
  func.func @transform_24(%arg0: i32) -> (i32, i32, i32) {
    %c0_i32 = arith.constant 0 : i32
    %c0_i32_0 = arith.constant 0 : i32
    %c0_i32_1 = arith.constant 0 : i32
    return %arg0, %c0_i32, %c0_i32_0 : i32, i32, i32
  }
  func.func @transform_25(%arg0: i32) -> (i32, i32, i32) {
    %c0_i32 = arith.constant 0 : i32
    %c0_i32_0 = arith.constant 0 : i32
    %c0_i32_1 = arith.constant 0 : i32
    return %arg0, %c0_i32, %c0_i32_0 : i32, i32, i32
  }
  func.func @transform_26(%arg0: i32) -> (i32, i32) {
    %c0_i32 = arith.constant 0 : i32
    %c0_i32_0 = arith.constant 0 : i32
    %c0_i32_1 = arith.constant 0 : i32
    return %c0_i32, %c0_i32_0 : i32, i32
  }
}

</mosaic_0001>

<llo_original>
// kernel: tpu_custom_call.1
$region0: #{tpu_custom_call.1}
  #allocation0 [shape = 'u32[]', space=smem, size = 0x4, offset = 0x4, fixed_abs, tag = 'smem constant byte address 0x4 - core index']
  #allocation1 [shape = 'u32[144,128]{1,0:T(1,128)}', space=vmem, size = 0x12000, scoped, tag = 'internal scratch']
  #allocation2 [shape = 'f32[16,32]{1,0:T(8,128)}', space=vmem, size = 0x2000, scoped, tag = 'scratch operand']
  %s0 = inlined_call_operand.vmem [shape: f32[16,32], index: 0, kind: input, shape index: {}]
  %s1 = inlined_call_operand.vmem [shape: f32[16,32], index: 1, kind: input, shape index: {}]
  %s2 = inlined_call_operand.vmem [shape: f32[16,16], index: 2, kind: input, shape index: {}]
  %s3 = inlined_call_operand.vmem [shape: f32[16,16], index: 3, kind: input, shape index: {}]
  %s4 = inlined_call_operand.vmem [shape: bf16[2,32,32], index: 4, kind: input, shape index: {}]
  %s5 = inlined_call_operand.vmem [shape: f32[2,1,32], index: 5, kind: input, shape index: {}]
  %s6 = inlined_call_operand.vmem [shape: bf16[2,32,64], index: 6, kind: input, shape index: {}]
  %s7 = inlined_call_operand.vmem [shape: f32[2,1,64], index: 7, kind: input, shape index: {}]
  %s8 = inlined_call_operand.vmem [shape: bf16[2,32,32], index: 8, kind: input, shape index: {}]
  %s9 = inlined_call_operand.vmem [shape: f32[2,1,32], index: 9, kind: input, shape index: {}]
  %s10 = inlined_call_operand.vmem [shape: bf16[2,32,32], index: 10, kind: input, shape index: {}]
  %s11 = inlined_call_operand.vmem [shape: f32[2,1,32], index: 11, kind: input, shape index: {}]
  %s12 = inlined_call_operand.vmem [shape: bf16[2,32,64], index: 12, kind: input, shape index: {}]
  %s13 = inlined_call_operand.vmem [shape: f32[2,1,64], index: 13, kind: input, shape index: {}]
  %s14 = inlined_call_operand.vmem [shape: bf16[2,32,32], index: 14, kind: input, shape index: {}]
  %s15 = inlined_call_operand.vmem [shape: f32[2,1,32], index: 15, kind: input, shape index: {}]
  %s16 = inlined_call_operand.vmem [shape: bf16[2,32,2048], index: 16, kind: input, shape index: {}]
  %s17 = inlined_call_operand.vmem [shape: f32[2,1,2048], index: 17, kind: input, shape index: {}]
  %s18 = inlined_call_operand.vmem [shape: bf16[2,2048,32], index: 18, kind: input, shape index: {}]
  %s19 = inlined_call_operand.vmem [shape: f32[2,1,32], index: 19, kind: input, shape index: {}]
  %s20 = inlined_call_operand.vmem [shape: f32[2,1,32], index: 20, kind: input, shape index: {}]
  %s21 = inlined_call_operand.vmem [shape: f32[2,1,32], index: 21, kind: input, shape index: {}]
  %s22 = inlined_call_operand.vmem [shape: f32[2,1,32], index: 22, kind: input, shape index: {}]
  %s23 = inlined_call_operand.vmem [shape: f32[2,1,32], index: 23, kind: input, shape index: {}]
  %s24 = inlined_call_operand.vmem [shape: f32[2,1,32], index: 24, kind: input, shape index: {}]
  %s25 = inlined_call_operand.vmem [shape: f32[2,1,32], index: 25, kind: input, shape index: {}]
  %s26 = inlined_call_operand.hbm [shape: f32[16,32], index: 26, kind: output, shape index: {}]
  %s27 = sld [smem:[#allocation0]]
  $region145: #{tpu_custom_call.1} parent=0
    _
  %s29 = ssub.s32 1, %s27
  %s30 = scalar_select 0, %s29, %s27
  $region1: #{tpu_custom_call.1} parent=0
    #allocation3 [shape = 'u8[8192]{0}', space=vmem, size = 0x2000, scoped, tag = 'output window, operand 0, single buffered']
    #allocation4 [shape = 's32[2]{0}', space=sflag, size = 0x8, scoped, tag = 'scoped memory for tpu_custom_call.1']
    %31 = vsyncpa [#allocation4], 0
    loop: start=0, step=1, limit=4
    $region2: #{tpu_custom_call.1} parent=1 // loop_pre_header
      _
    $region3: #{tpu_custom_call.1} parent=1 // loop_header
      %s33 = sphi 0, %s37
      %p34 = scmp.ge.s32.totalorder %s33, 4
      %s41 = sphi 0, %s41
      %s43 = sphi 0, %s41
      %s44 = sphi 0, %s43
      %s58 = sphi 0, %s44
      %s62 = sphi 0, %s62
      %s64 = sphi 0, %s62
      %s65 = sphi 0, %s64
      %s79 = sphi 0, %s65
      %s83 = sphi 0, %s83
      %s85 = sphi 0, %s83
      %s86 = sphi 0, %s85
      %s100 = sphi 0, %s86
      %s104 = sphi 0, %s104
      %s106 = sphi 0, %s104
      %s107 = sphi 0, %s106
      %s121 = sphi 0, %s107
      %s127 = sphi 0, %s129
      %s130 = sphi 0, %s127
      %s131 = sphi 0, %s130
      %s147 = sphi 0, %s131
      %s153 = sphi 0, %s155
      %s156 = sphi 0, %s153
      %s157 = sphi 0, %s156
      %s173 = sphi 0, %s157
      %s179 = sphi 0, %s181
      %s182 = sphi 0, %s179
      %s183 = sphi 0, %s182
      %s199 = sphi 0, %s183
      %s205 = sphi 0, %s207
      %s208 = sphi 0, %s205
      %s209 = sphi 0, %s208
      %s225 = sphi 0, %s209
      %s231 = sphi 0, %s233
      %s234 = sphi 0, %s231
      %s235 = sphi 0, %s234
      %s251 = sphi 0, %s235
      %s257 = sphi 0, %s259
      %s260 = sphi 0, %s257
      %s261 = sphi 0, %s260
      %s277 = sphi 0, %s261
      %s283 = sphi 0, %s285
      %s286 = sphi 0, %s283
      %s287 = sphi 0, %s286
      %s303 = sphi 0, %s287
      %s309 = sphi 0, %s311
      %s312 = sphi 0, %s309
      %s313 = sphi 0, %s312
      %s329 = sphi 0, %s313
      %s335 = sphi 0, %s337
      %s338 = sphi 0, %s335
      %s339 = sphi 0, %s338
      %s355 = sphi 0, %s339
      %s361 = sphi 0, %s363
      %s364 = sphi 0, %s361
      %s365 = sphi 0, %s364
      %s381 = sphi 0, %s365
      %s387 = sphi 0, %s389
      %s390 = sphi 0, %s387
      %s391 = sphi 0, %s390
      %s407 = sphi 0, %s391
      %s413 = sphi 0, %s415
      %s416 = sphi 0, %s413
      %s417 = sphi 0, %s416
      %s433 = sphi 0, %s417
      %s439 = sphi 0, %s441
      %s442 = sphi 0, %s439
      %s443 = sphi 0, %s442
      %s459 = sphi 0, %s443
      %s465 = sphi 0, %s467
      %s468 = sphi 0, %s465
      %s469 = sphi 0, %s468
      %s485 = sphi 0, %s469
      %s491 = sphi 0, %s493
      %s494 = sphi 0, %s491
      %s495 = sphi 0, %s494
      %s511 = sphi 0, %s495
      %s517 = sphi 0, %s519
      %s520 = sphi 0, %s517
      %s521 = sphi 0, %s520
      %s537 = sphi 0, %s521
      %s543 = sphi 0, %s545
      %s546 = sphi 0, %s543
      %s547 = sphi 0, %s546
      %s563 = sphi 0, %s547
      %s569 = sphi 0, %s571
      %s572 = sphi 0, %s569
      %s573 = sphi 0, %s572
      %s589 = sphi 0, %s573
      %s595 = sphi 0, %s597
      %s598 = sphi 0, %s595
      %s599 = sphi 0, %s598
      %s615 = sphi 0, %s599
      %s621 = sphi 0, %s623
      %s624 = sphi 0, %s621
      %s625 = sphi 0, %s624
      %s641 = sphi 0, %s625
      %s647 = sphi 0, %s649
      %s650 = sphi 0, %s647
      %s651 = sphi 0, %s650
      %s667 = sphi 0, %s651
      %s673 = sphi 0, %s675
      %s676 = sphi 0, %s673
      %s677 = sphi 0, %s676
      %s693 = sphi 0, %s677
      %s697 = sphi 0, %s697
      %s699 = sphi 0, %s697
      %s700 = sphi 0, %s699
      %s714 = sphi 0, %s700
    $region4: #{tpu_custom_call.1} parent=1 // loop_header_branch
      %36 = sbr.rel (%p34) target = $region8
    $region5: #{tpu_custom_call.1} parent=1 // loop_body
      %s38 = ssub.s32 %s33, 1
      %s39 = ssub.s32 %s33, 2
      %s40 = sadd.s32 %s33, 1
      %s42 = sadd.s32 %s41, 1
      %p45 = scmp.eq.s32.totalorder %s33, 1
      %p46 = scmp.ne.s32.totalorder %s41, %s43
      %p47 = scmp.eq.s32.totalorder %s33, 0
      %p48 = por %p46, %p47
      %p49 = scmp.ne.s32.totalorder %s41, %s43
      %p50 = scmp.eq.s32.totalorder %s38, 1
      %p51 = por %p49, %p50
      %p52 = scmp.ne.s32.totalorder %s43, %s44
      %p53 = scmp.eq.s32.totalorder %s38, 0
      %p54 = por %p52, %p53
      %p55 = scmp.ne.s32.totalorder %s43, %s44
      %p56 = scmp.eq.s32.totalorder %s39, 1
      %p57 = por %p55, %p56
      %p59 = scmp.ne.s32.totalorder %s44, %s58
      %p60 = scmp.eq.s32.totalorder %s39, 0
      %p61 = por %p59, %p60
      %s63 = sadd.s32 %s62, 1
      %p66 = scmp.eq.s32.totalorder %s33, 1
      %p67 = scmp.ne.s32.totalorder %s62, %s64
      %p68 = scmp.eq.s32.totalorder %s33, 0
      %p69 = por %p67, %p68
      %p70 = scmp.ne.s32.totalorder %s62, %s64
      %p71 = scmp.eq.s32.totalorder %s38, 1
      %p72 = por %p70, %p71
      %p73 = scmp.ne.s32.totalorder %s64, %s65
      %p74 = scmp.eq.s32.totalorder %s38, 0
      %p75 = por %p73, %p74
      %p76 = scmp.ne.s32.totalorder %s64, %s65
      %p77 = scmp.eq.s32.totalorder %s39, 1
      %p78 = por %p76, %p77
      %p80 = scmp.ne.s32.totalorder %s65, %s79
      %p81 = scmp.eq.s32.totalorder %s39, 0
      %p82 = por %p80, %p81
      %s84 = sadd.s32 %s83, 1
      %p87 = scmp.eq.s32.totalorder %s33, 1
      %p88 = scmp.ne.s32.totalorder %s83, %s85
      %p89 = scmp.eq.s32.totalorder %s33, 0
      %p90 = por %p88, %p89
      %p91 = scmp.ne.s32.totalorder %s83, %s85
      %p92 = scmp.eq.s32.totalorder %s38, 1
      %p93 = por %p91, %p92
      %p94 = scmp.ne.s32.totalorder %s85, %s86
      %p95 = scmp.eq.s32.totalorder %s38, 0
      %p96 = por %p94, %p95
      %p97 = scmp.ne.s32.totalorder %s85, %s86
      %p98 = scmp.eq.s32.totalorder %s39, 1
      %p99 = por %p97, %p98
      %p101 = scmp.ne.s32.totalorder %s86, %s100
      %p102 = scmp.eq.s32.totalorder %s39, 0
      %p103 = por %p101, %p102
      %s105 = sadd.s32 %s104, 1
      %p108 = scmp.eq.s32.totalorder %s33, 1
      %p109 = scmp.ne.s32.totalorder %s104, %s106
      %p110 = scmp.eq.s32.totalorder %s33, 0
      %p111 = por %p109, %p110
      %p112 = scmp.ne.s32.totalorder %s104, %s106
      %p113 = scmp.eq.s32.totalorder %s38, 1
      %p114 = por %p112, %p113
      %p115 = scmp.ne.s32.totalorder %s106, %s107
      %p116 = scmp.eq.s32.totalorder %s38, 0
      %p117 = por %p115, %p116
      %p118 = scmp.ne.s32.totalorder %s106, %s107
      %p119 = scmp.eq.s32.totalorder %s39, 1
      %p120 = por %p118, %p119
      %p122 = scmp.ne.s32.totalorder %s107, %s121
      %p123 = scmp.eq.s32.totalorder %s39, 0
      %p124 = por %p122, %p123
      %s125 = ssub.s32 %s33, %s40
      %p126 = scmp.eq.s32.totalorder %s125, 0
      %s128 = sadd.s32 %s127, 1
      %s129 = scalar_select %p126, %s127, %s128
      %p132 = pneg %p126
      %p133 = scmp.eq.s32.totalorder %s33, 1
      %p134 = por %p132, %p133
      %p135 = scmp.ne.s32.totalorder %s127, %s130
      %p136 = scmp.eq.s32.totalorder %s33, 0
      %p137 = por %p135, %p136
      %p138 = scmp.ne.s32.totalorder %s127, %s130
      %p139 = scmp.eq.s32.totalorder %s38, 1
      %p140 = por %p138, %p139
      %p141 = scmp.ne.s32.totalorder %s130, %s131
      %p142 = scmp.eq.s32.totalorder %s38, 0
      %p143 = por %p141, %p142
      %p144 = scmp.ne.s32.totalorder %s130, %s131
      %p145 = scmp.eq.s32.totalorder %s39, 1
      %p146 = por %p144, %p145
      %p148 = scmp.ne.s32.totalorder %s131, %s147
      %p149 = scmp.eq.s32.totalorder %s39, 0
      %p150 = por %p148, %p149
      %s151 = ssub.s32 %s33, %s40
      %p152 = scmp.eq.s32.totalorder %s151, 0
      %s154 = sadd.s32 %s153, 1
      %s155 = scalar_select %p152, %s153, %s154
      %p158 = pneg %p152
      %p159 = scmp.eq.s32.totalorder %s33, 1
      %p160 = por %p158, %p159
      %p161 = scmp.ne.s32.totalorder %s153, %s156
      %p162 = scmp.eq.s32.totalorder %s33, 0
      %p163 = por %p161, %p162
      %p164 = scmp.ne.s32.totalorder %s153, %s156
      %p165 = scmp.eq.s32.totalorder %s38, 1
      %p166 = por %p164, %p165
      %p167 = scmp.ne.s32.totalorder %s156, %s157
      %p168 = scmp.eq.s32.totalorder %s38, 0
      %p169 = por %p167, %p168
      %p170 = scmp.ne.s32.totalorder %s156, %s157
      %p171 = scmp.eq.s32.totalorder %s39, 1
      %p172 = por %p170, %p171
      %p174 = scmp.ne.s32.totalorder %s157, %s173
      %p175 = scmp.eq.s32.totalorder %s39, 0
      %p176 = por %p174, %p175
      %s177 = ssub.s32 %s33, %s40
      %p178 = scmp.eq.s32.totalorder %s177, 0
      %s180 = sadd.s32 %s179, 1
      %s181 = scalar_select %p178, %s179, %s180
      %p184 = pneg %p178
      %p185 = scmp.eq.s32.totalorder %s33, 1
      %p186 = por %p184, %p185
      %p187 = scmp.ne.s32.totalorder %s179, %s182
      %p188 = scmp.eq.s32.totalorder %s33, 0
      %p189 = por %p187, %p188
      %p190 = scmp.ne.s32.totalorder %s179, %s182
      %p191 = scmp.eq.s32.totalorder %s38, 1
      %p192 = por %p190, %p191
      %p193 = scmp.ne.s32.totalorder %s182, %s183
      %p194 = scmp.eq.s32.totalorder %s38, 0
      %p195 = por %p193, %p194
      %p196 = scmp.ne.s32.totalorder %s182, %s183
      %p197 = scmp.eq.s32.totalorder %s39, 1
      %p198 = por %p196, %p197
      %p200 = scmp.ne.s32.totalorder %s183, %s199
      %p201 = scmp.eq.s32.totalorder %s39, 0
      %p202 = por %p200, %p201
      %s203 = ssub.s32 %s33, %s40
      %p204 = scmp.eq.s32.totalorder %s203, 0
      %s206 = sadd.s32 %s205, 1
      %s207 = scalar_select %p204, %s205, %s206
      %p210 = pneg %p204
      %p211 = scmp.eq.s32.totalorder %s33, 1
      %p212 = por %p210, %p211
      %p213 = scmp.ne.s32.totalorder %s205, %s208
      %p214 = scmp.eq.s32.totalorder %s33, 0
      %p215 = por %p213, %p214
      %p216 = scmp.ne.s32.totalorder %s205, %s208
      %p217 = scmp.eq.s32.totalorder %s38, 1
      %p218 = por %p216, %p217
      %p219 = scmp.ne.s32.totalorder %s208, %s209
      %p220 = scmp.eq.s32.totalorder %s38, 0
      %p221 = por %p219, %p220
      %p222 = scmp.ne.s32.totalorder %s208, %s209
      %p223 = scmp.eq.s32.totalorder %s39, 1
      %p224 = por %p222, %p223
      %p226 = scmp.ne.s32.totalorder %s209, %s225
      %p227 = scmp.eq.s32.totalorder %s39, 0
      %p228 = por %p226, %p227
      %s229 = ssub.s32 %s33, %s40
      %p230 = scmp.eq.s32.totalorder %s229, 0
      %s232 = sadd.s32 %s231, 1
      %s233 = scalar_select %p230, %s231, %s232
      %p236 = pneg %p230
      %p237 = scmp.eq.s32.totalorder %s33, 1
      %p238 = por %p236, %p237
      %p239 = scmp.ne.s32.totalorder %s231, %s234
      %p240 = scmp.eq.s32.totalorder %s33, 0
      %p241 = por %p239, %p240
      %p242 = scmp.ne.s32.totalorder %s231, %s234
      %p243 = scmp.eq.s32.totalorder %s38, 1
      %p244 = por %p242, %p243
      %p245 = scmp.ne.s32.totalorder %s234, %s235
      %p246 = scmp.eq.s32.totalorder %s38, 0
      %p247 = por %p245, %p246
      %p248 = scmp.ne.s32.totalorder %s234, %s235
      %p249 = scmp.eq.s32.totalorder %s39, 1
      %p250 = por %p248, %p249
      %p252 = scmp.ne.s32.totalorder %s235, %s251
      %p253 = scmp.eq.s32.totalorder %s39, 0
      %p254 = por %p252, %p253
      %s255 = ssub.s32 %s33, %s40
      %p256 = scmp.eq.s32.totalorder %s255, 0
      %s258 = sadd.s32 %s257, 1
      %s259 = scalar_select %p256, %s257, %s258
      %p262 = pneg %p256
      %p263 = scmp.eq.s32.totalorder %s33, 1
      %p264 = por %p262, %p263
      %p265 = scmp.ne.s32.totalorder %s257, %s260
      %p266 = scmp.eq.s32.totalorder %s33, 0
      %p267 = por %p265, %p266
      %p268 = scmp.ne.s32.totalorder %s257, %s260
      %p269 = scmp.eq.s32.totalorder %s38, 1
      %p270 = por %p268, %p269
      %p271 = scmp.ne.s32.totalorder %s260, %s261
      %p272 = scmp.eq.s32.totalorder %s38, 0
      %p273 = por %p271, %p272
      %p274 = scmp.ne.s32.totalorder %s260, %s261
      %p275 = scmp.eq.s32.totalorder %s39, 1
      %p276 = por %p274, %p275
      %p278 = scmp.ne.s32.totalorder %s261, %s277
      %p279 = scmp.eq.s32.totalorder %s39, 0
      %p280 = por %p278, %p279
      %s281 = ssub.s32 %s33, %s40
      %p282 = scmp.eq.s32.totalorder %s281, 0
      %s284 = sadd.s32 %s283, 1
      %s285 = scalar_select %p282, %s283, %s284
      %p288 = pneg %p282
      %p289 = scmp.eq.s32.totalorder %s33, 1
      %p290 = por %p288, %p289
      %p291 = scmp.ne.s32.totalorder %s283, %s286
      %p292 = scmp.eq.s32.totalorder %s33, 0
      %p293 = por %p291, %p292
      %p294 = scmp.ne.s32.totalorder %s283, %s286
      %p295 = scmp.eq.s32.totalorder %s38, 1
      %p296 = por %p294, %p295
      %p297 = scmp.ne.s32.totalorder %s286, %s287
      %p298 = scmp.eq.s32.totalorder %s38, 0
      %p299 = por %p297, %p298
      %p300 = scmp.ne.s32.totalorder %s286, %s287
      %p301 = scmp.eq.s32.totalorder %s39, 1
      %p302 = por %p300, %p301
      %p304 = scmp.ne.s32.totalorder %s287, %s303
      %p305 = scmp.eq.s32.totalorder %s39, 0
      %p306 = por %p304, %p305
      %s307 = ssub.s32 %s33, %s40
      %p308 = scmp.eq.s32.totalorder %s307, 0
      %s310 = sadd.s32 %s309, 1
      %s311 = scalar_select %p308, %s309, %s310
      %p314 = pneg %p308
      %p315 = scmp.eq.s32.totalorder %s33, 1
      %p316 = por %p314, %p315
      %p317 = scmp.ne.s32.totalorder %s309, %s312
      %p318 = scmp.eq.s32.totalorder %s33, 0
      %p319 = por %p317, %p318
      %p320 = scmp.ne.s32.totalorder %s309, %s312
      %p321 = scmp.eq.s32.totalorder %s38, 1
      %p322 = por %p320, %p321
      %p323 = scmp.ne.s32.totalorder %s312, %s313
      %p324 = scmp.eq.s32.totalorder %s38, 0
      %p325 = por %p323, %p324
      %p326 = scmp.ne.s32.totalorder %s312, %s313
      %p327 = scmp.eq.s32.totalorder %s39, 1
      %p328 = por %p326, %p327
      %p330 = scmp.ne.s32.totalorder %s313, %s329
      %p331 = scmp.eq.s32.totalorder %s39, 0
      %p332 = por %p330, %p331
      %s333 = ssub.s32 %s33, %s40
      %p334 = scmp.eq.s32.totalorder %s333, 0
      %s336 = sadd.s32 %s335, 1
      %s337 = scalar_select %p334, %s335, %s336
      %p340 = pneg %p334
      %p341 = scmp.eq.s32.totalorder %s33, 1
      %p342 = por %p340, %p341
      %p343 = scmp.ne.s32.totalorder %s335, %s338
      %p344 = scmp.eq.s32.totalorder %s33, 0
      %p345 = por %p343, %p344
      %p346 = scmp.ne.s32.totalorder %s335, %s338
      %p347 = scmp.eq.s32.totalorder %s38, 1
      %p348 = por %p346, %p347
      %p349 = scmp.ne.s32.totalorder %s338, %s339
      %p350 = scmp.eq.s32.totalorder %s38, 0
      %p351 = por %p349, %p350
      %p352 = scmp.ne.s32.totalorder %s338, %s339
      %p353 = scmp.eq.s32.totalorder %s39, 1
      %p354 = por %p352, %p353
      %p356 = scmp.ne.s32.totalorder %s339, %s355
      %p357 = scmp.eq.s32.totalorder %s39, 0
      %p358 = por %p356, %p357
      %s359 = ssub.s32 %s33, %s40
      %p360 = scmp.eq.s32.totalorder %s359, 0
      %s362 = sadd.s32 %s361, 1
      %s363 = scalar_select %p360, %s361, %s362
      %p366 = pneg %p360
      %p367 = scmp.eq.s32.totalorder %s33, 1
      %p368 = por %p366, %p367
      %p369 = scmp.ne.s32.totalorder %s361, %s364
      %p370 = scmp.eq.s32.totalorder %s33, 0
      %p371 = por %p369, %p370
      %p372 = scmp.ne.s32.totalorder %s361, %s364
      %p373 = scmp.eq.s32.totalorder %s38, 1
      %p374 = por %p372, %p373
      %p375 = scmp.ne.s32.totalorder %s364, %s365
      %p376 = scmp.eq.s32.totalorder %s38, 0
      %p377 = por %p375, %p376
      %p378 = scmp.ne.s32.totalorder %s364, %s365
      %p379 = scmp.eq.s32.totalorder %s39, 1
      %p380 = por %p378, %p379
      %p382 = scmp.ne.s32.totalorder %s365, %s381
      %p383 = scmp.eq.s32.totalorder %s39, 0
      %p384 = por %p382, %p383
      %s385 = ssub.s32 %s33, %s40
      %p386 = scmp.eq.s32.totalorder %s385, 0
      %s388 = sadd.s32 %s387, 1
      %s389 = scalar_select %p386, %s387, %s388
      %p392 = pneg %p386
      %p393 = scmp.eq.s32.totalorder %s33, 1
      %p394 = por %p392, %p393
      %p395 = scmp.ne.s32.totalorder %s387, %s390
      %p396 = scmp.eq.s32.totalorder %s33, 0
      %p397 = por %p395, %p396
      %p398 = scmp.ne.s32.totalorder %s387, %s390
      %p399 = scmp.eq.s32.totalorder %s38, 1
      %p400 = por %p398, %p399
      %p401 = scmp.ne.s32.totalorder %s390, %s391
      %p402 = scmp.eq.s32.totalorder %s38, 0
      %p403 = por %p401, %p402
      %p404 = scmp.ne.s32.totalorder %s390, %s391
      %p405 = scmp.eq.s32.totalorder %s39, 1
      %p406 = por %p404, %p405
      %p408 = scmp.ne.s32.totalorder %s391, %s407
      %p409 = scmp.eq.s32.totalorder %s39, 0
      %p410 = por %p408, %p409
      %s411 = ssub.s32 %s33, %s40
      %p412 = scmp.eq.s32.totalorder %s411, 0
      %s414 = sadd.s32 %s413, 1
      %s415 = scalar_select %p412, %s413, %s414
      %p418 = pneg %p412
      %p419 = scmp.eq.s32.totalorder %s33, 1
      %p420 = por %p418, %p419
      %p421 = scmp.ne.s32.totalorder %s413, %s416
      %p422 = scmp.eq.s32.totalorder %s33, 0
      %p423 = por %p421, %p422
      %p424 = scmp.ne.s32.totalorder %s413, %s416
      %p425 = scmp.eq.s32.totalorder %s38, 1
      %p426 = por %p424, %p425
      %p427 = scmp.ne.s32.totalorder %s416, %s417
      %p428 = scmp.eq.s32.totalorder %s38, 0
      %p429 = por %p427, %p428
      %p430 = scmp.ne.s32.totalorder %s416, %s417
      %p431 = scmp.eq.s32.totalorder %s39, 1
      %p432 = por %p430, %p431
      %p434 = scmp.ne.s32.totalorder %s417, %s433
      %p435 = scmp.eq.s32.totalorder %s39, 0
      %p436 = por %p434, %p435
      %s437 = ssub.s32 %s33, %s40
      %p438 = scmp.eq.s32.totalorder %s437, 0
      %s440 = sadd.s32 %s439, 1
      %s441 = scalar_select %p438, %s439, %s440
      %p444 = pneg %p438
      %p445 = scmp.eq.s32.totalorder %s33, 1
      %p446 = por %p444, %p445
      %p447 = scmp.ne.s32.totalorder %s439, %s442
      %p448 = scmp.eq.s32.totalorder %s33, 0
      %p449 = por %p447, %p448
      %p450 = scmp.ne.s32.totalorder %s439, %s442
      %p451 = scmp.eq.s32.totalorder %s38, 1
      %p452 = por %p450, %p451
      %p453 = scmp.ne.s32.totalorder %s442, %s443
      %p454 = scmp.eq.s32.totalorder %s38, 0
      %p455 = por %p453, %p454
      %p456 = scmp.ne.s32.totalorder %s442, %s443
      %p457 = scmp.eq.s32.totalorder %s39, 1
      %p458 = por %p456, %p457
      %p460 = scmp.ne.s32.totalorder %s443, %s459
      %p461 = scmp.eq.s32.totalorder %s39, 0
      %p462 = por %p460, %p461
      %s463 = ssub.s32 %s33, %s40
      %p464 = scmp.eq.s32.totalorder %s463, 0
      %s466 = sadd.s32 %s465, 1
      %s467 = scalar_select %p464, %s465, %s466
      %p470 = pneg %p464
      %p471 = scmp.eq.s32.totalorder %s33, 1
      %p472 = por %p470, %p471
      %p473 = scmp.ne.s32.totalorder %s465, %s468
      %p474 = scmp.eq.s32.totalorder %s33, 0
      %p475 = por %p473, %p474
      %p476 = scmp.ne.s32.totalorder %s465, %s468
      %p477 = scmp.eq.s32.totalorder %s38, 1
      %p478 = por %p476, %p477
      %p479 = scmp.ne.s32.totalorder %s468, %s469
      %p480 = scmp.eq.s32.totalorder %s38, 0
      %p481 = por %p479, %p480
      %p482 = scmp.ne.s32.totalorder %s468, %s469
      %p483 = scmp.eq.s32.totalorder %s39, 1
      %p484 = por %p482, %p483
      %p486 = scmp.ne.s32.totalorder %s469, %s485
      %p487 = scmp.eq.s32.totalorder %s39, 0
      %p488 = por %p486, %p487
      %s489 = ssub.s32 %s33, %s40
      %p490 = scmp.eq.s32.totalorder %s489, 0
      %s492 = sadd.s32 %s491, 1
      %s493 = scalar_select %p490, %s491, %s492
      %p496 = pneg %p490
      %p497 = scmp.eq.s32.totalorder %s33, 1
      %p498 = por %p496, %p497
      %p499 = scmp.ne.s32.totalorder %s491, %s494
      %p500 = scmp.eq.s32.totalorder %s33, 0
      %p501 = por %p499, %p500
      %p502 = scmp.ne.s32.totalorder %s491, %s494
      %p503 = scmp.eq.s32.totalorder %s38, 1
      %p504 = por %p502, %p503
      %p505 = scmp.ne.s32.totalorder %s494, %s495
      %p506 = scmp.eq.s32.totalorder %s38, 0
      %p507 = por %p505, %p506
      %p508 = scmp.ne.s32.totalorder %s494, %s495
      %p509 = scmp.eq.s32.totalorder %s39, 1
      %p510 = por %p508, %p509
      %p512 = scmp.ne.s32.totalorder %s495, %s511
      %p513 = scmp.eq.s32.totalorder %s39, 0
      %p514 = por %p512, %p513
      %s515 = ssub.s32 %s33, %s40
      %p516 = scmp.eq.s32.totalorder %s515, 0
      %s518 = sadd.s32 %s517, 1
      %s519 = scalar_select %p516, %s517, %s518
      %p522 = pneg %p516
      %p523 = scmp.eq.s32.totalorder %s33, 1
      %p524 = por %p522, %p523
      %p525 = scmp.ne.s32.totalorder %s517, %s520
      %p526 = scmp.eq.s32.totalorder %s33, 0
      %p527 = por %p525, %p526
      %p528 = scmp.ne.s32.totalorder %s517, %s520
      %p529 = scmp.eq.s32.totalorder %s38, 1
      %p530 = por %p528, %p529
      %p531 = scmp.ne.s32.totalorder %s520, %s521
      %p532 = scmp.eq.s32.totalorder %s38, 0
      %p533 = por %p531, %p532
      %p534 = scmp.ne.s32.totalorder %s520, %s521
      %p535 = scmp.eq.s32.totalorder %s39, 1
      %p536 = por %p534, %p535
      %p538 = scmp.ne.s32.totalorder %s521, %s537
      %p539 = scmp.eq.s32.totalorder %s39, 0
      %p540 = por %p538, %p539
      %s541 = ssub.s32 %s33, %s40
      %p542 = scmp.eq.s32.totalorder %s541, 0
      %s544 = sadd.s32 %s543, 1
      %s545 = scalar_select %p542, %s543, %s544
      %p548 = pneg %p542
      %p549 = scmp.eq.s32.totalorder %s33, 1
      %p550 = por %p548, %p549
      %p551 = scmp.ne.s32.totalorder %s543, %s546
      %p552 = scmp.eq.s32.totalorder %s33, 0
      %p553 = por %p551, %p552
      %p554 = scmp.ne.s32.totalorder %s543, %s546
      %p555 = scmp.eq.s32.totalorder %s38, 1
      %p556 = por %p554, %p555
      %p557 = scmp.ne.s32.totalorder %s546, %s547
      %p558 = scmp.eq.s32.totalorder %s38, 0
      %p559 = por %p557, %p558
      %p560 = scmp.ne.s32.totalorder %s546, %s547
      %p561 = scmp.eq.s32.totalorder %s39, 1
      %p562 = por %p560, %p561
      %p564 = scmp.ne.s32.totalorder %s547, %s563
      %p565 = scmp.eq.s32.totalorder %s39, 0
      %p566 = por %p564, %p565
      %s567 = ssub.s32 %s33, %s40
      %p568 = scmp.eq.s32.totalorder %s567, 0
      %s570 = sadd.s32 %s569, 1
      %s571 = scalar_select %p568, %s569, %s570
      %p574 = pneg %p568
      %p575 = scmp.eq.s32.totalorder %s33, 1
      %p576 = por %p574, %p575
      %p577 = scmp.ne.s32.totalorder %s569, %s572
      %p578 = scmp.eq.s32.totalorder %s33, 0
      %p579 = por %p577, %p578
      %p580 = scmp.ne.s32.totalorder %s569, %s572
      %p581 = scmp.eq.s32.totalorder %s38, 1
      %p582 = por %p580, %p581
      %p583 = scmp.ne.s32.totalorder %s572, %s573
      %p584 = scmp.eq.s32.totalorder %s38, 0
      %p585 = por %p583, %p584
      %p586 = scmp.ne.s32.totalorder %s572, %s573
      %p587 = scmp.eq.s32.totalorder %s39, 1
      %p588 = por %p586, %p587
      %p590 = scmp.ne.s32.totalorder %s573, %s589
      %p591 = scmp.eq.s32.totalorder %s39, 0
      %p592 = por %p590, %p591
      %s593 = ssub.s32 %s33, %s40
      %p594 = scmp.eq.s32.totalorder %s593, 0
      %s596 = sadd.s32 %s595, 1
      %s597 = scalar_select %p594, %s595, %s596
      %p600 = pneg %p594
      %p601 = scmp.eq.s32.totalorder %s33, 1
      %p602 = por %p600, %p601
      %p603 = scmp.ne.s32.totalorder %s595, %s598
      %p604 = scmp.eq.s32.totalorder %s33, 0
      %p605 = por %p603, %p604
      %p606 = scmp.ne.s32.totalorder %s595, %s598
      %p607 = scmp.eq.s32.totalorder %s38, 1
      %p608 = por %p606, %p607
      %p609 = scmp.ne.s32.totalorder %s598, %s599
      %p610 = scmp.eq.s32.totalorder %s38, 0
      %p611 = por %p609, %p610
      %p612 = scmp.ne.s32.totalorder %s598, %s599
      %p613 = scmp.eq.s32.totalorder %s39, 1
      %p614 = por %p612, %p613
      %p616 = scmp.ne.s32.totalorder %s599, %s615
      %p617 = scmp.eq.s32.totalorder %s39, 0
      %p618 = por %p616, %p617
      %s619 = ssub.s32 %s33, %s40
      %p620 = scmp.eq.s32.totalorder %s619, 0
      %s622 = sadd.s32 %s621, 1
      %s623 = scalar_select %p620, %s621, %s622
      %p626 = pneg %p620
      %p627 = scmp.eq.s32.totalorder %s33, 1
      %p628 = por %p626, %p627
      %p629 = scmp.ne.s32.totalorder %s621, %s624
      %p630 = scmp.eq.s32.totalorder %s33, 0
      %p631 = por %p629, %p630
      %p632 = scmp.ne.s32.totalorder %s621, %s624
      %p633 = scmp.eq.s32.totalorder %s38, 1
      %p634 = por %p632, %p633
      %p635 = scmp.ne.s32.totalorder %s624, %s625
      %p636 = scmp.eq.s32.totalorder %s38, 0
      %p637 = por %p635, %p636
      %p638 = scmp.ne.s32.totalorder %s624, %s625
      %p639 = scmp.eq.s32.totalorder %s39, 1
      %p640 = por %p638, %p639
      %p642 = scmp.ne.s32.totalorder %s625, %s641
      %p643 = scmp.eq.s32.totalorder %s39, 0
      %p644 = por %p642, %p643
      %s645 = ssub.s32 %s33, %s40
      %p646 = scmp.eq.s32.totalorder %s645, 0
      %s648 = sadd.s32 %s647, 1
      %s649 = scalar_select %p646, %s647, %s648
      %p652 = pneg %p646
      %p653 = scmp.eq.s32.totalorder %s33, 1
      %p654 = por %p652, %p653
      %p655 = scmp.ne.s32.totalorder %s647, %s650
      %p656 = scmp.eq.s32.totalorder %s33, 0
      %p657 = por %p655, %p656
      %p658 = scmp.ne.s32.totalorder %s647, %s650
      %p659 = scmp.eq.s32.totalorder %s38, 1
      %p660 = por %p658, %p659
      %p661 = scmp.ne.s32.totalorder %s650, %s651
      %p662 = scmp.eq.s32.totalorder %s38, 0
      %p663 = por %p661, %p662
      %p664 = scmp.ne.s32.totalorder %s650, %s651
      %p665 = scmp.eq.s32.totalorder %s39, 1
      %p666 = por %p664, %p665
      %p668 = scmp.ne.s32.totalorder %s651, %s667
      %p669 = scmp.eq.s32.totalorder %s39, 0
      %p670 = por %p668, %p669
      %s671 = ssub.s32 %s33, %s40
      %p672 = scmp.eq.s32.totalorder %s671, 0
      %s674 = sadd.s32 %s673, 1
      %s675 = scalar_select %p672, %s673, %s674
      %p678 = pneg %p672
      %p679 = scmp.eq.s32.totalorder %s33, 1
      %p680 = por %p678, %p679
      %p681 = scmp.ne.s32.totalorder %s673, %s676
      %p682 = scmp.eq.s32.totalorder %s33, 0
      %p683 = por %p681, %p682
      %p684 = scmp.ne.s32.totalorder %s673, %s676
      %p685 = scmp.eq.s32.totalorder %s38, 1
      %p686 = por %p684, %p685
      %p687 = scmp.ne.s32.totalorder %s676, %s677
      %p688 = scmp.eq.s32.totalorder %s38, 0
      %p689 = por %p687, %p688
      %p690 = scmp.ne.s32.totalorder %s676, %s677
      %p691 = scmp.eq.s32.totalorder %s39, 1
      %p692 = por %p690, %p691
      %p694 = scmp.ne.s32.totalorder %s677, %s693
      %p695 = scmp.eq.s32.totalorder %s39, 0
      %p696 = por %p694, %p695
      %s698 = sadd.s32 %s697, 1
      %p701 = scmp.eq.s32.totalorder %s33, 1
      %p702 = scmp.ne.s32.totalorder %s697, %s699
      %p703 = scmp.eq.s32.totalorder %s33, 0
      %p704 = por %p702, %p703
      %p705 = scmp.ne.s32.totalorder %s697, %s699
      %p706 = scmp.eq.s32.totalorder %s38, 1
      %p707 = por %p705, %p706
      %p708 = scmp.ne.s32.totalorder %s699, %s700
      %p709 = scmp.eq.s32.totalorder %s38, 0
      %p710 = por %p708, %p709
      %p711 = scmp.ne.s32.totalorder %s699, %s700
      %p712 = scmp.eq.s32.totalorder %s39, 1
      %p713 = por %p711, %p712
      %p715 = scmp.ne.s32.totalorder %s700, %s714
      %p716 = scmp.eq.s32.totalorder %s39, 0
      %p717 = por %p715, %p716
      %p718 = scmp.le.s32.totalorder 1, %s33
      %p719 = scmp.lt.s32.totalorder %s33, 3
      %p720 = pnand %p718, %p719
      %p721 = pneg %p720
      // Predicated region
      $region9: #{tpu_custom_call.1} parent=5 // pred_check
        _
      $region10: #{tpu_custom_call.1} parent=5 // pred_check_branch
        %723 = sbr.rel (%p720) target = $region12
      $region11: #{tpu_custom_call.1} parent=5 // pred_region
        %s724 = ssub.s32 %s33, 1
        // Predicated region
        $region13: #{tpu_custom_call.1} parent=11 // pred_check
          %p725 = pneg %p54
        $region14: #{tpu_custom_call.1} parent=11 // pred_check_branch
          %727 = sbr.rel (%p725) target = $region16
        $region15: #{tpu_custom_call.1} parent=11 // pred_region
          _
        $region16: #{tpu_custom_call.1} parent=11 // pred_fallthru
          _
        // Predicated region
        $region17: #{tpu_custom_call.1} parent=11 // pred_check
          %p728 = pneg %p75
        $region18: #{tpu_custom_call.1} parent=11 // pred_check_branch
          %730 = sbr.rel (%p728) target = $region20
        $region19: #{tpu_custom_call.1} parent=11 // pred_region
          _
        $region20: #{tpu_custom_call.1} parent=11 // pred_fallthru
          _
        // Predicated region
        $region21: #{tpu_custom_call.1} parent=11 // pred_check
          %p731 = pneg %p96
        $region22: #{tpu_custom_call.1} parent=11 // pred_check_branch
          %733 = sbr.rel (%p731) target = $region24
        $region23: #{tpu_custom_call.1} parent=11 // pred_region
          _
        $region24: #{tpu_custom_call.1} parent=11 // pred_fallthru
          _
        // Predicated region
        $region25: #{tpu_custom_call.1} parent=11 // pred_check
          %p734 = pneg %p117
        $region26: #{tpu_custom_call.1} parent=11 // pred_check_branch
          %736 = sbr.rel (%p734) target = $region28
        $region27: #{tpu_custom_call.1} parent=11 // pred_region
          _
        $region28: #{tpu_custom_call.1} parent=11 // pred_fallthru
          _
      $region12: #{tpu_custom_call.1} parent=5 // pred_fallthru
        _
      %p737 = scmp.lt.s32.totalorder %s33, 2
      // Predicated region
      $region29: #{tpu_custom_call.1} parent=5 // pred_check
        %p738 = pneg %p737
      $region30: #{tpu_custom_call.1} parent=5 // pred_check_branch
        %740 = sbr.rel (%p738) target = $region32
      $region31: #{tpu_custom_call.1} parent=5 // pred_region
        // Predicated region
        $region33: #{tpu_custom_call.1} parent=31 // pred_check
          %p741 = pneg %p137
        $region34: #{tpu_custom_call.1} parent=31 // pred_check_branch
          %743 = sbr.rel (%p741) target = $region36
        $region35: #{tpu_custom_call.1} parent=31 // pred_region
          %p744 = scmp.lt.s32.totalorder %s33, 1
          %s745 = scalar_select %p744, %s33, 1
          %s746 = smul.addr %s745, 4
          %s747 = smul.addr %s746, 4
          %s748 = scalar_lea.vmem %s4, %s747
        $region36: #{tpu_custom_call.1} parent=31 // pred_fallthru
          _
        // Predicated region
        $region37: #{tpu_custom_call.1} parent=31 // pred_check
          %p749 = pneg %p163
        $region38: #{tpu_custom_call.1} parent=31 // pred_check_branch
          %751 = sbr.rel (%p749) target = $region40
        $region39: #{tpu_custom_call.1} parent=31 // pred_region
          %p752 = scmp.lt.s32.totalorder %s33, 1
          %s753 = scalar_select %p752, %s33, 1
          %s754 = scalar_lea.vmem %s5, %s753
        $region40: #{tpu_custom_call.1} parent=31 // pred_fallthru
          _
        // Predicated region
        $region41: #{tpu_custom_call.1} parent=31 // pred_check
          %p755 = pneg %p189
        $region42: #{tpu_custom_call.1} parent=31 // pred_check_branch
          %757 = sbr.rel (%p755) target = $region44
        $region43: #{tpu_custom_call.1} parent=31 // pred_region
          %p758 = scmp.lt.s32.totalorder %s33, 1
          %s759 = scalar_select %p758, %s33, 1
          %s760 = smul.addr %s759, 4
          %s761 = smul.addr %s760, 4
          %s762 = scalar_lea.vmem %s6, %s761
        $region44: #{tpu_custom_call.1} parent=31 // pred_fallthru
          _
        // Predicated region
        $region45: #{tpu_custom_call.1} parent=31 // pred_check
          %p763 = pneg %p215
        $region46: #{tpu_custom_call.1} parent=31 // pred_check_branch
          %765 = sbr.rel (%p763) target = $region48
        $region47: #{tpu_custom_call.1} parent=31 // pred_region
          %p766 = scmp.lt.s32.totalorder %s33, 1
          %s767 = scalar_select %p766, %s33, 1
          %s768 = scalar_lea.vmem %s7, %s767
        $region48: #{tpu_custom_call.1} parent=31 // pred_fallthru
          _
        // Predicated region
        $region49: #{tpu_custom_call.1} parent=31 // pred_check
          %p769 = pneg %p241
        $region50: #{tpu_custom_call.1} parent=31 // pred_check_branch
          %771 = sbr.rel (%p769) target = $region52
        $region51: #{tpu_custom_call.1} parent=31 // pred_region
          %p772 = scmp.lt.s32.totalorder %s33, 1
          %s773 = scalar_select %p772, %s33, 1
          %s774 = smul.addr %s773, 4
          %s775 = smul.addr %s774, 4
          %s776 = scalar_lea.vmem %s8, %s775
        $region52: #{tpu_custom_call.1} parent=31 // pred_fallthru
          _
        // Predicated region
        $region53: #{tpu_custom_call.1} parent=31 // pred_check
          %p777 = pneg %p267
        $region54: #{tpu_custom_call.1} parent=31 // pred_check_branch
          %779 = sbr.rel (%p777) target = $region56
        $region55: #{tpu_custom_call.1} parent=31 // pred_region
          %p780 = scmp.lt.s32.totalorder %s33, 1
          %s781 = scalar_select %p780, %s33, 1
          %s782 = scalar_lea.vmem %s9, %s781
        $region56: #{tpu_custom_call.1} parent=31 // pred_fallthru
          _
        // Predicated region
        $region57: #{tpu_custom_call.1} parent=31 // pred_check
          %p783 = pneg %p293
        $region58: #{tpu_custom_call.1} parent=31 // pred_check_branch
          %785 = sbr.rel (%p783) target = $region60
        $region59: #{tpu_custom_call.1} parent=31 // pred_region
          %p786 = scmp.lt.s32.totalorder %s33, 1
          %s787 = scalar_select %p786, %s33, 1
          %s788 = smul.addr %s787, 4
          %s789 = smul.addr %s788, 4
          %s790 = scalar_lea.vmem %s10, %s789
        $region60: #{tpu_custom_call.1} parent=31 // pred_fallthru
          _
        // Predicated region
        $region61: #{tpu_custom_call.1} parent=31 // pred_check
          %p791 = pneg %p319
        $region62: #{tpu_custom_call.1} parent=31 // pred_check_branch
          %793 = sbr.rel (%p791) target = $region64
        $region63: #{tpu_custom_call.1} parent=31 // pred_region
          %p794 = scmp.lt.s32.totalorder %s33, 1
          %s795 = scalar_select %p794, %s33, 1
          %s796 = scalar_lea.vmem %s11, %s795
        $region64: #{tpu_custom_call.1} parent=31 // pred_fallthru
          _
        // Predicated region
        $region65: #{tpu_custom_call.1} parent=31 // pred_check
          %p797 = pneg %p345
        $region66: #{tpu_custom_call.1} parent=31 // pred_check_branch
          %799 = sbr.rel (%p797) target = $region68
        $region67: #{tpu_custom_call.1} parent=31 // pred_region
          %p800 = scmp.lt.s32.totalorder %s33, 1
          %s801 = scalar_select %p800, %s33, 1
          %s802 = smul.addr %s801, 4
          %s803 = smul.addr %s802, 4
          %s804 = scalar_lea.vmem %s12, %s803
        $region68: #{tpu_custom_call.1} parent=31 // pred_fallthru
          _
        // Predicated region
        $region69: #{tpu_custom_call.1} parent=31 // pred_check
          %p805 = pneg %p371
        $region70: #{tpu_custom_call.1} parent=31 // pred_check_branch
          %807 = sbr.rel (%p805) target = $region72
        $region71: #{tpu_custom_call.1} parent=31 // pred_region
          %p808 = scmp.lt.s32.totalorder %s33, 1
          %s809 = scalar_select %p808, %s33, 1
          %s810 = scalar_lea.vmem %s13, %s809
        $region72: #{tpu_custom_call.1} parent=31 // pred_fallthru
          _
        // Predicated region
        $region73: #{tpu_custom_call.1} parent=31 // pred_check
          %p811 = pneg %p397
        $region74: #{tpu_custom_call.1} parent=31 // pred_check_branch
          %813 = sbr.rel (%p811) target = $region76
        $region75: #{tpu_custom_call.1} parent=31 // pred_region
          %p814 = scmp.lt.s32.totalorder %s33, 1
          %s815 = scalar_select %p814, %s33, 1
          %s816 = smul.addr %s815, 4
          %s817 = smul.addr %s816, 4
          %s818 = scalar_lea.vmem %s14, %s817
        $region76: #{tpu_custom_call.1} parent=31 // pred_fallthru
          _
        // Predicated region
        $region77: #{tpu_custom_call.1} parent=31 // pred_check
          %p819 = pneg %p423
        $region78: #{tpu_custom_call.1} parent=31 // pred_check_branch
          %821 = sbr.rel (%p819) target = $region80
        $region79: #{tpu_custom_call.1} parent=31 // pred_region
          %p822 = scmp.lt.s32.totalorder %s33, 1
          %s823 = scalar_select %p822, %s33, 1
          %s824 = scalar_lea.vmem %s15, %s823
        $region80: #{tpu_custom_call.1} parent=31 // pred_fallthru
          _
        // Predicated region
        $region81: #{tpu_custom_call.1} parent=31 // pred_check
          %p825 = pneg %p449
        $region82: #{tpu_custom_call.1} parent=31 // pred_check_branch
          %827 = sbr.rel (%p825) target = $region84
        $region83: #{tpu_custom_call.1} parent=31 // pred_region
          %p828 = scmp.lt.s32.totalorder %s33, 1
          %s829 = scalar_select %p828, %s33, 1
          %s830 = smul.addr %s829, 64
          %s831 = smul.addr %s830, 4
          %s832 = scalar_lea.vmem %s16, %s831
        $region84: #{tpu_custom_call.1} parent=31 // pred_fallthru
          _
        // Predicated region
        $region85: #{tpu_custom_call.1} parent=31 // pred_check
          %p833 = pneg %p475
        $region86: #{tpu_custom_call.1} parent=31 // pred_check_branch
          %835 = sbr.rel (%p833) target = $region88
        $region87: #{tpu_custom_call.1} parent=31 // pred_region
          %p836 = scmp.lt.s32.totalorder %s33, 1
          %s837 = scalar_select %p836, %s33, 1
          %s838 = smul.addr %s837, 16
          %s839 = scalar_lea.vmem %s17, %s838
        $region88: #{tpu_custom_call.1} parent=31 // pred_fallthru
          _
        // Predicated region
        $region89: #{tpu_custom_call.1} parent=31 // pred_check
          %p840 = pneg %p501
        $region90: #{tpu_custom_call.1} parent=31 // pred_check_branch
          %842 = sbr.rel (%p840) target = $region92
        $region91: #{tpu_custom_call.1} parent=31 // pred_region
          %p843 = scmp.lt.s32.totalorder %s33, 1
          %s844 = scalar_select %p843, %s33, 1
          %s845 = smul.addr %s844, 256
          %s846 = smul.addr %s845, 4
          %s847 = scalar_lea.vmem %s18, %s846
        $region92: #{tpu_custom_call.1} parent=31 // pred_fallthru
          _
        // Predicated region
        $region93: #{tpu_custom_call.1} parent=31 // pred_check
          %p848 = pneg %p527
        $region94: #{tpu_custom_call.1} parent=31 // pred_check_branch
          %850 = sbr.rel (%p848) target = $region96
        $region95: #{tpu_custom_call.1} parent=31 // pred_region
          %p851 = scmp.lt.s32.totalorder %s33, 1
          %s852 = scalar_select %p851, %s33, 1
          %s853 = scalar_lea.vmem %s19, %s852
        $region96: #{tpu_custom_call.1} parent=31 // pred_fallthru
          _
        // Predicated region
        $region97: #{tpu_custom_call.1} parent=31 // pred_check
          %p854 = pneg %p553
        $region98: #{tpu_custom_call.1} parent=31 // pred_check_branch
          %856 = sbr.rel (%p854) target = $region100
        $region99: #{tpu_custom_call.1} parent=31 // pred_region
          %p857 = scmp.lt.s32.totalorder %s33, 1
          %s858 = scalar_select %p857, %s33, 1
          %s859 = scalar_lea.vmem %s20, %s858
        $region100: #{tpu_custom_call.1} parent=31 // pred_fallthru
          _
        // Predicated region
        $region101: #{tpu_custom_call.1} parent=31 // pred_check
          %p860 = pneg %p579
        $region102: #{tpu_custom_call.1} parent=31 // pred_check_branch
          %862 = sbr.rel (%p860) target = $region104
        $region103: #{tpu_custom_call.1} parent=31 // pred_region
          %p863 = scmp.lt.s32.totalorder %s33, 1
          %s864 = scalar_select %p863, %s33, 1
          %s865 = scalar_lea.vmem %s21, %s864
        $region104: #{tpu_custom_call.1} parent=31 // pred_fallthru
          _
        // Predicated region
        $region105: #{tpu_custom_call.1} parent=31 // pred_check
          %p866 = pneg %p605
        $region106: #{tpu_custom_call.1} parent=31 // pred_check_branch
          %868 = sbr.rel (%p866) target = $region108
        $region107: #{tpu_custom_call.1} parent=31 // pred_region
          %p869 = scmp.lt.s32.totalorder %s33, 1
          %s870 = scalar_select %p869, %s33, 1
          %s871 = scalar_lea.vmem %s22, %s870
        $region108: #{tpu_custom_call.1} parent=31 // pred_fallthru
          _
        // Predicated region
        $region109: #{tpu_custom_call.1} parent=31 // pred_check
          %p872 = pneg %p631
        $region110: #{tpu_custom_call.1} parent=31 // pred_check_branch
          %874 = sbr.rel (%p872) target = $region112
        $region111: #{tpu_custom_call.1} parent=31 // pred_region
          %p875 = scmp.lt.s32.totalorder %s33, 1
          %s876 = scalar_select %p875, %s33, 1
          %s877 = scalar_lea.vmem %s23, %s876
        $region112: #{tpu_custom_call.1} parent=31 // pred_fallthru
          _
        // Predicated region
        $region113: #{tpu_custom_call.1} parent=31 // pred_check
          %p878 = pneg %p657
        $region114: #{tpu_custom_call.1} parent=31 // pred_check_branch
          %880 = sbr.rel (%p878) target = $region116
        $region115: #{tpu_custom_call.1} parent=31 // pred_region
          %p881 = scmp.lt.s32.totalorder %s33, 1
          %s882 = scalar_select %p881, %s33, 1
          %s883 = scalar_lea.vmem %s24, %s882
        $region116: #{tpu_custom_call.1} parent=31 // pred_fallthru
          _
        // Predicated region
        $region117: #{tpu_custom_call.1} parent=31 // pred_check
          %p884 = pneg %p683
        $region118: #{tpu_custom_call.1} parent=31 // pred_check_branch
          %886 = sbr.rel (%p884) target = $region120
        $region119: #{tpu_custom_call.1} parent=31 // pred_region
          %p887 = scmp.lt.s32.totalorder %s33, 1
          %s888 = scalar_select %p887, %s33, 1
          %s889 = scalar_lea.vmem %s25, %s888
        $region120: #{tpu_custom_call.1} parent=31 // pred_fallthru
          _
      $region32: #{tpu_custom_call.1} parent=5 // pred_fallthru
        _
      %p890 = scmp.le.s32.totalorder 1, %s33
      %p891 = scmp.lt.s32.totalorder %s33, 3
      %p892 = pnand %p890, %p891
      %p893 = pneg %p892
      // Predicated region
      $region121: #{tpu_custom_call.1} parent=5 // pred_check
        _
      $region122: #{tpu_custom_call.1} parent=5 // pred_check_branch
        %895 = sbr.rel (%p892) target = $region124
      $region123: #{tpu_custom_call.1} parent=5 // pred_region
        %s896 = ssub.s32 %s33, 1
        %p897 = pneg %p54
        %p898 = pneg %p51
        %p899 = pneg %p75
        %p900 = pneg %p72
        %p901 = pneg %p96
        %p902 = pneg %p93
        %p903 = pneg %p117
        %p904 = pneg %p114
        %p905 = scmp.lt.s32.totalorder %s38, 1
        %s906 = scalar_select %p905, %s38, 1
        %s907 = smul.addr %s906, 4
        %s908 = smul.addr %s907, 4
        %s909 = scalar_lea.vmem %s4, %s908
        %p910 = pneg %p143
        %p911 = pneg %p140
        %p912 = scmp.lt.s32.totalorder %s38, 1
        %s913 = scalar_select %p912, %s38, 1
        %s914 = scalar_lea.vmem %s5, %s913
        %p915 = pneg %p169
        %p916 = pneg %p166
        %p917 = scmp.lt.s32.totalorder %s38, 1
        %s918 = scalar_select %p917, %s38, 1
        %s919 = smul.addr %s918, 4
        %s920 = smul.addr %s919, 4
        %s921 = scalar_lea.vmem %s6, %s920
        %p922 = pneg %p195
        %p923 = pneg %p192
        %p924 = scmp.lt.s32.totalorder %s38, 1
        %s925 = scalar_select %p924, %s38, 1
        %s926 = scalar_lea.vmem %s7, %s925
        %p927 = pneg %p221
        %p928 = pneg %p218
        %p929 = scmp.lt.s32.totalorder %s38, 1
        %s930 = scalar_select %p929, %s38, 1
        %s931 = smul.addr %s930, 4
        %s932 = smul.addr %s931, 4
        %s933 = scalar_lea.vmem %s8, %s932
        %p934 = pneg %p247
        %p935 = pneg %p244
        %p936 = scmp.lt.s32.totalorder %s38, 1
        %s937 = scalar_select %p936, %s38, 1
        %s938 = scalar_lea.vmem %s9, %s937
        %p939 = pneg %p273
        %p940 = pneg %p270
        %p941 = scmp.lt.s32.totalorder %s38, 1
        %s942 = scalar_select %p941, %s38, 1
        %s943 = smul.addr %s942, 4
        %s944 = smul.addr %s943, 4
        %s945 = scalar_lea.vmem %s10, %s944
        %p946 = pneg %p299
        %p947 = pneg %p296
        %p948 = scmp.lt.s32.totalorder %s38, 1
        %s949 = scalar_select %p948, %s38, 1
        %s950 = scalar_lea.vmem %s11, %s949
        %p951 = pneg %p325
        %p952 = pneg %p322
        %p953 = scmp.lt.s32.totalorder %s38, 1
        %s954 = scalar_select %p953, %s38, 1
        %s955 = smul.addr %s954, 4
        %s956 = smul.addr %s955, 4
        %s957 = scalar_lea.vmem %s12, %s956
        %p958 = pneg %p351
        %p959 = pneg %p348
        %p960 = scmp.lt.s32.totalorder %s38, 1
        %s961 = scalar_select %p960, %s38, 1
        %s962 = scalar_lea.vmem %s13, %s961
        %p963 = pneg %p377
        %p964 = pneg %p374
        %p965 = scmp.lt.s32.totalorder %s38, 1
        %s966 = scalar_select %p965, %s38, 1
        %s967 = smul.addr %s966, 4
        %s968 = smul.addr %s967, 4
        %s969 = scalar_lea.vmem %s14, %s968
        %p970 = pneg %p403
        %p971 = pneg %p400
        %p972 = scmp.lt.s32.totalorder %s38, 1
        %s973 = scalar_select %p972, %s38, 1
        %s974 = scalar_lea.vmem %s15, %s973
        %p975 = pneg %p429
        %p976 = pneg %p426
        %p977 = scmp.lt.s32.totalorder %s38, 1
        %s978 = scalar_select %p977, %s38, 1
        %s979 = smul.addr %s978, 64
        %s980 = smul.addr %s979, 4
        %s981 = scalar_lea.vmem %s16, %s980
        %p982 = pneg %p455
        %p983 = pneg %p452
        %p984 = scmp.lt.s32.totalorder %s38, 1
        %s985 = scalar_select %p984, %s38, 1
        %s986 = smul.addr %s985, 16
        %s987 = scalar_lea.vmem %s17, %s986
        %p988 = pneg %p481
        %p989 = pneg %p478
        %p990 = scmp.lt.s32.totalorder %s38, 1
        %s991 = scalar_select %p990, %s38, 1
        %s992 = smul.addr %s991, 256
        %s993 = smul.addr %s992, 4
        %s994 = scalar_lea.vmem %s18, %s993
        %p995 = pneg %p507
        %p996 = pneg %p504
        %p997 = scmp.lt.s32.totalorder %s38, 1
        %s998 = scalar_select %p997, %s38, 1
        %s999 = scalar_lea.vmem %s19, %s998
        %p1000 = pneg %p533
        %p1001 = pneg %p530
        %p1002 = scmp.lt.s32.totalorder %s38, 1
        %s1003 = scalar_select %p1002, %s38, 1
        %s1004 = scalar_lea.vmem %s20, %s1003
        %p1005 = pneg %p559
        %p1006 = pneg %p556
        %p1007 = scmp.lt.s32.totalorder %s38, 1
        %s1008 = scalar_select %p1007, %s38, 1
        %s1009 = scalar_lea.vmem %s21, %s1008
        %p1010 = pneg %p585
        %p1011 = pneg %p582
        %p1012 = scmp.lt.s32.totalorder %s38, 1
        %s1013 = scalar_select %p1012, %s38, 1
        %s1014 = scalar_lea.vmem %s22, %s1013
        %p1015 = pneg %p611
        %p1016 = pneg %p608
        %p1017 = scmp.lt.s32.totalorder %s38, 1
        %s1018 = scalar_select %p1017, %s38, 1
        %s1019 = scalar_lea.vmem %s23, %s1018
        %p1020 = pneg %p637
        %p1021 = pneg %p634
        %p1022 = scmp.lt.s32.totalorder %s38, 1
        %s1023 = scalar_select %p1022, %s38, 1
        %s1024 = scalar_lea.vmem %s24, %s1023
        %p1025 = pneg %p663
        %p1026 = pneg %p660
        %p1027 = scmp.lt.s32.totalorder %s38, 1
        %s1028 = scalar_select %p1027, %s38, 1
        %s1029 = scalar_lea.vmem %s25, %s1028
        %p1030 = pneg %p689
        %p1031 = pneg %p686
        %p1032 = pneg %p710
        %p1033 = pneg %p707
        %p1034 = scmp.lt.s32.totalorder %s38, 1
        %s1035 = scalar_select %p1034, %s38, 1
        %s1036 = smul.addr %s1035, 4
        %s1037 = smul.addr %s1036, 4
        %s1038 = scalar_lea.vmem %s4, %s1037
        %p1039 = scmp.lt.s32.totalorder %s38, 1
        %s1040 = scalar_select %p1039, %s38, 1
        %s1041 = scalar_lea.vmem %s5, %s1040
        %p1042 = scmp.lt.s32.totalorder %s38, 1
        %s1043 = scalar_select %p1042, %s38, 1
        %s1044 = smul.addr %s1043, 4
        %s1045 = smul.addr %s1044, 4
        %s1046 = scalar_lea.vmem %s6, %s1045
        %p1047 = scmp.lt.s32.totalorder %s38, 1
        %s1048 = scalar_select %p1047, %s38, 1
        %s1049 = scalar_lea.vmem %s7, %s1048
        %p1050 = scmp.lt.s32.totalorder %s38, 1
        %s1051 = scalar_select %p1050, %s38, 1
        %s1052 = smul.addr %s1051, 4
        %s1053 = smul.addr %s1052, 4
        %s1054 = scalar_lea.vmem %s8, %s1053
        %p1055 = scmp.lt.s32.totalorder %s38, 1
        %s1056 = scalar_select %p1055, %s38, 1
        %s1057 = scalar_lea.vmem %s9, %s1056
        %p1058 = scmp.lt.s32.totalorder %s38, 1
        %s1059 = scalar_select %p1058, %s38, 1
        %s1060 = smul.addr %s1059, 4
        %s1061 = smul.addr %s1060, 4
        %s1062 = scalar_lea.vmem %s10, %s1061
        %p1063 = scmp.lt.s32.totalorder %s38, 1
        %s1064 = scalar_select %p1063, %s38, 1
        %s1065 = scalar_lea.vmem %s11, %s1064
        %p1066 = scmp.lt.s32.totalorder %s38, 1
        %s1067 = scalar_select %p1066, %s38, 1
        %s1068 = smul.addr %s1067, 4
        %s1069 = smul.addr %s1068, 4
        %s1070 = scalar_lea.vmem %s12, %s1069
        %p1071 = scmp.lt.s32.totalorder %s38, 1
        %s1072 = scalar_select %p1071, %s38, 1
        %s1073 = scalar_lea.vmem %s13, %s1072
        %p1074 = scmp.lt.s32.totalorder %s38, 1
        %s1075 = scalar_select %p1074, %s38, 1
        %s1076 = smul.addr %s1075, 4
        %s1077 = smul.addr %s1076, 4
        %s1078 = scalar_lea.vmem %s14, %s1077
        %p1079 = scmp.lt.s32.totalorder %s38, 1
        %s1080 = scalar_select %p1079, %s38, 1
        %s1081 = scalar_lea.vmem %s15, %s1080
        %p1082 = scmp.lt.s32.totalorder %s38, 1
        %s1083 = scalar_select %p1082, %s38, 1
        %s1084 = smul.addr %s1083, 64
        %s1085 = smul.addr %s1084, 4
        %s1086 = scalar_lea.vmem %s16, %s1085
        %p1087 = scmp.lt.s32.totalorder %s38, 1
        %s1088 = scalar_select %p1087, %s38, 1
        %s1089 = smul.addr %s1088, 16
        %s1090 = scalar_lea.vmem %s17, %s1089
        %p1091 = scmp.lt.s32.totalorder %s38, 1
        %s1092 = scalar_select %p1091, %s38, 1
        %s1093 = smul.addr %s1092, 256
        %s1094 = smul.addr %s1093, 4
        %s1095 = scalar_lea.vmem %s18, %s1094
        %p1096 = scmp.lt.s32.totalorder %s38, 1
        %s1097 = scalar_select %p1096, %s38, 1
        %s1098 = scalar_lea.vmem %s19, %s1097
        %p1099 = scmp.lt.s32.totalorder %s38, 1
        %s1100 = scalar_select %p1099, %s38, 1
        %s1101 = scalar_lea.vmem %s20, %s1100
        %p1102 = scmp.lt.s32.totalorder %s38, 1
        %s1103 = scalar_select %p1102, %s38, 1
        %s1104 = scalar_lea.vmem %s21, %s1103
        %p1105 = scmp.lt.s32.totalorder %s38, 1
        %s1106 = scalar_select %p1105, %s38, 1
        %s1107 = scalar_lea.vmem %s22, %s1106
        %p1108 = scmp.lt.s32.totalorder %s38, 1
        %s1109 = scalar_select %p1108, %s38, 1
        %s1110 = scalar_lea.vmem %s23, %s1109
        %p1111 = scmp.lt.s32.totalorder %s38, 1
        %s1112 = scalar_select %p1111, %s38, 1
        %s1113 = scalar_lea.vmem %s24, %s1112
        %p1114 = scmp.lt.s32.totalorder %s38, 1
        %s1115 = scalar_select %p1114, %s38, 1
        %s1116 = scalar_lea.vmem %s25, %s1115
        %p1118 = scmp.eq.s32.totalorder %s38, 0
        // Predicated region
        $region125: #{tpu_custom_call.1} parent=123 // pred_check
          %p1119 = pneg %p1118
        $region126: #{tpu_custom_call.1} parent=123 // pred_check_branch
          %1121 = sbr.rel (%p1119) target = $region128
        $region127: #{tpu_custom_call.1} parent=123 // pred_region
          %v1122 = vld [vmem:[%s0] sm:$0xff]
          %v1123 = vld [vmem:[%s0 + $0x8] sm:$0xff]
          %vm1124 = vcmask 261120
          %1125 = vst.msk [vmem:[#allocation2] sm:$0xff] %vm1124, %v1122
          %1126 = vst.msk [vmem:[#allocation2 + $0x8] sm:$0xff] %vm1124, %v1123
        $region128: #{tpu_custom_call.1} parent=123 // pred_fallthru
          _
        %v1127 = vld [vmem:[#allocation2] sm:$0xff]
        %v1128 = vld [vmem:[#allocation2 + $0x8] sm:$0xff]
        %v1129 = vld [vmem:[%s1] sm:$0xff]
        %v1130 = vld [vmem:[%s1 + $0x8] sm:$0xff]
        %v1131 = vld [vmem:[%s1038] sm:$0xf]
        %v1132 = vld [vmem:[%s1038 + $0x4] sm:$0xf]
        %v1133 = vld [vmem:[%s1038 + $0x8] sm:$0xf]
        %v1134 = vld [vmem:[%s1038 + $0xc] sm:$0xf]
        %v1135 = vld [vmem:[%s1041] sm:$0x1]
        %v1136 = vld [vmem:[%s1046] sm:$0xf]
        %v1137 = vld [vmem:[%s1046 + $0x4] sm:$0xf]
        %v1138 = vld [vmem:[%s1046 + $0x8] sm:$0xf]
        %v1139 = vld [vmem:[%s1046 + $0xc] sm:$0xf]
        %v1140 = vld [vmem:[%s1049] sm:$0x1]
        %v1141 = vld [vmem:[%s1054] sm:$0xf]
        %v1142 = vld [vmem:[%s1054 + $0x4] sm:$0xf]
        %v1143 = vld [vmem:[%s1054 + $0x8] sm:$0xf]
        %v1144 = vld [vmem:[%s1054 + $0xc] sm:$0xf]
        %v1145 = vld [vmem:[%s1057] sm:$0x1]
        %v1146 = vld [vmem:[%s2] sm:$0xff]
        %v1147 = vld [vmem:[%s2 + $0x8] sm:$0xff]
        %v1148 = vpack.c.bf16 %v1128, %v1127
        %v1150 = vlaneseq
        %v1151 = vshrl.u32 %v1150, 7
        %v1152 = vsub.s32 0, %v1151
        %v1153 = vrot.slane %v1135, %v1152
        %v1159 = vunpack.c.l.b16 %v1131
        %v1160 = vunpack.c.l.b16 %v1132
        %v1161 = vunpack.c.l.b16 %v1133
        %v1162 = vunpack.c.l.b16 %v1134
        %v1163 = vpack.c.b16 %v1160, %v1159
        %v1164 = vpack.c.b16 %v1162, %v1161
        %vm1167 = vcmask 261120
        %v1169 = vsel %vm1167, %v1148, 0
        %1171 = vmatprep.subr.bf16.mxu0 0
        %1172 = vmatpush1.bf16.msra.mxu0 %v1163
        %1173 = vmatprep.subr.bf16.mxu0 0
        %1174 = vmatpush1.bf16.msra.mxu0 %v1164
        %1175 = vmatprep.subr.bf16.mxu0 0
        %1176 = vmatpush1.bf16.msra.mxu0 0
        %1177 = vmatprep.subr.bf16.mxu0 0
        %1178 = vmatpush1.bf16.msra.mxu0 0
        %1179 = vmatprep.subr.bf16.mxu0 0
        %1180 = vmatpush1.bf16.msra.mxu0 0
        %1181 = vmatprep.subr.bf16.mxu0 0
        %1182 = vmatpush1.bf16.msra.mxu0 0
        %1183 = vmatprep.subr.bf16.mxu0 0
        %1184 = vmatpush1.bf16.msra.mxu0 0
        %1185 = vmatprep.subr.bf16.mxu0 0
        %1186 = vmatpush1.bf16.msra.mxu0 0
        %1187 = vmatprep.subr.bf16.mxu0 0
        %1188 = vmatpush1.bf16.msra.mxu0 0
        %1189 = vmatprep.subr.bf16.mxu0 0
        %1190 = vmatpush1.bf16.msra.mxu0 0
        %1191 = vmatprep.subr.bf16.mxu0 0
        %1192 = vmatpush1.bf16.msra.mxu0 0
        %1193 = vmatprep.subr.bf16.mxu0 0
        %1194 = vmatpush1.bf16.msra.mxu0 0
        %1195 = vmatprep.subr.bf16.mxu0 0
        %1196 = vmatpush1.bf16.msra.mxu0 0
        %1197 = vmatprep.subr.bf16.mxu0 0
        %1198 = vmatpush1.bf16.msra.mxu0 0
        %1199 = vmatprep.subr.bf16.mxu0 0
        %1200 = vmatpush1.bf16.msra.mxu0 0
        %1201 = vmatprep.subr.bf16.mxu0 0
        %1202 = vmatpush1.bf16.msra.mxu0 0
        %1203 = vmatprep.mubr.bf16.mxu0 0
        %1204 = vmatmul.mubr.bf16.gmra.mrb[0].mxu0 %v1169
        %v1205 = vpop.f32.mrb[0].mxu0
        %v1206 = vadd.f32 %v1153, %v1205
        %v1207 = vpop.f32.mrb[0].mxu0
        %v1208 = vpop.f32.mrb[0].mxu0
        %v1209 = vadd.f32 %v1153, %v1208
        %v1210 = vpop.f32.mrb[0].mxu0
        %1211 = vdwg.mxu0
        %v1213 = vlaneseq
        %v1214 = vshrl.u32 %v1213, 7
        %v1215 = vsub.s32 0, %v1214
        %v1216 = vrot.slane %v1140, %v1215
        %v1222 = vunpack.c.l.b16 %v1136
        %v1223 = vunpack.c.l.b16 %v1137
        %v1224 = vunpack.c.l.b16 %v1138
        %v1225 = vunpack.c.l.b16 %v1139
        %v1226 = vpack.c.b16 %v1223, %v1222
        %v1227 = vpack.c.b16 %v1225, %v1224
        %1230 = vmatprep.subr.bf16.mxu0 0
        %1231 = vmatpush1.bf16.msra.mxu0 %v1226
        %1232 = vmatprep.subr.bf16.mxu0 0
        %1233 = vmatpush1.bf16.msra.mxu0 %v1227
        %1234 = vmatprep.subr.bf16.mxu0 0
        %1235 = vmatpush1.bf16.msra.mxu0 0
        %1236 = vmatprep.subr.bf16.mxu0 0
        %1237 = vmatpush1.bf16.msra.mxu0 0
        %1238 = vmatprep.subr.bf16.mxu0 0
        %1239 = vmatpush1.bf16.msra.mxu0 0
        %1240 = vmatprep.subr.bf16.mxu0 0
        %1241 = vmatpush1.bf16.msra.mxu0 0
        %1242 = vmatprep.subr.bf16.mxu0 0
        %1243 = vmatpush1.bf16.msra.mxu0 0
        %1244 = vmatprep.subr.bf16.mxu0 0
        %1245 = vmatpush1.bf16.msra.mxu0 0
        %1246 = vmatprep.subr.bf16.mxu0 0
        %1247 = vmatpush1.bf16.msra.mxu0 0
        %1248 = vmatprep.subr.bf16.mxu0 0
        %1249 = vmatpush1.bf16.msra.mxu0 0
        %1250 = vmatprep.subr.bf16.mxu0 0
        %1251 = vmatpush1.bf16.msra.mxu0 0
        %1252 = vmatprep.subr.bf16.mxu0 0
        %1253 = vmatpush1.bf16.msra.mxu0 0
        %1254 = vmatprep.subr.bf16.mxu0 0
        %1255 = vmatpush1.bf16.msra.mxu0 0
        %1256 = vmatprep.subr.bf16.mxu0 0
        %1257 = vmatpush1.bf16.msra.mxu0 0
        %1258 = vmatprep.subr.bf16.mxu0 0
        %1259 = vmatpush1.bf16.msra.mxu0 0
        %1260 = vmatprep.subr.bf16.mxu0 0
        %1261 = vmatpush1.bf16.msra.mxu0 0
        %1262 = vmatprep.mubr.bf16.mxu0 0
        %1263 = vmatmul.mubr.bf16.gmra.mrb[0].mxu0 %v1169
        %v1264 = vpop.f32.mrb[0].mxu0
        %v1265 = vadd.f32 %v1216, %v1264
        %v1266 = vpop.f32.mrb[0].mxu0
        %v1267 = vpop.f32.mrb[0].mxu0
        %v1268 = vadd.f32 %v1216, %v1267
        %v1269 = vpop.f32.mrb[0].mxu0
        %1270 = vdwg.mxu0
        %vm1271 = vcmask 31744
        %v1273 = vsel %vm1271, %v1206, 0
        %v1276 = vsel %vm1271, %v1209, 0
        %v1279 = vsel %vm1271, %v1265, 0
        %v1282 = vsel %vm1271, %v1268, 0
        %1284 = vmatprep.subr.mxu0 0.0
        %1285 = vmatpush1.xpose.msra.mxu0 %v1279
        %1286 = vmatprep.subr.mxu0 0.0
        %1287 = vmatpush1.xpose.msra.mxu0 %v1282
        %1288 = vmatprep.subr.mxu0 0.0
        %1289 = vmatpush1.xpose.msra.mxu0 0.0
        %1290 = vmatprep.subr.mxu0 0.0
        %1291 = vmatpush1.xpose.msra.mxu0 0.0
        %1292 = vmatprep.subr.mxu0 0.0
        %1293 = vmatpush1.xpose.msra.mxu0 0.0
        %1294 = vmatprep.subr.mxu0 0.0
        %1295 = vmatpush1.xpose.msra.mxu0 0.0
        %1296 = vmatprep.subr.mxu0 0.0
        %1297 = vmatpush1.xpose.msra.mxu0 0.0
        %1298 = vmatprep.subr.mxu0 0.0
        %1299 = vmatpush1.xpose.msra.mxu0 0.0
        %1300 = vmatprep.subr.mxu0 0.0
        %1301 = vmatpush1.xpose.msra.mxu0 0.0
        %1302 = vmatprep.subr.mxu0 0.0
        %1303 = vmatpush1.xpose.msra.mxu0 0.0
        %1304 = vmatprep.subr.mxu0 0.0
        %1305 = vmatpush1.xpose.msra.mxu0 0.0
        %1306 = vmatprep.subr.mxu0 0.0
        %1307 = vmatpush1.xpose.msra.mxu0 0.0
        %1308 = vmatprep.subr.mxu0 0.0
        %1309 = vmatpush1.xpose.msra.mxu0 0.0
        %1310 = vmatprep.subr.mxu0 0.0
        %1311 = vmatpush1.xpose.msra.mxu0 0.0
        %1312 = vmatprep.subr.mxu0 0.0
        %1313 = vmatpush1.xpose.msra.mxu0 0.0
        %1314 = vmatprep.subr.mxu0 0.0
        %1315 = vmatpush1.xpose.msra.mxu0 0.0
        %1316 = vmatprep.subr.mxu0 0.0
        %1317 = vmatpush1.xpose.msra.mxu0 0.0
        %1318 = vmatprep.subr.mxu0 0.0
        %1319 = vmatpush1.xpose.msra.mxu0 0.0
        %1320 = vmatprep.subr.mxu0 0.0
        %1321 = vmatpush1.xpose.msra.mxu0 0.0
        %1322 = vmatprep.subr.mxu0 0.0
        %1323 = vmatpush1.xpose.msra.mxu0 0.0
        %1324 = vmatprep.subr.mxu0 0.0
        %1325 = vmatpush1.xpose.msra.mxu0 0.0
        %1326 = vmatprep.subr.mxu0 0.0
        %1327 = vmatpush1.xpose.msra.mxu0 0.0
        %1328 = vmatprep.subr.mxu0 0.0
        %1329 = vmatpush1.xpose.msra.mxu0 0.0
        %1330 = vmatprep.subr.mxu0 0.0
        %1331 = vmatpush1.xpose.msra.mxu0 0.0
        %1332 = vmatprep.subr.mxu0 0.0
        %1333 = vmatpush1.xpose.msra.mxu0 0.0
        %1334 = vmatprep.subr.mxu0 0.0
        %1335 = vmatpush1.xpose.msra.mxu0 0.0
        %1336 = vmatprep.subr.mxu0 0.0
        %1337 = vmatpush1.xpose.msra.mxu0 0.0
        %1338 = vmatprep.subr.mxu0 0.0
        %1339 = vmatpush1.xpose.msra.mxu0 0.0
        %1340 = vmatprep.subr.mxu0 0.0
        %1341 = vmatpush1.xpose.msra.mxu0 0.0
        %1342 = vmatprep.subr.mxu0 0.0
        %1343 = vmatpush1.xpose.msra.mxu0 0.0
        %1344 = vmatprep.subr.mxu0 0.0
        %1345 = vmatpush1.xpose.msra.mxu0 0.0
        %1346 = vmatprep.subr.mxu0 0.0
        %1347 = vmatpush1.xpose.msra.mxu0 0.0
        %1348 = vmatprep.mubr.f32.mxu0 0.0
        %1349 = vmatmul.mubr.f32.gmra.mrb[0].mxu0 %v1273
        %v1350 = vpop.f32.mrb[0].mxu0
        %v1351 = vadd.f32 0.0, %v1350
        %v1352 = vpop.f32.mrb[0].mxu0
        %1353 = vmatprep.mubr.f32.mxu0 0.0
        %1354 = vmatmul.mubr.f32.gmra.mrb[0].mxu0 %v1276
        %v1355 = vpop.f32.mrb[0].mxu0
        %v1356 = vadd.f32 0.0, %v1355
        %v1357 = vpop.f32.mrb[0].mxu0
        %1358 = vdwg.mxu0
        %v1359 = vmul.f32 %v1351, 0.5
        %v1360 = vmul.f32 %v1356, 0.5
        %v1361 = vadd.f32 %v1359, %v1146
        %v1362 = vadd.f32 %v1360, %v1147
        %vm1363 = vcmask 130048
        %v1364 = vsel %vm1363, %v1361, -inf
        %1365 = vmax.xlane.f32.xlu0 %v1364
        %v1366 = vpop.xlane.xlu0 %1365
        %v1367 = vsel %vm1363, %v1362, -inf
        %1368 = vmax.xlane.f32.xlu0 %v1367
        %v1369 = vpop.xlane.xlu0 %1368
        %v1370 = vsub.f32 %v1361, %v1366
        %v1371 = vsub.f32 %v1362, %v1369
        %v1372 = vmul.f32 %v1370, 1.442695
        %v1373 = vpow.pop %v1372
        %v1374 = vmul.f32 %v1371, 1.442695
        %v1375 = vpow.pop %v1374
        %v1376 = vsel %vm1363, %v1373, 0.0
        %1377 = vadd.xlane.f32.xlu0 %v1376
        %v1378 = vpop.xlane.xlu0 %1377
        %v1379 = vsel %vm1363, %v1375, 0.0
        %1380 = vadd.xlane.f32.xlu0 %v1379
        %v1381 = vpop.xlane.xlu0 %1380
        %v1382 = vrcp.pop %v1378
        %v1383 = vmul.f32 %v1373, %v1382
        %v1384 = vrcp.pop %v1381
        %v1385 = vmul.f32 %v1375, %v1384
        %1386 = vrot.lane.b32.xlu0 %v1265, 96
        %v1387 = vpop.permute.xlu0 %1386
        %1388 = vrot.lane.b32.xlu0 %v1268, 96
        %v1389 = vpop.permute.xlu0 %1388
        %v1393 = vsel %vm1363, %v1383, 0
        %v1396 = vsel %vm1363, %v1385, 0
        %1398 = vmatprep.subr.mxu0 0.0
        %1399 = vmatpush1.msra.mxu0 %v1387
        %1400 = vmatprep.subr.mxu0 0.0
        %1401 = vmatpush1.msra.mxu0 %v1389
        %1402 = vmatprep.subr.mxu0 0.0
        %1403 = vmatpush1.msra.mxu0 0.0
        %1404 = vmatprep.subr.mxu0 0.0
        %1405 = vmatpush1.msra.mxu0 0.0
        %1406 = vmatprep.subr.mxu0 0.0
        %1407 = vmatpush1.msra.mxu0 0.0
        %1408 = vmatprep.subr.mxu0 0.0
        %1409 = vmatpush1.msra.mxu0 0.0
        %1410 = vmatprep.subr.mxu0 0.0
        %1411 = vmatpush1.msra.mxu0 0.0
        %1412 = vmatprep.subr.mxu0 0.0
        %1413 = vmatpush1.msra.mxu0 0.0
        %1414 = vmatprep.subr.mxu0 0.0
        %1415 = vmatpush1.msra.mxu0 0.0
        %1416 = vmatprep.subr.mxu0 0.0
        %1417 = vmatpush1.msra.mxu0 0.0
        %1418 = vmatprep.subr.mxu0 0.0
        %1419 = vmatpush1.msra.mxu0 0.0
        %1420 = vmatprep.subr.mxu0 0.0
        %1421 = vmatpush1.msra.mxu0 0.0
        %1422 = vmatprep.subr.mxu0 0.0
        %1423 = vmatpush1.msra.mxu0 0.0
        %1424 = vmatprep.subr.mxu0 0.0
        %1425 = vmatpush1.msra.mxu0 0.0
        %1426 = vmatprep.subr.mxu0 0.0
        %1427 = vmatpush1.msra.mxu0 0.0
        %1428 = vmatprep.subr.mxu0 0.0
        %1429 = vmatpush1.msra.mxu0 0.0
        %1430 = vmatprep.subr.mxu0 0.0
        %1431 = vmatpush1.msra.mxu0 0.0
        %1432 = vmatprep.subr.mxu0 0.0
        %1433 = vmatpush1.msra.mxu0 0.0
        %1434 = vmatprep.subr.mxu0 0.0
        %1435 = vmatpush1.msra.mxu0 0.0
        %1436 = vmatprep.subr.mxu0 0.0
        %1437 = vmatpush1.msra.mxu0 0.0
        %1438 = vmatprep.subr.mxu0 0.0
        %1439 = vmatpush1.msra.mxu0 0.0
        %1440 = vmatprep.subr.mxu0 0.0
        %1441 = vmatpush1.msra.mxu0 0.0
        %1442 = vmatprep.subr.mxu0 0.0
        %1443 = vmatpush1.msra.mxu0 0.0
        %1444 = vmatprep.subr.mxu0 0.0
        %1445 = vmatpush1.msra.mxu0 0.0
        %1446 = vmatprep.subr.mxu0 0.0
        %1447 = vmatpush1.msra.mxu0 0.0
        %1448 = vmatprep.subr.mxu0 0.0
        %1449 = vmatpush1.msra.mxu0 0.0
        %1450 = vmatprep.subr.mxu0 0.0
        %1451 = vmatpush1.msra.mxu0 0.0
        %1452 = vmatprep.subr.mxu0 0.0
        %1453 = vmatpush1.msra.mxu0 0.0
        %1454 = vmatprep.subr.mxu0 0.0
        %1455 = vmatpush1.msra.mxu0 0.0
        %1456 = vmatprep.subr.mxu0 0.0
        %1457 = vmatpush1.msra.mxu0 0.0
        %1458 = vmatprep.subr.mxu0 0.0
        %1459 = vmatpush1.msra.mxu0 0.0
        %1460 = vmatprep.subr.mxu0 0.0
        %1461 = vmatpush1.msra.mxu0 0.0
        %1462 = vmatprep.mubr.f32.mxu0 0.0
        %1463 = vmatmul.mubr.f32.gmra.mrb[0].mxu0 %v1393
        %v1464 = vpop.f32.mrb[0].mxu0
        %v1465 = vadd.f32 0.0, %v1464
        %v1466 = vpop.f32.mrb[0].mxu0
        %1467 = vmatprep.mubr.f32.mxu0 0.0
        %1468 = vmatmul.mubr.f32.gmra.mrb[0].mxu0 %v1396
        %v1469 = vpop.f32.mrb[0].mxu0
        %v1470 = vadd.f32 0.0, %v1469
        %v1471 = vpop.f32.mrb[0].mxu0
        %1472 = vdwg.mxu0
        %1473 = vrot.lane.b32.xlu0 %v1206, 124
        %v1474 = vpop.permute.xlu0 %1473
        %1475 = vrot.lane.b32.xlu0 %v1209, 124
        %v1476 = vpop.permute.xlu0 %1475
        %1477 = vrot.lane.b32.xlu0 %v1265, 124
        %v1478 = vpop.permute.xlu0 %1477
        %1479 = vrot.lane.b32.xlu0 %v1268, 124
        %v1480 = vpop.permute.xlu0 %1479
        %v1481 = vsel %vm1271, %v1474, 0
        %v1483 = vsel %vm1271, %v1476, 0
        %v1485 = vsel %vm1271, %v1478, 0
        %v1487 = vsel %vm1271, %v1480, 0
        %1489 = vmatprep.subr.mxu0 0.0
        %1490 = vmatpush1.xpose.msra.mxu0 %v1485
        %1491 = vmatprep.subr.mxu0 0.0
        %1492 = vmatpush1.xpose.msra.mxu0 %v1487
        %1493 = vmatprep.subr.mxu0 0.0
        %1494 = vmatpush1.xpose.msra.mxu0 0.0
        %1495 = vmatprep.subr.mxu0 0.0
        %1496 = vmatpush1.xpose.msra.mxu0 0.0
        %1497 = vmatprep.subr.mxu0 0.0
        %1498 = vmatpush1.xpose.msra.mxu0 0.0
        %1499 = vmatprep.subr.mxu0 0.0
        %1500 = vmatpush1.xpose.msra.mxu0 0.0
        %1501 = vmatprep.subr.mxu0 0.0
        %1502 = vmatpush1.xpose.msra.mxu0 0.0
        %1503 = vmatprep.subr.mxu0 0.0
        %1504 = vmatpush1.xpose.msra.mxu0 0.0
        %1505 = vmatprep.subr.mxu0 0.0
        %1506 = vmatpush1.xpose.msra.mxu0 0.0
        %1507 = vmatprep.subr.mxu0 0.0
        %1508 = vmatpush1.xpose.msra.mxu0 0.0
        %1509 = vmatprep.subr.mxu0 0.0
        %1510 = vmatpush1.xpose.msra.mxu0 0.0
        %1511 = vmatprep.subr.mxu0 0.0
        %1512 = vmatpush1.xpose.msra.mxu0 0.0
        %1513 = vmatprep.subr.mxu0 0.0
        %1514 = vmatpush1.xpose.msra.mxu0 0.0
        %1515 = vmatprep.subr.mxu0 0.0
        %1516 = vmatpush1.xpose.msra.mxu0 0.0
        %1517 = vmatprep.subr.mxu0 0.0
        %1518 = vmatpush1.xpose.msra.mxu0 0.0
        %1519 = vmatprep.subr.mxu0 0.0
        %1520 = vmatpush1.xpose.msra.mxu0 0.0
        %1521 = vmatprep.subr.mxu0 0.0
        %1522 = vmatpush1.xpose.msra.mxu0 0.0
        %1523 = vmatprep.subr.mxu0 0.0
        %1524 = vmatpush1.xpose.msra.mxu0 0.0
        %1525 = vmatprep.subr.mxu0 0.0
        %1526 = vmatpush1.xpose.msra.mxu0 0.0
        %1527 = vmatprep.subr.mxu0 0.0
        %1528 = vmatpush1.xpose.msra.mxu0 0.0
        %1529 = vmatprep.subr.mxu0 0.0
        %1530 = vmatpush1.xpose.msra.mxu0 0.0
        %1531 = vmatprep.subr.mxu0 0.0
        %1532 = vmatpush1.xpose.msra.mxu0 0.0
        %1533 = vmatprep.subr.mxu0 0.0
        %1534 = vmatpush1.xpose.msra.mxu0 0.0
        %1535 = vmatprep.subr.mxu0 0.0
        %1536 = vmatpush1.xpose.msra.mxu0 0.0
        %1537 = vmatprep.subr.mxu0 0.0
        %1538 = vmatpush1.xpose.msra.mxu0 0.0
        %1539 = vmatprep.subr.mxu0 0.0
        %1540 = vmatpush1.xpose.msra.mxu0 0.0
        %1541 = vmatprep.subr.mxu0 0.0
        %1542 = vmatpush1.xpose.msra.mxu0 0.0
        %1543 = vmatprep.subr.mxu0 0.0
        %1544 = vmatpush1.xpose.msra.mxu0 0.0
        %1545 = vmatprep.subr.mxu0 0.0
        %1546 = vmatpush1.xpose.msra.mxu0 0.0
        %1547 = vmatprep.subr.mxu0 0.0
        %1548 = vmatpush1.xpose.msra.mxu0 0.0
        %1549 = vmatprep.subr.mxu0 0.0
        %1550 = vmatpush1.xpose.msra.mxu0 0.0
        %1551 = vmatprep.subr.mxu0 0.0
        %1552 = vmatpush1.xpose.msra.mxu0 0.0
        %1553 = vmatprep.mubr.f32.mxu0 0.0
        %1554 = vmatmul.mubr.f32.gmra.mrb[0].mxu0 %v1481
        %v1555 = vpop.f32.mrb[0].mxu0
        %v1556 = vadd.f32 0.0, %v1555
        %v1557 = vpop.f32.mrb[0].mxu0
        %1558 = vmatprep.mubr.f32.mxu0 0.0
        %1559 = vmatmul.mubr.f32.gmra.mrb[0].mxu0 %v1483
        %v1560 = vpop.f32.mrb[0].mxu0
        %v1561 = vadd.f32 0.0, %v1560
        %v1562 = vpop.f32.mrb[0].mxu0
        %1563 = vdwg.mxu0
        %v1564 = vmul.f32 %v1556, 0.5
        %v1565 = vmul.f32 %v1561, 0.5
        %v1566 = vadd.f32 %v1564, %v1146
        %v1567 = vadd.f32 %v1565, %v1147
        %v1568 = vsel %vm1363, %v1566, -inf
        %1569 = vmax.xlane.f32.xlu0 %v1568
        %v1570 = vpop.xlane.xlu0 %1569
        %v1571 = vsel %vm1363, %v1567, -inf
        %1572 = vmax.xlane.f32.xlu0 %v1571
        %v1573 = vpop.xlane.xlu0 %1572
        %v1574 = vsub.f32 %v1566, %v1570
        %v1575 = vsub.f32 %v1567, %v1573
        %v1576 = vmul.f32 %v1574, 1.442695
        %v1577 = vpow.pop %v1576
        %v1578 = vmul.f32 %v1575, 1.442695
        %v1579 = vpow.pop %v1578
        %v1580 = vsel %vm1363, %v1577, 0.0
        %1581 = vadd.xlane.f32.xlu0 %v1580
        %v1582 = vpop.xlane.xlu0 %1581
        %v1583 = vsel %vm1363, %v1579, 0.0
        %1584 = vadd.xlane.f32.xlu0 %v1583
        %v1585 = vpop.xlane.xlu0 %1584
        %v1586 = vrcp.pop %v1582
        %v1587 = vmul.f32 %v1577, %v1586
        %v1588 = vrcp.pop %v1585
        %v1589 = vmul.f32 %v1579, %v1588
        %1590 = vrot.lane.b32.xlu0 %v1265, 92
        %v1591 = vpop.permute.xlu0 %1590
        %1592 = vrot.lane.b32.xlu0 %v1268, 92
        %v1593 = vpop.permute.xlu0 %1592
        %v1597 = vsel %vm1363, %v1587, 0
        %v1600 = vsel %vm1363, %v1589, 0
        %1602 = vmatprep.subr.mxu0 0.0
        %1603 = vmatpush1.msra.mxu0 %v1591
        %1604 = vmatprep.subr.mxu0 0.0
        %1605 = vmatpush1.msra.mxu0 %v1593
        %1606 = vmatprep.subr.mxu0 0.0
        %1607 = vmatpush1.msra.mxu0 0.0
        %1608 = vmatprep.subr.mxu0 0.0
        %1609 = vmatpush1.msra.mxu0 0.0
        %1610 = vmatprep.subr.mxu0 0.0
        %1611 = vmatpush1.msra.mxu0 0.0
        %1612 = vmatprep.subr.mxu0 0.0
        %1613 = vmatpush1.msra.mxu0 0.0
        %1614 = vmatprep.subr.mxu0 0.0
        %1615 = vmatpush1.msra.mxu0 0.0
        %1616 = vmatprep.subr.mxu0 0.0
        %1617 = vmatpush1.msra.mxu0 0.0
        %1618 = vmatprep.subr.mxu0 0.0
        %1619 = vmatpush1.msra.mxu0 0.0
        %1620 = vmatprep.subr.mxu0 0.0
        %1621 = vmatpush1.msra.mxu0 0.0
        %1622 = vmatprep.subr.mxu0 0.0
        %1623 = vmatpush1.msra.mxu0 0.0
        %1624 = vmatprep.subr.mxu0 0.0
        %1625 = vmatpush1.msra.mxu0 0.0
        %1626 = vmatprep.subr.mxu0 0.0
        %1627 = vmatpush1.msra.mxu0 0.0
        %1628 = vmatprep.subr.mxu0 0.0
        %1629 = vmatpush1.msra.mxu0 0.0
        %1630 = vmatprep.subr.mxu0 0.0
        %1631 = vmatpush1.msra.mxu0 0.0
        %1632 = vmatprep.subr.mxu0 0.0
        %1633 = vmatpush1.msra.mxu0 0.0
        %1634 = vmatprep.subr.mxu0 0.0
        %1635 = vmatpush1.msra.mxu0 0.0
        %1636 = vmatprep.subr.mxu0 0.0
        %1637 = vmatpush1.msra.mxu0 0.0
        %1638 = vmatprep.subr.mxu0 0.0
        %1639 = vmatpush1.msra.mxu0 0.0
        %1640 = vmatprep.subr.mxu0 0.0
        %1641 = vmatpush1.msra.mxu0 0.0
        %1642 = vmatprep.subr.mxu0 0.0
        %1643 = vmatpush1.msra.mxu0 0.0
        %1644 = vmatprep.subr.mxu0 0.0
        %1645 = vmatpush1.msra.mxu0 0.0
        %1646 = vmatprep.subr.mxu0 0.0
        %1647 = vmatpush1.msra.mxu0 0.0
        %1648 = vmatprep.subr.mxu0 0.0
        %1649 = vmatpush1.msra.mxu0 0.0
        %1650 = vmatprep.subr.mxu0 0.0
        %1651 = vmatpush1.msra.mxu0 0.0
        %1652 = vmatprep.subr.mxu0 0.0
        %1653 = vmatpush1.msra.mxu0 0.0
        %1654 = vmatprep.subr.mxu0 0.0
        %1655 = vmatpush1.msra.mxu0 0.0
        %1656 = vmatprep.subr.mxu0 0.0
        %1657 = vmatpush1.msra.mxu0 0.0
        %1658 = vmatprep.subr.mxu0 0.0
        %1659 = vmatpush1.msra.mxu0 0.0
        %1660 = vmatprep.subr.mxu0 0.0
        %1661 = vmatpush1.msra.mxu0 0.0
        %1662 = vmatprep.subr.mxu0 0.0
        %1663 = vmatpush1.msra.mxu0 0.0
        %1664 = vmatprep.subr.mxu0 0.0
        %1665 = vmatpush1.msra.mxu0 0.0
        %1666 = vmatprep.mubr.f32.mxu0 0.0
        %1667 = vmatmul.mubr.f32.gmra.mrb[0].mxu0 %v1597
        %v1668 = vpop.f32.mrb[0].mxu0
        %v1669 = vadd.f32 0.0, %v1668
        %v1670 = vpop.f32.mrb[0].mxu0
        %1671 = vmatprep.mubr.f32.mxu0 0.0
        %1672 = vmatmul.mubr.f32.gmra.mrb[0].mxu0 %v1600
        %v1673 = vpop.f32.mrb[0].mxu0
        %v1674 = vadd.f32 0.0, %v1673
        %v1675 = vpop.f32.mrb[0].mxu0
        %1676 = vdwg.mxu0
        %1677 = vrot.lane.b32.xlu0 %v1206, 120
        %v1678 = vpop.permute.xlu0 %1677
        %1679 = vrot.lane.b32.xlu0 %v1209, 120
        %v1680 = vpop.permute.xlu0 %1679
        %1681 = vrot.lane.b32.xlu0 %v1265, 120
        %v1682 = vpop.permute.xlu0 %1681
        %1683 = vrot.lane.b32.xlu0 %v1268, 120
        %v1684 = vpop.permute.xlu0 %1683
        %v1685 = vsel %vm1271, %v1678, 0
        %v1687 = vsel %vm1271, %v1680, 0
        %v1689 = vsel %vm1271, %v1682, 0
        %v1691 = vsel %vm1271, %v1684, 0
        %1693 = vmatprep.subr.mxu0 0.0
        %1694 = vmatpush1.xpose.msra.mxu0 %v1689
        %1695 = vmatprep.subr.mxu0 0.0
        %1696 = vmatpush1.xpose.msra.mxu0 %v1691
        %1697 = vmatprep.subr.mxu0 0.0
        %1698 = vmatpush1.xpose.msra.mxu0 0.0
        %1699 = vmatprep.subr.mxu0 0.0
        %1700 = vmatpush1.xpose.msra.mxu0 0.0
        %1701 = vmatprep.subr.mxu0 0.0
        %1702 = vmatpush1.xpose.msra.mxu0 0.0
        %1703 = vmatprep.subr.mxu0 0.0
        %1704 = vmatpush1.xpose.msra.mxu0 0.0
        %1705 = vmatprep.subr.mxu0 0.0
        %1706 = vmatpush1.xpose.msra.mxu0 0.0
        %1707 = vmatprep.subr.mxu0 0.0
        %1708 = vmatpush1.xpose.msra.mxu0 0.0
        %1709 = vmatprep.subr.mxu0 0.0
        %1710 = vmatpush1.xpose.msra.mxu0 0.0
        %1711 = vmatprep.subr.mxu0 0.0
        %1712 = vmatpush1.xpose.msra.mxu0 0.0
        %1713 = vmatprep.subr.mxu0 0.0
        %1714 = vmatpush1.xpose.msra.mxu0 0.0
        %1715 = vmatprep.subr.mxu0 0.0
        %1716 = vmatpush1.xpose.msra.mxu0 0.0
        %1717 = vmatprep.subr.mxu0 0.0
        %1718 = vmatpush1.xpose.msra.mxu0 0.0
        %1719 = vmatprep.subr.mxu0 0.0
        %1720 = vmatpush1.xpose.msra.mxu0 0.0
        %1721 = vmatprep.subr.mxu0 0.0
        %1722 = vmatpush1.xpose.msra.mxu0 0.0
        %1723 = vmatprep.subr.mxu0 0.0
        %1724 = vmatpush1.xpose.msra.mxu0 0.0
        %1725 = vmatprep.subr.mxu0 0.0
        %1726 = vmatpush1.xpose.msra.mxu0 0.0
        %1727 = vmatprep.subr.mxu0 0.0
        %1728 = vmatpush1.xpose.msra.mxu0 0.0
        %1729 = vmatprep.subr.mxu0 0.0
        %1730 = vmatpush1.xpose.msra.mxu0 0.0
        %1731 = vmatprep.subr.mxu0 0.0
        %1732 = vmatpush1.xpose.msra.mxu0 0.0
        %1733 = vmatprep.subr.mxu0 0.0
        %1734 = vmatpush1.xpose.msra.mxu0 0.0
        %1735 = vmatprep.subr.mxu0 0.0
        %1736 = vmatpush1.xpose.msra.mxu0 0.0
        %1737 = vmatprep.subr.mxu0 0.0
        %1738 = vmatpush1.xpose.msra.mxu0 0.0
        %1739 = vmatprep.subr.mxu0 0.0
        %1740 = vmatpush1.xpose.msra.mxu0 0.0
        %1741 = vmatprep.subr.mxu0 0.0
        %1742 = vmatpush1.xpose.msra.mxu0 0.0
        %1743 = vmatprep.subr.mxu0 0.0
        %1744 = vmatpush1.xpose.msra.mxu0 0.0
        %1745 = vmatprep.subr.mxu0 0.0
        %1746 = vmatpush1.xpose.msra.mxu0 0.0
        %1747 = vmatprep.subr.mxu0 0.0
        %1748 = vmatpush1.xpose.msra.mxu0 0.0
        %1749 = vmatprep.subr.mxu0 0.0
        %1750 = vmatpush1.xpose.msra.mxu0 0.0
        %1751 = vmatprep.subr.mxu0 0.0
        %1752 = vmatpush1.xpose.msra.mxu0 0.0
        %1753 = vmatprep.subr.mxu0 0.0
        %1754 = vmatpush1.xpose.msra.mxu0 0.0
        %1755 = vmatprep.subr.mxu0 0.0
        %1756 = vmatpush1.xpose.msra.mxu0 0.0
        %1757 = vmatprep.mubr.f32.mxu0 0.0
        %1758 = vmatmul.mubr.f32.gmra.mrb[0].mxu0 %v1685
        %v1759 = vpop.f32.mrb[0].mxu0
        %v1760 = vadd.f32 0.0, %v1759
        %v1761 = vpop.f32.mrb[0].mxu0
        %1762 = vmatprep.mubr.f32.mxu0 0.0
        %1763 = vmatmul.mubr.f32.gmra.mrb[0].mxu0 %v1687
        %v1764 = vpop.f32.mrb[0].mxu0
        %v1765 = vadd.f32 0.0, %v1764
        %v1766 = vpop.f32.mrb[0].mxu0
        %1767 = vdwg.mxu0
        %v1768 = vmul.f32 %v1760, 0.5
        %v1769 = vmul.f32 %v1765, 0.5
        %v1770 = vadd.f32 %v1768, %v1146
        %v1771 = vadd.f32 %v1769, %v1147
        %v1772 = vsel %vm1363, %v1770, -inf
        %1773 = vmax.xlane.f32.xlu0 %v1772
        %v1774 = vpop.xlane.xlu0 %1773
        %v1775 = vsel %vm1363, %v1771, -inf
        %1776 = vmax.xlane.f32.xlu0 %v1775
        %v1777 = vpop.xlane.xlu0 %1776
        %v1778 = vsub.f32 %v1770, %v1774
        %v1779 = vsub.f32 %v1771, %v1777
        %v1780 = vmul.f32 %v1778, 1.442695
        %v1781 = vpow.pop %v1780
        %v1782 = vmul.f32 %v1779, 1.442695
        %v1783 = vpow.pop %v1782
        %v1784 = vsel %vm1363, %v1781, 0.0
        %1785 = vadd.xlane.f32.xlu0 %v1784
        %v1786 = vpop.xlane.xlu0 %1785
        %v1787 = vsel %vm1363, %v1783, 0.0
        %1788 = vadd.xlane.f32.xlu0 %v1787
        %v1789 = vpop.xlane.xlu0 %1788
        %v1790 = vrcp.pop %v1786
        %v1791 = vmul.f32 %v1781, %v1790
        %v1792 = vrcp.pop %v1789
        %v1793 = vmul.f32 %v1783, %v1792
        %1794 = vrot.lane.b32.xlu0 %v1265, 88
        %v1795 = vpop.permute.xlu0 %1794
        %1796 = vrot.lane.b32.xlu0 %v1268, 88
        %v1797 = vpop.permute.xlu0 %1796
        %v1801 = vsel %vm1363, %v1791, 0
        %v1804 = vsel %vm1363, %v1793, 0
        %1806 = vmatprep.subr.mxu0 0.0
        %1807 = vmatpush1.msra.mxu0 %v1795
        %1808 = vmatprep.subr.mxu0 0.0
        %1809 = vmatpush1.msra.mxu0 %v1797
        %1810 = vmatprep.subr.mxu0 0.0
        %1811 = vmatpush1.msra.mxu0 0.0
        %1812 = vmatprep.subr.mxu0 0.0
        %1813 = vmatpush1.msra.mxu0 0.0
        %1814 = vmatprep.subr.mxu0 0.0
        %1815 = vmatpush1.msra.mxu0 0.0
        %1816 = vmatprep.subr.mxu0 0.0
        %1817 = vmatpush1.msra.mxu0 0.0
        %1818 = vmatprep.subr.mxu0 0.0
        %1819 = vmatpush1.msra.mxu0 0.0
        %1820 = vmatprep.subr.mxu0 0.0
        %1821 = vmatpush1.msra.mxu0 0.0
        %1822 = vmatprep.subr.mxu0 0.0
        %1823 = vmatpush1.msra.mxu0 0.0
        %1824 = vmatprep.subr.mxu0 0.0
        %1825 = vmatpush1.msra.mxu0 0.0
        %1826 = vmatprep.subr.mxu0 0.0
        %1827 = vmatpush1.msra.mxu0 0.0
        %1828 = vmatprep.subr.mxu0 0.0
        %1829 = vmatpush1.msra.mxu0 0.0
        %1830 = vmatprep.subr.mxu0 0.0
        %1831 = vmatpush1.msra.mxu0 0.0
        %1832 = vmatprep.subr.mxu0 0.0
        %1833 = vmatpush1.msra.mxu0 0.0
        %1834 = vmatprep.subr.mxu0 0.0
        %1835 = vmatpush1.msra.mxu0 0.0
        %1836 = vmatprep.subr.mxu0 0.0
        %1837 = vmatpush1.msra.mxu0 0.0
        %1838 = vmatprep.subr.mxu0 0.0
        %1839 = vmatpush1.msra.mxu0 0.0
        %1840 = vmatprep.subr.mxu0 0.0
        %1841 = vmatpush1.msra.mxu0 0.0
        %1842 = vmatprep.subr.mxu0 0.0
        %1843 = vmatpush1.msra.mxu0 0.0
        %1844 = vmatprep.subr.mxu0 0.0
        %1845 = vmatpush1.msra.mxu0 0.0
        %1846 = vmatprep.subr.mxu0 0.0
        %1847 = vmatpush1.msra.mxu0 0.0
        %1848 = vmatprep.subr.mxu0 0.0
        %1849 = vmatpush1.msra.mxu0 0.0
        %1850 = vmatprep.subr.mxu0 0.0
        %1851 = vmatpush1.msra.mxu0 0.0
        %1852 = vmatprep.subr.mxu0 0.0
        %1853 = vmatpush1.msra.mxu0 0.0
        %1854 = vmatprep.subr.mxu0 0.0
        %1855 = vmatpush1.msra.mxu0 0.0
        %1856 = vmatprep.subr.mxu0 0.0
        %1857 = vmatpush1.msra.mxu0 0.0
        %1858 = vmatprep.subr.mxu0 0.0
        %1859 = vmatpush1.msra.mxu0 0.0
        %1860 = vmatprep.subr.mxu0 0.0
        %1861 = vmatpush1.msra.mxu0 0.0
        %1862 = vmatprep.subr.mxu0 0.0
        %1863 = vmatpush1.msra.mxu0 0.0
        %1864 = vmatprep.subr.mxu0 0.0
        %1865 = vmatpush1.msra.mxu0 0.0
        %1866 = vmatprep.subr.mxu0 0.0
        %1867 = vmatpush1.msra.mxu0 0.0
        %1868 = vmatprep.subr.mxu0 0.0
        %1869 = vmatpush1.msra.mxu0 0.0
        %1870 = vmatprep.mubr.f32.mxu0 0.0
        %1871 = vmatmul.mubr.f32.gmra.mrb[0].mxu0 %v1801
        %v1872 = vpop.f32.mrb[0].mxu0
        %v1873 = vadd.f32 0.0, %v1872
        %v1874 = vpop.f32.mrb[0].mxu0
        %1875 = vmatprep.mubr.f32.mxu0 0.0
        %1876 = vmatmul.mubr.f32.gmra.mrb[0].mxu0 %v1804
        %v1877 = vpop.f32.mrb[0].mxu0
        %v1878 = vadd.f32 0.0, %v1877
        %v1879 = vpop.f32.mrb[0].mxu0
        %1880 = vdwg.mxu0
        %1881 = vrot.lane.b32.xlu0 %v1206, 116
        %v1882 = vpop.permute.xlu0 %1881
        %1883 = vrot.lane.b32.xlu0 %v1209, 116
        %v1884 = vpop.permute.xlu0 %1883
        %1885 = vrot.lane.b32.xlu0 %v1265, 116
        %v1886 = vpop.permute.xlu0 %1885
        %1887 = vrot.lane.b32.xlu0 %v1268, 116
        %v1888 = vpop.permute.xlu0 %1887
        %v1889 = vsel %vm1271, %v1882, 0
        %v1891 = vsel %vm1271, %v1884, 0
        %v1893 = vsel %vm1271, %v1886, 0
        %v1895 = vsel %vm1271, %v1888, 0
        %1897 = vmatprep.subr.mxu0 0.0
        %1898 = vmatpush1.xpose.msra.mxu0 %v1893
        %1899 = vmatprep.subr.mxu0 0.0
        %1900 = vmatpush1.xpose.msra.mxu0 %v1895
        %1901 = vmatprep.subr.mxu0 0.0
        %1902 = vmatpush1.xpose.msra.mxu0 0.0
        %1903 = vmatprep.subr.mxu0 0.0
        %1904 = vmatpush1.xpose.msra.mxu0 0.0
        %1905 = vmatprep.subr.mxu0 0.0
        %1906 = vmatpush1.xpose.msra.mxu0 0.0
        %1907 = vmatprep.subr.mxu0 0.0
        %1908 = vmatpush1.xpose.msra.mxu0 0.0
        %1909 = vmatprep.subr.mxu0 0.0
        %1910 = vmatpush1.xpose.msra.mxu0 0.0
        %1911 = vmatprep.subr.mxu0 0.0
        %1912 = vmatpush1.xpose.msra.mxu0 0.0
        %1913 = vmatprep.subr.mxu0 0.0
        %1914 = vmatpush1.xpose.msra.mxu0 0.0
        %1915 = vmatprep.subr.mxu0 0.0
        %1916 = vmatpush1.xpose.msra.mxu0 0.0
        %1917 = vmatprep.subr.mxu0 0.0
        %1918 = vmatpush1.xpose.msra.mxu0 0.0
        %1919 = vmatprep.subr.mxu0 0.0
        %1920 = vmatpush1.xpose.msra.mxu0 0.0
        %1921 = vmatprep.subr.mxu0 0.0
        %1922 = vmatpush1.xpose.msra.mxu0 0.0
        %1923 = vmatprep.subr.mxu0 0.0
        %1924 = vmatpush1.xpose.msra.mxu0 0.0
        %1925 = vmatprep.subr.mxu0 0.0
        %1926 = vmatpush1.xpose.msra.mxu0 0.0
        %1927 = vmatprep.subr.mxu0 0.0
        %1928 = vmatpush1.xpose.msra.mxu0 0.0
        %1929 = vmatprep.subr.mxu0 0.0
        %1930 = vmatpush1.xpose.msra.mxu0 0.0
        %1931 = vmatprep.subr.mxu0 0.0
        %1932 = vmatpush1.xpose.msra.mxu0 0.0
        %1933 = vmatprep.subr.mxu0 0.0
        %1934 = vmatpush1.xpose.msra.mxu0 0.0
        %1935 = vmatprep.subr.mxu0 0.0
        %1936 = vmatpush1.xpose.msra.mxu0 0.0
        %1937 = vmatprep.subr.mxu0 0.0
        %1938 = vmatpush1.xpose.msra.mxu0 0.0
        %1939 = vmatprep.subr.mxu0 0.0
        %1940 = vmatpush1.xpose.msra.mxu0 0.0
        %1941 = vmatprep.subr.mxu0 0.0
        %1942 = vmatpush1.xpose.msra.mxu0 0.0
        %1943 = vmatprep.subr.mxu0 0.0
        %1944 = vmatpush1.xpose.msra.mxu0 0.0
        %1945 = vmatprep.subr.mxu0 0.0
        %1946 = vmatpush1.xpose.msra.mxu0 0.0
        %1947 = vmatprep.subr.mxu0 0.0
        %1948 = vmatpush1.xpose.msra.mxu0 0.0
        %1949 = vmatprep.subr.mxu0 0.0
        %1950 = vmatpush1.xpose.msra.mxu0 0.0
        %1951 = vmatprep.subr.mxu0 0.0
        %1952 = vmatpush1.xpose.msra.mxu0 0.0
        %1953 = vmatprep.subr.mxu0 0.0
        %1954 = vmatpush1.xpose.msra.mxu0 0.0
        %1955 = vmatprep.subr.mxu0 0.0
        %1956 = vmatpush1.xpose.msra.mxu0 0.0
        %1957 = vmatprep.subr.mxu0 0.0
        %1958 = vmatpush1.xpose.msra.mxu0 0.0
        %1959 = vmatprep.subr.mxu0 0.0
        %1960 = vmatpush1.xpose.msra.mxu0 0.0
        %1961 = vmatprep.mubr.f32.mxu0 0.0
        %1962 = vmatmul.mubr.f32.gmra.mrb[0].mxu0 %v1889
        %v1963 = vpop.f32.mrb[0].mxu0
        %v1964 = vadd.f32 0.0, %v1963
        %v1965 = vpop.f32.mrb[0].mxu0
        %1966 = vmatprep.mubr.f32.mxu0 0.0
        %1967 = vmatmul.mubr.f32.gmra.mrb[0].mxu0 %v1891
        %v1968 = vpop.f32.mrb[0].mxu0
        %v1969 = vadd.f32 0.0, %v1968
        %v1970 = vpop.f32.mrb[0].mxu0
        %1971 = vdwg.mxu0
        %v1972 = vmul.f32 %v1964, 0.5
        %v1973 = vmul.f32 %v1969, 0.5
        %v1974 = vadd.f32 %v1972, %v1146
        %v1975 = vadd.f32 %v1973, %v1147
        %v1976 = vsel %vm1363, %v1974, -inf
        %1977 = vmax.xlane.f32.xlu0 %v1976
        %v1978 = vpop.xlane.xlu0 %1977
        %v1979 = vsel %vm1363, %v1975, -inf
        %1980 = vmax.xlane.f32.xlu0 %v1979
        %v1981 = vpop.xlane.xlu0 %1980
        %v1982 = vsub.f32 %v1974, %v1978
        %v1983 = vsub.f32 %v1975, %v1981
        %v1984 = vmul.f32 %v1982, 1.442695
        %v1985 = vpow.pop %v1984
        %v1986 = vmul.f32 %v1983, 1.442695
        %v1987 = vpow.pop %v1986
        %v1988 = vsel %vm1363, %v1985, 0.0
        %1989 = vadd.xlane.f32.xlu0 %v1988
        %v1990 = vpop.xlane.xlu0 %1989
        %v1991 = vsel %vm1363, %v1987, 0.0
        %1992 = vadd.xlane.f32.xlu0 %v1991
        %v1993 = vpop.xlane.xlu0 %1992
        %v1994 = vrcp.pop %v1990
        %v1995 = vmul.f32 %v1985, %v1994
        %v1996 = vrcp.pop %v1993
        %v1997 = vmul.f32 %v1987, %v1996
        %1998 = vrot.lane.b32.xlu0 %v1265, 84
        %v1999 = vpop.permute.xlu0 %1998
        %2000 = vrot.lane.b32.xlu0 %v1268, 84
        %v2001 = vpop.permute.xlu0 %2000
        %v2005 = vsel %vm1363, %v1995, 0
        %v2008 = vsel %vm1363, %v1997, 0
        %2010 = vmatprep.subr.mxu0 0.0
        %2011 = vmatpush1.msra.mxu0 %v1999
        %2012 = vmatprep.subr.mxu0 0.0
        %2013 = vmatpush1.msra.mxu0 %v2001
        %2014 = vmatprep.subr.mxu0 0.0
        %2015 = vmatpush1.msra.mxu0 0.0
        %2016 = vmatprep.subr.mxu0 0.0
        %2017 = vmatpush1.msra.mxu0 0.0
        %2018 = vmatprep.subr.mxu0 0.0
        %2019 = vmatpush1.msra.mxu0 0.0
        %2020 = vmatprep.subr.mxu0 0.0
        %2021 = vmatpush1.msra.mxu0 0.0
        %2022 = vmatprep.subr.mxu0 0.0
        %2023 = vmatpush1.msra.mxu0 0.0
        %2024 = vmatprep.subr.mxu0 0.0
        %2025 = vmatpush1.msra.mxu0 0.0
        %2026 = vmatprep.subr.mxu0 0.0
        %2027 = vmatpush1.msra.mxu0 0.0
        %2028 = vmatprep.subr.mxu0 0.0
        %2029 = vmatpush1.msra.mxu0 0.0
        %2030 = vmatprep.subr.mxu0 0.0
        %2031 = vmatpush1.msra.mxu0 0.0
        %2032 = vmatprep.subr.mxu0 0.0
        %2033 = vmatpush1.msra.mxu0 0.0
        %2034 = vmatprep.subr.mxu0 0.0
        %2035 = vmatpush1.msra.mxu0 0.0
        %2036 = vmatprep.subr.mxu0 0.0
        %2037 = vmatpush1.msra.mxu0 0.0
        %2038 = vmatprep.subr.mxu0 0.0
        %2039 = vmatpush1.msra.mxu0 0.0
        %2040 = vmatprep.subr.mxu0 0.0
        %2041 = vmatpush1.msra.mxu0 0.0
        %2042 = vmatprep.subr.mxu0 0.0
        %2043 = vmatpush1.msra.mxu0 0.0
        %2044 = vmatprep.subr.mxu0 0.0
        %2045 = vmatpush1.msra.mxu0 0.0
        %2046 = vmatprep.subr.mxu0 0.0
        %2047 = vmatpush1.msra.mxu0 0.0
        %2048 = vmatprep.subr.mxu0 0.0
        %2049 = vmatpush1.msra.mxu0 0.0
        %2050 = vmatprep.subr.mxu0 0.0
        %2051 = vmatpush1.msra.mxu0 0.0
        %2052 = vmatprep.subr.mxu0 0.0
        %2053 = vmatpush1.msra.mxu0 0.0
        %2054 = vmatprep.subr.mxu0 0.0
        %2055 = vmatpush1.msra.mxu0 0.0
        %2056 = vmatprep.subr.mxu0 0.0
        %2057 = vmatpush1.msra.mxu0 0.0
        %2058 = vmatprep.subr.mxu0 0.0
        %2059 = vmatpush1.msra.mxu0 0.0
        %2060 = vmatprep.subr.mxu0 0.0
        %2061 = vmatpush1.msra.mxu0 0.0
        %2062 = vmatprep.subr.mxu0 0.0
        %2063 = vmatpush1.msra.mxu0 0.0
        %2064 = vmatprep.subr.mxu0 0.0
        %2065 = vmatpush1.msra.mxu0 0.0
        %2066 = vmatprep.subr.mxu0 0.0
        %2067 = vmatpush1.msra.mxu0 0.0
        %2068 = vmatprep.subr.mxu0 0.0
        %2069 = vmatpush1.msra.mxu0 0.0
        %2070 = vmatprep.subr.mxu0 0.0
        %2071 = vmatpush1.msra.mxu0 0.0
        %2072 = vmatprep.subr.mxu0 0.0
        %2073 = vmatpush1.msra.mxu0 0.0
        %2074 = vmatprep.mubr.f32.mxu0 0.0
        %2075 = vmatmul.mubr.f32.gmra.mrb[0].mxu0 %v2005
        %v2076 = vpop.f32.mrb[0].mxu0
        %v2077 = vadd.f32 0.0, %v2076
        %v2078 = vpop.f32.mrb[0].mxu0
        %2079 = vmatprep.mubr.f32.mxu0 0.0
        %2080 = vmatmul.mubr.f32.gmra.mrb[0].mxu0 %v2008
        %v2081 = vpop.f32.mrb[0].mxu0
        %v2082 = vadd.f32 0.0, %v2081
        %v2083 = vpop.f32.mrb[0].mxu0
        %2084 = vdwg.mxu0
        %2085 = vrot.lane.b32.xlu0 %v1206, 112
        %v2086 = vpop.permute.xlu0 %2085
        %2087 = vrot.lane.b32.xlu0 %v1209, 112
        %v2088 = vpop.permute.xlu0 %2087
        %2089 = vrot.lane.b32.xlu0 %v1265, 112
        %v2090 = vpop.permute.xlu0 %2089
        %2091 = vrot.lane.b32.xlu0 %v1268, 112
        %v2092 = vpop.permute.xlu0 %2091
        %v2093 = vsel %vm1271, %v2086, 0
        %v2095 = vsel %vm1271, %v2088, 0
        %v2097 = vsel %vm1271, %v2090, 0
        %v2099 = vsel %vm1271, %v2092, 0
        %2101 = vmatprep.subr.mxu0 0.0
        %2102 = vmatpush1.xpose.msra.mxu0 %v2097
        %2103 = vmatprep.subr.mxu0 0.0
        %2104 = vmatpush1.xpose.msra.mxu0 %v2099
        %2105 = vmatprep.subr.mxu0 0.0
        %2106 = vmatpush1.xpose.msra.mxu0 0.0
        %2107 = vmatprep.subr.mxu0 0.0
        %2108 = vmatpush1.xpose.msra.mxu0 0.0
        %2109 = vmatprep.subr.mxu0 0.0
        %2110 = vmatpush1.xpose.msra.mxu0 0.0
        %2111 = vmatprep.subr.mxu0 0.0
        %2112 = vmatpush1.xpose.msra.mxu0 0.0
        %2113 = vmatprep.subr.mxu0 0.0
        %2114 = vmatpush1.xpose.msra.mxu0 0.0
        %2115 = vmatprep.subr.mxu0 0.0
        %2116 = vmatpush1.xpose.msra.mxu0 0.0
        %2117 = vmatprep.subr.mxu0 0.0
        %2118 = vmatpush1.xpose.msra.mxu0 0.0
        %2119 = vmatprep.subr.mxu0 0.0
        %2120 = vmatpush1.xpose.msra.mxu0 0.0
        %2121 = vmatprep.subr.mxu0 0.0
        %2122 = vmatpush1.xpose.msra.mxu0 0.0
        %2123 = vmatprep.subr.mxu0 0.0
        %2124 = vmatpush1.xpose.msra.mxu0 0.0
        %2125 = vmatprep.subr.mxu0 0.0
        %2126 = vmatpush1.xpose.msra.mxu0 0.0
        %2127 = vmatprep.subr.mxu0 0.0
        %2128 = vmatpush1.xpose.msra.mxu0 0.0
        %2129 = vmatprep.subr.mxu0 0.0
        %2130 = vmatpush1.xpose.msra.mxu0 0.0
        %2131 = vmatprep.subr.mxu0 0.0
        %2132 = vmatpush1.xpose.msra.mxu0 0.0
        %2133 = vmatprep.subr.mxu0 0.0
        %2134 = vmatpush1.xpose.msra.mxu0 0.0
        %2135 = vmatprep.subr.mxu0 0.0
        %2136 = vmatpush1.xpose.msra.mxu0 0.0
        %2137 = vmatprep.subr.mxu0 0.0
        %2138 = vmatpush1.xpose.msra.mxu0 0.0
        %2139 = vmatprep.subr.mxu0 0.0
        %2140 = vmatpush1.xpose.msra.mxu0 0.0
        %2141 = vmatprep.subr.mxu0 0.0
        %2142 = vmatpush1.xpose.msra.mxu0 0.0
        %2143 = vmatprep.subr.mxu0 0.0
        %2144 = vmatpush1.xpose.msra.mxu0 0.0
        %2145 = vmatprep.subr.mxu0 0.0
        %2146 = vmatpush1.xpose.msra.mxu0 0.0
        %2147 = vmatprep.subr.mxu0 0.0
        %2148 = vmatpush1.xpose.msra.mxu0 0.0
        %2149 = vmatprep.subr.mxu0 0.0
        %2150 = vmatpush1.xpose.msra.mxu0 0.0
        %2151 = vmatprep.subr.mxu0 0.0
        %2152 = vmatpush1.xpose.msra.mxu0 0.0
        %2153 = vmatprep.subr.mxu0 0.0
        %2154 = vmatpush1.xpose.msra.mxu0 0.0
        %2155 = vmatprep.subr.mxu0 0.0
        %2156 = vmatpush1.xpose.msra.mxu0 0.0
        %2157 = vmatprep.subr.mxu0 0.0
        %2158 = vmatpush1.xpose.msra.mxu0 0.0
        %2159 = vmatprep.subr.mxu0 0.0
        %2160 = vmatpush1.xpose.msra.mxu0 0.0
        %2161 = vmatprep.subr.mxu0 0.0
        %2162 = vmatpush1.xpose.msra.mxu0 0.0
        %2163 = vmatprep.subr.mxu0 0.0
        %2164 = vmatpush1.xpose.msra.mxu0 0.0
        %2165 = vmatprep.mubr.f32.mxu0 0.0
        %2166 = vmatmul.mubr.f32.gmra.mrb[0].mxu0 %v2093
        %v2167 = vpop.f32.mrb[0].mxu0
        %v2168 = vadd.f32 0.0, %v2167
        %v2169 = vpop.f32.mrb[0].mxu0
        %2170 = vmatprep.mubr.f32.mxu0 0.0
        %2171 = vmatmul.mubr.f32.gmra.mrb[0].mxu0 %v2095
        %v2172 = vpop.f32.mrb[0].mxu0
        %v2173 = vadd.f32 0.0, %v2172
        %v2174 = vpop.f32.mrb[0].mxu0
        %2175 = vdwg.mxu0
        %v2176 = vmul.f32 %v2168, 0.5
        %v2177 = vmul.f32 %v2173, 0.5
        %v2178 = vadd.f32 %v2176, %v1146
        %v2179 = vadd.f32 %v2177, %v1147
        %v2180 = vsel %vm1363, %v2178, -inf
        %2181 = vmax.xlane.f32.xlu0 %v2180
        %v2182 = vpop.xlane.xlu0 %2181
        %v2183 = vsel %vm1363, %v2179, -inf
        %2184 = vmax.xlane.f32.xlu0 %v2183
        %v2185 = vpop.xlane.xlu0 %2184
        %v2186 = vsub.f32 %v2178, %v2182
        %v2187 = vsub.f32 %v2179, %v2185
        %v2188 = vmul.f32 %v2186, 1.442695
        %v2189 = vpow.pop %v2188
        %v2190 = vmul.f32 %v2187, 1.442695
        %v2191 = vpow.pop %v2190
        %v2192 = vsel %vm1363, %v2189, 0.0
        %2193 = vadd.xlane.f32.xlu0 %v2192
        %v2194 = vpop.xlane.xlu0 %2193
        %v2195 = vsel %vm1363, %v2191, 0.0
        %2196 = vadd.xlane.f32.xlu0 %v2195
        %v2197 = vpop.xlane.xlu0 %2196
        %v2198 = vrcp.pop %v2194
        %v2199 = vmul.f32 %v2189, %v2198
        %v2200 = vrcp.pop %v2197
        %v2201 = vmul.f32 %v2191, %v2200
        %2202 = vrot.lane.b32.xlu0 %v1265, 80
        %v2203 = vpop.permute.xlu0 %2202
        %2204 = vrot.lane.b32.xlu0 %v1268, 80
        %v2205 = vpop.permute.xlu0 %2204
        %v2209 = vsel %vm1363, %v2199, 0
        %v2212 = vsel %vm1363, %v2201, 0
        %2214 = vmatprep.subr.mxu0 0.0
        %2215 = vmatpush1.msra.mxu0 %v2203
        %2216 = vmatprep.subr.mxu0 0.0
        %2217 = vmatpush1.msra.mxu0 %v2205
        %2218 = vmatprep.subr.mxu0 0.0
        %2219 = vmatpush1.msra.mxu0 0.0
        %2220 = vmatprep.subr.mxu0 0.0
        %2221 = vmatpush1.msra.mxu0 0.0
        %2222 = vmatprep.subr.mxu0 0.0
        %2223 = vmatpush1.msra.mxu0 0.0
        %2224 = vmatprep.subr.mxu0 0.0
        %2225 = vmatpush1.msra.mxu0 0.0
        %2226 = vmatprep.subr.mxu0 0.0
        %2227 = vmatpush1.msra.mxu0 0.0
        %2228 = vmatprep.subr.mxu0 0.0
        %2229 = vmatpush1.msra.mxu0 0.0
        %2230 = vmatprep.subr.mxu0 0.0
        %2231 = vmatpush1.msra.mxu0 0.0
        %2232 = vmatprep.subr.mxu0 0.0
        %2233 = vmatpush1.msra.mxu0 0.0
        %2234 = vmatprep.subr.mxu0 0.0
        %2235 = vmatpush1.msra.mxu0 0.0
        %2236 = vmatprep.subr.mxu0 0.0
        %2237 = vmatpush1.msra.mxu0 0.0
        %2238 = vmatprep.subr.mxu0 0.0
        %2239 = vmatpush1.msra.mxu0 0.0
        %2240 = vmatprep.subr.mxu0 0.0
        %2241 = vmatpush1.msra.mxu0 0.0
        %2242 = vmatprep.subr.mxu0 0.0
        %2243 = vmatpush1.msra.mxu0 0.0
        %2244 = vmatprep.subr.mxu0 0.0
        %2245 = vmatpush1.msra.mxu0 0.0
        %2246 = vmatprep.subr.mxu0 0.0
        %2247 = vmatpush1.msra.mxu0 0.0
        %2248 = vmatprep.subr.mxu0 0.0
        %2249 = vmatpush1.msra.mxu0 0.0
        %2250 = vmatprep.subr.mxu0 0.0
        %2251 = vmatpush1.msra.mxu0 0.0
        %2252 = vmatprep.subr.mxu0 0.0
        %2253 = vmatpush1.msra.mxu0 0.0
        %2254 = vmatprep.subr.mxu0 0.0
        %2255 = vmatpush1.msra.mxu0 0.0
        %2256 = vmatprep.subr.mxu0 0.0
        %2257 = vmatpush1.msra.mxu0 0.0
        %2258 = vmatprep.subr.mxu0 0.0
        %2259 = vmatpush1.msra.mxu0 0.0
        %2260 = vmatprep.subr.mxu0 0.0
        %2261 = vmatpush1.msra.mxu0 0.0
        %2262 = vmatprep.subr.mxu0 0.0
        %2263 = vmatpush1.msra.mxu0 0.0
        %2264 = vmatprep.subr.mxu0 0.0
        %2265 = vmatpush1.msra.mxu0 0.0
        %2266 = vmatprep.subr.mxu0 0.0
        %2267 = vmatpush1.msra.mxu0 0.0
        %2268 = vmatprep.subr.mxu0 0.0
        %2269 = vmatpush1.msra.mxu0 0.0
        %2270 = vmatprep.subr.mxu0 0.0
        %2271 = vmatpush1.msra.mxu0 0.0
        %2272 = vmatprep.subr.mxu0 0.0
        %2273 = vmatpush1.msra.mxu0 0.0
        %2274 = vmatprep.subr.mxu0 0.0
        %2275 = vmatpush1.msra.mxu0 0.0
        %2276 = vmatprep.subr.mxu0 0.0
        %2277 = vmatpush1.msra.mxu0 0.0
        %2278 = vmatprep.mubr.f32.mxu0 0.0
        %2279 = vmatmul.mubr.f32.gmra.mrb[0].mxu0 %v2209
        %v2280 = vpop.f32.mrb[0].mxu0
        %v2281 = vadd.f32 0.0, %v2280
        %v2282 = vpop.f32.mrb[0].mxu0
        %2283 = vmatprep.mubr.f32.mxu0 0.0
        %2284 = vmatmul.mubr.f32.gmra.mrb[0].mxu0 %v2212
        %v2285 = vpop.f32.mrb[0].mxu0
        %v2286 = vadd.f32 0.0, %v2285
        %v2287 = vpop.f32.mrb[0].mxu0
        %2288 = vdwg.mxu0
        %2289 = vrot.lane.b32.xlu0 %v1206, 108
        %v2290 = vpop.permute.xlu0 %2289
        %2291 = vrot.lane.b32.xlu0 %v1209, 108
        %v2292 = vpop.permute.xlu0 %2291
        %2293 = vrot.lane.b32.xlu0 %v1265, 108
        %v2294 = vpop.permute.xlu0 %2293
        %2295 = vrot.lane.b32.xlu0 %v1268, 108
        %v2296 = vpop.permute.xlu0 %2295
        %v2297 = vsel %vm1271, %v2290, 0
        %v2299 = vsel %vm1271, %v2292, 0
        %v2301 = vsel %vm1271, %v2294, 0
        %v2303 = vsel %vm1271, %v2296, 0
        %2305 = vmatprep.subr.mxu0 0.0
        %2306 = vmatpush1.xpose.msra.mxu0 %v2301
        %2307 = vmatprep.subr.mxu0 0.0
        %2308 = vmatpush1.xpose.msra.mxu0 %v2303
        %2309 = vmatprep.subr.mxu0 0.0
        %2310 = vmatpush1.xpose.msra.mxu0 0.0
        %2311 = vmatprep.subr.mxu0 0.0
        %2312 = vmatpush1.xpose.msra.mxu0 0.0
        %2313 = vmatprep.subr.mxu0 0.0
        %2314 = vmatpush1.xpose.msra.mxu0 0.0
        %2315 = vmatprep.subr.mxu0 0.0
        %2316 = vmatpush1.xpose.msra.mxu0 0.0
        %2317 = vmatprep.subr.mxu0 0.0
        %2318 = vmatpush1.xpose.msra.mxu0 0.0
        %2319 = vmatprep.subr.mxu0 0.0
        %2320 = vmatpush1.xpose.msra.mxu0 0.0
        %2321 = vmatprep.subr.mxu0 0.0
        %2322 = vmatpush1.xpose.msra.mxu0 0.0
        %2323 = vmatprep.subr.mxu0 0.0
        %2324 = vmatpush1.xpose.msra.mxu0 0.0
        %2325 = vmatprep.subr.mxu0 0.0
        %2326 = vmatpush1.xpose.msra.mxu0 0.0
        %2327 = vmatprep.subr.mxu0 0.0
        %2328 = vmatpush1.xpose.msra.mxu0 0.0
        %2329 = vmatprep.subr.mxu0 0.0
        %2330 = vmatpush1.xpose.msra.mxu0 0.0
        %2331 = vmatprep.subr.mxu0 0.0
        %2332 = vmatpush1.xpose.msra.mxu0 0.0
        %2333 = vmatprep.subr.mxu0 0.0
        %2334 = vmatpush1.xpose.msra.mxu0 0.0
        %2335 = vmatprep.subr.mxu0 0.0
        %2336 = vmatpush1.xpose.msra.mxu0 0.0
        %2337 = vmatprep.subr.mxu0 0.0
        %2338 = vmatpush1.xpose.msra.mxu0 0.0
        %2339 = vmatprep.subr.mxu0 0.0
        %2340 = vmatpush1.xpose.msra.mxu0 0.0
        %2341 = vmatprep.subr.mxu0 0.0
        %2342 = vmatpush1.xpose.msra.mxu0 0.0
        %2343 = vmatprep.subr.mxu0 0.0
        %2344 = vmatpush1.xpose.msra.mxu0 0.0
        %2345 = vmatprep.subr.mxu0 0.0
        %2346 = vmatpush1.xpose.msra.mxu0 0.0
        %2347 = vmatprep.subr.mxu0 0.0
        %2348 = vmatpush1.xpose.msra.mxu0 0.0
        %2349 = vmatprep.subr.mxu0 0.0
        %2350 = vmatpush1.xpose.msra.mxu0 0.0
        %2351 = vmatprep.subr.mxu0 0.0
        %2352 = vmatpush1.xpose.msra.mxu0 0.0
        %2353 = vmatprep.subr.mxu0 0.0
        %2354 = vmatpush1.xpose.msra.mxu0 0.0
        %2355 = vmatprep.subr.mxu0 0.0
        %2356 = vmatpush1.xpose.msra.mxu0 0.0
        %2357 = vmatprep.subr.mxu0 0.0
        %2358 = vmatpush1.xpose.msra.mxu0 0.0
        %2359 = vmatprep.subr.mxu0 0.0
        %2360 = vmatpush1.xpose.msra.mxu0 0.0
        %2361 = vmatprep.subr.mxu0 0.0
        %2362 = vmatpush1.xpose.msra.mxu0 0.0
        %2363 = vmatprep.subr.mxu0 0.0
        %2364 = vmatpush1.xpose.msra.mxu0 0.0
        %2365 = vmatprep.subr.mxu0 0.0
        %2366 = vmatpush1.xpose.msra.mxu0 0.0
        %2367 = vmatprep.subr.mxu0 0.0
        %2368 = vmatpush1.xpose.msra.mxu0 0.0
        %2369 = vmatprep.mubr.f32.mxu0 0.0
        %2370 = vmatmul.mubr.f32.gmra.mrb[0].mxu0 %v2297
        %v2371 = vpop.f32.mrb[0].mxu0
        %v2372 = vadd.f32 0.0, %v2371
        %v2373 = vpop.f32.mrb[0].mxu0
        %2374 = vmatprep.mubr.f32.mxu0 0.0
        %2375 = vmatmul.mubr.f32.gmra.mrb[0].mxu0 %v2299
        %v2376 = vpop.f32.mrb[0].mxu0
        %v2377 = vadd.f32 0.0, %v2376
        %v2378 = vpop.f32.mrb[0].mxu0
        %2379 = vdwg.mxu0
        %v2380 = vmul.f32 %v2372, 0.5
        %v2381 = vmul.f32 %v2377, 0.5
        %v2382 = vadd.f32 %v2380, %v1146
        %v2383 = vadd.f32 %v2381, %v1147
        %v2384 = vsel %vm1363, %v2382, -inf
        %2385 = vmax.xlane.f32.xlu0 %v2384
        %v2386 = vpop.xlane.xlu0 %2385
        %v2387 = vsel %vm1363, %v2383, -inf
        %2388 = vmax.xlane.f32.xlu0 %v2387
        %v2389 = vpop.xlane.xlu0 %2388
        %v2390 = vsub.f32 %v2382, %v2386
        %v2391 = vsub.f32 %v2383, %v2389
        %v2392 = vmul.f32 %v2390, 1.442695
        %v2393 = vpow.pop %v2392
        %v2394 = vmul.f32 %v2391, 1.442695
        %v2395 = vpow.pop %v2394
        %v2396 = vsel %vm1363, %v2393, 0.0
        %2397 = vadd.xlane.f32.xlu0 %v2396
        %v2398 = vpop.xlane.xlu0 %2397
        %v2399 = vsel %vm1363, %v2395, 0.0
        %2400 = vadd.xlane.f32.xlu0 %v2399
        %v2401 = vpop.xlane.xlu0 %2400
        %v2402 = vrcp.pop %v2398
        %v2403 = vmul.f32 %v2393, %v2402
        %v2404 = vrcp.pop %v2401
        %v2405 = vmul.f32 %v2395, %v2404
        %2406 = vrot.lane.b32.xlu0 %v1265, 76
        %v2407 = vpop.permute.xlu0 %2406
        %2408 = vrot.lane.b32.xlu0 %v1268, 76
        %v2409 = vpop.permute.xlu0 %2408
        %v2413 = vsel %vm1363, %v2403, 0
        %v2416 = vsel %vm1363, %v2405, 0
        %2418 = vmatprep.subr.mxu0 0.0
        %2419 = vmatpush1.msra.mxu0 %v2407
        %2420 = vmatprep.subr.mxu0 0.0
        %2421 = vmatpush1.msra.mxu0 %v2409
        %2422 = vmatprep.subr.mxu0 0.0
        %2423 = vmatpush1.msra.mxu0 0.0
        %2424 = vmatprep.subr.mxu0 0.0
        %2425 = vmatpush1.msra.mxu0 0.0
        %2426 = vmatprep.subr.mxu0 0.0
        %2427 = vmatpush1.msra.mxu0 0.0
        %2428 = vmatprep.subr.mxu0 0.0
        %2429 = vmatpush1.msra.mxu0 0.0
        %2430 = vmatprep.subr.mxu0 0.0
        %2431 = vmatpush1.msra.mxu0 0.0
        %2432 = vmatprep.subr.mxu0 0.0
        %2433 = vmatpush1.msra.mxu0 0.0
        %2434 = vmatprep.subr.mxu0 0.0
        %2435 = vmatpush1.msra.mxu0 0.0
        %2436 = vmatprep.subr.mxu0 0.0
        %2437 = vmatpush1.msra.mxu0 0.0
        %2438 = vmatprep.subr.mxu0 0.0
        %2439 = vmatpush1.msra.mxu0 0.0
        %2440 = vmatprep.subr.mxu0 0.0
        %2441 = vmatpush1.msra.mxu0 0.0
        %2442 = vmatprep.subr.mxu0 0.0
        %2443 = vmatpush1.msra.mxu0 0.0
        %2444 = vmatprep.subr.mxu0 0.0
        %2445 = vmatpush1.msra.mxu0 0.0
        %2446 = vmatprep.subr.mxu0 0.0
        %2447 = vmatpush1.msra.mxu0 0.0
        %2448 = vmatprep.subr.mxu0 0.0
        %2449 = vmatpush1.msra.mxu0 0.0
        %2450 = vmatprep.subr.mxu0 0.0
        %2451 = vmatpush1.msra.mxu0 0.0
        %2452 = vmatprep.subr.mxu0 0.0
        %2453 = vmatpush1.msra.mxu0 0.0
        %2454 = vmatprep.subr.mxu0 0.0
        %2455 = vmatpush1.msra.mxu0 0.0
        %2456 = vmatprep.subr.mxu0 0.0
        %2457 = vmatpush1.msra.mxu0 0.0
        %2458 = vmatprep.subr.mxu0 0.0
        %2459 = vmatpush1.msra.mxu0 0.0
        %2460 = vmatprep.subr.mxu0 0.0
        %2461 = vmatpush1.msra.mxu0 0.0
        %2462 = vmatprep.subr.mxu0 0.0
        %2463 = vmatpush1.msra.mxu0 0.0
        %2464 = vmatprep.subr.mxu0 0.0
        %2465 = vmatpush1.msra.mxu0 0.0
        %2466 = vmatprep.subr.mxu0 0.0
        %2467 = vmatpush1.msra.mxu0 0.0
        %2468 = vmatprep.subr.mxu0 0.0
        %2469 = vmatpush1.msra.mxu0 0.0
        %2470 = vmatprep.subr.mxu0 0.0
        %2471 = vmatpush1.msra.mxu0 0.0
        %2472 = vmatprep.subr.mxu0 0.0
        %2473 = vmatpush1.msra.mxu0 0.0
        %2474 = vmatprep.subr.mxu0 0.0
        %2475 = vmatpush1.msra.mxu0 0.0
        %2476 = vmatprep.subr.mxu0 0.0
        %2477 = vmatpush1.msra.mxu0 0.0
        %2478 = vmatprep.subr.mxu0 0.0
        %2479 = vmatpush1.msra.mxu0 0.0
        %2480 = vmatprep.subr.mxu0 0.0
        %2481 = vmatpush1.msra.mxu0 0.0
        %2482 = vmatprep.mubr.f32.mxu0 0.0
        %2483 = vmatmul.mubr.f32.gmra.mrb[0].mxu0 %v2413
        %v2484 = vpop.f32.mrb[0].mxu0
        %v2485 = vadd.f32 0.0, %v2484
        %v2486 = vpop.f32.mrb[0].mxu0
        %2487 = vmatprep.mubr.f32.mxu0 0.0
        %2488 = vmatmul.mubr.f32.gmra.mrb[0].mxu0 %v2416
        %v2489 = vpop.f32.mrb[0].mxu0
        %v2490 = vadd.f32 0.0, %v2489
        %v2491 = vpop.f32.mrb[0].mxu0
        %2492 = vdwg.mxu0
        %2493 = vrot.lane.b32.xlu0 %v1206, 104
        %v2494 = vpop.permute.xlu0 %2493
        %2495 = vrot.lane.b32.xlu0 %v1209, 104
        %v2496 = vpop.permute.xlu0 %2495
        %2497 = vrot.lane.b32.xlu0 %v1265, 104
        %v2498 = vpop.permute.xlu0 %2497
        %2499 = vrot.lane.b32.xlu0 %v1268, 104
        %v2500 = vpop.permute.xlu0 %2499
        %v2501 = vsel %vm1271, %v2494, 0
        %v2503 = vsel %vm1271, %v2496, 0
        %v2505 = vsel %vm1271, %v2498, 0
        %v2507 = vsel %vm1271, %v2500, 0
        %2509 = vmatprep.subr.mxu0 0.0
        %2510 = vmatpush1.xpose.msra.mxu0 %v2505
        %2511 = vmatprep.subr.mxu0 0.0
        %2512 = vmatpush1.xpose.msra.mxu0 %v2507
        %2513 = vmatprep.subr.mxu0 0.0
        %2514 = vmatpush1.xpose.msra.mxu0 0.0
        %2515 = vmatprep.subr.mxu0 0.0
        %2516 = vmatpush1.xpose.msra.mxu0 0.0
        %2517 = vmatprep.subr.mxu0 0.0
        %2518 = vmatpush1.xpose.msra.mxu0 0.0
        %2519 = vmatprep.subr.mxu0 0.0
        %2520 = vmatpush1.xpose.msra.mxu0 0.0
        %2521 = vmatprep.subr.mxu0 0.0
        %2522 = vmatpush1.xpose.msra.mxu0 0.0
        %2523 = vmatprep.subr.mxu0 0.0
        %2524 = vmatpush1.xpose.msra.mxu0 0.0
        %2525 = vmatprep.subr.mxu0 0.0
        %2526 = vmatpush1.xpose.msra.mxu0 0.0
        %2527 = vmatprep.subr.mxu0 0.0
        %2528 = vmatpush1.xpose.msra.mxu0 0.0
        %2529 = vmatprep.subr.mxu0 0.0
        %2530 = vmatpush1.xpose.msra.mxu0 0.0
        %2531 = vmatprep.subr.mxu0 0.0
        %2532 = vmatpush1.xpose.msra.mxu0 0.0
        %2533 = vmatprep.subr.mxu0 0.0
        %2534 = vmatpush1.xpose.msra.mxu0 0.0
        %2535 = vmatprep.subr.mxu0 0.0
        %2536 = vmatpush1.xpose.msra.mxu0 0.0
        %2537 = vmatprep.subr.mxu0 0.0
        %2538 = vmatpush1.xpose.msra.mxu0 0.0
        %2539 = vmatprep.subr.mxu0 0.0
        %2540 = vmatpush1.xpose.msra.mxu0 0.0
        %2541 = vmatprep.subr.mxu0 0.0
        %2542 = vmatpush1.xpose.msra.mxu0 0.0
        %2543 = vmatprep.subr.mxu0 0.0
        %2544 = vmatpush1.xpose.msra.mxu0 0.0
        %2545 = vmatprep.subr.mxu0 0.0
        %2546 = vmatpush1.xpose.msra.mxu0 0.0
        %2547 = vmatprep.subr.mxu0 0.0
        %2548 = vmatpush1.xpose.msra.mxu0 0.0
        %2549 = vmatprep.subr.mxu0 0.0
        %2550 = vmatpush1.xpose.msra.mxu0 0.0
        %2551 = vmatprep.subr.mxu0 0.0
        %2552 = vmatpush1.xpose.msra.mxu0 0.0
        %2553 = vmatprep.subr.mxu0 0.0
        %2554 = vmatpush1.xpose.msra.mxu0 0.0
        %2555 = vmatprep.subr.mxu0 0.0
        %2556 = vmatpush1.xpose.msra.mxu0 0.0
        %2557 = vmatprep.subr.mxu0 0.0
        %2558 = vmatpush1.xpose.msra.mxu0 0.0
        %2559 = vmatprep.subr.mxu0 0.0
        %2560 = vmatpush1.xpose.msra.mxu0 0.0
        %2561 = vmatprep.subr.mxu0 0.0
        %2562 = vmatpush1.xpose.msra.mxu0 0.0
        %2563 = vmatprep.subr.mxu0 0.0
        %2564 = vmatpush1.xpose.msra.mxu0 0.0
        %2565 = vmatprep.subr.mxu0 0.0
        %2566 = vmatpush1.xpose.msra.mxu0 0.0
        %2567 = vmatprep.subr.mxu0 0.0
        %2568 = vmatpush1.xpose.msra.mxu0 0.0
        %2569 = vmatprep.subr.mxu0 0.0
        %2570 = vmatpush1.xpose.msra.mxu0 0.0
        %2571 = vmatprep.subr.mxu0 0.0
        %2572 = vmatpush1.xpose.msra.mxu0 0.0
        %2573 = vmatprep.mubr.f32.mxu0 0.0
        %2574 = vmatmul.mubr.f32.gmra.mrb[0].mxu0 %v2501
        %v2575 = vpop.f32.mrb[0].mxu0
        %v2576 = vadd.f32 0.0, %v2575
        %v2577 = vpop.f32.mrb[0].mxu0
        %2578 = vmatprep.mubr.f32.mxu0 0.0
        %2579 = vmatmul.mubr.f32.gmra.mrb[0].mxu0 %v2503
        %v2580 = vpop.f32.mrb[0].mxu0
        %v2581 = vadd.f32 0.0, %v2580
        %v2582 = vpop.f32.mrb[0].mxu0
        %2583 = vdwg.mxu0
        %v2584 = vmul.f32 %v2576, 0.5
        %v2585 = vmul.f32 %v2581, 0.5
        %v2586 = vadd.f32 %v2584, %v1146
        %v2587 = vadd.f32 %v2585, %v1147
        %v2588 = vsel %vm1363, %v2586, -inf
        %2589 = vmax.xlane.f32.xlu0 %v2588
        %v2590 = vpop.xlane.xlu0 %2589
        %v2591 = vsel %vm1363, %v2587, -inf
        %2592 = vmax.xlane.f32.xlu0 %v2591
        %v2593 = vpop.xlane.xlu0 %2592
        %v2594 = vsub.f32 %v2586, %v2590
        %v2595 = vsub.f32 %v2587, %v2593
        %v2596 = vmul.f32 %v2594, 1.442695
        %v2597 = vpow.pop %v2596
        %v2598 = vmul.f32 %v2595, 1.442695
        %v2599 = vpow.pop %v2598
        %v2600 = vsel %vm1363, %v2597, 0.0
        %2601 = vadd.xlane.f32.xlu0 %v2600
        %v2602 = vpop.xlane.xlu0 %2601
        %v2603 = vsel %vm1363, %v2599, 0.0
        %2604 = vadd.xlane.f32.xlu0 %v2603
        %v2605 = vpop.xlane.xlu0 %2604
        %v2606 = vrcp.pop %v2602
        %v2607 = vmul.f32 %v2597, %v2606
        %v2608 = vrcp.pop %v2605
        %v2609 = vmul.f32 %v2599, %v2608
        %2610 = vrot.lane.b32.xlu0 %v1265, 72
        %v2611 = vpop.permute.xlu0 %2610
        %2612 = vrot.lane.b32.xlu0 %v1268, 72
        %v2613 = vpop.permute.xlu0 %2612
        %v2617 = vsel %vm1363, %v2607, 0
        %v2620 = vsel %vm1363, %v2609, 0
        %2622 = vmatprep.subr.mxu0 0.0
        %2623 = vmatpush1.msra.mxu0 %v2611
        %2624 = vmatprep.subr.mxu0 0.0
        %2625 = vmatpush1.msra.mxu0 %v2613
        %2626 = vmatprep.subr.mxu0 0.0
        %2627 = vmatpush1.msra.mxu0 0.0
        %2628 = vmatprep.subr.mxu0 0.0
        %2629 = vmatpush1.msra.mxu0 0.0
        %2630 = vmatprep.subr.mxu0 0.0
        %2631 = vmatpush1.msra.mxu0 0.0
        %2632 = vmatprep.subr.mxu0 0.0
        %2633 = vmatpush1.msra.mxu0 0.0
        %2634 = vmatprep.subr.mxu0 0.0
        %2635 = vmatpush1.msra.mxu0 0.0
        %2636 = vmatprep.subr.mxu0 0.0
        %2637 = vmatpush1.msra.mxu0 0.0
        %2638 = vmatprep.subr.mxu0 0.0
        %2639 = vmatpush1.msra.mxu0 0.0
        %2640 = vmatprep.subr.mxu0 0.0
        %2641 = vmatpush1.msra.mxu0 0.0
        %2642 = vmatprep.subr.mxu0 0.0
        %2643 = vmatpush1.msra.mxu0 0.0
        %2644 = vmatprep.subr.mxu0 0.0
        %2645 = vmatpush1.msra.mxu0 0.0
        %2646 = vmatprep.subr.mxu0 0.0
        %2647 = vmatpush1.msra.mxu0 0.0
        %2648 = vmatprep.subr.mxu0 0.0
        %2649 = vmatpush1.msra.mxu0 0.0
        %2650 = vmatprep.subr.mxu0 0.0
        %2651 = vmatpush1.msra.mxu0 0.0
        %2652 = vmatprep.subr.mxu0 0.0
        %2653 = vmatpush1.msra.mxu0 0.0
        %2654 = vmatprep.subr.mxu0 0.0
        %2655 = vmatpush1.msra.mxu0 0.0
        %2656 = vmatprep.subr.mxu0 0.0
        %2657 = vmatpush1.msra.mxu0 0.0
        %2658 = vmatprep.subr.mxu0 0.0
        %2659 = vmatpush1.msra.mxu0 0.0
        %2660 = vmatprep.subr.mxu0 0.0
        %2661 = vmatpush1.msra.mxu0 0.0
        %2662 = vmatprep.subr.mxu0 0.0
        %2663 = vmatpush1.msra.mxu0 0.0
        %2664 = vmatprep.subr.mxu0 0.0
        %2665 = vmatpush1.msra.mxu0 0.0
        %2666 = vmatprep.subr.mxu0 0.0
        %2667 = vmatpush1.msra.mxu0 0.0
        %2668 = vmatprep.subr.mxu0 0.0
        %2669 = vmatpush1.msra.mxu0 0.0
        %2670 = vmatprep.subr.mxu0 0.0
        %2671 = vmatpush1.msra.mxu0 0.0
        %2672 = vmatprep.subr.mxu0 0.0
        %2673 = vmatpush1.msra.mxu0 0.0
        %2674 = vmatprep.subr.mxu0 0.0
        %2675 = vmatpush1.msra.mxu0 0.0
        %2676 = vmatprep.subr.mxu0 0.0
        %2677 = vmatpush1.msra.mxu0 0.0
        %2678 = vmatprep.subr.mxu0 0.0
        %2679 = vmatpush1.msra.mxu0 0.0
        %2680 = vmatprep.subr.mxu0 0.0
        %2681 = vmatpush1.msra.mxu0 0.0
        %2682 = vmatprep.subr.mxu0 0.0
        %2683 = vmatpush1.msra.mxu0 0.0
        %2684 = vmatprep.subr.mxu0 0.0
        %2685 = vmatpush1.msra.mxu0 0.0
        %2686 = vmatprep.mubr.f32.mxu0 0.0
        %2687 = vmatmul.mubr.f32.gmra.mrb[0].mxu0 %v2617
        %v2688 = vpop.f32.mrb[0].mxu0
        %v2689 = vadd.f32 0.0, %v2688
        %v2690 = vpop.f32.mrb[0].mxu0
        %2691 = vmatprep.mubr.f32.mxu0 0.0
        %2692 = vmatmul.mubr.f32.gmra.mrb[0].mxu0 %v2620
        %v2693 = vpop.f32.mrb[0].mxu0
        %v2694 = vadd.f32 0.0, %v2693
        %v2695 = vpop.f32.mrb[0].mxu0
        %2696 = vdwg.mxu0
        %2697 = vrot.lane.b32.xlu0 %v1206, 100
        %v2698 = vpop.permute.xlu0 %2697
        %2699 = vrot.lane.b32.xlu0 %v1209, 100
        %v2700 = vpop.permute.xlu0 %2699
        %2701 = vrot.lane.b32.xlu0 %v1265, 100
        %v2702 = vpop.permute.xlu0 %2701
        %2703 = vrot.lane.b32.xlu0 %v1268, 100
        %v2704 = vpop.permute.xlu0 %2703
        %v2705 = vsel %vm1271, %v2698, 0
        %v2707 = vsel %vm1271, %v2700, 0
        %v2709 = vsel %vm1271, %v2702, 0
        %v2711 = vsel %vm1271, %v2704, 0
        %2713 = vmatprep.subr.mxu0 0.0
        %2714 = vmatpush1.xpose.msra.mxu0 %v2709
        %2715 = vmatprep.subr.mxu0 0.0
        %2716 = vmatpush1.xpose.msra.mxu0 %v2711
        %2717 = vmatprep.subr.mxu0 0.0
        %2718 = vmatpush1.xpose.msra.mxu0 0.0
        %2719 = vmatprep.subr.mxu0 0.0
        %2720 = vmatpush1.xpose.msra.mxu0 0.0
        %2721 = vmatprep.subr.mxu0 0.0
        %2722 = vmatpush1.xpose.msra.mxu0 0.0
        %2723 = vmatprep.subr.mxu0 0.0
        %2724 = vmatpush1.xpose.msra.mxu0 0.0
        %2725 = vmatprep.subr.mxu0 0.0
        %2726 = vmatpush1.xpose.msra.mxu0 0.0
        %2727 = vmatprep.subr.mxu0 0.0
        %2728 = vmatpush1.xpose.msra.mxu0 0.0
        %2729 = vmatprep.subr.mxu0 0.0
        %2730 = vmatpush1.xpose.msra.mxu0 0.0
        %2731 = vmatprep.subr.mxu0 0.0
        %2732 = vmatpush1.xpose.msra.mxu0 0.0
        %2733 = vmatprep.subr.mxu0 0.0
        %2734 = vmatpush1.xpose.msra.mxu0 0.0
        %2735 = vmatprep.subr.mxu0 0.0
        %2736 = vmatpush1.xpose.msra.mxu0 0.0
        %2737 = vmatprep.subr.mxu0 0.0
        %2738 = vmatpush1.xpose.msra.mxu0 0.0
        %2739 = vmatprep.subr.mxu0 0.0
        %2740 = vmatpush1.xpose.msra.mxu0 0.0
        %2741 = vmatprep.subr.mxu0 0.0
        %2742 = vmatpush1.xpose.msra.mxu0 0.0
        %2743 = vmatprep.subr.mxu0 0.0
        %2744 = vmatpush1.xpose.msra.mxu0 0.0
        %2745 = vmatprep.subr.mxu0 0.0
        %2746 = vmatpush1.xpose.msra.mxu0 0.0
        %2747 = vmatprep.subr.mxu0 0.0
        %2748 = vmatpush1.xpose.msra.mxu0 0.0
        %2749 = vmatprep.subr.mxu0 0.0
        %2750 = vmatpush1.xpose.msra.mxu0 0.0
        %2751 = vmatprep.subr.mxu0 0.0
        %2752 = vmatpush1.xpose.msra.mxu0 0.0
        %2753 = vmatprep.subr.mxu0 0.0
        %2754 = vmatpush1.xpose.msra.mxu0 0.0
        %2755 = vmatprep.subr.mxu0 0.0
        %2756 = vmatpush1.xpose.msra.mxu0 0.0
        %2757 = vmatprep.subr.mxu0 0.0
        %2758 = vmatpush1.xpose.msra.mxu0 0.0
        %2759 = vmatprep.subr.mxu0 0.0
        %2760 = vmatpush1.xpose.msra.mxu0 0.0
        %2761 = vmatprep.subr.mxu0 0.0
        %2762 = vmatpush1.xpose.msra.mxu0 0.0
        %2763 = vmatprep.subr.mxu0 0.0
        %2764 = vmatpush1.xpose.msra.mxu0 0.0
        %2765 = vmatprep.subr.mxu0 0.0
        %2766 = vmatpush1.xpose.msra.mxu0 0.0
        %2767 = vmatprep.subr.mxu0 0.0
        %2768 = vmatpush1.xpose.msra.mxu0 0.0
        %2769 = vmatprep.subr.mxu0 0.0
        %2770 = vmatpush1.xpose.msra.mxu0 0.0
        %2771 = vmatprep.subr.mxu0 0.0
        %2772 = vmatpush1.xpose.msra.mxu0 0.0
        %2773 = vmatprep.subr.mxu0 0.0
        %2774 = vmatpush1.xpose.msra.mxu0 0.0
        %2775 = vmatprep.subr.mxu0 0.0
        %2776 = vmatpush1.xpose.msra.mxu0 0.0
        %2777 = vmatprep.mubr.f32.mxu0 0.0
        %2778 = vmatmul.mubr.f32.gmra.mrb[0].mxu0 %v2705
        %v2779 = vpop.f32.mrb[0].mxu0
        %v2780 = vadd.f32 0.0, %v2779
        %v2781 = vpop.f32.mrb[0].mxu0
        %2782 = vmatprep.mubr.f32.mxu0 0.0
        %2783 = vmatmul.mubr.f32.gmra.mrb[0].mxu0 %v2707
        %v2784 = vpop.f32.mrb[0].mxu0
        %v2785 = vadd.f32 0.0, %v2784
        %v2786 = vpop.f32.mrb[0].mxu0
        %2787 = vdwg.mxu0
        %v2788 = vmul.f32 %v2780, 0.5
        %v2789 = vmul.f32 %v2785, 0.5
        %v2790 = vadd.f32 %v2788, %v1146
        %v2791 = vadd.f32 %v2789, %v1147
        %v2792 = vsel %vm1363, %v2790, -inf
        %2793 = vmax.xlane.f32.xlu0 %v2792
        %v2794 = vpop.xlane.xlu0 %2793
        %v2795 = vsel %vm1363, %v2791, -inf
        %2796 = vmax.xlane.f32.xlu0 %v2795
        %v2797 = vpop.xlane.xlu0 %2796
        %v2798 = vsub.f32 %v2790, %v2794
        %v2799 = vsub.f32 %v2791, %v2797
        %v2800 = vmul.f32 %v2798, 1.442695
        %v2801 = vpow.pop %v2800
        %v2802 = vmul.f32 %v2799, 1.442695
        %v2803 = vpow.pop %v2802
        %v2804 = vsel %vm1363, %v2801, 0.0
        %2805 = vadd.xlane.f32.xlu0 %v2804
        %v2806 = vpop.xlane.xlu0 %2805
        %v2807 = vsel %vm1363, %v2803, 0.0
        %2808 = vadd.xlane.f32.xlu0 %v2807
        %v2809 = vpop.xlane.xlu0 %2808
        %v2810 = vrcp.pop %v2806
        %v2811 = vmul.f32 %v2801, %v2810
        %v2812 = vrcp.pop %v2809
        %v2813 = vmul.f32 %v2803, %v2812
        %2814 = vrot.lane.b32.xlu0 %v1265, 68
        %v2815 = vpop.permute.xlu0 %2814
        %2816 = vrot.lane.b32.xlu0 %v1268, 68
        %v2817 = vpop.permute.xlu0 %2816
        %v2821 = vsel %vm1363, %v2811, 0
        %v2824 = vsel %vm1363, %v2813, 0
        %2826 = vmatprep.subr.mxu0 0.0
        %2827 = vmatpush1.msra.mxu0 %v2815
        %2828 = vmatprep.subr.mxu0 0.0
        %2829 = vmatpush1.msra.mxu0 %v2817
        %2830 = vmatprep.subr.mxu0 0.0
        %2831 = vmatpush1.msra.mxu0 0.0
        %2832 = vmatprep.subr.mxu0 0.0
        %2833 = vmatpush1.msra.mxu0 0.0
        %2834 = vmatprep.subr.mxu0 0.0
        %2835 = vmatpush1.msra.mxu0 0.0
        %2836 = vmatprep.subr.mxu0 0.0
        %2837 = vmatpush1.msra.mxu0 0.0
        %2838 = vmatprep.subr.mxu0 0.0
        %2839 = vmatpush1.msra.mxu0 0.0
        %2840 = vmatprep.subr.mxu0 0.0
        %2841 = vmatpush1.msra.mxu0 0.0
        %2842 = vmatprep.subr.mxu0 0.0
        %2843 = vmatpush1.msra.mxu0 0.0
        %2844 = vmatprep.subr.mxu0 0.0
        %2845 = vmatpush1.msra.mxu0 0.0
        %2846 = vmatprep.subr.mxu0 0.0
        %2847 = vmatpush1.msra.mxu0 0.0
        %2848 = vmatprep.subr.mxu0 0.0
        %2849 = vmatpush1.msra.mxu0 0.0
        %2850 = vmatprep.subr.mxu0 0.0
        %2851 = vmatpush1.msra.mxu0 0.0
        %2852 = vmatprep.subr.mxu0 0.0
        %2853 = vmatpush1.msra.mxu0 0.0
        %2854 = vmatprep.subr.mxu0 0.0
        %2855 = vmatpush1.msra.mxu0 0.0
        %2856 = vmatprep.subr.mxu0 0.0
        %2857 = vmatpush1.msra.mxu0 0.0
        %2858 = vmatprep.subr.mxu0 0.0
        %2859 = vmatpush1.msra.mxu0 0.0
        %2860 = vmatprep.subr.mxu0 0.0
        %2861 = vmatpush1.msra.mxu0 0.0
        %2862 = vmatprep.subr.mxu0 0.0
        %2863 = vmatpush1.msra.mxu0 0.0
        %2864 = vmatprep.subr.mxu0 0.0
        %2865 = vmatpush1.msra.mxu0 0.0
        %2866 = vmatprep.subr.mxu0 0.0
        %2867 = vmatpush1.msra.mxu0 0.0
        %2868 = vmatprep.subr.mxu0 0.0
        %2869 = vmatpush1.msra.mxu0 0.0
        %2870 = vmatprep.subr.mxu0 0.0
        %2871 = vmatpush1.msra.mxu0 0.0
        %2872 = vmatprep.subr.mxu0 0.0
        %2873 = vmatpush1.msra.mxu0 0.0
        %2874 = vmatprep.subr.mxu0 0.0
        %2875 = vmatpush1.msra.mxu0 0.0
        %2876 = vmatprep.subr.mxu0 0.0
        %2877 = vmatpush1.msra.mxu0 0.0
        %2878 = vmatprep.subr.mxu0 0.0
        %2879 = vmatpush1.msra.mxu0 0.0
        %2880 = vmatprep.subr.mxu0 0.0
        %2881 = vmatpush1.msra.mxu0 0.0
        %2882 = vmatprep.subr.mxu0 0.0
        %2883 = vmatpush1.msra.mxu0 0.0
        %2884 = vmatprep.subr.mxu0 0.0
        %2885 = vmatpush1.msra.mxu0 0.0
        %2886 = vmatprep.subr.mxu0 0.0
        %2887 = vmatpush1.msra.mxu0 0.0
        %2888 = vmatprep.subr.mxu0 0.0
        %2889 = vmatpush1.msra.mxu0 0.0
        %2890 = vmatprep.mubr.f32.mxu0 0.0
        %2891 = vmatmul.mubr.f32.gmra.mrb[0].mxu0 %v2821
        %v2892 = vpop.f32.mrb[0].mxu0
        %v2893 = vadd.f32 0.0, %v2892
        %v2894 = vpop.f32.mrb[0].mxu0
        %2895 = vmatprep.mubr.f32.mxu0 0.0
        %2896 = vmatmul.mubr.f32.gmra.mrb[0].mxu0 %v2824
        %v2897 = vpop.f32.mrb[0].mxu0
        %v2898 = vadd.f32 0.0, %v2897
        %v2899 = vpop.f32.mrb[0].mxu0
        %2900 = vdwg.mxu0
        %2903 = vrot.lane.b32.xlu0 %v1669, 4
        %v2904 = vpop.permute.xlu0 %2903
        %2905 = vrot.lane.b32.xlu0 %v1674, 4
        %v2906 = vpop.permute.xlu0 %2905
        %2911 = vrot.lane.b32.xlu0 %v1873, 8
        %v2912 = vpop.permute.xlu0 %2911
        %2913 = vrot.lane.b32.xlu0 %v1878, 8
        %v2914 = vpop.permute.xlu0 %2913
        %2919 = vrot.lane.b32.xlu0 %v2077, 12
        %v2920 = vpop.permute.xlu0 %2919
        %2921 = vrot.lane.b32.xlu0 %v2082, 12
        %v2922 = vpop.permute.xlu0 %2921
        %2927 = vrot.lane.b32.xlu0 %v2281, 16
        %v2928 = vpop.permute.xlu0 %2927
        %2929 = vrot.lane.b32.xlu0 %v2286, 16
        %v2930 = vpop.permute.xlu0 %2929
        %2935 = vrot.lane.b32.xlu0 %v2485, 20
        %v2936 = vpop.permute.xlu0 %2935
        %2937 = vrot.lane.b32.xlu0 %v2490, 20
        %v2938 = vpop.permute.xlu0 %2937
        %2943 = vrot.lane.b32.xlu0 %v2689, 24
        %v2944 = vpop.permute.xlu0 %2943
        %2945 = vrot.lane.b32.xlu0 %v2694, 24
        %v2946 = vpop.permute.xlu0 %2945
        %2951 = vrot.lane.b32.xlu0 %v2893, 28
        %v2952 = vpop.permute.xlu0 %2951
        %2953 = vrot.lane.b32.xlu0 %v2898, 28
        %v2954 = vpop.permute.xlu0 %2953
        %v2957 = vsel %vm1271, %v1465, %v2904
        %v2958 = vsel %vm1271, %v1470, %v2906
        %vm2959 = vcmask 64512
        %v2960 = vsel %vm2959, %v2957, %v2912
        %v2961 = vsel %vm2959, %v2958, %v2914
        %vm2962 = vcmask 97280
        %v2963 = vsel %vm2962, %v2960, %v2920
        %v2964 = vsel %vm2962, %v2961, %v2922
        %v2965 = vsel %vm1363, %v2963, %v2928
        %v2966 = vsel %vm1363, %v2964, %v2930
        %vm2967 = vcmask 162816
        %v2968 = vsel %vm2967, %v2965, %v2936
        %v2969 = vsel %vm2967, %v2966, %v2938
        %vm2970 = vcmask 195584
        %v2971 = vsel %vm2970, %v2968, %v2944
        %v2972 = vsel %vm2970, %v2969, %v2946
        %vm2973 = vcmask 228352
        %v2974 = vsel %vm2973, %v2971, %v2952
        %v2975 = vsel %vm2973, %v2972, %v2954
        %v2976 = vpack.c.bf16 %v2975, %v2974
        %v2978 = vlaneseq
        %v2979 = vshrl.u32 %v2978, 7
        %v2980 = vsub.s32 0, %v2979
        %v2981 = vrot.slane %v1145, %v2980
        %v2987 = vunpack.c.l.b16 %v1141
        %v2988 = vunpack.c.l.b16 %v1142
        %v2989 = vunpack.c.l.b16 %v1143
        %v2990 = vunpack.c.l.b16 %v1144
        %v2991 = vpack.c.b16 %v2988, %v2987
        %v2992 = vpack.c.b16 %v2990, %v2989
        %v2996 = vsel %vm1167, %v2976, 0
        %2998 = vmatprep.subr.bf16.mxu0 0
        %2999 = vmatpush1.bf16.msra.mxu0 %v2991
        %3000 = vmatprep.subr.bf16.mxu0 0
        %3001 = vmatpush1.bf16.msra.mxu0 %v2992
        %3002 = vmatprep.subr.bf16.mxu0 0
        %3003 = vmatpush1.bf16.msra.mxu0 0
        %3004 = vmatprep.subr.bf16.mxu0 0
        %3005 = vmatpush1.bf16.msra.mxu0 0
        %3006 = vmatprep.subr.bf16.mxu0 0
        %3007 = vmatpush1.bf16.msra.mxu0 0
        %3008 = vmatprep.subr.bf16.mxu0 0
        %3009 = vmatpush1.bf16.msra.mxu0 0
        %3010 = vmatprep.subr.bf16.mxu0 0
        %3011 = vmatpush1.bf16.msra.mxu0 0
        %3012 = vmatprep.subr.bf16.mxu0 0
        %3013 = vmatpush1.bf16.msra.mxu0 0
        %3014 = vmatprep.subr.bf16.mxu0 0
        %3015 = vmatpush1.bf16.msra.mxu0 0
        %3016 = vmatprep.subr.bf16.mxu0 0
        %3017 = vmatpush1.bf16.msra.mxu0 0
        %3018 = vmatprep.subr.bf16.mxu0 0
        %3019 = vmatpush1.bf16.msra.mxu0 0
        %3020 = vmatprep.subr.bf16.mxu0 0
        %3021 = vmatpush1.bf16.msra.mxu0 0
        %3022 = vmatprep.subr.bf16.mxu0 0
        %3023 = vmatpush1.bf16.msra.mxu0 0
        %3024 = vmatprep.subr.bf16.mxu0 0
        %3025 = vmatpush1.bf16.msra.mxu0 0
        %3026 = vmatprep.subr.bf16.mxu0 0
        %3027 = vmatpush1.bf16.msra.mxu0 0
        %3028 = vmatprep.subr.bf16.mxu0 0
        %3029 = vmatpush1.bf16.msra.mxu0 0
        %3030 = vmatprep.mubr.bf16.mxu0 0
        %3031 = vmatmul.mubr.bf16.gmra.mrb[0].mxu0 %v2996
        %v3032 = vpop.f32.mrb[0].mxu0
        %v3033 = vadd.f32 %v2981, %v3032
        %v3034 = vpop.f32.mrb[0].mxu0
        %v3035 = vpop.f32.mrb[0].mxu0
        %v3036 = vadd.f32 %v2981, %v3035
        %v3037 = vpop.f32.mrb[0].mxu0
        %3038 = vdwg.mxu0
        %v3039 = vadd.f32 %v1127, %v3033
        %v3040 = vadd.f32 %v1128, %v3036
        %v3041 = vld [vmem:[%s1101] sm:$0x1]
        %v3042 = vld [vmem:[%s1104] sm:$0x1]
        %v3043 = vsel %vm1167, %v3039, 0.0
        %3044 = vadd.xlane.f32.xlu0 %v3043
        %v3045 = vpop.xlane.xlu0 %3044
        %v3046 = vsel %vm1167, %v3040, 0.0
        %3047 = vadd.xlane.f32.xlu0 %v3046
        %v3048 = vpop.xlane.xlu0 %3047
        %v3049 = vrcp.pop 32.0
        %v3050 = vmul.f32 %v3045, %v3049
        %v3051 = vmul.f32 %v3048, %v3049
        %v3052 = vsub.f32 %v3039, %v3050
        %v3053 = vsub.f32 %v3040, %v3051
        %v3054 = vmul.f32 %v3052, %v3052
        %v3055 = vmul.f32 %v3053, %v3053
        %v3056 = vsel %vm1167, %v3054, 0.0
        %3057 = vadd.xlane.f32.xlu0 %v3056
        %v3058 = vpop.xlane.xlu0 %3057
        %v3059 = vsel %vm1167, %v3055, 0.0
        %3060 = vadd.xlane.f32.xlu0 %v3059
        %v3061 = vpop.xlane.xlu0 %3060
        %v3062 = vmul.f32 %v3058, %v3049
        %v3063 = vmul.f32 %v3061, %v3049
        %v3064 = vadd.f32 %v3062, 1e-05
        %v3065 = vadd.f32 %v3063, 1e-05
        %v3066 = vrsqrt.pop %v3064
        %v3067 = vrsqrt.pop %v3065
        %v3068 = vmul.f32 %v3052, %v3066
        %v3069 = vmul.f32 %v3053, %v3067
        %v3071 = vlaneseq
        %v3072 = vshrl.u32 %v3071, 7
        %v3073 = vsub.s32 0, %v3072
        %v3074 = vrot.slane %v3041, %v3073
        %v3076 = vmul.f32 %v3068, %v3074
        %v3077 = vmul.f32 %v3069, %v3074
        %v3079 = vlaneseq
        %v3080 = vshrl.u32 %v3079, 7
        %v3081 = vsub.s32 0, %v3080
        %v3082 = vrot.slane %v3042, %v3081
        %v3084 = vadd.f32 %v3076, %v3082
        %v3085 = vadd.f32 %v3077, %v3082
        %v3086 = vld [vmem:[%s1062] sm:$0xf]
        %v3087 = vld [vmem:[%s1062 + $0x4] sm:$0xf]
        %v3088 = vld [vmem:[%s1062 + $0x8] sm:$0xf]
        %v3089 = vld [vmem:[%s1062 + $0xc] sm:$0xf]
        %v3090 = vld [vmem:[%s1065] sm:$0x1]
        %v3091 = vld [vmem:[%s1070] sm:$0xf]
        %v3092 = vld [vmem:[%s1070 + $0x4] sm:$0xf]
        %v3093 = vld [vmem:[%s1070 + $0x8] sm:$0xf]
        %v3094 = vld [vmem:[%s1070 + $0xc] sm:$0xf]
        %v3095 = vld [vmem:[%s1073] sm:$0x1]
        %v3096 = vld [vmem:[%s1078] sm:$0xf]
        %v3097 = vld [vmem:[%s1078 + $0x4] sm:$0xf]
        %v3098 = vld [vmem:[%s1078 + $0x8] sm:$0xf]
        %v3099 = vld [vmem:[%s1078 + $0xc] sm:$0xf]
        %v3100 = vld [vmem:[%s1081] sm:$0x1]
        %v3101 = vld [vmem:[%s3] sm:$0xff]
        %v3102 = vld [vmem:[%s3 + $0x8] sm:$0xff]
        %v3103 = vpack.c.bf16 %v3085, %v3084
        %v3105 = vlaneseq
        %v3106 = vshrl.u32 %v3105, 7
        %v3107 = vsub.s32 0, %v3106
        %v3108 = vrot.slane %v3090, %v3107
        %v3114 = vunpack.c.l.b16 %v3086
        %v3115 = vunpack.c.l.b16 %v3087
        %v3116 = vunpack.c.l.b16 %v3088
        %v3117 = vunpack.c.l.b16 %v3089
        %v3118 = vpack.c.b16 %v3115, %v3114
        %v3119 = vpack.c.b16 %v3117, %v3116
        %v3123 = vsel %vm1167, %v3103, 0
        %3125 = vmatprep.subr.bf16.mxu0 0
        %3126 = vmatpush1.bf16.msra.mxu0 %v3118
        %3127 = vmatprep.subr.bf16.mxu0 0
        %3128 = vmatpush1.bf16.msra.mxu0 %v3119
        %3129 = vmatprep.subr.bf16.mxu0 0
        %3130 = vmatpush1.bf16.msra.mxu0 0
        %3131 = vmatprep.subr.bf16.mxu0 0
        %3132 = vmatpush1.bf16.msra.mxu0 0
        %3133 = vmatprep.subr.bf16.mxu0 0
        %3134 = vmatpush1.bf16.msra.mxu0 0
        %3135 = vmatprep.subr.bf16.mxu0 0
        %3136 = vmatpush1.bf16.msra.mxu0 0
        %3137 = vmatprep.subr.bf16.mxu0 0
        %3138 = vmatpush1.bf16.msra.mxu0 0
        %3139 = vmatprep.subr.bf16.mxu0 0
        %3140 = vmatpush1.bf16.msra.mxu0 0
        %3141 = vmatprep.subr.bf16.mxu0 0
        %3142 = vmatpush1.bf16.msra.mxu0 0
        %3143 = vmatprep.subr.bf16.mxu0 0
        %3144 = vmatpush1.bf16.msra.mxu0 0
        %3145 = vmatprep.subr.bf16.mxu0 0
        %3146 = vmatpush1.bf16.msra.mxu0 0
        %3147 = vmatprep.subr.bf16.mxu0 0
        %3148 = vmatpush1.bf16.msra.mxu0 0
        %3149 = vmatprep.subr.bf16.mxu0 0
        %3150 = vmatpush1.bf16.msra.mxu0 0
        %3151 = vmatprep.subr.bf16.mxu0 0
        %3152 = vmatpush1.bf16.msra.mxu0 0
        %3153 = vmatprep.subr.bf16.mxu0 0
        %3154 = vmatpush1.bf16.msra.mxu0 0
        %3155 = vmatprep.subr.bf16.mxu0 0
        %3156 = vmatpush1.bf16.msra.mxu0 0
        %3157 = vmatprep.mubr.bf16.mxu0 0
        %3158 = vmatmul.mubr.bf16.gmra.mrb[0].mxu0 %v3123
        %v3159 = vpop.f32.mrb[0].mxu0
        %v3160 = vadd.f32 %v3108, %v3159
        %v3161 = vpop.f32.mrb[0].mxu0
        %v3162 = vpop.f32.mrb[0].mxu0
        %v3163 = vadd.f32 %v3108, %v3162
        %v3164 = vpop.f32.mrb[0].mxu0
        %3165 = vdwg.mxu0
        %v3166 = vpack.c.bf16 %v1130, %v1129
        %v3168 = vlaneseq
        %v3169 = vshrl.u32 %v3168, 7
        %v3170 = vsub.s32 0, %v3169
        %v3171 = vrot.slane %v3095, %v3170
        %v3177 = vunpack.c.l.b16 %v3091
        %v3178 = vunpack.c.l.b16 %v3092
        %v3179 = vunpack.c.l.b16 %v3093
        %v3180 = vunpack.c.l.b16 %v3094
        %v3181 = vpack.c.b16 %v3178, %v3177
        %v3182 = vpack.c.b16 %v3180, %v3179
        %v3186 = vsel %vm1167, %v3166, 0
        %3188 = vmatprep.subr.bf16.mxu0 0
        %3189 = vmatpush1.bf16.msra.mxu0 %v3181
        %3190 = vmatprep.subr.bf16.mxu0 0
        %3191 = vmatpush1.bf16.msra.mxu0 %v3182
        %3192 = vmatprep.subr.bf16.mxu0 0
        %3193 = vmatpush1.bf16.msra.mxu0 0
        %3194 = vmatprep.subr.bf16.mxu0 0
        %3195 = vmatpush1.bf16.msra.mxu0 0
        %3196 = vmatprep.subr.bf16.mxu0 0
        %3197 = vmatpush1.bf16.msra.mxu0 0
        %3198 = vmatprep.subr.bf16.mxu0 0
        %3199 = vmatpush1.bf16.msra.mxu0 0
        %3200 = vmatprep.subr.bf16.mxu0 0
        %3201 = vmatpush1.bf16.msra.mxu0 0
        %3202 = vmatprep.subr.bf16.mxu0 0
        %3203 = vmatpush1.bf16.msra.mxu0 0
        %3204 = vmatprep.subr.bf16.mxu0 0
        %3205 = vmatpush1.bf16.msra.mxu0 0
        %3206 = vmatprep.subr.bf16.mxu0 0
        %3207 = vmatpush1.bf16.msra.mxu0 0
        %3208 = vmatprep.subr.bf16.mxu0 0
        %3209 = vmatpush1.bf16.msra.mxu0 0
        %3210 = vmatprep.subr.bf16.mxu0 0
        %3211 = vmatpush1.bf16.msra.mxu0 0
        %3212 = vmatprep.subr.bf16.mxu0 0
        %3213 = vmatpush1.bf16.msra.mxu0 0
        %3214 = vmatprep.subr.bf16.mxu0 0
        %3215 = vmatpush1.bf16.msra.mxu0 0
        %3216 = vmatprep.subr.bf16.mxu0 0
        %3217 = vmatpush1.bf16.msra.mxu0 0
        %3218 = vmatprep.subr.bf16.mxu0 0
        %3219 = vmatpush1.bf16.msra.mxu0 0
        %3220 = vmatprep.mubr.bf16.mxu0 0
        %3221 = vmatmul.mubr.bf16.gmra.mrb[0].mxu0 %v3186
        %v3222 = vpop.f32.mrb[0].mxu0
        %v3223 = vadd.f32 %v3171, %v3222
        %v3224 = vpop.f32.mrb[0].mxu0
        %v3225 = vpop.f32.mrb[0].mxu0
        %v3226 = vadd.f32 %v3171, %v3225
        %v3227 = vpop.f32.mrb[0].mxu0
        %3228 = vdwg.mxu0
        %v3230 = vsel %vm1271, %v3160, 0
        %v3233 = vsel %vm1271, %v3163, 0
        %v3236 = vsel %vm1271, %v3223, 0
        %v3239 = vsel %vm1271, %v3226, 0
        %3241 = vmatprep.subr.mxu0 0.0
        %3242 = vmatpush1.xpose.msra.mxu0 %v3236
        %3243 = vmatprep.subr.mxu0 0.0
        %3244 = vmatpush1.xpose.msra.mxu0 %v3239
        %3245 = vmatprep.subr.mxu0 0.0
        %3246 = vmatpush1.xpose.msra.mxu0 0.0
        %3247 = vmatprep.subr.mxu0 0.0
        %3248 = vmatpush1.xpose.msra.mxu0 0.0
        %3249 = vmatprep.subr.mxu0 0.0
        %3250 = vmatpush1.xpose.msra.mxu0 0.0
        %3251 = vmatprep.subr.mxu0 0.0
        %3252 = vmatpush1.xpose.msra.mxu0 0.0
        %3253 = vmatprep.subr.mxu0 0.0
        %3254 = vmatpush1.xpose.msra.mxu0 0.0
        %3255 = vmatprep.subr.mxu0 0.0
        %3256 = vmatpush1.xpose.msra.mxu0 0.0
        %3257 = vmatprep.subr.mxu0 0.0
        %3258 = vmatpush1.xpose.msra.mxu0 0.0
        %3259 = vmatprep.subr.mxu0 0.0
        %3260 = vmatpush1.xpose.msra.mxu0 0.0
        %3261 = vmatprep.subr.mxu0 0.0
        %3262 = vmatpush1.xpose.msra.mxu0 0.0
        %3263 = vmatprep.subr.mxu0 0.0
        %3264 = vmatpush1.xpose.msra.mxu0 0.0
        %3265 = vmatprep.subr.mxu0 0.0
        %3266 = vmatpush1.xpose.msra.mxu0 0.0
        %3267 = vmatprep.subr.mxu0 0.0
        %3268 = vmatpush1.xpose.msra.mxu0 0.0
        %3269 = vmatprep.subr.mxu0 0.0
        %3270 = vmatpush1.xpose.msra.mxu0 0.0
        %3271 = vmatprep.subr.mxu0 0.0
        %3272 = vmatpush1.xpose.msra.mxu0 0.0
        %3273 = vmatprep.subr.mxu0 0.0
        %3274 = vmatpush1.xpose.msra.mxu0 0.0
        %3275 = vmatprep.subr.mxu0 0.0
        %3276 = vmatpush1.xpose.msra.mxu0 0.0
        %3277 = vmatprep.subr.mxu0 0.0
        %3278 = vmatpush1.xpose.msra.mxu0 0.0
        %3279 = vmatprep.subr.mxu0 0.0
        %3280 = vmatpush1.xpose.msra.mxu0 0.0
        %3281 = vmatprep.subr.mxu0 0.0
        %3282 = vmatpush1.xpose.msra.mxu0 0.0
        %3283 = vmatprep.subr.mxu0 0.0
        %3284 = vmatpush1.xpose.msra.mxu0 0.0
        %3285 = vmatprep.subr.mxu0 0.0
        %3286 = vmatpush1.xpose.msra.mxu0 0.0
        %3287 = vmatprep.subr.mxu0 0.0
        %3288 = vmatpush1.xpose.msra.mxu0 0.0
        %3289 = vmatprep.subr.mxu0 0.0
        %3290 = vmatpush1.xpose.msra.mxu0 0.0
        %3291 = vmatprep.subr.mxu0 0.0
        %3292 = vmatpush1.xpose.msra.mxu0 0.0
        %3293 = vmatprep.subr.mxu0 0.0
        %3294 = vmatpush1.xpose.msra.mxu0 0.0
        %3295 = vmatprep.subr.mxu0 0.0
        %3296 = vmatpush1.xpose.msra.mxu0 0.0
        %3297 = vmatprep.subr.mxu0 0.0
        %3298 = vmatpush1.xpose.msra.mxu0 0.0
        %3299 = vmatprep.subr.mxu0 0.0
        %3300 = vmatpush1.xpose.msra.mxu0 0.0
        %3301 = vmatprep.subr.mxu0 0.0
        %3302 = vmatpush1.xpose.msra.mxu0 0.0
        %3303 = vmatprep.subr.mxu0 0.0
        %3304 = vmatpush1.xpose.msra.mxu0 0.0
        %3305 = vmatprep.mubr.f32.mxu0 0.0
        %3306 = vmatmul.mubr.f32.gmra.mrb[0].mxu0 %v3230
        %v3307 = vpop.f32.mrb[0].mxu0
        %v3308 = vadd.f32 0.0, %v3307
        %v3309 = vpop.f32.mrb[0].mxu0
        %3310 = vmatprep.mubr.f32.mxu0 0.0
        %3311 = vmatmul.mubr.f32.gmra.mrb[0].mxu0 %v3233
        %v3312 = vpop.f32.mrb[0].mxu0
        %v3313 = vadd.f32 0.0, %v3312
        %v3314 = vpop.f32.mrb[0].mxu0
        %3315 = vdwg.mxu0
        %v3316 = vmul.f32 %v3308, 0.5
        %v3317 = vmul.f32 %v3313, 0.5
        %v3318 = vadd.f32 %v3316, %v3101
        %v3319 = vadd.f32 %v3317, %v3102
        %v3320 = vsel %vm1363, %v3318, -inf
        %3321 = vmax.xlane.f32.xlu0 %v3320
        %v3322 = vpop.xlane.xlu0 %3321
        %v3323 = vsel %vm1363, %v3319, -inf
        %3324 = vmax.xlane.f32.xlu0 %v3323
        %v3325 = vpop.xlane.xlu0 %3324
        %v3326 = vsub.f32 %v3318, %v3322
        %v3327 = vsub.f32 %v3319, %v3325
        %v3328 = vmul.f32 %v3326, 1.442695
        %v3329 = vpow.pop %v3328
        %v3330 = vmul.f32 %v3327, 1.442695
        %v3331 = vpow.pop %v3330
        %v3332 = vsel %vm1363, %v3329, 0.0
        %3333 = vadd.xlane.f32.xlu0 %v3332
        %v3334 = vpop.xlane.xlu0 %3333
        %v3335 = vsel %vm1363, %v3331, 0.0
        %3336 = vadd.xlane.f32.xlu0 %v3335
        %v3337 = vpop.xlane.xlu0 %3336
        %v3338 = vrcp.pop %v3334
        %v3339 = vmul.f32 %v3329, %v3338
        %v3340 = vrcp.pop %v3337
        %v3341 = vmul.f32 %v3331, %v3340
        %3342 = vrot.lane.b32.xlu0 %v3223, 96
        %v3343 = vpop.permute.xlu0 %3342
        %3344 = vrot.lane.b32.xlu0 %v3226, 96
        %v3345 = vpop.permute.xlu0 %3344
        %v3349 = vsel %vm1363, %v3339, 0
        %v3352 = vsel %vm1363, %v3341, 0
        %3354 = vmatprep.subr.mxu0 0.0
        %3355 = vmatpush1.msra.mxu0 %v3343
        %3356 = vmatprep.subr.mxu0 0.0
        %3357 = vmatpush1.msra.mxu0 %v3345
        %3358 = vmatprep.subr.mxu0 0.0
        %3359 = vmatpush1.msra.mxu0 0.0
        %3360 = vmatprep.subr.mxu0 0.0
        %3361 = vmatpush1.msra.mxu0 0.0
        %3362 = vmatprep.subr.mxu0 0.0
        %3363 = vmatpush1.msra.mxu0 0.0
        %3364 = vmatprep.subr.mxu0 0.0
        %3365 = vmatpush1.msra.mxu0 0.0
        %3366 = vmatprep.subr.mxu0 0.0
        %3367 = vmatpush1.msra.mxu0 0.0
        %3368 = vmatprep.subr.mxu0 0.0
        %3369 = vmatpush1.msra.mxu0 0.0
        %3370 = vmatprep.subr.mxu0 0.0
        %3371 = vmatpush1.msra.mxu0 0.0
        %3372 = vmatprep.subr.mxu0 0.0
        %3373 = vmatpush1.msra.mxu0 0.0
        %3374 = vmatprep.subr.mxu0 0.0
        %3375 = vmatpush1.msra.mxu0 0.0
        %3376 = vmatprep.subr.mxu0 0.0
        %3377 = vmatpush1.msra.mxu0 0.0
        %3378 = vmatprep.subr.mxu0 0.0
        %3379 = vmatpush1.msra.mxu0 0.0
        %3380 = vmatprep.subr.mxu0 0.0
        %3381 = vmatpush1.msra.mxu0 0.0
        %3382 = vmatprep.subr.mxu0 0.0
        %3383 = vmatpush1.msra.mxu0 0.0
        %3384 = vmatprep.subr.mxu0 0.0
        %3385 = vmatpush1.msra.mxu0 0.0
        %3386 = vmatprep.subr.mxu0 0.0
        %3387 = vmatpush1.msra.mxu0 0.0
        %3388 = vmatprep.subr.mxu0 0.0
        %3389 = vmatpush1.msra.mxu0 0.0
        %3390 = vmatprep.subr.mxu0 0.0
        %3391 = vmatpush1.msra.mxu0 0.0
        %3392 = vmatprep.subr.mxu0 0.0
        %3393 = vmatpush1.msra.mxu0 0.0
        %3394 = vmatprep.subr.mxu0 0.0
        %3395 = vmatpush1.msra.mxu0 0.0
        %3396 = vmatprep.subr.mxu0 0.0
        %3397 = vmatpush1.msra.mxu0 0.0
        %3398 = vmatprep.subr.mxu0 0.0
        %3399 = vmatpush1.msra.mxu0 0.0
        %3400 = vmatprep.subr.mxu0 0.0
        %3401 = vmatpush1.msra.mxu0 0.0
        %3402 = vmatprep.subr.mxu0 0.0
        %3403 = vmatpush1.msra.mxu0 0.0
        %3404 = vmatprep.subr.mxu0 0.0
        %3405 = vmatpush1.msra.mxu0 0.0
        %3406 = vmatprep.subr.mxu0 0.0
        %3407 = vmatpush1.msra.mxu0 0.0
        %3408 = vmatprep.subr.mxu0 0.0
        %3409 = vmatpush1.msra.mxu0 0.0
        %3410 = vmatprep.subr.mxu0 0.0
        %3411 = vmatpush1.msra.mxu0 0.0
        %3412 = vmatprep.subr.mxu0 0.0
        %3413 = vmatpush1.msra.mxu0 0.0
        %3414 = vmatprep.subr.mxu0 0.0
        %3415 = vmatpush1.msra.mxu0 0.0
        %3416 = vmatprep.subr.mxu0 0.0
        %3417 = vmatpush1.msra.mxu0 0.0
        %3418 = vmatprep.mubr.f32.mxu0 0.0
        %3419 = vmatmul.mubr.f32.gmra.mrb[0].mxu0 %v3349
        %v3420 = vpop.f32.mrb[0].mxu0
        %v3421 = vadd.f32 0.0, %v3420
        %v3422 = vpop.f32.mrb[0].mxu0
        %3423 = vmatprep.mubr.f32.mxu0 0.0
        %3424 = vmatmul.mubr.f32.gmra.mrb[0].mxu0 %v3352
        %v3425 = vpop.f32.mrb[0].mxu0
        %v3426 = vadd.f32 0.0, %v3425
        %v3427 = vpop.f32.mrb[0].mxu0
        %3428 = vdwg.mxu0
        %3429 = vrot.lane.b32.xlu0 %v3160, 124
        %v3430 = vpop.permute.xlu0 %3429
        %3431 = vrot.lane.b32.xlu0 %v3163, 124
        %v3432 = vpop.permute.xlu0 %3431
        %3433 = vrot.lane.b32.xlu0 %v3223, 124
        %v3434 = vpop.permute.xlu0 %3433
        %3435 = vrot.lane.b32.xlu0 %v3226, 124
        %v3436 = vpop.permute.xlu0 %3435
        %v3437 = vsel %vm1271, %v3430, 0
        %v3439 = vsel %vm1271, %v3432, 0
        %v3441 = vsel %vm1271, %v3434, 0
        %v3443 = vsel %vm1271, %v3436, 0
        %3445 = vmatprep.subr.mxu0 0.0
        %3446 = vmatpush1.xpose.msra.mxu0 %v3441
        %3447 = vmatprep.subr.mxu0 0.0
        %3448 = vmatpush1.xpose.msra.mxu0 %v3443
        %3449 = vmatprep.subr.mxu0 0.0
        %3450 = vmatpush1.xpose.msra.mxu0 0.0
        %3451 = vmatprep.subr.mxu0 0.0
        %3452 = vmatpush1.xpose.msra.mxu0 0.0
        %3453 = vmatprep.subr.mxu0 0.0
        %3454 = vmatpush1.xpose.msra.mxu0 0.0
        %3455 = vmatprep.subr.mxu0 0.0
        %3456 = vmatpush1.xpose.msra.mxu0 0.0
        %3457 = vmatprep.subr.mxu0 0.0
        %3458 = vmatpush1.xpose.msra.mxu0 0.0
        %3459 = vmatprep.subr.mxu0 0.0
        %3460 = vmatpush1.xpose.msra.mxu0 0.0
        %3461 = vmatprep.subr.mxu0 0.0
        %3462 = vmatpush1.xpose.msra.mxu0 0.0
        %3463 = vmatprep.subr.mxu0 0.0
        %3464 = vmatpush1.xpose.msra.mxu0 0.0
        %3465 = vmatprep.subr.mxu0 0.0
        %3466 = vmatpush1.xpose.msra.mxu0 0.0
        %3467 = vmatprep.subr.mxu0 0.0
        %3468 = vmatpush1.xpose.msra.mxu0 0.0
        %3469 = vmatprep.subr.mxu0 0.0
        %3470 = vmatpush1.xpose.msra.mxu0 0.0
        %3471 = vmatprep.subr.mxu0 0.0
        %3472 = vmatpush1.xpose.msra.mxu0 0.0
        %3473 = vmatprep.subr.mxu0 0.0
        %3474 = vmatpush1.xpose.msra.mxu0 0.0
        %3475 = vmatprep.subr.mxu0 0.0
        %3476 = vmatpush1.xpose.msra.mxu0 0.0
        %3477 = vmatprep.subr.mxu0 0.0
        %3478 = vmatpush1.xpose.msra.mxu0 0.0
        %3479 = vmatprep.subr.mxu0 0.0
        %3480 = vmatpush1.xpose.msra.mxu0 0.0
        %3481 = vmatprep.subr.mxu0 0.0
        %3482 = vmatpush1.xpose.msra.mxu0 0.0
        %3483 = vmatprep.subr.mxu0 0.0
        %3484 = vmatpush1.xpose.msra.mxu0 0.0
        %3485 = vmatprep.subr.mxu0 0.0
        %3486 = vmatpush1.xpose.msra.mxu0 0.0
        %3487 = vmatprep.subr.mxu0 0.0
        %3488 = vmatpush1.xpose.msra.mxu0 0.0
        %3489 = vmatprep.subr.mxu0 0.0
        %3490 = vmatpush1.xpose.msra.mxu0 0.0
        %3491 = vmatprep.subr.mxu0 0.0
        %3492 = vmatpush1.xpose.msra.mxu0 0.0
        %3493 = vmatprep.subr.mxu0 0.0
        %3494 = vmatpush1.xpose.msra.mxu0 0.0
        %3495 = vmatprep.subr.mxu0 0.0
        %3496 = vmatpush1.xpose.msra.mxu0 0.0
        %3497 = vmatprep.subr.mxu0 0.0
        %3498 = vmatpush1.xpose.msra.mxu0 0.0
        %3499 = vmatprep.subr.mxu0 0.0
        %3500 = vmatpush1.xpose.msra.mxu0 0.0
        %3501 = vmatprep.subr.mxu0 0.0
        %3502 = vmatpush1.xpose.msra.mxu0 0.0
        %3503 = vmatprep.subr.mxu0 0.0
        %3504 = vmatpush1.xpose.msra.mxu0 0.0
        %3505 = vmatprep.subr.mxu0 0.0
        %3506 = vmatpush1.xpose.msra.mxu0 0.0
        %3507 = vmatprep.subr.mxu0 0.0
        %3508 = vmatpush1.xpose.msra.mxu0 0.0
        %3509 = vmatprep.mubr.f32.mxu0 0.0
        %3510 = vmatmul.mubr.f32.gmra.mrb[0].mxu0 %v3437
        %v3511 = vpop.f32.mrb[0].mxu0
        %v3512 = vadd.f32 0.0, %v3511
        %v3513 = vpop.f32.mrb[0].mxu0
        %3514 = vmatprep.mubr.f32.mxu0 0.0
        %3515 = vmatmul.mubr.f32.gmra.mrb[0].mxu0 %v3439
        %v3516 = vpop.f32.mrb[0].mxu0
        %v3517 = vadd.f32 0.0, %v3516
        %v3518 = vpop.f32.mrb[0].mxu0
        %3519 = vdwg.mxu0
        %v3520 = vmul.f32 %v3512, 0.5
        %v3521 = vmul.f32 %v3517, 0.5
        %v3522 = vadd.f32 %v3520, %v3101
        %v3523 = vadd.f32 %v3521, %v3102
        %v3524 = vsel %vm1363, %v3522, -inf
        %3525 = vmax.xlane.f32.xlu0 %v3524
        %v3526 = vpop.xlane.xlu0 %3525
        %v3527 = vsel %vm1363, %v3523, -inf
        %3528 = vmax.xlane.f32.xlu0 %v3527
        %v3529 = vpop.xlane.xlu0 %3528
        %v3530 = vsub.f32 %v3522, %v3526
        %v3531 = vsub.f32 %v3523, %v3529
        %v3532 = vmul.f32 %v3530, 1.442695
        %v3533 = vpow.pop %v3532
        %v3534 = vmul.f32 %v3531, 1.442695
        %v3535 = vpow.pop %v3534
        %v3536 = vsel %vm1363, %v3533, 0.0
        %3537 = vadd.xlane.f32.xlu0 %v3536
        %v3538 = vpop.xlane.xlu0 %3537
        %v3539 = vsel %vm1363, %v3535, 0.0
        %3540 = vadd.xlane.f32.xlu0 %v3539
        %v3541 = vpop.xlane.xlu0 %3540
        %v3542 = vrcp.pop %v3538
        %v3543 = vmul.f32 %v3533, %v3542
        %v3544 = vrcp.pop %v3541
        %v3545 = vmul.f32 %v3535, %v3544
        %3546 = vrot.lane.b32.xlu0 %v3223, 92
        %v3547 = vpop.permute.xlu0 %3546
        %3548 = vrot.lane.b32.xlu0 %v3226, 92
        %v3549 = vpop.permute.xlu0 %3548
        %v3553 = vsel %vm1363, %v3543, 0
        %v3556 = vsel %vm1363, %v3545, 0
        %3558 = vmatprep.subr.mxu0 0.0
        %3559 = vmatpush1.msra.mxu0 %v3547
        %3560 = vmatprep.subr.mxu0 0.0
        %3561 = vmatpush1.msra.mxu0 %v3549
        %3562 = vmatprep.subr.mxu0 0.0
        %3563 = vmatpush1.msra.mxu0 0.0
        %3564 = vmatprep.subr.mxu0 0.0
        %3565 = vmatpush1.msra.mxu0 0.0
        %3566 = vmatprep.subr.mxu0 0.0
        %3567 = vmatpush1.msra.mxu0 0.0
        %3568 = vmatprep.subr.mxu0 0.0
        %3569 = vmatpush1.msra.mxu0 0.0
        %3570 = vmatprep.subr.mxu0 0.0
        %3571 = vmatpush1.msra.mxu0 0.0
        %3572 = vmatprep.subr.mxu0 0.0
        %3573 = vmatpush1.msra.mxu0 0.0
        %3574 = vmatprep.subr.mxu0 0.0
        %3575 = vmatpush1.msra.mxu0 0.0
        %3576 = vmatprep.subr.mxu0 0.0
        %3577 = vmatpush1.msra.mxu0 0.0
        %3578 = vmatprep.subr.mxu0 0.0
        %3579 = vmatpush1.msra.mxu0 0.0
        %3580 = vmatprep.subr.mxu0 0.0
        %3581 = vmatpush1.msra.mxu0 0.0
        %3582 = vmatprep.subr.mxu0 0.0
        %3583 = vmatpush1.msra.mxu0 0.0
        %3584 = vmatprep.subr.mxu0 0.0
        %3585 = vmatpush1.msra.mxu0 0.0
        %3586 = vmatprep.subr.mxu0 0.0
        %3587 = vmatpush1.msra.mxu0 0.0
        %3588 = vmatprep.subr.mxu0 0.0
        %3589 = vmatpush1.msra.mxu0 0.0
        %3590 = vmatprep.subr.mxu0 0.0
        %3591 = vmatpush1.msra.mxu0 0.0
        %3592 = vmatprep.subr.mxu0 0.0
        %3593 = vmatpush1.msra.mxu0 0.0
        %3594 = vmatprep.subr.mxu0 0.0
        %3595 = vmatpush1.msra.mxu0 0.0
        %3596 = vmatprep.subr.mxu0 0.0
        %3597 = vmatpush1.msra.mxu0 0.0
        %3598 = vmatprep.subr.mxu0 0.0
        %3599 = vmatpush1.msra.mxu0 0.0
        %3600 = vmatprep.subr.mxu0 0.0
        %3601 = vmatpush1.msra.mxu0 0.0
        %3602 = vmatprep.subr.mxu0 0.0
        %3603 = vmatpush1.msra.mxu0 0.0
        %3604 = vmatprep.subr.mxu0 0.0
        %3605 = vmatpush1.msra.mxu0 0.0
        %3606 = vmatprep.subr.mxu0 0.0
        %3607 = vmatpush1.msra.mxu0 0.0
        %3608 = vmatprep.subr.mxu0 0.0
        %3609 = vmatpush1.msra.mxu0 0.0
        %3610 = vmatprep.subr.mxu0 0.0
        %3611 = vmatpush1.msra.mxu0 0.0
        %3612 = vmatprep.subr.mxu0 0.0
        %3613 = vmatpush1.msra.mxu0 0.0
        %3614 = vmatprep.subr.mxu0 0.0
        %3615 = vmatpush1.msra.mxu0 0.0
        %3616 = vmatprep.subr.mxu0 0.0
        %3617 = vmatpush1.msra.mxu0 0.0
        %3618 = vmatprep.subr.mxu0 0.0
        %3619 = vmatpush1.msra.mxu0 0.0
        %3620 = vmatprep.subr.mxu0 0.0
        %3621 = vmatpush1.msra.mxu0 0.0
        %3622 = vmatprep.mubr.f32.mxu0 0.0
        %3623 = vmatmul.mubr.f32.gmra.mrb[0].mxu0 %v3553
        %v3624 = vpop.f32.mrb[0].mxu0
        %v3625 = vadd.f32 0.0, %v3624
        %v3626 = vpop.f32.mrb[0].mxu0
        %3627 = vmatprep.mubr.f32.mxu0 0.0
        %3628 = vmatmul.mubr.f32.gmra.mrb[0].mxu0 %v3556
        %v3629 = vpop.f32.mrb[0].mxu0
        %v3630 = vadd.f32 0.0, %v3629
        %v3631 = vpop.f32.mrb[0].mxu0
        %3632 = vdwg.mxu0
        %3633 = vrot.lane.b32.xlu0 %v3160, 120
        %v3634 = vpop.permute.xlu0 %3633
        %3635 = vrot.lane.b32.xlu0 %v3163, 120
        %v3636 = vpop.permute.xlu0 %3635
        %3637 = vrot.lane.b32.xlu0 %v3223, 120
        %v3638 = vpop.permute.xlu0 %3637
        %3639 = vrot.lane.b32.xlu0 %v3226, 120
        %v3640 = vpop.permute.xlu0 %3639
        %v3641 = vsel %vm1271, %v3634, 0
        %v3643 = vsel %vm1271, %v3636, 0
        %v3645 = vsel %vm1271, %v3638, 0
        %v3647 = vsel %vm1271, %v3640, 0
        %3649 = vmatprep.subr.mxu0 0.0
        %3650 = vmatpush1.xpose.msra.mxu0 %v3645
        %3651 = vmatprep.subr.mxu0 0.0
        %3652 = vmatpush1.xpose.msra.mxu0 %v3647
        %3653 = vmatprep.subr.mxu0 0.0
        %3654 = vmatpush1.xpose.msra.mxu0 0.0
        %3655 = vmatprep.subr.mxu0 0.0
        %3656 = vmatpush1.xpose.msra.mxu0 0.0
        %3657 = vmatprep.subr.mxu0 0.0
        %3658 = vmatpush1.xpose.msra.mxu0 0.0
        %3659 = vmatprep.subr.mxu0 0.0
        %3660 = vmatpush1.xpose.msra.mxu0 0.0
        %3661 = vmatprep.subr.mxu0 0.0
        %3662 = vmatpush1.xpose.msra.mxu0 0.0
        %3663 = vmatprep.subr.mxu0 0.0
        %3664 = vmatpush1.xpose.msra.mxu0 0.0
        %3665 = vmatprep.subr.mxu0 0.0
        %3666 = vmatpush1.xpose.msra.mxu0 0.0
        %3667 = vmatprep.subr.mxu0 0.0
        %3668 = vmatpush1.xpose.msra.mxu0 0.0
        %3669 = vmatprep.subr.mxu0 0.0
        %3670 = vmatpush1.xpose.msra.mxu0 0.0
        %3671 = vmatprep.subr.mxu0 0.0
        %3672 = vmatpush1.xpose.msra.mxu0 0.0
        %3673 = vmatprep.subr.mxu0 0.0
        %3674 = vmatpush1.xpose.msra.mxu0 0.0
        %3675 = vmatprep.subr.mxu0 0.0
        %3676 = vmatpush1.xpose.msra.mxu0 0.0
        %3677 = vmatprep.subr.mxu0 0.0
        %3678 = vmatpush1.xpose.msra.mxu0 0.0
        %3679 = vmatprep.subr.mxu0 0.0
        %3680 = vmatpush1.xpose.msra.mxu0 0.0
        %3681 = vmatprep.subr.mxu0 0.0
        %3682 = vmatpush1.xpose.msra.mxu0 0.0
        %3683 = vmatprep.subr.mxu0 0.0
        %3684 = vmatpush1.xpose.msra.mxu0 0.0
        %3685 = vmatprep.subr.mxu0 0.0
        %3686 = vmatpush1.xpose.msra.mxu0 0.0
        %3687 = vmatprep.subr.mxu0 0.0
        %3688 = vmatpush1.xpose.msra.mxu0 0.0
        %3689 = vmatprep.subr.mxu0 0.0
        %3690 = vmatpush1.xpose.msra.mxu0 0.0
        %3691 = vmatprep.subr.mxu0 0.0
        %3692 = vmatpush1.xpose.msra.mxu0 0.0
        %3693 = vmatprep.subr.mxu0 0.0
        %3694 = vmatpush1.xpose.msra.mxu0 0.0
        %3695 = vmatprep.subr.mxu0 0.0
        %3696 = vmatpush1.xpose.msra.mxu0 0.0
        %3697 = vmatprep.subr.mxu0 0.0
        %3698 = vmatpush1.xpose.msra.mxu0 0.0
        %3699 = vmatprep.subr.mxu0 0.0
        %3700 = vmatpush1.xpose.msra.mxu0 0.0
        %3701 = vmatprep.subr.mxu0 0.0
        %3702 = vmatpush1.xpose.msra.mxu0 0.0
        %3703 = vmatprep.subr.mxu0 0.0
        %3704 = vmatpush1.xpose.msra.mxu0 0.0
        %3705 = vmatprep.subr.mxu0 0.0
        %3706 = vmatpush1.xpose.msra.mxu0 0.0
        %3707 = vmatprep.subr.mxu0 0.0
        %3708 = vmatpush1.xpose.msra.mxu0 0.0
        %3709 = vmatprep.subr.mxu0 0.0
        %3710 = vmatpush1.xpose.msra.mxu0 0.0
        %3711 = vmatprep.subr.mxu0 0.0
        %3712 = vmatpush1.xpose.msra.mxu0 0.0
        %3713 = vmatprep.mubr.f32.mxu0 0.0
        %3714 = vmatmul.mubr.f32.gmra.mrb[0].mxu0 %v3641
        %v3715 = vpop.f32.mrb[0].mxu0
        %v3716 = vadd.f32 0.0, %v3715
        %v3717 = vpop.f32.mrb[0].mxu0
        %3718 = vmatprep.mubr.f32.mxu0 0.0
        %3719 = vmatmul.mubr.f32.gmra.mrb[0].mxu0 %v3643
        %v3720 = vpop.f32.mrb[0].mxu0
        %v3721 = vadd.f32 0.0, %v3720
        %v3722 = vpop.f32.mrb[0].mxu0
        %3723 = vdwg.mxu0
        %v3724 = vmul.f32 %v3716, 0.5
        %v3725 = vmul.f32 %v3721, 0.5
        %v3726 = vadd.f32 %v3724, %v3101
        %v3727 = vadd.f32 %v3725, %v3102
        %v3728 = vsel %vm1363, %v3726, -inf
        %3729 = vmax.xlane.f32.xlu0 %v3728
        %v3730 = vpop.xlane.xlu0 %3729
        %v3731 = vsel %vm1363, %v3727, -inf
        %3732 = vmax.xlane.f32.xlu0 %v3731
        %v3733 = vpop.xlane.xlu0 %3732
        %v3734 = vsub.f32 %v3726, %v3730
        %v3735 = vsub.f32 %v3727, %v3733
        %v3736 = vmul.f32 %v3734, 1.442695
        %v3737 = vpow.pop %v3736
        %v3738 = vmul.f32 %v3735, 1.442695
        %v3739 = vpow.pop %v3738
        %v3740 = vsel %vm1363, %v3737, 0.0
        %3741 = vadd.xlane.f32.xlu0 %v3740
        %v3742 = vpop.xlane.xlu0 %3741
        %v3743 = vsel %vm1363, %v3739, 0.0
        %3744 = vadd.xlane.f32.xlu0 %v3743
        %v3745 = vpop.xlane.xlu0 %3744
        %v3746 = vrcp.pop %v3742
        %v3747 = vmul.f32 %v3737, %v3746
        %v3748 = vrcp.pop %v3745
        %v3749 = vmul.f32 %v3739, %v3748
        %3750 = vrot.lane.b32.xlu0 %v3223, 88
        %v3751 = vpop.permute.xlu0 %3750
        %3752 = vrot.lane.b32.xlu0 %v3226, 88
        %v3753 = vpop.permute.xlu0 %3752
        %v3757 = vsel %vm1363, %v3747, 0
        %v3760 = vsel %vm1363, %v3749, 0
        %3762 = vmatprep.subr.mxu0 0.0
        %3763 = vmatpush1.msra.mxu0 %v3751
        %3764 = vmatprep.subr.mxu0 0.0
        %3765 = vmatpush1.msra.mxu0 %v3753
        %3766 = vmatprep.subr.mxu0 0.0
        %3767 = vmatpush1.msra.mxu0 0.0
        %3768 = vmatprep.subr.mxu0 0.0
        %3769 = vmatpush1.msra.mxu0 0.0
        %3770 = vmatprep.subr.mxu0 0.0
        %3771 = vmatpush1.msra.mxu0 0.0
        %3772 = vmatprep.subr.mxu0 0.0
        %3773 = vmatpush1.msra.mxu0 0.0
        %3774 = vmatprep.subr.mxu0 0.0
        %3775 = vmatpush1.msra.mxu0 0.0
        %3776 = vmatprep.subr.mxu0 0.0
        %3777 = vmatpush1.msra.mxu0 0.0
        %3778 = vmatprep.subr.mxu0 0.0
        %3779 = vmatpush1.msra.mxu0 0.0
        %3780 = vmatprep.subr.mxu0 0.0
        %3781 = vmatpush1.msra.mxu0 0.0
        %3782 = vmatprep.subr.mxu0 0.0
        %3783 = vmatpush1.msra.mxu0 0.0
        %3784 = vmatprep.subr.mxu0 0.0
        %3785 = vmatpush1.msra.mxu0 0.0
        %3786 = vmatprep.subr.mxu0 0.0
        %3787 = vmatpush1.msra.mxu0 0.0
        %3788 = vmatprep.subr.mxu0 0.0
        %3789 = vmatpush1.msra.mxu0 0.0
        %3790 = vmatprep.subr.mxu0 0.0
        %3791 = vmatpush1.msra.mxu0 0.0
        %3792 = vmatprep.subr.mxu0 0.0
        %3793 = vmatpush1.msra.mxu0 0.0
        %3794 = vmatprep.subr.mxu0 0.0
        %3795 = vmatpush1.msra.mxu0 0.0
        %3796 = vmatprep.subr.mxu0 0.0
        %3797 = vmatpush1.msra.mxu0 0.0
        %3798 = vmatprep.subr.mxu0 0.0
        %3799 = vmatpush1.msra.mxu0 0.0
        %3800 = vmatprep.subr.mxu0 0.0
        %3801 = vmatpush1.msra.mxu0 0.0
        %3802 = vmatprep.subr.mxu0 0.0
        %3803 = vmatpush1.msra.mxu0 0.0
        %3804 = vmatprep.subr.mxu0 0.0
        %3805 = vmatpush1.msra.mxu0 0.0
        %3806 = vmatprep.subr.mxu0 0.0
        %3807 = vmatpush1.msra.mxu0 0.0
        %3808 = vmatprep.subr.mxu0 0.0
        %3809 = vmatpush1.msra.mxu0 0.0
        %3810 = vmatprep.subr.mxu0 0.0
        %3811 = vmatpush1.msra.mxu0 0.0
        %3812 = vmatprep.subr.mxu0 0.0
        %3813 = vmatpush1.msra.mxu0 0.0
        %3814 = vmatprep.subr.mxu0 0.0
        %3815 = vmatpush1.msra.mxu0 0.0
        %3816 = vmatprep.subr.mxu0 0.0
        %3817 = vmatpush1.msra.mxu0 0.0
        %3818 = vmatprep.subr.mxu0 0.0
        %3819 = vmatpush1.msra.mxu0 0.0
        %3820 = vmatprep.subr.mxu0 0.0
        %3821 = vmatpush1.msra.mxu0 0.0
        %3822 = vmatprep.subr.mxu0 0.0
        %3823 = vmatpush1.msra.mxu0 0.0
        %3824 = vmatprep.subr.mxu0 0.0
        %3825 = vmatpush1.msra.mxu0 0.0
        %3826 = vmatprep.mubr.f32.mxu0 0.0
        %3827 = vmatmul.mubr.f32.gmra.mrb[0].mxu0 %v3757
        %v3828 = vpop.f32.mrb[0].mxu0
        %v3829 = vadd.f32 0.0, %v3828
        %v3830 = vpop.f32.mrb[0].mxu0
        %3831 = vmatprep.mubr.f32.mxu0 0.0
        %3832 = vmatmul.mubr.f32.gmra.mrb[0].mxu0 %v3760
        %v3833 = vpop.f32.mrb[0].mxu0
        %v3834 = vadd.f32 0.0, %v3833
        %v3835 = vpop.f32.mrb[0].mxu0
        %3836 = vdwg.mxu0
        %3837 = vrot.lane.b32.xlu0 %v3160, 116
        %v3838 = vpop.permute.xlu0 %3837
        %3839 = vrot.lane.b32.xlu0 %v3163, 116
        %v3840 = vpop.permute.xlu0 %3839
        %3841 = vrot.lane.b32.xlu0 %v3223, 116
        %v3842 = vpop.permute.xlu0 %3841
        %3843 = vrot.lane.b32.xlu0 %v3226, 116
        %v3844 = vpop.permute.xlu0 %3843
        %v3845 = vsel %vm1271, %v3838, 0
        %v3847 = vsel %vm1271, %v3840, 0
        %v3849 = vsel %vm1271, %v3842, 0
        %v3851 = vsel %vm1271, %v3844, 0
        %3853 = vmatprep.subr.mxu0 0.0
        %3854 = vmatpush1.xpose.msra.mxu0 %v3849
        %3855 = vmatprep.subr.mxu0 0.0
        %3856 = vmatpush1.xpose.msra.mxu0 %v3851
        %3857 = vmatprep.subr.mxu0 0.0
        %3858 = vmatpush1.xpose.msra.mxu0 0.0
        %3859 = vmatprep.subr.mxu0 0.0
        %3860 = vmatpush1.xpose.msra.mxu0 0.0
        %3861 = vmatprep.subr.mxu0 0.0
        %3862 = vmatpush1.xpose.msra.mxu0 0.0
        %3863 = vmatprep.subr.mxu0 0.0
        %3864 = vmatpush1.xpose.msra.mxu0 0.0
        %3865 = vmatprep.subr.mxu0 0.0
        %3866 = vmatpush1.xpose.msra.mxu0 0.0
        %3867 = vmatprep.subr.mxu0 0.0
        %3868 = vmatpush1.xpose.msra.mxu0 0.0
        %3869 = vmatprep.subr.mxu0 0.0
        %3870 = vmatpush1.xpose.msra.mxu0 0.0
        %3871 = vmatprep.subr.mxu0 0.0
        %3872 = vmatpush1.xpose.msra.mxu0 0.0
        %3873 = vmatprep.subr.mxu0 0.0
        %3874 = vmatpush1.xpose.msra.mxu0 0.0
        %3875 = vmatprep.subr.mxu0 0.0
        %3876 = vmatpush1.xpose.msra.mxu0 0.0
        %3877 = vmatprep.subr.mxu0 0.0
        %3878 = vmatpush1.xpose.msra.mxu0 0.0
        %3879 = vmatprep.subr.mxu0 0.0
        %3880 = vmatpush1.xpose.msra.mxu0 0.0
        %3881 = vmatprep.subr.mxu0 0.0
        %3882 = vmatpush1.xpose.msra.mxu0 0.0
        %3883 = vmatprep.subr.mxu0 0.0
        %3884 = vmatpush1.xpose.msra.mxu0 0.0
        %3885 = vmatprep.subr.mxu0 0.0
        %3886 = vmatpush1.xpose.msra.mxu0 0.0
        %3887 = vmatprep.subr.mxu0 0.0
        %3888 = vmatpush1.xpose.msra.mxu0 0.0
        %3889 = vmatprep.subr.mxu0 0.0
        %3890 = vmatpush1.xpose.msra.mxu0 0.0
        %3891 = vmatprep.subr.mxu0 0.0
        %3892 = vmatpush1.xpose.msra.mxu0 0.0
        %3893 = vmatprep.subr.mxu0 0.0
        %3894 = vmatpush1.xpose.msra.mxu0 0.0
        %3895 = vmatprep.subr.mxu0 0.0
        %3896 = vmatpush1.xpose.msra.mxu0 0.0
        %3897 = vmatprep.subr.mxu0 0.0
        %3898 = vmatpush1.xpose.msra.mxu0 0.0
        %3899 = vmatprep.subr.mxu0 0.0
        %3900 = vmatpush1.xpose.msra.mxu0 0.0
        %3901 = vmatprep.subr.mxu0 0.0
        %3902 = vmatpush1.xpose.msra.mxu0 0.0
        %3903 = vmatprep.subr.mxu0 0.0
        %3904 = vmatpush1.xpose.msra.mxu0 0.0
        %3905 = vmatprep.subr.mxu0 0.0
        %3906 = vmatpush1.xpose.msra.mxu0 0.0
        %3907 = vmatprep.subr.mxu0 0.0
        %3908 = vmatpush1.xpose.msra.mxu0 0.0
        %3909 = vmatprep.subr.mxu0 0.0
        %3910 = vmatpush1.xpose.msra.mxu0 0.0
        %3911 = vmatprep.subr.mxu0 0.0
        %3912 = vmatpush1.xpose.msra.mxu0 0.0
        %3913 = vmatprep.subr.mxu0 0.0
        %3914 = vmatpush1.xpose.msra.mxu0 0.0
        %3915 = vmatprep.subr.mxu0 0.0
        %3916 = vmatpush1.xpose.msra.mxu0 0.0
        %3917 = vmatprep.mubr.f32.mxu0 0.0
        %3918 = vmatmul.mubr.f32.gmra.mrb[0].mxu0 %v3845
        %v3919 = vpop.f32.mrb[0].mxu0
        %v3920 = vadd.f32 0.0, %v3919
        %v3921 = vpop.f32.mrb[0].mxu0
        %3922 = vmatprep.mubr.f32.mxu0 0.0
        %3923 = vmatmul.mubr.f32.gmra.mrb[0].mxu0 %v3847
        %v3924 = vpop.f32.mrb[0].mxu0
        %v3925 = vadd.f32 0.0, %v3924
        %v3926 = vpop.f32.mrb[0].mxu0
        %3927 = vdwg.mxu0
        %v3928 = vmul.f32 %v3920, 0.5
        %v3929 = vmul.f32 %v3925, 0.5
        %v3930 = vadd.f32 %v3928, %v3101
        %v3931 = vadd.f32 %v3929, %v3102
        %v3932 = vsel %vm1363, %v3930, -inf
        %3933 = vmax.xlane.f32.xlu0 %v3932
        %v3934 = vpop.xlane.xlu0 %3933
        %v3935 = vsel %vm1363, %v3931, -inf
        %3936 = vmax.xlane.f32.xlu0 %v3935
        %v3937 = vpop.xlane.xlu0 %3936
        %v3938 = vsub.f32 %v3930, %v3934
        %v3939 = vsub.f32 %v3931, %v3937
        %v3940 = vmul.f32 %v3938, 1.442695
        %v3941 = vpow.pop %v3940
        %v3942 = vmul.f32 %v3939, 1.442695
        %v3943 = vpow.pop %v3942
        %v3944 = vsel %vm1363, %v3941, 0.0
        %3945 = vadd.xlane.f32.xlu0 %v3944
        %v3946 = vpop.xlane.xlu0 %3945
        %v3947 = vsel %vm1363, %v3943, 0.0
        %3948 = vadd.xlane.f32.xlu0 %v3947
        %v3949 = vpop.xlane.xlu0 %3948
        %v3950 = vrcp.pop %v3946
        %v3951 = vmul.f32 %v3941, %v3950
        %v3952 = vrcp.pop %v3949
        %v3953 = vmul.f32 %v3943, %v3952
        %3954 = vrot.lane.b32.xlu0 %v3223, 84
        %v3955 = vpop.permute.xlu0 %3954
        %3956 = vrot.lane.b32.xlu0 %v3226, 84
        %v3957 = vpop.permute.xlu0 %3956
        %v3961 = vsel %vm1363, %v3951, 0
        %v3964 = vsel %vm1363, %v3953, 0
        %3966 = vmatprep.subr.mxu0 0.0
        %3967 = vmatpush1.msra.mxu0 %v3955
        %3968 = vmatprep.subr.mxu0 0.0
        %3969 = vmatpush1.msra.mxu0 %v3957
        %3970 = vmatprep.subr.mxu0 0.0
        %3971 = vmatpush1.msra.mxu0 0.0
        %3972 = vmatprep.subr.mxu0 0.0
        %3973 = vmatpush1.msra.mxu0 0.0
        %3974 = vmatprep.subr.mxu0 0.0
        %3975 = vmatpush1.msra.mxu0 0.0
        %3976 = vmatprep.subr.mxu0 0.0
        %3977 = vmatpush1.msra.mxu0 0.0
        %3978 = vmatprep.subr.mxu0 0.0
        %3979 = vmatpush1.msra.mxu0 0.0
        %3980 = vmatprep.subr.mxu0 0.0
        %3981 = vmatpush1.msra.mxu0 0.0
        %3982 = vmatprep.subr.mxu0 0.0
        %3983 = vmatpush1.msra.mxu0 0.0
        %3984 = vmatprep.subr.mxu0 0.0
        %3985 = vmatpush1.msra.mxu0 0.0
        %3986 = vmatprep.subr.mxu0 0.0
        %3987 = vmatpush1.msra.mxu0 0.0
        %3988 = vmatprep.subr.mxu0 0.0
        %3989 = vmatpush1.msra.mxu0 0.0
        %3990 = vmatprep.subr.mxu0 0.0
        %3991 = vmatpush1.msra.mxu0 0.0
        %3992 = vmatprep.subr.mxu0 0.0
        %3993 = vmatpush1.msra.mxu0 0.0
        %3994 = vmatprep.subr.mxu0 0.0
        %3995 = vmatpush1.msra.mxu0 0.0
        %3996 = vmatprep.subr.mxu0 0.0
        %3997 = vmatpush1.msra.mxu0 0.0
        %3998 = vmatprep.subr.mxu0 0.0
        %3999 = vmatpush1.msra.mxu0 0.0
        %4000 = vmatprep.subr.mxu0 0.0
        %4001 = vmatpush1.msra.mxu0 0.0
        %4002 = vmatprep.subr.mxu0 0.0
        %4003 = vmatpush1.msra.mxu0 0.0
        %4004 = vmatprep.subr.mxu0 0.0
        %4005 = vmatpush1.msra.mxu0 0.0
        %4006 = vmatprep.subr.mxu0 0.0
        %4007 = vmatpush1.msra.mxu0 0.0
        %4008 = vmatprep.subr.mxu0 0.0
        %4009 = vmatpush1.msra.mxu0 0.0
        %4010 = vmatprep.subr.mxu0 0.0
        %4011 = vmatpush1.msra.mxu0 0.0
        %4012 = vmatprep.subr.mxu0 0.0
        %4013 = vmatpush1.msra.mxu0 0.0
        %4014 = vmatprep.subr.mxu0 0.0
        %4015 = vmatpush1.msra.mxu0 0.0
        %4016 = vmatprep.subr.mxu0 0.0
        %4017 = vmatpush1.msra.mxu0 0.0
        %4018 = vmatprep.subr.mxu0 0.0
        %4019 = vmatpush1.msra.mxu0 0.0
        %4020 = vmatprep.subr.mxu0 0.0
        %4021 = vmatpush1.msra.mxu0 0.0
        %4022 = vmatprep.subr.mxu0 0.0
        %4023 = vmatpush1.msra.mxu0 0.0
        %4024 = vmatprep.subr.mxu0 0.0
        %4025 = vmatpush1.msra.mxu0 0.0
        %4026 = vmatprep.subr.mxu0 0.0
        %4027 = vmatpush1.msra.mxu0 0.0
        %4028 = vmatprep.subr.mxu0 0.0
        %4029 = vmatpush1.msra.mxu0 0.0
        %4030 = vmatprep.mubr.f32.mxu0 0.0
        %4031 = vmatmul.mubr.f32.gmra.mrb[0].mxu0 %v3961
        %v4032 = vpop.f32.mrb[0].mxu0
        %v4033 = vadd.f32 0.0, %v4032
        %v4034 = vpop.f32.mrb[0].mxu0
        %4035 = vmatprep.mubr.f32.mxu0 0.0
        %4036 = vmatmul.mubr.f32.gmra.mrb[0].mxu0 %v3964
        %v4037 = vpop.f32.mrb[0].mxu0
        %v4038 = vadd.f32 0.0, %v4037
        %v4039 = vpop.f32.mrb[0].mxu0
        %4040 = vdwg.mxu0
        %4041 = vrot.lane.b32.xlu0 %v3160, 112
        %v4042 = vpop.permute.xlu0 %4041
        %4043 = vrot.lane.b32.xlu0 %v3163, 112
        %v4044 = vpop.permute.xlu0 %4043
        %4045 = vrot.lane.b32.xlu0 %v3223, 112
        %v4046 = vpop.permute.xlu0 %4045
        %4047 = vrot.lane.b32.xlu0 %v3226, 112
        %v4048 = vpop.permute.xlu0 %4047
        %v4049 = vsel %vm1271, %v4042, 0
        %v4051 = vsel %vm1271, %v4044, 0
        %v4053 = vsel %vm1271, %v4046, 0
        %v4055 = vsel %vm1271, %v4048, 0
        %4057 = vmatprep.subr.mxu0 0.0
        %4058 = vmatpush1.xpose.msra.mxu0 %v4053
        %4059 = vmatprep.subr.mxu0 0.0
        %4060 = vmatpush1.xpose.msra.mxu0 %v4055
        %4061 = vmatprep.subr.mxu0 0.0
        %4062 = vmatpush1.xpose.msra.mxu0 0.0
        %4063 = vmatprep.subr.mxu0 0.0
        %4064 = vmatpush1.xpose.msra.mxu0 0.0
        %4065 = vmatprep.subr.mxu0 0.0
        %4066 = vmatpush1.xpose.msra.mxu0 0.0
        %4067 = vmatprep.subr.mxu0 0.0
        %4068 = vmatpush1.xpose.msra.mxu0 0.0
        %4069 = vmatprep.subr.mxu0 0.0
        %4070 = vmatpush1.xpose.msra.mxu0 0.0
        %4071 = vmatprep.subr.mxu0 0.0
        %4072 = vmatpush1.xpose.msra.mxu0 0.0
        %4073 = vmatprep.subr.mxu0 0.0
        %4074 = vmatpush1.xpose.msra.mxu0 0.0
        %4075 = vmatprep.subr.mxu0 0.0
        %4076 = vmatpush1.xpose.msra.mxu0 0.0
        %4077 = vmatprep.subr.mxu0 0.0
        %4078 = vmatpush1.xpose.msra.mxu0 0.0
        %4079 = vmatprep.subr.mxu0 0.0
        %4080 = vmatpush1.xpose.msra.mxu0 0.0
        %4081 = vmatprep.subr.mxu0 0.0
        %4082 = vmatpush1.xpose.msra.mxu0 0.0
        %4083 = vmatprep.subr.mxu0 0.0
        %4084 = vmatpush1.xpose.msra.mxu0 0.0
        %4085 = vmatprep.subr.mxu0 0.0
        %4086 = vmatpush1.xpose.msra.mxu0 0.0
        %4087 = vmatprep.subr.mxu0 0.0
        %4088 = vmatpush1.xpose.msra.mxu0 0.0
        %4089 = vmatprep.subr.mxu0 0.0
        %4090 = vmatpush1.xpose.msra.mxu0 0.0
        %4091 = vmatprep.subr.mxu0 0.0
        %4092 = vmatpush1.xpose.msra.mxu0 0.0
        %4093 = vmatprep.subr.mxu0 0.0
        %4094 = vmatpush1.xpose.msra.mxu0 0.0
        %4095 = vmatprep.subr.mxu0 0.0
        %4096 = vmatpush1.xpose.msra.mxu0 0.0
        %4097 = vmatprep.subr.mxu0 0.0
        %4098 = vmatpush1.xpose.msra.mxu0 0.0
        %4099 = vmatprep.subr.mxu0 0.0
        %4100 = vmatpush1.xpose.msra.mxu0 0.0
        %4101 = vmatprep.subr.mxu0 0.0
        %4102 = vmatpush1.xpose.msra.mxu0 0.0
        %4103 = vmatprep.subr.mxu0 0.0
        %4104 = vmatpush1.xpose.msra.mxu0 0.0
        %4105 = vmatprep.subr.mxu0 0.0
        %4106 = vmatpush1.xpose.msra.mxu0 0.0
        %4107 = vmatprep.subr.mxu0 0.0
        %4108 = vmatpush1.xpose.msra.mxu0 0.0
        %4109 = vmatprep.subr.mxu0 0.0
        %4110 = vmatpush1.xpose.msra.mxu0 0.0
        %4111 = vmatprep.subr.mxu0 0.0
        %4112 = vmatpush1.xpose.msra.mxu0 0.0
        %4113 = vmatprep.subr.mxu0 0.0
        %4114 = vmatpush1.xpose.msra.mxu0 0.0
        %4115 = vmatprep.subr.mxu0 0.0
        %4116 = vmatpush1.xpose.msra.mxu0 0.0
        %4117 = vmatprep.subr.mxu0 0.0
        %4118 = vmatpush1.xpose.msra.mxu0 0.0
        %4119 = vmatprep.subr.mxu0 0.0
        %4120 = vmatpush1.xpose.msra.mxu0 0.0
        %4121 = vmatprep.mubr.f32.mxu0 0.0
        %4122 = vmatmul.mubr.f32.gmra.mrb[0].mxu0 %v4049
        %v4123 = vpop.f32.mrb[0].mxu0
        %v4124 = vadd.f32 0.0, %v4123
        %v4125 = vpop.f32.mrb[0].mxu0
        %4126 = vmatprep.mubr.f32.mxu0 0.0
        %4127 = vmatmul.mubr.f32.gmra.mrb[0].mxu0 %v4051
        %v4128 = vpop.f32.mrb[0].mxu0
        %v4129 = vadd.f32 0.0, %v4128
        %v4130 = vpop.f32.mrb[0].mxu0
        %4131 = vdwg.mxu0
        %v4132 = vmul.f32 %v4124, 0.5
        %v4133 = vmul.f32 %v4129, 0.5
        %v4134 = vadd.f32 %v4132, %v3101
        %v4135 = vadd.f32 %v4133, %v3102
        %v4136 = vsel %vm1363, %v4134, -inf
        %4137 = vmax.xlane.f32.xlu0 %v4136
        %v4138 = vpop.xlane.xlu0 %4137
        %v4139 = vsel %vm1363, %v4135, -inf
        %4140 = vmax.xlane.f32.xlu0 %v4139
        %v4141 = vpop.xlane.xlu0 %4140
        %v4142 = vsub.f32 %v4134, %v4138
        %v4143 = vsub.f32 %v4135, %v4141
        %v4144 = vmul.f32 %v4142, 1.442695
        %v4145 = vpow.pop %v4144
        %v4146 = vmul.f32 %v4143, 1.442695
        %v4147 = vpow.pop %v4146
        %v4148 = vsel %vm1363, %v4145, 0.0
        %4149 = vadd.xlane.f32.xlu0 %v4148
        %v4150 = vpop.xlane.xlu0 %4149
        %v4151 = vsel %vm1363, %v4147, 0.0
        %4152 = vadd.xlane.f32.xlu0 %v4151
        %v4153 = vpop.xlane.xlu0 %4152
        %v4154 = vrcp.pop %v4150
        %v4155 = vmul.f32 %v4145, %v4154
        %v4156 = vrcp.pop %v4153
        %v4157 = vmul.f32 %v4147, %v4156
        %4158 = vrot.lane.b32.xlu0 %v3223, 80
        %v4159 = vpop.permute.xlu0 %4158
        %4160 = vrot.lane.b32.xlu0 %v3226, 80
        %v4161 = vpop.permute.xlu0 %4160
        %v4165 = vsel %vm1363, %v4155, 0
        %v4168 = vsel %vm1363, %v4157, 0
        %4170 = vmatprep.subr.mxu0 0.0
        %4171 = vmatpush1.msra.mxu0 %v4159
        %4172 = vmatprep.subr.mxu0 0.0
        %4173 = vmatpush1.msra.mxu0 %v4161
        %4174 = vmatprep.subr.mxu0 0.0
        %4175 = vmatpush1.msra.mxu0 0.0
        %4176 = vmatprep.subr.mxu0 0.0
        %4177 = vmatpush1.msra.mxu0 0.0
        %4178 = vmatprep.subr.mxu0 0.0
        %4179 = vmatpush1.msra.mxu0 0.0
        %4180 = vmatprep.subr.mxu0 0.0
        %4181 = vmatpush1.msra.mxu0 0.0
        %4182 = vmatprep.subr.mxu0 0.0
        %4183 = vmatpush1.msra.mxu0 0.0
        %4184 = vmatprep.subr.mxu0 0.0
        %4185 = vmatpush1.msra.mxu0 0.0
        %4186 = vmatprep.subr.mxu0 0.0
        %4187 = vmatpush1.msra.mxu0 0.0
        %4188 = vmatprep.subr.mxu0 0.0
        %4189 = vmatpush1.msra.mxu0 0.0
        %4190 = vmatprep.subr.mxu0 0.0
        %4191 = vmatpush1.msra.mxu0 0.0
        %4192 = vmatprep.subr.mxu0 0.0
        %4193 = vmatpush1.msra.mxu0 0.0
        %4194 = vmatprep.subr.mxu0 0.0
        %4195 = vmatpush1.msra.mxu0 0.0
        %4196 = vmatprep.subr.mxu0 0.0
        %4197 = vmatpush1.msra.mxu0 0.0
        %4198 = vmatprep.subr.mxu0 0.0
        %4199 = vmatpush1.msra.mxu0 0.0
        %4200 = vmatprep.subr.mxu0 0.0
        %4201 = vmatpush1.msra.mxu0 0.0
        %4202 = vmatprep.subr.mxu0 0.0
        %4203 = vmatpush1.msra.mxu0 0.0
        %4204 = vmatprep.subr.mxu0 0.0
        %4205 = vmatpush1.msra.mxu0 0.0
        %4206 = vmatprep.subr.mxu0 0.0
        %4207 = vmatpush1.msra.mxu0 0.0
        %4208 = vmatprep.subr.mxu0 0.0
        %4209 = vmatpush1.msra.mxu0 0.0
        %4210 = vmatprep.subr.mxu0 0.0
        %4211 = vmatpush1.msra.mxu0 0.0
        %4212 = vmatprep.subr.mxu0 0.0
        %4213 = vmatpush1.msra.mxu0 0.0
        %4214 = vmatprep.subr.mxu0 0.0
        %4215 = vmatpush1.msra.mxu0 0.0
        %4216 = vmatprep.subr.mxu0 0.0
        %4217 = vmatpush1.msra.mxu0 0.0
        %4218 = vmatprep.subr.mxu0 0.0
        %4219 = vmatpush1.msra.mxu0 0.0
        %4220 = vmatprep.subr.mxu0 0.0
        %4221 = vmatpush1.msra.mxu0 0.0
        %4222 = vmatprep.subr.mxu0 0.0
        %4223 = vmatpush1.msra.mxu0 0.0
        %4224 = vmatprep.subr.mxu0 0.0
        %4225 = vmatpush1.msra.mxu0 0.0
        %4226 = vmatprep.subr.mxu0 0.0
        %4227 = vmatpush1.msra.mxu0 0.0
        %4228 = vmatprep.subr.mxu0 0.0
        %4229 = vmatpush1.msra.mxu0 0.0
        %4230 = vmatprep.subr.mxu0 0.0
        %4231 = vmatpush1.msra.mxu0 0.0
        %4232 = vmatprep.subr.mxu0 0.0
        %4233 = vmatpush1.msra.mxu0 0.0
        %4234 = vmatprep.mubr.f32.mxu0 0.0
        %4235 = vmatmul.mubr.f32.gmra.mrb[0].mxu0 %v4165
        %v4236 = vpop.f32.mrb[0].mxu0
        %v4237 = vadd.f32 0.0, %v4236
        %v4238 = vpop.f32.mrb[0].mxu0
        %4239 = vmatprep.mubr.f32.mxu0 0.0
        %4240 = vmatmul.mubr.f32.gmra.mrb[0].mxu0 %v4168
        %v4241 = vpop.f32.mrb[0].mxu0
        %v4242 = vadd.f32 0.0, %v4241
        %v4243 = vpop.f32.mrb[0].mxu0
        %4244 = vdwg.mxu0
        %4245 = vrot.lane.b32.xlu0 %v3160, 108
        %v4246 = vpop.permute.xlu0 %4245
        %4247 = vrot.lane.b32.xlu0 %v3163, 108
        %v4248 = vpop.permute.xlu0 %4247
        %4249 = vrot.lane.b32.xlu0 %v3223, 108
        %v4250 = vpop.permute.xlu0 %4249
        %4251 = vrot.lane.b32.xlu0 %v3226, 108
        %v4252 = vpop.permute.xlu0 %4251
        %v4253 = vsel %vm1271, %v4246, 0
        %v4255 = vsel %vm1271, %v4248, 0
        %v4257 = vsel %vm1271, %v4250, 0
        %v4259 = vsel %vm1271, %v4252, 0
        %4261 = vmatprep.subr.mxu0 0.0
        %4262 = vmatpush1.xpose.msra.mxu0 %v4257
        %4263 = vmatprep.subr.mxu0 0.0
        %4264 = vmatpush1.xpose.msra.mxu0 %v4259
        %4265 = vmatprep.subr.mxu0 0.0
        %4266 = vmatpush1.xpose.msra.mxu0 0.0
        %4267 = vmatprep.subr.mxu0 0.0
        %4268 = vmatpush1.xpose.msra.mxu0 0.0
        %4269 = vmatprep.subr.mxu0 0.0
        %4270 = vmatpush1.xpose.msra.mxu0 0.0
        %4271 = vmatprep.subr.mxu0 0.0
        %4272 = vmatpush1.xpose.msra.mxu0 0.0
        %4273 = vmatprep.subr.mxu0 0.0
        %4274 = vmatpush1.xpose.msra.mxu0 0.0
        %4275 = vmatprep.subr.mxu0 0.0
        %4276 = vmatpush1.xpose.msra.mxu0 0.0
        %4277 = vmatprep.subr.mxu0 0.0
        %4278 = vmatpush1.xpose.msra.mxu0 0.0
        %4279 = vmatprep.subr.mxu0 0.0
        %4280 = vmatpush1.xpose.msra.mxu0 0.0
        %4281 = vmatprep.subr.mxu0 0.0
        %4282 = vmatpush1.xpose.msra.mxu0 0.0
        %4283 = vmatprep.subr.mxu0 0.0
        %4284 = vmatpush1.xpose.msra.mxu0 0.0
        %4285 = vmatprep.subr.mxu0 0.0
        %4286 = vmatpush1.xpose.msra.mxu0 0.0
        %4287 = vmatprep.subr.mxu0 0.0
        %4288 = vmatpush1.xpose.msra.mxu0 0.0
        %4289 = vmatprep.subr.mxu0 0.0
        %4290 = vmatpush1.xpose.msra.mxu0 0.0
        %4291 = vmatprep.subr.mxu0 0.0
        %4292 = vmatpush1.xpose.msra.mxu0 0.0
        %4293 = vmatprep.subr.mxu0 0.0
        %4294 = vmatpush1.xpose.msra.mxu0 0.0
        %4295 = vmatprep.subr.mxu0 0.0
        %4296 = vmatpush1.xpose.msra.mxu0 0.0
        %4297 = vmatprep.subr.mxu0 0.0
        %4298 = vmatpush1.xpose.msra.mxu0 0.0
        %4299 = vmatprep.subr.mxu0 0.0
        %4300 = vmatpush1.xpose.msra.mxu0 0.0
        %4301 = vmatprep.subr.mxu0 0.0
        %4302 = vmatpush1.xpose.msra.mxu0 0.0
        %4303 = vmatprep.subr.mxu0 0.0
        %4304 = vmatpush1.xpose.msra.mxu0 0.0
        %4305 = vmatprep.subr.mxu0 0.0
        %4306 = vmatpush1.xpose.msra.mxu0 0.0
        %4307 = vmatprep.subr.mxu0 0.0
        %4308 = vmatpush1.xpose.msra.mxu0 0.0
        %4309 = vmatprep.subr.mxu0 0.0
        %4310 = vmatpush1.xpose.msra.mxu0 0.0
        %4311 = vmatprep.subr.mxu0 0.0
        %4312 = vmatpush1.xpose.msra.mxu0 0.0
        %4313 = vmatprep.subr.mxu0 0.0
        %4314 = vmatpush1.xpose.msra.mxu0 0.0
        %4315 = vmatprep.subr.mxu0 0.0
        %4316 = vmatpush1.xpose.msra.mxu0 0.0
        %4317 = vmatprep.subr.mxu0 0.0
        %4318 = vmatpush1.xpose.msra.mxu0 0.0
        %4319 = vmatprep.subr.mxu0 0.0
        %4320 = vmatpush1.xpose.msra.mxu0 0.0
        %4321 = vmatprep.subr.mxu0 0.0
        %4322 = vmatpush1.xpose.msra.mxu0 0.0
        %4323 = vmatprep.subr.mxu0 0.0
        %4324 = vmatpush1.xpose.msra.mxu0 0.0
        %4325 = vmatprep.mubr.f32.mxu0 0.0
        %4326 = vmatmul.mubr.f32.gmra.mrb[0].mxu0 %v4253
        %v4327 = vpop.f32.mrb[0].mxu0
        %v4328 = vadd.f32 0.0, %v4327
        %v4329 = vpop.f32.mrb[0].mxu0
        %4330 = vmatprep.mubr.f32.mxu0 0.0
        %4331 = vmatmul.mubr.f32.gmra.mrb[0].mxu0 %v4255
        %v4332 = vpop.f32.mrb[0].mxu0
        %v4333 = vadd.f32 0.0, %v4332
        %v4334 = vpop.f32.mrb[0].mxu0
        %4335 = vdwg.mxu0
        %v4336 = vmul.f32 %v4328, 0.5
        %v4337 = vmul.f32 %v4333, 0.5
        %v4338 = vadd.f32 %v4336, %v3101
        %v4339 = vadd.f32 %v4337, %v3102
        %v4340 = vsel %vm1363, %v4338, -inf
        %4341 = vmax.xlane.f32.xlu0 %v4340
        %v4342 = vpop.xlane.xlu0 %4341
        %v4343 = vsel %vm1363, %v4339, -inf
        %4344 = vmax.xlane.f32.xlu0 %v4343
        %v4345 = vpop.xlane.xlu0 %4344
        %v4346 = vsub.f32 %v4338, %v4342
        %v4347 = vsub.f32 %v4339, %v4345
        %v4348 = vmul.f32 %v4346, 1.442695
        %v4349 = vpow.pop %v4348
        %v4350 = vmul.f32 %v4347, 1.442695
        %v4351 = vpow.pop %v4350
        %v4352 = vsel %vm1363, %v4349, 0.0
        %4353 = vadd.xlane.f32.xlu0 %v4352
        %v4354 = vpop.xlane.xlu0 %4353
        %v4355 = vsel %vm1363, %v4351, 0.0
        %4356 = vadd.xlane.f32.xlu0 %v4355
        %v4357 = vpop.xlane.xlu0 %4356
        %v4358 = vrcp.pop %v4354
        %v4359 = vmul.f32 %v4349, %v4358
        %v4360 = vrcp.pop %v4357
        %v4361 = vmul.f32 %v4351, %v4360
        %4362 = vrot.lane.b32.xlu0 %v3223, 76
        %v4363 = vpop.permute.xlu0 %4362
        %4364 = vrot.lane.b32.xlu0 %v3226, 76
        %v4365 = vpop.permute.xlu0 %4364
        %v4369 = vsel %vm1363, %v4359, 0
        %v4372 = vsel %vm1363, %v4361, 0
        %4374 = vmatprep.subr.mxu0 0.0
        %4375 = vmatpush1.msra.mxu0 %v4363
        %4376 = vmatprep.subr.mxu0 0.0
        %4377 = vmatpush1.msra.mxu0 %v4365
        %4378 = vmatprep.subr.mxu0 0.0
        %4379 = vmatpush1.msra.mxu0 0.0
        %4380 = vmatprep.subr.mxu0 0.0
        %4381 = vmatpush1.msra.mxu0 0.0
        %4382 = vmatprep.subr.mxu0 0.0
        %4383 = vmatpush1.msra.mxu0 0.0
        %4384 = vmatprep.subr.mxu0 0.0
        %4385 = vmatpush1.msra.mxu0 0.0
        %4386 = vmatprep.subr.mxu0 0.0
        %4387 = vmatpush1.msra.mxu0 0.0
        %4388 = vmatprep.subr.mxu0 0.0
        %4389 = vmatpush1.msra.mxu0 0.0
        %4390 = vmatprep.subr.mxu0 0.0
        %4391 = vmatpush1.msra.mxu0 0.0
        %4392 = vmatprep.subr.mxu0 0.0
        %4393 = vmatpush1.msra.mxu0 0.0
        %4394 = vmatprep.subr.mxu0 0.0
        %4395 = vmatpush1.msra.mxu0 0.0
        %4396 = vmatprep.subr.mxu0 0.0
        %4397 = vmatpush1.msra.mxu0 0.0
        %4398 = vmatprep.subr.mxu0 0.0
        %4399 = vmatpush1.msra.mxu0 0.0
        %4400 = vmatprep.subr.mxu0 0.0
        %4401 = vmatpush1.msra.mxu0 0.0
        %4402 = vmatprep.subr.mxu0 0.0
        %4403 = vmatpush1.msra.mxu0 0.0
        %4404 = vmatprep.subr.mxu0 0.0
        %4405 = vmatpush1.msra.mxu0 0.0
        %4406 = vmatprep.subr.mxu0 0.0
        %4407 = vmatpush1.msra.mxu0 0.0
        %4408 = vmatprep.subr.mxu0 0.0
        %4409 = vmatpush1.msra.mxu0 0.0
        %4410 = vmatprep.subr.mxu0 0.0
        %4411 = vmatpush1.msra.mxu0 0.0
        %4412 = vmatprep.subr.mxu0 0.0
        %4413 = vmatpush1.msra.mxu0 0.0
        %4414 = vmatprep.subr.mxu0 0.0
        %4415 = vmatpush1.msra.mxu0 0.0
        %4416 = vmatprep.subr.mxu0 0.0
        %4417 = vmatpush1.msra.mxu0 0.0
        %4418 = vmatprep.subr.mxu0 0.0
        %4419 = vmatpush1.msra.mxu0 0.0
        %4420 = vmatprep.subr.mxu0 0.0
        %4421 = vmatpush1.msra.mxu0 0.0
        %4422 = vmatprep.subr.mxu0 0.0
        %4423 = vmatpush1.msra.mxu0 0.0
        %4424 = vmatprep.subr.mxu0 0.0
        %4425 = vmatpush1.msra.mxu0 0.0
        %4426 = vmatprep.subr.mxu0 0.0
        %4427 = vmatpush1.msra.mxu0 0.0
        %4428 = vmatprep.subr.mxu0 0.0
        %4429 = vmatpush1.msra.mxu0 0.0
        %4430 = vmatprep.subr.mxu0 0.0
        %4431 = vmatpush1.msra.mxu0 0.0
        %4432 = vmatprep.subr.mxu0 0.0
        %4433 = vmatpush1.msra.mxu0 0.0
        %4434 = vmatprep.subr.mxu0 0.0
        %4435 = vmatpush1.msra.mxu0 0.0
        %4436 = vmatprep.subr.mxu0 0.0
        %4437 = vmatpush1.msra.mxu0 0.0
        %4438 = vmatprep.mubr.f32.mxu0 0.0
        %4439 = vmatmul.mubr.f32.gmra.mrb[0].mxu0 %v4369
        %v4440 = vpop.f32.mrb[0].mxu0
        %v4441 = vadd.f32 0.0, %v4440
        %v4442 = vpop.f32.mrb[0].mxu0
        %4443 = vmatprep.mubr.f32.mxu0 0.0
        %4444 = vmatmul.mubr.f32.gmra.mrb[0].mxu0 %v4372
        %v4445 = vpop.f32.mrb[0].mxu0
        %v4446 = vadd.f32 0.0, %v4445
        %v4447 = vpop.f32.mrb[0].mxu0
        %4448 = vdwg.mxu0
        %4449 = vrot.lane.b32.xlu0 %v3160, 104
        %v4450 = vpop.permute.xlu0 %4449
        %4451 = vrot.lane.b32.xlu0 %v3163, 104
        %v4452 = vpop.permute.xlu0 %4451
        %4453 = vrot.lane.b32.xlu0 %v3223, 104
        %v4454 = vpop.permute.xlu0 %4453
        %4455 = vrot.lane.b32.xlu0 %v3226, 104
        %v4456 = vpop.permute.xlu0 %4455
        %v4457 = vsel %vm1271, %v4450, 0
        %v4459 = vsel %vm1271, %v4452, 0
        %v4461 = vsel %vm1271, %v4454, 0
        %v4463 = vsel %vm1271, %v4456, 0
        %4465 = vmatprep.subr.mxu0 0.0
        %4466 = vmatpush1.xpose.msra.mxu0 %v4461
        %4467 = vmatprep.subr.mxu0 0.0
        %4468 = vmatpush1.xpose.msra.mxu0 %v4463
        %4469 = vmatprep.subr.mxu0 0.0
        %4470 = vmatpush1.xpose.msra.mxu0 0.0
        %4471 = vmatprep.subr.mxu0 0.0
        %4472 = vmatpush1.xpose.msra.mxu0 0.0
        %4473 = vmatprep.subr.mxu0 0.0
        %4474 = vmatpush1.xpose.msra.mxu0 0.0
        %4475 = vmatprep.subr.mxu0 0.0
        %4476 = vmatpush1.xpose.msra.mxu0 0.0
        %4477 = vmatprep.subr.mxu0 0.0
        %4478 = vmatpush1.xpose.msra.mxu0 0.0
        %4479 = vmatprep.subr.mxu0 0.0
        %4480 = vmatpush1.xpose.msra.mxu0 0.0
        %4481 = vmatprep.subr.mxu0 0.0
        %4482 = vmatpush1.xpose.msra.mxu0 0.0
        %4483 = vmatprep.subr.mxu0 0.0
        %4484 = vmatpush1.xpose.msra.mxu0 0.0
        %4485 = vmatprep.subr.mxu0 0.0
        %4486 = vmatpush1.xpose.msra.mxu0 0.0
        %4487 = vmatprep.subr.mxu0 0.0
        %4488 = vmatpush1.xpose.msra.mxu0 0.0
        %4489 = vmatprep.subr.mxu0 0.0
        %4490 = vmatpush1.xpose.msra.mxu0 0.0
        %4491 = vmatprep.subr.mxu0 0.0
        %4492 = vmatpush1.xpose.msra.mxu0 0.0
        %4493 = vmatprep.subr.mxu0 0.0
        %4494 = vmatpush1.xpose.msra.mxu0 0.0
        %4495 = vmatprep.subr.mxu0 0.0
        %4496 = vmatpush1.xpose.msra.mxu0 0.0
        %4497 = vmatprep.subr.mxu0 0.0
        %4498 = vmatpush1.xpose.msra.mxu0 0.0
        %4499 = vmatprep.subr.mxu0 0.0
        %4500 = vmatpush1.xpose.msra.mxu0 0.0
        %4501 = vmatprep.subr.mxu0 0.0
        %4502 = vmatpush1.xpose.msra.mxu0 0.0
        %4503 = vmatprep.subr.mxu0 0.0
        %4504 = vmatpush1.xpose.msra.mxu0 0.0
        %4505 = vmatprep.subr.mxu0 0.0
        %4506 = vmatpush1.xpose.msra.mxu0 0.0
        %4507 = vmatprep.subr.mxu0 0.0
        %4508 = vmatpush1.xpose.msra.mxu0 0.0
        %4509 = vmatprep.subr.mxu0 0.0
        %4510 = vmatpush1.xpose.msra.mxu0 0.0
        %4511 = vmatprep.subr.mxu0 0.0
        %4512 = vmatpush1.xpose.msra.mxu0 0.0
        %4513 = vmatprep.subr.mxu0 0.0
        %4514 = vmatpush1.xpose.msra.mxu0 0.0
        %4515 = vmatprep.subr.mxu0 0.0
        %4516 = vmatpush1.xpose.msra.mxu0 0.0
        %4517 = vmatprep.subr.mxu0 0.0
        %4518 = vmatpush1.xpose.msra.mxu0 0.0
        %4519 = vmatprep.subr.mxu0 0.0
        %4520 = vmatpush1.xpose.msra.mxu0 0.0
        %4521 = vmatprep.subr.mxu0 0.0
        %4522 = vmatpush1.xpose.msra.mxu0 0.0
        %4523 = vmatprep.subr.mxu0 0.0
        %4524 = vmatpush1.xpose.msra.mxu0 0.0
        %4525 = vmatprep.subr.mxu0 0.0
        %4526 = vmatpush1.xpose.msra.mxu0 0.0
        %4527 = vmatprep.subr.mxu0 0.0
        %4528 = vmatpush1.xpose.msra.mxu0 0.0
        %4529 = vmatprep.mubr.f32.mxu0 0.0
        %4530 = vmatmul.mubr.f32.gmra.mrb[0].mxu0 %v4457
        %v4531 = vpop.f32.mrb[0].mxu0
        %v4532 = vadd.f32 0.0, %v4531
        %v4533 = vpop.f32.mrb[0].mxu0
        %4534 = vmatprep.mubr.f32.mxu0 0.0
        %4535 = vmatmul.mubr.f32.gmra.mrb[0].mxu0 %v4459
        %v4536 = vpop.f32.mrb[0].mxu0
        %v4537 = vadd.f32 0.0, %v4536
        %v4538 = vpop.f32.mrb[0].mxu0
        %4539 = vdwg.mxu0
        %v4540 = vmul.f32 %v4532, 0.5
        %v4541 = vmul.f32 %v4537, 0.5
        %v4542 = vadd.f32 %v4540, %v3101
        %v4543 = vadd.f32 %v4541, %v3102
        %v4544 = vsel %vm1363, %v4542, -inf
        %4545 = vmax.xlane.f32.xlu0 %v4544
        %v4546 = vpop.xlane.xlu0 %4545
        %v4547 = vsel %vm1363, %v4543, -inf
        %4548 = vmax.xlane.f32.xlu0 %v4547
        %v4549 = vpop.xlane.xlu0 %4548
        %v4550 = vsub.f32 %v4542, %v4546
        %v4551 = vsub.f32 %v4543, %v4549
        %v4552 = vmul.f32 %v4550, 1.442695
        %v4553 = vpow.pop %v4552
        %v4554 = vmul.f32 %v4551, 1.442695
        %v4555 = vpow.pop %v4554
        %v4556 = vsel %vm1363, %v4553, 0.0
        %4557 = vadd.xlane.f32.xlu0 %v4556
        %v4558 = vpop.xlane.xlu0 %4557
        %v4559 = vsel %vm1363, %v4555, 0.0
        %4560 = vadd.xlane.f32.xlu0 %v4559
        %v4561 = vpop.xlane.xlu0 %4560
        %v4562 = vrcp.pop %v4558
        %v4563 = vmul.f32 %v4553, %v4562
        %v4564 = vrcp.pop %v4561
        %v4565 = vmul.f32 %v4555, %v4564
        %4566 = vrot.lane.b32.xlu0 %v3223, 72
        %v4567 = vpop.permute.xlu0 %4566
        %4568 = vrot.lane.b32.xlu0 %v3226, 72
        %v4569 = vpop.permute.xlu0 %4568
        %v4573 = vsel %vm1363, %v4563, 0
        %v4576 = vsel %vm1363, %v4565, 0
        %4578 = vmatprep.subr.mxu0 0.0
        %4579 = vmatpush1.msra.mxu0 %v4567
        %4580 = vmatprep.subr.mxu0 0.0
        %4581 = vmatpush1.msra.mxu0 %v4569
        %4582 = vmatprep.subr.mxu0 0.0
        %4583 = vmatpush1.msra.mxu0 0.0
        %4584 = vmatprep.subr.mxu0 0.0
        %4585 = vmatpush1.msra.mxu0 0.0
        %4586 = vmatprep.subr.mxu0 0.0
        %4587 = vmatpush1.msra.mxu0 0.0
        %4588 = vmatprep.subr.mxu0 0.0
        %4589 = vmatpush1.msra.mxu0 0.0
        %4590 = vmatprep.subr.mxu0 0.0
        %4591 = vmatpush1.msra.mxu0 0.0
        %4592 = vmatprep.subr.mxu0 0.0
        %4593 = vmatpush1.msra.mxu0 0.0
        %4594 = vmatprep.subr.mxu0 0.0
        %4595 = vmatpush1.msra.mxu0 0.0
        %4596 = vmatprep.subr.mxu0 0.0
        %4597 = vmatpush1.msra.mxu0 0.0
        %4598 = vmatprep.subr.mxu0 0.0
        %4599 = vmatpush1.msra.mxu0 0.0
        %4600 = vmatprep.subr.mxu0 0.0
        %4601 = vmatpush1.msra.mxu0 0.0
        %4602 = vmatprep.subr.mxu0 0.0
        %4603 = vmatpush1.msra.mxu0 0.0
        %4604 = vmatprep.subr.mxu0 0.0
        %4605 = vmatpush1.msra.mxu0 0.0
        %4606 = vmatprep.subr.mxu0 0.0
        %4607 = vmatpush1.msra.mxu0 0.0
        %4608 = vmatprep.subr.mxu0 0.0
        %4609 = vmatpush1.msra.mxu0 0.0
        %4610 = vmatprep.subr.mxu0 0.0
        %4611 = vmatpush1.msra.mxu0 0.0
        %4612 = vmatprep.subr.mxu0 0.0
        %4613 = vmatpush1.msra.mxu0 0.0
        %4614 = vmatprep.subr.mxu0 0.0
        %4615 = vmatpush1.msra.mxu0 0.0
        %4616 = vmatprep.subr.mxu0 0.0
        %4617 = vmatpush1.msra.mxu0 0.0
        %4618 = vmatprep.subr.mxu0 0.0
        %4619 = vmatpush1.msra.mxu0 0.0
        %4620 = vmatprep.subr.mxu0 0.0
        %4621 = vmatpush1.msra.mxu0 0.0
        %4622 = vmatprep.subr.mxu0 0.0
        %4623 = vmatpush1.msra.mxu0 0.0
        %4624 = vmatprep.subr.mxu0 0.0
        %4625 = vmatpush1.msra.mxu0 0.0
        %4626 = vmatprep.subr.mxu0 0.0
        %4627 = vmatpush1.msra.mxu0 0.0
        %4628 = vmatprep.subr.mxu0 0.0
        %4629 = vmatpush1.msra.mxu0 0.0
        %4630 = vmatprep.subr.mxu0 0.0
        %4631 = vmatpush1.msra.mxu0 0.0
        %4632 = vmatprep.subr.mxu0 0.0
        %4633 = vmatpush1.msra.mxu0 0.0
        %4634 = vmatprep.subr.mxu0 0.0
        %4635 = vmatpush1.msra.mxu0 0.0
        %4636 = vmatprep.subr.mxu0 0.0
        %4637 = vmatpush1.msra.mxu0 0.0
        %4638 = vmatprep.subr.mxu0 0.0
        %4639 = vmatpush1.msra.mxu0 0.0
        %4640 = vmatprep.subr.mxu0 0.0
        %4641 = vmatpush1.msra.mxu0 0.0
        %4642 = vmatprep.mubr.f32.mxu0 0.0
        %4643 = vmatmul.mubr.f32.gmra.mrb[0].mxu0 %v4573
        %v4644 = vpop.f32.mrb[0].mxu0
        %v4645 = vadd.f32 0.0, %v4644
        %v4646 = vpop.f32.mrb[0].mxu0
        %4647 = vmatprep.mubr.f32.mxu0 0.0
        %4648 = vmatmul.mubr.f32.gmra.mrb[0].mxu0 %v4576
        %v4649 = vpop.f32.mrb[0].mxu0
        %v4650 = vadd.f32 0.0, %v4649
        %v4651 = vpop.f32.mrb[0].mxu0
        %4652 = vdwg.mxu0
        %4653 = vrot.lane.b32.xlu0 %v3160, 100
        %v4654 = vpop.permute.xlu0 %4653
        %4655 = vrot.lane.b32.xlu0 %v3163, 100
        %v4656 = vpop.permute.xlu0 %4655
        %4657 = vrot.lane.b32.xlu0 %v3223, 100
        %v4658 = vpop.permute.xlu0 %4657
        %4659 = vrot.lane.b32.xlu0 %v3226, 100
        %v4660 = vpop.permute.xlu0 %4659
        %v4661 = vsel %vm1271, %v4654, 0
        %v4663 = vsel %vm1271, %v4656, 0
        %v4665 = vsel %vm1271, %v4658, 0
        %v4667 = vsel %vm1271, %v4660, 0
        %4669 = vmatprep.subr.mxu0 0.0
        %4670 = vmatpush1.xpose.msra.mxu0 %v4665
        %4671 = vmatprep.subr.mxu0 0.0
        %4672 = vmatpush1.xpose.msra.mxu0 %v4667
        %4673 = vmatprep.subr.mxu0 0.0
        %4674 = vmatpush1.xpose.msra.mxu0 0.0
        %4675 = vmatprep.subr.mxu0 0.0
        %4676 = vmatpush1.xpose.msra.mxu0 0.0
        %4677 = vmatprep.subr.mxu0 0.0
        %4678 = vmatpush1.xpose.msra.mxu0 0.0
        %4679 = vmatprep.subr.mxu0 0.0
        %4680 = vmatpush1.xpose.msra.mxu0 0.0
        %4681 = vmatprep.subr.mxu0 0.0
        %4682 = vmatpush1.xpose.msra.mxu0 0.0
        %4683 = vmatprep.subr.mxu0 0.0
        %4684 = vmatpush1.xpose.msra.mxu0 0.0
        %4685 = vmatprep.subr.mxu0 0.0
        %4686 = vmatpush1.xpose.msra.mxu0 0.0
        %4687 = vmatprep.subr.mxu0 0.0
        %4688 = vmatpush1.xpose.msra.mxu0 0.0
        %4689 = vmatprep.subr.mxu0 0.0
        %4690 = vmatpush1.xpose.msra.mxu0 0.0
        %4691 = vmatprep.subr.mxu0 0.0
        %4692 = vmatpush1.xpose.msra.mxu0 0.0
        %4693 = vmatprep.subr.mxu0 0.0
        %4694 = vmatpush1.xpose.msra.mxu0 0.0
        %4695 = vmatprep.subr.mxu0 0.0
        %4696 = vmatpush1.xpose.msra.mxu0 0.0
        %4697 = vmatprep.subr.mxu0 0.0
        %4698 = vmatpush1.xpose.msra.mxu0 0.0
        %4699 = vmatprep.subr.mxu0 0.0
        %4700 = vmatpush1.xpose.msra.mxu0 0.0
        %4701 = vmatprep.subr.mxu0 0.0
        %4702 = vmatpush1.xpose.msra.mxu0 0.0
        %4703 = vmatprep.subr.mxu0 0.0
        %4704 = vmatpush1.xpose.msra.mxu0 0.0
        %4705 = vmatprep.subr.mxu0 0.0
        %4706 = vmatpush1.xpose.msra.mxu0 0.0
        %4707 = vmatprep.subr.mxu0 0.0
        %4708 = vmatpush1.xpose.msra.mxu0 0.0
        %4709 = vmatprep.subr.mxu0 0.0
        %4710 = vmatpush1.xpose.msra.mxu0 0.0
        %4711 = vmatprep.subr.mxu0 0.0
        %4712 = vmatpush1.xpose.msra.mxu0 0.0
        %4713 = vmatprep.subr.mxu0 0.0
        %4714 = vmatpush1.xpose.msra.mxu0 0.0
        %4715 = vmatprep.subr.mxu0 0.0
        %4716 = vmatpush1.xpose.msra.mxu0 0.0
        %4717 = vmatprep.subr.mxu0 0.0
        %4718 = vmatpush1.xpose.msra.mxu0 0.0
        %4719 = vmatprep.subr.mxu0 0.0
        %4720 = vmatpush1.xpose.msra.mxu0 0.0
        %4721 = vmatprep.subr.mxu0 0.0
        %4722 = vmatpush1.xpose.msra.mxu0 0.0
        %4723 = vmatprep.subr.mxu0 0.0
        %4724 = vmatpush1.xpose.msra.mxu0 0.0
        %4725 = vmatprep.subr.mxu0 0.0
        %4726 = vmatpush1.xpose.msra.mxu0 0.0
        %4727 = vmatprep.subr.mxu0 0.0
        %4728 = vmatpush1.xpose.msra.mxu0 0.0
        %4729 = vmatprep.subr.mxu0 0.0
        %4730 = vmatpush1.xpose.msra.mxu0 0.0
        %4731 = vmatprep.subr.mxu0 0.0
        %4732 = vmatpush1.xpose.msra.mxu0 0.0
        %4733 = vmatprep.mubr.f32.mxu0 0.0
        %4734 = vmatmul.mubr.f32.gmra.mrb[0].mxu0 %v4661
        %v4735 = vpop.f32.mrb[0].mxu0
        %v4736 = vadd.f32 0.0, %v4735
        %v4737 = vpop.f32.mrb[0].mxu0
        %4738 = vmatprep.mubr.f32.mxu0 0.0
        %4739 = vmatmul.mubr.f32.gmra.mrb[0].mxu0 %v4663
        %v4740 = vpop.f32.mrb[0].mxu0
        %v4741 = vadd.f32 0.0, %v4740
        %v4742 = vpop.f32.mrb[0].mxu0
        %4743 = vdwg.mxu0
        %v4744 = vmul.f32 %v4736, 0.5
        %v4745 = vmul.f32 %v4741, 0.5
        %v4746 = vadd.f32 %v4744, %v3101
        %v4747 = vadd.f32 %v4745, %v3102
        %v4748 = vsel %vm1363, %v4746, -inf
        %4749 = vmax.xlane.f32.xlu0 %v4748
        %v4750 = vpop.xlane.xlu0 %4749
        %v4751 = vsel %vm1363, %v4747, -inf
        %4752 = vmax.xlane.f32.xlu0 %v4751
        %v4753 = vpop.xlane.xlu0 %4752
        %v4754 = vsub.f32 %v4746, %v4750
        %v4755 = vsub.f32 %v4747, %v4753
        %v4756 = vmul.f32 %v4754, 1.442695
        %v4757 = vpow.pop %v4756
        %v4758 = vmul.f32 %v4755, 1.442695
        %v4759 = vpow.pop %v4758
        %v4760 = vsel %vm1363, %v4757, 0.0
        %4761 = vadd.xlane.f32.xlu0 %v4760
        %v4762 = vpop.xlane.xlu0 %4761
        %v4763 = vsel %vm1363, %v4759, 0.0
        %4764 = vadd.xlane.f32.xlu0 %v4763
        %v4765 = vpop.xlane.xlu0 %4764
        %v4766 = vrcp.pop %v4762
        %v4767 = vmul.f32 %v4757, %v4766
        %v4768 = vrcp.pop %v4765
        %v4769 = vmul.f32 %v4759, %v4768
        %4770 = vrot.lane.b32.xlu0 %v3223, 68
        %v4771 = vpop.permute.xlu0 %4770
        %4772 = vrot.lane.b32.xlu0 %v3226, 68
        %v4773 = vpop.permute.xlu0 %4772
        %v4777 = vsel %vm1363, %v4767, 0
        %v4780 = vsel %vm1363, %v4769, 0
        %4782 = vmatprep.subr.mxu0 0.0
        %4783 = vmatpush1.msra.mxu0 %v4771
        %4784 = vmatprep.subr.mxu0 0.0
        %4785 = vmatpush1.msra.mxu0 %v4773
        %4786 = vmatprep.subr.mxu0 0.0
        %4787 = vmatpush1.msra.mxu0 0.0
        %4788 = vmatprep.subr.mxu0 0.0
        %4789 = vmatpush1.msra.mxu0 0.0
        %4790 = vmatprep.subr.mxu0 0.0
        %4791 = vmatpush1.msra.mxu0 0.0
        %4792 = vmatprep.subr.mxu0 0.0
        %4793 = vmatpush1.msra.mxu0 0.0
        %4794 = vmatprep.subr.mxu0 0.0
        %4795 = vmatpush1.msra.mxu0 0.0
        %4796 = vmatprep.subr.mxu0 0.0
        %4797 = vmatpush1.msra.mxu0 0.0
        %4798 = vmatprep.subr.mxu0 0.0
        %4799 = vmatpush1.msra.mxu0 0.0
        %4800 = vmatprep.subr.mxu0 0.0
        %4801 = vmatpush1.msra.mxu0 0.0
        %4802 = vmatprep.subr.mxu0 0.0
        %4803 = vmatpush1.msra.mxu0 0.0
        %4804 = vmatprep.subr.mxu0 0.0
        %4805 = vmatpush1.msra.mxu0 0.0
        %4806 = vmatprep.subr.mxu0 0.0
        %4807 = vmatpush1.msra.mxu0 0.0
        %4808 = vmatprep.subr.mxu0 0.0
        %4809 = vmatpush1.msra.mxu0 0.0
        %4810 = vmatprep.subr.mxu0 0.0
        %4811 = vmatpush1.msra.mxu0 0.0
        %4812 = vmatprep.subr.mxu0 0.0
        %4813 = vmatpush1.msra.mxu0 0.0
        %4814 = vmatprep.subr.mxu0 0.0
        %4815 = vmatpush1.msra.mxu0 0.0
        %4816 = vmatprep.subr.mxu0 0.0
        %4817 = vmatpush1.msra.mxu0 0.0
        %4818 = vmatprep.subr.mxu0 0.0
        %4819 = vmatpush1.msra.mxu0 0.0
        %4820 = vmatprep.subr.mxu0 0.0
        %4821 = vmatpush1.msra.mxu0 0.0
        %4822 = vmatprep.subr.mxu0 0.0
        %4823 = vmatpush1.msra.mxu0 0.0
        %4824 = vmatprep.subr.mxu0 0.0
        %4825 = vmatpush1.msra.mxu0 0.0
        %4826 = vmatprep.subr.mxu0 0.0
        %4827 = vmatpush1.msra.mxu0 0.0
        %4828 = vmatprep.subr.mxu0 0.0
        %4829 = vmatpush1.msra.mxu0 0.0
        %4830 = vmatprep.subr.mxu0 0.0
        %4831 = vmatpush1.msra.mxu0 0.0
        %4832 = vmatprep.subr.mxu0 0.0
        %4833 = vmatpush1.msra.mxu0 0.0
        %4834 = vmatprep.subr.mxu0 0.0
        %4835 = vmatpush1.msra.mxu0 0.0
        %4836 = vmatprep.subr.mxu0 0.0
        %4837 = vmatpush1.msra.mxu0 0.0
        %4838 = vmatprep.subr.mxu0 0.0
        %4839 = vmatpush1.msra.mxu0 0.0
        %4840 = vmatprep.subr.mxu0 0.0
        %4841 = vmatpush1.msra.mxu0 0.0
        %4842 = vmatprep.subr.mxu0 0.0
        %4843 = vmatpush1.msra.mxu0 0.0
        %4844 = vmatprep.subr.mxu0 0.0
        %4845 = vmatpush1.msra.mxu0 0.0
        %4846 = vmatprep.mubr.f32.mxu0 0.0
        %4847 = vmatmul.mubr.f32.gmra.mrb[0].mxu0 %v4777
        %v4848 = vpop.f32.mrb[0].mxu0
        %v4849 = vadd.f32 0.0, %v4848
        %v4850 = vpop.f32.mrb[0].mxu0
        %4851 = vmatprep.mubr.f32.mxu0 0.0
        %4852 = vmatmul.mubr.f32.gmra.mrb[0].mxu0 %v4780
        %v4853 = vpop.f32.mrb[0].mxu0
        %v4854 = vadd.f32 0.0, %v4853
        %v4855 = vpop.f32.mrb[0].mxu0
        %4856 = vdwg.mxu0
        %4859 = vrot.lane.b32.xlu0 %v3625, 4
        %v4860 = vpop.permute.xlu0 %4859
        %4861 = vrot.lane.b32.xlu0 %v3630, 4
        %v4862 = vpop.permute.xlu0 %4861
        %4867 = vrot.lane.b32.xlu0 %v3829, 8
        %v4868 = vpop.permute.xlu0 %4867
        %4869 = vrot.lane.b32.xlu0 %v3834, 8
        %v4870 = vpop.permute.xlu0 %4869
        %4875 = vrot.lane.b32.xlu0 %v4033, 12
        %v4876 = vpop.permute.xlu0 %4875
        %4877 = vrot.lane.b32.xlu0 %v4038, 12
        %v4878 = vpop.permute.xlu0 %4877
        %4883 = vrot.lane.b32.xlu0 %v4237, 16
        %v4884 = vpop.permute.xlu0 %4883
        %4885 = vrot.lane.b32.xlu0 %v4242, 16
        %v4886 = vpop.permute.xlu0 %4885
        %4891 = vrot.lane.b32.xlu0 %v4441, 20
        %v4892 = vpop.permute.xlu0 %4891
        %4893 = vrot.lane.b32.xlu0 %v4446, 20
        %v4894 = vpop.permute.xlu0 %4893
        %4899 = vrot.lane.b32.xlu0 %v4645, 24
        %v4900 = vpop.permute.xlu0 %4899
        %4901 = vrot.lane.b32.xlu0 %v4650, 24
        %v4902 = vpop.permute.xlu0 %4901
        %4907 = vrot.lane.b32.xlu0 %v4849, 28
        %v4908 = vpop.permute.xlu0 %4907
        %4909 = vrot.lane.b32.xlu0 %v4854, 28
        %v4910 = vpop.permute.xlu0 %4909
        %v4913 = vsel %vm1271, %v3421, %v4860
        %v4914 = vsel %vm1271, %v3426, %v4862
        %v4915 = vsel %vm2959, %v4913, %v4868
        %v4916 = vsel %vm2959, %v4914, %v4870
        %v4917 = vsel %vm2962, %v4915, %v4876
        %v4918 = vsel %vm2962, %v4916, %v4878
        %v4919 = vsel %vm1363, %v4917, %v4884
        %v4920 = vsel %vm1363, %v4918, %v4886
        %v4921 = vsel %vm2967, %v4919, %v4892
        %v4922 = vsel %vm2967, %v4920, %v4894
        %v4923 = vsel %vm2970, %v4921, %v4900
        %v4924 = vsel %vm2970, %v4922, %v4902
        %v4925 = vsel %vm2973, %v4923, %v4908
        %v4926 = vsel %vm2973, %v4924, %v4910
        %v4927 = vpack.c.bf16 %v4926, %v4925
        %v4929 = vlaneseq
        %v4930 = vshrl.u32 %v4929, 7
        %v4931 = vsub.s32 0, %v4930
        %v4932 = vrot.slane %v3100, %v4931
        %v4938 = vunpack.c.l.b16 %v3096
        %v4939 = vunpack.c.l.b16 %v3097
        %v4940 = vunpack.c.l.b16 %v3098
        %v4941 = vunpack.c.l.b16 %v3099
        %v4942 = vpack.c.b16 %v4939, %v4938
        %v4943 = vpack.c.b16 %v4941, %v4940
        %v4947 = vsel %vm1167, %v4927, 0
        %4949 = vmatprep.subr.bf16.mxu0 0
        %4950 = vmatpush1.bf16.msra.mxu0 %v4942
        %4951 = vmatprep.subr.bf16.mxu0 0
        %4952 = vmatpush1.bf16.msra.mxu0 %v4943
        %4953 = vmatprep.subr.bf16.mxu0 0
        %4954 = vmatpush1.bf16.msra.mxu0 0
        %4955 = vmatprep.subr.bf16.mxu0 0
        %4956 = vmatpush1.bf16.msra.mxu0 0
        %4957 = vmatprep.subr.bf16.mxu0 0
        %4958 = vmatpush1.bf16.msra.mxu0 0
        %4959 = vmatprep.subr.bf16.mxu0 0
        %4960 = vmatpush1.bf16.msra.mxu0 0
        %4961 = vmatprep.subr.bf16.mxu0 0
        %4962 = vmatpush1.bf16.msra.mxu0 0
        %4963 = vmatprep.subr.bf16.mxu0 0
        %4964 = vmatpush1.bf16.msra.mxu0 0
        %4965 = vmatprep.subr.bf16.mxu0 0
        %4966 = vmatpush1.bf16.msra.mxu0 0
        %4967 = vmatprep.subr.bf16.mxu0 0
        %4968 = vmatpush1.bf16.msra.mxu0 0
        %4969 = vmatprep.subr.bf16.mxu0 0
        %4970 = vmatpush1.bf16.msra.mxu0 0
        %4971 = vmatprep.subr.bf16.mxu0 0
        %4972 = vmatpush1.bf16.msra.mxu0 0
        %4973 = vmatprep.subr.bf16.mxu0 0
        %4974 = vmatpush1.bf16.msra.mxu0 0
        %4975 = vmatprep.subr.bf16.mxu0 0
        %4976 = vmatpush1.bf16.msra.mxu0 0
        %4977 = vmatprep.subr.bf16.mxu0 0
        %4978 = vmatpush1.bf16.msra.mxu0 0
        %4979 = vmatprep.subr.bf16.mxu0 0
        %4980 = vmatpush1.bf16.msra.mxu0 0
        %4981 = vmatprep.mubr.bf16.mxu0 0
        %4982 = vmatmul.mubr.bf16.gmra.mrb[0].mxu0 %v4947
        %v4983 = vpop.f32.mrb[0].mxu0
        %v4984 = vadd.f32 %v4932, %v4983
        %v4985 = vpop.f32.mrb[0].mxu0
        %v4986 = vpop.f32.mrb[0].mxu0
        %v4987 = vadd.f32 %v4932, %v4986
        %v4988 = vpop.f32.mrb[0].mxu0
        %4989 = vdwg.mxu0
        %v4990 = vadd.f32 %v3084, %v4984
        %v4991 = vadd.f32 %v3085, %v4987
        %v4992 = vld [vmem:[%s1107] sm:$0x1]
        %v4993 = vld [vmem:[%s1110] sm:$0x1]
        %v4994 = vsel %vm1167, %v4990, 0.0
        %4995 = vadd.xlane.f32.xlu0 %v4994
        %v4996 = vpop.xlane.xlu0 %4995
        %v4997 = vsel %vm1167, %v4991, 0.0
        %4998 = vadd.xlane.f32.xlu0 %v4997
        %v4999 = vpop.xlane.xlu0 %4998
        %v5000 = vmul.f32 %v4996, %v3049
        %v5001 = vmul.f32 %v4999, %v3049
        %v5002 = vsub.f32 %v4990, %v5000
        %v5003 = vsub.f32 %v4991, %v5001
        %v5004 = vmul.f32 %v5002, %v5002
        %v5005 = vmul.f32 %v5003, %v5003
        %v5006 = vsel %vm1167, %v5004, 0.0
        %5007 = vadd.xlane.f32.xlu0 %v5006
        %v5008 = vpop.xlane.xlu0 %5007
        %v5009 = vsel %vm1167, %v5005, 0.0
        %5010 = vadd.xlane.f32.xlu0 %v5009
        %v5011 = vpop.xlane.xlu0 %5010
        %v5012 = vmul.f32 %v5008, %v3049
        %v5013 = vmul.f32 %v5011, %v3049
        %v5014 = vadd.f32 %v5012, 1e-05
        %v5015 = vadd.f32 %v5013, 1e-05
        %v5016 = vrsqrt.pop %v5014
        %v5017 = vrsqrt.pop %v5015
        %v5018 = vmul.f32 %v5002, %v5016
        %v5019 = vmul.f32 %v5003, %v5017
        %v5021 = vlaneseq
        %v5022 = vshrl.u32 %v5021, 7
        %v5023 = vsub.s32 0, %v5022
        %v5024 = vrot.slane %v4992, %v5023
        %v5026 = vmul.f32 %v5018, %v5024
        %v5027 = vmul.f32 %v5019, %v5024
        %v5029 = vlaneseq
        %v5030 = vshrl.u32 %v5029, 7
        %v5031 = vsub.s32 0, %v5030
        %v5032 = vrot.slane %v4993, %v5031
        %v5034 = vadd.f32 %v5026, %v5032
        %v5035 = vadd.f32 %v5027, %v5032
        %v5036 = vpack.c.bf16 %v5035, %v5034
        %v5037 = vld [vmem:[%s1086] sm:$0xff]
        %v5038 = vld [vmem:[%s1086 + $0x8] sm:$0xff]
        %v5039 = vld [vmem:[%s1086 + $0x10] sm:$0xff]
        %v5040 = vld [vmem:[%s1086 + $0x18] sm:$0xff]
        %v5041 = vld [vmem:[%s1086 + $0x20] sm:$0xff]
        %v5042 = vld [vmem:[%s1086 + $0x28] sm:$0xff]
        %v5043 = vld [vmem:[%s1086 + $0x30] sm:$0xff]
        %v5044 = vld [vmem:[%s1086 + $0x38] sm:$0xff]
        %v5045 = vld [vmem:[%s1086 + $0x40] sm:$0xff]
        %v5046 = vld [vmem:[%s1086 + $0x48] sm:$0xff]
        %v5047 = vld [vmem:[%s1086 + $0x50] sm:$0xff]
        %v5048 = vld [vmem:[%s1086 + $0x58] sm:$0xff]
        %v5049 = vld [vmem:[%s1086 + $0x60] sm:$0xff]
        %v5050 = vld [vmem:[%s1086 + $0x68] sm:$0xff]
        %v5051 = vld [vmem:[%s1086 + $0x70] sm:$0xff]
        %v5052 = vld [vmem:[%s1086 + $0x78] sm:$0xff]
        %v5053 = vld [vmem:[%s1086 + $0x80] sm:$0xff]
        %v5054 = vld [vmem:[%s1086 + $0x88] sm:$0xff]
        %v5055 = vld [vmem:[%s1086 + $0x90] sm:$0xff]
        %v5056 = vld [vmem:[%s1086 + $0x98] sm:$0xff]
        %v5057 = vld [vmem:[%s1086 + $0xa0] sm:$0xff]
        %v5058 = vld [vmem:[%s1086 + $0xa8] sm:$0xff]
        %v5059 = vld [vmem:[%s1086 + $0xb0] sm:$0xff]
        %v5060 = vld [vmem:[%s1086 + $0xb8] sm:$0xff]
        %v5061 = vld [vmem:[%s1086 + $0xc0] sm:$0xff]
        %v5062 = vld [vmem:[%s1086 + $0xc8] sm:$0xff]
        %v5063 = vld [vmem:[%s1086 + $0xd0] sm:$0xff]
        %v5064 = vld [vmem:[%s1086 + $0xd8] sm:$0xff]
        %v5065 = vld [vmem:[%s1086 + $0xe0] sm:$0xff]
        %v5066 = vld [vmem:[%s1086 + $0xe8] sm:$0xff]
        %v5067 = vld [vmem:[%s1086 + $0xf0] sm:$0xff]
        %v5068 = vld [vmem:[%s1086 + $0xf8] sm:$0xff]
        %v5069 = vld [vmem:[%s1090] sm:$0xff]
        %v5070 = vld [vmem:[%s1090 + $0x8] sm:$0xff]
        %v5073 = vlaneseq
        %v5074 = vshrl.u32 %v5073, 7
        %v5075 = vsub.s32 0, %v5074
        %v5076 = vrot.slane %v5069, %v5075
        %v5077 = vlaneseq
        %v5078 = vshrl.u32 %v5077, 7
        %v5079 = vsub.s32 1, %v5078
        %v5080 = vrot.slane %v5069, %v5079
        %v5081 = vlaneseq
        %v5082 = vshrl.u32 %v5081, 7
        %v5083 = vsub.s32 2, %v5082
        %v5084 = vrot.slane %v5069, %v5083
        %v5085 = vlaneseq
        %v5086 = vshrl.u32 %v5085, 7
        %v5087 = vsub.s32 3, %v5086
        %v5088 = vrot.slane %v5069, %v5087
        %v5089 = vlaneseq
        %v5090 = vshrl.u32 %v5089, 7
        %v5091 = vsub.s32 4, %v5090
        %v5092 = vrot.slane %v5069, %v5091
        %v5093 = vlaneseq
        %v5094 = vshrl.u32 %v5093, 7
        %v5095 = vsub.s32 5, %v5094
        %v5096 = vrot.slane %v5069, %v5095
        %v5097 = vlaneseq
        %v5098 = vshrl.u32 %v5097, 7
        %v5099 = vsub.s32 6, %v5098
        %v5100 = vrot.slane %v5069, %v5099
        %v5101 = vlaneseq
        %v5102 = vshrl.u32 %v5101, 7
        %v5103 = vsub.s32 7, %v5102
        %v5104 = vrot.slane %v5069, %v5103
        %v5105 = vlaneseq
        %v5106 = vshrl.u32 %v5105, 7
        %v5107 = vsub.s32 0, %v5106
        %v5108 = vrot.slane %v5070, %v5107
        %v5109 = vlaneseq
        %v5110 = vshrl.u32 %v5109, 7
        %v5111 = vsub.s32 1, %v5110
        %v5112 = vrot.slane %v5070, %v5111
        %v5113 = vlaneseq
        %v5114 = vshrl.u32 %v5113, 7
        %v5115 = vsub.s32 2, %v5114
        %v5116 = vrot.slane %v5070, %v5115
        %v5117 = vlaneseq
        %v5118 = vshrl.u32 %v5117, 7
        %v5119 = vsub.s32 3, %v5118
        %v5120 = vrot.slane %v5070, %v5119
        %v5121 = vlaneseq
        %v5122 = vshrl.u32 %v5121, 7
        %v5123 = vsub.s32 4, %v5122
        %v5124 = vrot.slane %v5070, %v5123
        %v5125 = vlaneseq
        %v5126 = vshrl.u32 %v5125, 7
        %v5127 = vsub.s32 5, %v5126
        %v5128 = vrot.slane %v5070, %v5127
        %v5129 = vlaneseq
        %v5130 = vshrl.u32 %v5129, 7
        %v5131 = vsub.s32 6, %v5130
        %v5132 = vrot.slane %v5070, %v5131
        %v5133 = vlaneseq
        %v5134 = vshrl.u32 %v5133, 7
        %v5135 = vsub.s32 7, %v5134
        %v5136 = vrot.slane %v5070, %v5135
        %v5185 = vunpack.c.l.b16 %v5037
        %v5186 = vunpack.c.h.b16 %v5037
        %v5187 = vunpack.c.l.b16 %v5038
        %v5188 = vunpack.c.h.b16 %v5038
        %v5189 = vunpack.c.l.b16 %v5039
        %v5190 = vunpack.c.h.b16 %v5039
        %v5191 = vunpack.c.l.b16 %v5040
        %v5192 = vunpack.c.h.b16 %v5040
        %v5193 = vunpack.c.l.b16 %v5041
        %v5194 = vunpack.c.h.b16 %v5041
        %v5195 = vunpack.c.l.b16 %v5042
        %v5196 = vunpack.c.h.b16 %v5042
        %v5197 = vunpack.c.l.b16 %v5043
        %v5198 = vunpack.c.h.b16 %v5043
        %v5199 = vunpack.c.l.b16 %v5044
        %v5200 = vunpack.c.h.b16 %v5044
        %v5201 = vunpack.c.l.b16 %v5045
        %v5202 = vunpack.c.h.b16 %v5045
        %v5203 = vunpack.c.l.b16 %v5046
        %v5204 = vunpack.c.h.b16 %v5046
        %v5205 = vunpack.c.l.b16 %v5047
        %v5206 = vunpack.c.h.b16 %v5047
        %v5207 = vunpack.c.l.b16 %v5048
        %v5208 = vunpack.c.h.b16 %v5048
        %v5209 = vunpack.c.l.b16 %v5049
        %v5210 = vunpack.c.h.b16 %v5049
        %v5211 = vunpack.c.l.b16 %v5050
        %v5212 = vunpack.c.h.b16 %v5050
        %v5213 = vunpack.c.l.b16 %v5051
        %v5214 = vunpack.c.h.b16 %v5051
        %v5215 = vunpack.c.l.b16 %v5052
        %v5216 = vunpack.c.h.b16 %v5052
        %v5217 = vunpack.c.l.b16 %v5053
        %v5218 = vunpack.c.h.b16 %v5053
        %v5219 = vunpack.c.l.b16 %v5054
        %v5220 = vunpack.c.h.b16 %v5054
        %v5221 = vunpack.c.l.b16 %v5055
        %v5222 = vunpack.c.h.b16 %v5055
        %v5223 = vunpack.c.l.b16 %v5056
        %v5224 = vunpack.c.h.b16 %v5056
        %v5225 = vunpack.c.l.b16 %v5057
        %v5226 = vunpack.c.h.b16 %v5057
        %v5227 = vunpack.c.l.b16 %v5058
        %v5228 = vunpack.c.h.b16 %v5058
        %v5229 = vunpack.c.l.b16 %v5059
        %v5230 = vunpack.c.h.b16 %v5059
        %v5231 = vunpack.c.l.b16 %v5060
        %v5232 = vunpack.c.h.b16 %v5060
        %v5233 = vunpack.c.l.b16 %v5061
        %v5234 = vunpack.c.h.b16 %v5061
        %v5235 = vunpack.c.l.b16 %v5062
        %v5236 = vunpack.c.h.b16 %v5062
        %v5237 = vunpack.c.l.b16 %v5063
        %v5238 = vunpack.c.h.b16 %v5063
        %v5239 = vunpack.c.l.b16 %v5064
        %v5240 = vunpack.c.h.b16 %v5064
        %v5241 = vunpack.c.l.b16 %v5065
        %v5242 = vunpack.c.h.b16 %v5065
        %v5243 = vunpack.c.l.b16 %v5066
        %v5244 = vunpack.c.h.b16 %v5066
        %v5245 = vunpack.c.l.b16 %v5067
        %v5246 = vunpack.c.h.b16 %v5067
        %v5247 = vunpack.c.l.b16 %v5068
        %v5248 = vunpack.c.h.b16 %v5068
        %v5249 = vpack.c.b16 %v5201, %v5185
        %v5250 = vpack.c.b16 %v5202, %v5186
        %v5251 = vpack.c.b16 %v5203, %v5187
        %v5252 = vpack.c.b16 %v5204, %v5188
        %v5253 = vpack.c.b16 %v5205, %v5189
        %v5254 = vpack.c.b16 %v5206, %v5190
        %v5255 = vpack.c.b16 %v5207, %v5191
        %v5256 = vpack.c.b16 %v5208, %v5192
        %v5257 = vpack.c.b16 %v5209, %v5193
        %v5258 = vpack.c.b16 %v5210, %v5194
        %v5259 = vpack.c.b16 %v5211, %v5195
        %v5260 = vpack.c.b16 %v5212, %v5196
        %v5261 = vpack.c.b16 %v5213, %v5197
        %v5262 = vpack.c.b16 %v5214, %v5198
        %v5263 = vpack.c.b16 %v5215, %v5199
        %v5264 = vpack.c.b16 %v5216, %v5200
        %v5265 = vpack.c.b16 %v5233, %v5217
        %v5266 = vpack.c.b16 %v5234, %v5218
        %v5267 = vpack.c.b16 %v5235, %v5219
        %v5268 = vpack.c.b16 %v5236, %v5220
        %v5269 = vpack.c.b16 %v5237, %v5221
        %v5270 = vpack.c.b16 %v5238, %v5222
        %v5271 = vpack.c.b16 %v5239, %v5223
        %v5272 = vpack.c.b16 %v5240, %v5224
        %v5273 = vpack.c.b16 %v5241, %v5225
        %v5274 = vpack.c.b16 %v5242, %v5226
        %v5275 = vpack.c.b16 %v5243, %v5227
        %v5276 = vpack.c.b16 %v5244, %v5228
        %v5277 = vpack.c.b16 %v5245, %v5229
        %v5278 = vpack.c.b16 %v5246, %v5230
        %v5279 = vpack.c.b16 %v5247, %v5231
        %v5280 = vpack.c.b16 %v5248, %v5232
        %v5314 = vsel %vm1167, %v5036, 0
        %5316 = vmatprep.subr.bf16.mxu0 %v5250
        %5317 = vmatpush1.bf16.msra.mxu0 %v5249
        %5318 = vmatprep.subr.bf16.mxu0 %v5266
        %5319 = vmatpush1.bf16.msra.mxu0 %v5265
        %5320 = vmatprep.subr.bf16.mxu0 0
        %5321 = vmatpush1.bf16.msra.mxu0 0
        %5322 = vmatprep.subr.bf16.mxu0 0
        %5323 = vmatpush1.bf16.msra.mxu0 0
        %5324 = vmatprep.subr.bf16.mxu0 0
        %5325 = vmatpush1.bf16.msra.mxu0 0
        %5326 = vmatprep.subr.bf16.mxu0 0
        %5327 = vmatpush1.bf16.msra.mxu0 0
        %5328 = vmatprep.subr.bf16.mxu0 0
        %5329 = vmatpush1.bf16.msra.mxu0 0
        %5330 = vmatprep.subr.bf16.mxu0 0
        %5331 = vmatpush1.bf16.msra.mxu0 0
        %5332 = vmatprep.subr.bf16.mxu0 0
        %5333 = vmatpush1.bf16.msra.mxu0 0
        %5334 = vmatprep.subr.bf16.mxu0 0
        %5335 = vmatpush1.bf16.msra.mxu0 0
        %5336 = vmatprep.subr.bf16.mxu0 0
        %5337 = vmatpush1.bf16.msra.mxu0 0
        %5338 = vmatprep.subr.bf16.mxu0 0
        %5339 = vmatpush1.bf16.msra.mxu0 0
        %5340 = vmatprep.subr.bf16.mxu0 0
        %5341 = vmatpush1.bf16.msra.mxu0 0
        %5342 = vmatprep.subr.bf16.mxu0 0
        %5343 = vmatpush1.bf16.msra.mxu0 0
        %5344 = vmatprep.subr.bf16.mxu0 0
        %5345 = vmatpush1.bf16.msra.mxu0 0
        %5346 = vmatprep.subr.bf16.mxu0 0
        %5347 = vmatpush1.bf16.msra.mxu0 0
        %5348 = vmatprep.mubr.bf16.mxu0 0
        %5349 = vmatmul.mubr.bf16.gmra.mrb[0].mxu0 %v5314
        %v5350 = vpop.f32.mrb[0].mxu0
        %v5351 = vadd.f32 %v5076, %v5350
        %v5352 = vpop.f32.mrb[0].mxu0
        %v5353 = vadd.f32 %v5080, %v5352
        %v5354 = vpop.f32.mrb[0].mxu0
        %v5355 = vadd.f32 %v5076, %v5354
        %v5356 = vpop.f32.mrb[0].mxu0
        %v5357 = vadd.f32 %v5080, %v5356
        %5358 = vdwg.mxu0
        %5359 = vmatprep.subr.bf16.mxu0 %v5252
        %5360 = vmatpush1.bf16.msra.mxu0 %v5251
        %5361 = vmatprep.subr.bf16.mxu0 %v5268
        %5362 = vmatpush1.bf16.msra.mxu0 %v5267
        %5363 = vmatprep.subr.bf16.mxu0 0
        %5364 = vmatpush1.bf16.msra.mxu0 0
        %5365 = vmatprep.subr.bf16.mxu0 0
        %5366 = vmatpush1.bf16.msra.mxu0 0
        %5367 = vmatprep.subr.bf16.mxu0 0
        %5368 = vmatpush1.bf16.msra.mxu0 0
        %5369 = vmatprep.subr.bf16.mxu0 0
        %5370 = vmatpush1.bf16.msra.mxu0 0
        %5371 = vmatprep.subr.bf16.mxu0 0
        %5372 = vmatpush1.bf16.msra.mxu0 0
        %5373 = vmatprep.subr.bf16.mxu0 0
        %5374 = vmatpush1.bf16.msra.mxu0 0
        %5375 = vmatprep.subr.bf16.mxu0 0
        %5376 = vmatpush1.bf16.msra.mxu0 0
        %5377 = vmatprep.subr.bf16.mxu0 0
        %5378 = vmatpush1.bf16.msra.mxu0 0
        %5379 = vmatprep.subr.bf16.mxu0 0
        %5380 = vmatpush1.bf16.msra.mxu0 0
        %5381 = vmatprep.subr.bf16.mxu0 0
        %5382 = vmatpush1.bf16.msra.mxu0 0
        %5383 = vmatprep.subr.bf16.mxu0 0
        %5384 = vmatpush1.bf16.msra.mxu0 0
        %5385 = vmatprep.subr.bf16.mxu0 0
        %5386 = vmatpush1.bf16.msra.mxu0 0
        %5387 = vmatprep.subr.bf16.mxu0 0
        %5388 = vmatpush1.bf16.msra.mxu0 0
        %5389 = vmatprep.subr.bf16.mxu0 0
        %5390 = vmatpush1.bf16.msra.mxu0 0
        %5391 = vmatprep.mubr.bf16.mxu0 0
        %5392 = vmatmul.mubr.bf16.gmra.mrb[0].mxu0 %v5314
        %v5393 = vpop.f32.mrb[0].mxu0
        %v5394 = vadd.f32 %v5084, %v5393
        %v5395 = vpop.f32.mrb[0].mxu0
        %v5396 = vadd.f32 %v5088, %v5395
        %v5397 = vpop.f32.mrb[0].mxu0
        %v5398 = vadd.f32 %v5084, %v5397
        %v5399 = vpop.f32.mrb[0].mxu0
        %v5400 = vadd.f32 %v5088, %v5399
        %5401 = vdwg.mxu0
        %5402 = vmatprep.subr.bf16.mxu0 %v5254
        %5403 = vmatpush1.bf16.msra.mxu0 %v5253
        %5404 = vmatprep.subr.bf16.mxu0 %v5270
        %5405 = vmatpush1.bf16.msra.mxu0 %v5269
        %5406 = vmatprep.subr.bf16.mxu0 0
        %5407 = vmatpush1.bf16.msra.mxu0 0
        %5408 = vmatprep.subr.bf16.mxu0 0
        %5409 = vmatpush1.bf16.msra.mxu0 0
        %5410 = vmatprep.subr.bf16.mxu0 0
        %5411 = vmatpush1.bf16.msra.mxu0 0
        %5412 = vmatprep.subr.bf16.mxu0 0
        %5413 = vmatpush1.bf16.msra.mxu0 0
        %5414 = vmatprep.subr.bf16.mxu0 0
        %5415 = vmatpush1.bf16.msra.mxu0 0
        %5416 = vmatprep.subr.bf16.mxu0 0
        %5417 = vmatpush1.bf16.msra.mxu0 0
        %5418 = vmatprep.subr.bf16.mxu0 0
        %5419 = vmatpush1.bf16.msra.mxu0 0
        %5420 = vmatprep.subr.bf16.mxu0 0
        %5421 = vmatpush1.bf16.msra.mxu0 0
        %5422 = vmatprep.subr.bf16.mxu0 0
        %5423 = vmatpush1.bf16.msra.mxu0 0
        %5424 = vmatprep.subr.bf16.mxu0 0
        %5425 = vmatpush1.bf16.msra.mxu0 0
        %5426 = vmatprep.subr.bf16.mxu0 0
        %5427 = vmatpush1.bf16.msra.mxu0 0
        %5428 = vmatprep.subr.bf16.mxu0 0
        %5429 = vmatpush1.bf16.msra.mxu0 0
        %5430 = vmatprep.subr.bf16.mxu0 0
        %5431 = vmatpush1.bf16.msra.mxu0 0
        %5432 = vmatprep.subr.bf16.mxu0 0
        %5433 = vmatpush1.bf16.msra.mxu0 0
        %5434 = vmatprep.mubr.bf16.mxu0 0
        %5435 = vmatmul.mubr.bf16.gmra.mrb[0].mxu0 %v5314
        %v5436 = vpop.f32.mrb[0].mxu0
        %v5437 = vadd.f32 %v5092, %v5436
        %v5438 = vpop.f32.mrb[0].mxu0
        %v5439 = vadd.f32 %v5096, %v5438
        %v5440 = vpop.f32.mrb[0].mxu0
        %v5441 = vadd.f32 %v5092, %v5440
        %v5442 = vpop.f32.mrb[0].mxu0
        %v5443 = vadd.f32 %v5096, %v5442
        %5444 = vdwg.mxu0
        %5445 = vmatprep.subr.bf16.mxu0 %v5256
        %5446 = vmatpush1.bf16.msra.mxu0 %v5255
        %5447 = vmatprep.subr.bf16.mxu0 %v5272
        %5448 = vmatpush1.bf16.msra.mxu0 %v5271
        %5449 = vmatprep.subr.bf16.mxu0 0
        %5450 = vmatpush1.bf16.msra.mxu0 0
        %5451 = vmatprep.subr.bf16.mxu0 0
        %5452 = vmatpush1.bf16.msra.mxu0 0
        %5453 = vmatprep.subr.bf16.mxu0 0
        %5454 = vmatpush1.bf16.msra.mxu0 0
        %5455 = vmatprep.subr.bf16.mxu0 0
        %5456 = vmatpush1.bf16.msra.mxu0 0
        %5457 = vmatprep.subr.bf16.mxu0 0
        %5458 = vmatpush1.bf16.msra.mxu0 0
        %5459 = vmatprep.subr.bf16.mxu0 0
        %5460 = vmatpush1.bf16.msra.mxu0 0
        %5461 = vmatprep.subr.bf16.mxu0 0
        %5462 = vmatpush1.bf16.msra.mxu0 0
        %5463 = vmatprep.subr.bf16.mxu0 0
        %5464 = vmatpush1.bf16.msra.mxu0 0
        %5465 = vmatprep.subr.bf16.mxu0 0
        %5466 = vmatpush1.bf16.msra.mxu0 0
        %5467 = vmatprep.subr.bf16.mxu0 0
        %5468 = vmatpush1.bf16.msra.mxu0 0
        %5469 = vmatprep.subr.bf16.mxu0 0
        %5470 = vmatpush1.bf16.msra.mxu0 0
        %5471 = vmatprep.subr.bf16.mxu0 0
        %5472 = vmatpush1.bf16.msra.mxu0 0
        %5473 = vmatprep.subr.bf16.mxu0 0
        %5474 = vmatpush1.bf16.msra.mxu0 0
        %5475 = vmatprep.subr.bf16.mxu0 0
        %5476 = vmatpush1.bf16.msra.mxu0 0
        %5477 = vmatprep.mubr.bf16.mxu0 0
        %5478 = vmatmul.mubr.bf16.gmra.mrb[0].mxu0 %v5314
        %v5479 = vpop.f32.mrb[0].mxu0
        %v5480 = vadd.f32 %v5100, %v5479
        %v5481 = vpop.f32.mrb[0].mxu0
        %v5482 = vadd.f32 %v5104, %v5481
        %v5483 = vpop.f32.mrb[0].mxu0
        %v5484 = vadd.f32 %v5100, %v5483
        %v5485 = vpop.f32.mrb[0].mxu0
        %v5486 = vadd.f32 %v5104, %v5485
        %5487 = vdwg.mxu0
        %5488 = vmatprep.subr.bf16.mxu0 %v5258
        %5489 = vmatpush1.bf16.msra.mxu0 %v5257
        %5490 = vmatprep.subr.bf16.mxu0 %v5274
        %5491 = vmatpush1.bf16.msra.mxu0 %v5273
        %5492 = vmatprep.subr.bf16.mxu0 0
        %5493 = vmatpush1.bf16.msra.mxu0 0
        %5494 = vmatprep.subr.bf16.mxu0 0
        %5495 = vmatpush1.bf16.msra.mxu0 0
        %5496 = vmatprep.subr.bf16.mxu0 0
        %5497 = vmatpush1.bf16.msra.mxu0 0
        %5498 = vmatprep.subr.bf16.mxu0 0
        %5499 = vmatpush1.bf16.msra.mxu0 0
        %5500 = vmatprep.subr.bf16.mxu0 0
        %5501 = vmatpush1.bf16.msra.mxu0 0
        %5502 = vmatprep.subr.bf16.mxu0 0
        %5503 = vmatpush1.bf16.msra.mxu0 0
        %5504 = vmatprep.subr.bf16.mxu0 0
        %5505 = vmatpush1.bf16.msra.mxu0 0
        %5506 = vmatprep.subr.bf16.mxu0 0
        %5507 = vmatpush1.bf16.msra.mxu0 0
        %5508 = vmatprep.subr.bf16.mxu0 0
        %5509 = vmatpush1.bf16.msra.mxu0 0
        %5510 = vmatprep.subr.bf16.mxu0 0
        %5511 = vmatpush1.bf16.msra.mxu0 0
        %5512 = vmatprep.subr.bf16.mxu0 0
        %5513 = vmatpush1.bf16.msra.mxu0 0
        %5514 = vmatprep.subr.bf16.mxu0 0
        %5515 = vmatpush1.bf16.msra.mxu0 0
        %5516 = vmatprep.subr.bf16.mxu0 0
        %5517 = vmatpush1.bf16.msra.mxu0 0
        %5518 = vmatprep.subr.bf16.mxu0 0
        %5519 = vmatpush1.bf16.msra.mxu0 0
        %5520 = vmatprep.mubr.bf16.mxu0 0
        %5521 = vmatmul.mubr.bf16.gmra.mrb[0].mxu0 %v5314
        %v5522 = vpop.f32.mrb[0].mxu0
        %v5523 = vadd.f32 %v5108, %v5522
        %v5524 = vpop.f32.mrb[0].mxu0
        %v5525 = vadd.f32 %v5112, %v5524
        %v5526 = vpop.f32.mrb[0].mxu0
        %v5527 = vadd.f32 %v5108, %v5526
        %v5528 = vpop.f32.mrb[0].mxu0
        %v5529 = vadd.f32 %v5112, %v5528
        %5530 = vdwg.mxu0
        %5531 = vmatprep.subr.bf16.mxu0 %v5260
        %5532 = vmatpush1.bf16.msra.mxu0 %v5259
        %5533 = vmatprep.subr.bf16.mxu0 %v5276
        %5534 = vmatpush1.bf16.msra.mxu0 %v5275
        %5535 = vmatprep.subr.bf16.mxu0 0
        %5536 = vmatpush1.bf16.msra.mxu0 0
        %5537 = vmatprep.subr.bf16.mxu0 0
        %5538 = vmatpush1.bf16.msra.mxu0 0
        %5539 = vmatprep.subr.bf16.mxu0 0
        %5540 = vmatpush1.bf16.msra.mxu0 0
        %5541 = vmatprep.subr.bf16.mxu0 0
        %5542 = vmatpush1.bf16.msra.mxu0 0
        %5543 = vmatprep.subr.bf16.mxu0 0
        %5544 = vmatpush1.bf16.msra.mxu0 0
        %5545 = vmatprep.subr.bf16.mxu0 0
        %5546 = vmatpush1.bf16.msra.mxu0 0
        %5547 = vmatprep.subr.bf16.mxu0 0
        %5548 = vmatpush1.bf16.msra.mxu0 0
        %5549 = vmatprep.subr.bf16.mxu0 0
        %5550 = vmatpush1.bf16.msra.mxu0 0
        %5551 = vmatprep.subr.bf16.mxu0 0
        %5552 = vmatpush1.bf16.msra.mxu0 0
        %5553 = vmatprep.subr.bf16.mxu0 0
        %5554 = vmatpush1.bf16.msra.mxu0 0
        %5555 = vmatprep.subr.bf16.mxu0 0
        %5556 = vmatpush1.bf16.msra.mxu0 0
        %5557 = vmatprep.subr.bf16.mxu0 0
        %5558 = vmatpush1.bf16.msra.mxu0 0
        %5559 = vmatprep.subr.bf16.mxu0 0
        %5560 = vmatpush1.bf16.msra.mxu0 0
        %5561 = vmatprep.subr.bf16.mxu0 0
        %5562 = vmatpush1.bf16.msra.mxu0 0
        %5563 = vmatprep.mubr.bf16.mxu0 0
        %5564 = vmatmul.mubr.bf16.gmra.mrb[0].mxu0 %v5314
        %v5565 = vpop.f32.mrb[0].mxu0
        %v5566 = vadd.f32 %v5116, %v5565
        %v5567 = vpop.f32.mrb[0].mxu0
        %v5568 = vadd.f32 %v5120, %v5567
        %v5569 = vpop.f32.mrb[0].mxu0
        %v5570 = vadd.f32 %v5116, %v5569
        %v5571 = vpop.f32.mrb[0].mxu0
        %v5572 = vadd.f32 %v5120, %v5571
        %5573 = vdwg.mxu0
        %5574 = vmatprep.subr.bf16.mxu0 %v5262
        %5575 = vmatpush1.bf16.msra.mxu0 %v5261
        %5576 = vmatprep.subr.bf16.mxu0 %v5278
        %5577 = vmatpush1.bf16.msra.mxu0 %v5277
        %5578 = vmatprep.subr.bf16.mxu0 0
        %5579 = vmatpush1.bf16.msra.mxu0 0
        %5580 = vmatprep.subr.bf16.mxu0 0
        %5581 = vmatpush1.bf16.msra.mxu0 0
        %5582 = vmatprep.subr.bf16.mxu0 0
        %5583 = vmatpush1.bf16.msra.mxu0 0
        %5584 = vmatprep.subr.bf16.mxu0 0
        %5585 = vmatpush1.bf16.msra.mxu0 0
        %5586 = vmatprep.subr.bf16.mxu0 0
        %5587 = vmatpush1.bf16.msra.mxu0 0
        %5588 = vmatprep.subr.bf16.mxu0 0
        %5589 = vmatpush1.bf16.msra.mxu0 0
        %5590 = vmatprep.subr.bf16.mxu0 0
        %5591 = vmatpush1.bf16.msra.mxu0 0
        %5592 = vmatprep.subr.bf16.mxu0 0
        %5593 = vmatpush1.bf16.msra.mxu0 0
        %5594 = vmatprep.subr.bf16.mxu0 0
        %5595 = vmatpush1.bf16.msra.mxu0 0
        %5596 = vmatprep.subr.bf16.mxu0 0
        %5597 = vmatpush1.bf16.msra.mxu0 0
        %5598 = vmatprep.subr.bf16.mxu0 0
        %5599 = vmatpush1.bf16.msra.mxu0 0
        %5600 = vmatprep.subr.bf16.mxu0 0
        %5601 = vmatpush1.bf16.msra.mxu0 0
        %5602 = vmatprep.subr.bf16.mxu0 0
        %5603 = vmatpush1.bf16.msra.mxu0 0
        %5604 = vmatprep.subr.bf16.mxu0 0
        %5605 = vmatpush1.bf16.msra.mxu0 0
        %5606 = vmatprep.mubr.bf16.mxu0 0
        %5607 = vmatmul.mubr.bf16.gmra.mrb[0].mxu0 %v5314
        %v5608 = vpop.f32.mrb[0].mxu0
        %v5609 = vadd.f32 %v5124, %v5608
        %v5610 = vpop.f32.mrb[0].mxu0
        %v5611 = vadd.f32 %v5128, %v5610
        %v5612 = vpop.f32.mrb[0].mxu0
        %v5613 = vadd.f32 %v5124, %v5612
        %v5614 = vpop.f32.mrb[0].mxu0
        %v5615 = vadd.f32 %v5128, %v5614
        %5616 = vdwg.mxu0
        %5617 = vmatprep.subr.bf16.mxu0 %v5264
        %5618 = vmatpush1.bf16.msra.mxu0 %v5263
        %5619 = vmatprep.subr.bf16.mxu0 %v5280
        %5620 = vmatpush1.bf16.msra.mxu0 %v5279
        %5621 = vmatprep.subr.bf16.mxu0 0
        %5622 = vmatpush1.bf16.msra.mxu0 0
        %5623 = vmatprep.subr.bf16.mxu0 0
        %5624 = vmatpush1.bf16.msra.mxu0 0
        %5625 = vmatprep.subr.bf16.mxu0 0
        %5626 = vmatpush1.bf16.msra.mxu0 0
        %5627 = vmatprep.subr.bf16.mxu0 0
        %5628 = vmatpush1.bf16.msra.mxu0 0
        %5629 = vmatprep.subr.bf16.mxu0 0
        %5630 = vmatpush1.bf16.msra.mxu0 0
        %5631 = vmatprep.subr.bf16.mxu0 0
        %5632 = vmatpush1.bf16.msra.mxu0 0
        %5633 = vmatprep.subr.bf16.mxu0 0
        %5634 = vmatpush1.bf16.msra.mxu0 0
        %5635 = vmatprep.subr.bf16.mxu0 0
        %5636 = vmatpush1.bf16.msra.mxu0 0
        %5637 = vmatprep.subr.bf16.mxu0 0
        %5638 = vmatpush1.bf16.msra.mxu0 0
        %5639 = vmatprep.subr.bf16.mxu0 0
        %5640 = vmatpush1.bf16.msra.mxu0 0
        %5641 = vmatprep.subr.bf16.mxu0 0
        %5642 = vmatpush1.bf16.msra.mxu0 0
        %5643 = vmatprep.subr.bf16.mxu0 0
        %5644 = vmatpush1.bf16.msra.mxu0 0
        %5645 = vmatprep.subr.bf16.mxu0 0
        %5646 = vmatpush1.bf16.msra.mxu0 0
        %5647 = vmatprep.subr.bf16.mxu0 0
        %5648 = vmatpush1.bf16.msra.mxu0 0
        %5649 = vmatprep.mubr.bf16.mxu0 0
        %5650 = vmatmul.mubr.bf16.gmra.mrb[0].mxu0 %v5314
        %v5651 = vpop.f32.mrb[0].mxu0
        %v5652 = vadd.f32 %v5132, %v5651
        %v5653 = vpop.f32.mrb[0].mxu0
        %v5654 = vadd.f32 %v5136, %v5653
        %v5655 = vpop.f32.mrb[0].mxu0
        %v5656 = vadd.f32 %v5132, %v5655
        %v5657 = vpop.f32.mrb[0].mxu0
        %v5658 = vadd.f32 %v5136, %v5657
        %5659 = vdwg.mxu0
        %v5660 = vmax.f32 %v5351, 0.0
        %v5661 = vmax.f32 %v5353, 0.0
        %v5662 = vmax.f32 %v5394, 0.0
        %v5663 = vmax.f32 %v5396, 0.0
        %v5664 = vmax.f32 %v5437, 0.0
        %v5665 = vmax.f32 %v5439, 0.0
        %v5666 = vmax.f32 %v5480, 0.0
        %v5667 = vmax.f32 %v5482, 0.0
        %v5668 = vmax.f32 %v5523, 0.0
        %v5669 = vmax.f32 %v5525, 0.0
        %v5670 = vmax.f32 %v5566, 0.0
        %v5671 = vmax.f32 %v5568, 0.0
        %v5672 = vmax.f32 %v5609, 0.0
        %v5673 = vmax.f32 %v5611, 0.0
        %v5674 = vmax.f32 %v5652, 0.0
        %v5675 = vmax.f32 %v5654, 0.0
        %v5676 = vmax.f32 %v5355, 0.0
        %v5677 = vmax.f32 %v5357, 0.0
        %v5678 = vmax.f32 %v5398, 0.0
        %v5679 = vmax.f32 %v5400, 0.0
        %v5680 = vmax.f32 %v5441, 0.0
        %v5681 = vmax.f32 %v5443, 0.0
        %v5682 = vmax.f32 %v5484, 0.0
        %v5683 = vmax.f32 %v5486, 0.0
        %v5684 = vmax.f32 %v5527, 0.0
        %v5685 = vmax.f32 %v5529, 0.0
        %v5686 = vmax.f32 %v5570, 0.0
        %v5687 = vmax.f32 %v5572, 0.0
        %v5688 = vmax.f32 %v5613, 0.0
        %v5689 = vmax.f32 %v5615, 0.0
        %v5690 = vmax.f32 %v5656, 0.0
        %v5691 = vmax.f32 %v5658, 0.0
        %v5692 = vpack.c.bf16 %v5676, %v5660
        %v5693 = vpack.c.bf16 %v5677, %v5661
        %v5694 = vpack.c.bf16 %v5678, %v5662
        %v5695 = vpack.c.bf16 %v5679, %v5663
        %v5696 = vpack.c.bf16 %v5680, %v5664
        %v5697 = vpack.c.bf16 %v5681, %v5665
        %v5698 = vpack.c.bf16 %v5682, %v5666
        %v5699 = vpack.c.bf16 %v5683, %v5667
        %v5700 = vpack.c.bf16 %v5684, %v5668
        %v5701 = vpack.c.bf16 %v5685, %v5669
        %v5702 = vpack.c.bf16 %v5686, %v5670
        %v5703 = vpack.c.bf16 %v5687, %v5671
        %v5704 = vpack.c.bf16 %v5688, %v5672
        %v5705 = vpack.c.bf16 %v5689, %v5673
        %v5706 = vpack.c.bf16 %v5690, %v5674
        %v5707 = vpack.c.bf16 %v5691, %v5675
        %v5708 = vld [vmem:[%s1095] sm:$0xf]
        %v5709 = vld [vmem:[%s1095 + $0x4] sm:$0xf]
        %v5710 = vld [vmem:[%s1095 + $0x8] sm:$0xf]
        %v5711 = vld [vmem:[%s1095 + $0xc] sm:$0xf]
        %v5712 = vld [vmem:[%s1095 + $0x10] sm:$0xf]
        %v5713 = vld [vmem:[%s1095 + $0x14] sm:$0xf]
        %v5714 = vld [vmem:[%s1095 + $0x18] sm:$0xf]
        %v5715 = vld [vmem:[%s1095 + $0x1c] sm:$0xf]
        %v5716 = vld [vmem:[%s1095 + $0x20] sm:$0xf]
        %v5717 = vld [vmem:[%s1095 + $0x24] sm:$0xf]
        %v5718 = vld [vmem:[%s1095 + $0x28] sm:$0xf]
        %v5719 = vld [vmem:[%s1095 + $0x2c] sm:$0xf]
        %v5720 = vld [vmem:[%s1095 + $0x30] sm:$0xf]
        %v5721 = vld [vmem:[%s1095 + $0x34] sm:$0xf]
        %v5722 = vld [vmem:[%s1095 + $0x38] sm:$0xf]
        %v5723 = vld [vmem:[%s1095 + $0x3c] sm:$0xf]
        %v5724 = vld [vmem:[%s1095 + $0x40] sm:$0xf]
        %v5725 = vld [vmem:[%s1095 + $0x44] sm:$0xf]
        %v5726 = vld [vmem:[%s1095 + $0x48] sm:$0xf]
        %v5727 = vld [vmem:[%s1095 + $0x4c] sm:$0xf]
        %v5728 = vld [vmem:[%s1095 + $0x50] sm:$0xf]
        %v5729 = vld [vmem:[%s1095 + $0x54] sm:$0xf]
        %v5730 = vld [vmem:[%s1095 + $0x58] sm:$0xf]
        %v5731 = vld [vmem:[%s1095 + $0x5c] sm:$0xf]
        %v5732 = vld [vmem:[%s1095 + $0x60] sm:$0xf]
        %v5733 = vld [vmem:[%s1095 + $0x64] sm:$0xf]
        %v5734 = vld [vmem:[%s1095 + $0x68] sm:$0xf]
        %v5735 = vld [vmem:[%s1095 + $0x6c] sm:$0xf]
        %v5736 = vld [vmem:[%s1095 + $0x70] sm:$0xf]
        %v5737 = vld [vmem:[%s1095 + $0x74] sm:$0xf]
        %v5738 = vld [vmem:[%s1095 + $0x78] sm:$0xf]
        %v5739 = vld [vmem:[%s1095 + $0x7c] sm:$0xf]
        %v5740 = vld [vmem:[%s1095 + $0x80] sm:$0xf]
        %v5741 = vld [vmem:[%s1095 + $0x84] sm:$0xf]
        %v5742 = vld [vmem:[%s1095 + $0x88] sm:$0xf]
        %v5743 = vld [vmem:[%s1095 + $0x8c] sm:$0xf]
        %v5744 = vld [vmem:[%s1095 + $0x90] sm:$0xf]
        %v5745 = vld [vmem:[%s1095 + $0x94] sm:$0xf]
        %v5746 = vld [vmem:[%s1095 + $0x98] sm:$0xf]
        %v5747 = vld [vmem:[%s1095 + $0x9c] sm:$0xf]
        %v5748 = vld [vmem:[%s1095 + $0xa0] sm:$0xf]
        %v5749 = vld [vmem:[%s1095 + $0xa4] sm:$0xf]
        %v5750 = vld [vmem:[%s1095 + $0xa8] sm:$0xf]
        %v5751 = vld [vmem:[%s1095 + $0xac] sm:$0xf]
        %v5752 = vld [vmem:[%s1095 + $0xb0] sm:$0xf]
        %v5753 = vld [vmem:[%s1095 + $0xb4] sm:$0xf]
        %v5754 = vld [vmem:[%s1095 + $0xb8] sm:$0xf]
        %v5755 = vld [vmem:[%s1095 + $0xbc] sm:$0xf]
        %v5756 = vld [vmem:[%s1095 + $0xc0] sm:$0xf]
        %v5757 = vld [vmem:[%s1095 + $0xc4] sm:$0xf]
        %v5758 = vld [vmem:[%s1095 + $0xc8] sm:$0xf]
        %v5759 = vld [vmem:[%s1095 + $0xcc] sm:$0xf]
        %v5760 = vld [vmem:[%s1095 + $0xd0] sm:$0xf]
        %v5761 = vld [vmem:[%s1095 + $0xd4] sm:$0xf]
        %v5762 = vld [vmem:[%s1095 + $0xd8] sm:$0xf]
        %v5763 = vld [vmem:[%s1095 + $0xdc] sm:$0xf]
        %v5764 = vld [vmem:[%s1095 + $0xe0] sm:$0xf]
        %v5765 = vld [vmem:[%s1095 + $0xe4] sm:$0xf]
        %v5766 = vld [vmem:[%s1095 + $0xe8] sm:$0xf]
        %v5767 = vld [vmem:[%s1095 + $0xec] sm:$0xf]
        %v5768 = vld [vmem:[%s1095 + $0xf0] sm:$0xf]
        %v5769 = vld [vmem:[%s1095 + $0xf4] sm:$0xf]
        %v5770 = vld [vmem:[%s1095 + $0xf8] sm:$0xf]
        %v5771 = vld [vmem:[%s1095 + $0xfc] sm:$0xf]
        %v5772 = vld [vmem:[%s1095 + $0x100] sm:$0xf]
        %v5773 = vld [vmem:[%s1095 + $0x104] sm:$0xf]
        %v5774 = vld [vmem:[%s1095 + $0x108] sm:$0xf]
        %v5775 = vld [vmem:[%s1095 + $0x10c] sm:$0xf]
        %v5776 = vld [vmem:[%s1095 + $0x110] sm:$0xf]
        %v5777 = vld [vmem:[%s1095 + $0x114] sm:$0xf]
        %v5778 = vld [vmem:[%s1095 + $0x118] sm:$0xf]
        %v5779 = vld [vmem:[%s1095 + $0x11c] sm:$0xf]
        %v5780 = vld [vmem:[%s1095 + $0x120] sm:$0xf]
        %v5781 = vld [vmem:[%s1095 + $0x124] sm:$0xf]
        %v5782 = vld [vmem:[%s1095 + $0x128] sm:$0xf]
        %v5783 = vld [vmem:[%s1095 + $0x12c] sm:$0xf]
        %v5784 = vld [vmem:[%s1095 + $0x130] sm:$0xf]
        %v5785 = vld [vmem:[%s1095 + $0x134] sm:$0xf]
        %v5786 = vld [vmem:[%s1095 + $0x138] sm:$0xf]
        %v5787 = vld [vmem:[%s1095 + $0x13c] sm:$0xf]
        %v5788 = vld [vmem:[%s1095 + $0x140] sm:$0xf]
        %v5789 = vld [vmem:[%s1095 + $0x144] sm:$0xf]
        %v5790 = vld [vmem:[%s1095 + $0x148] sm:$0xf]
        %v5791 = vld [vmem:[%s1095 + $0x14c] sm:$0xf]
        %v5792 = vld [vmem:[%s1095 + $0x150] sm:$0xf]
        %v5793 = vld [vmem:[%s1095 + $0x154] sm:$0xf]
        %v5794 = vld [vmem:[%s1095 + $0x158] sm:$0xf]
        %v5795 = vld [vmem:[%s1095 + $0x15c] sm:$0xf]
        %v5796 = vld [vmem:[%s1095 + $0x160] sm:$0xf]
        %v5797 = vld [vmem:[%s1095 + $0x164] sm:$0xf]
        %v5798 = vld [vmem:[%s1095 + $0x168] sm:$0xf]
        %v5799 = vld [vmem:[%s1095 + $0x16c] sm:$0xf]
        %v5800 = vld [vmem:[%s1095 + $0x170] sm:$0xf]
        %v5801 = vld [vmem:[%s1095 + $0x174] sm:$0xf]
        %v5802 = vld [vmem:[%s1095 + $0x178] sm:$0xf]
        %v5803 = vld [vmem:[%s1095 + $0x17c] sm:$0xf]
        %v5804 = vld [vmem:[%s1095 + $0x180] sm:$0xf]
        %v5805 = vld [vmem:[%s1095 + $0x184] sm:$0xf]
        %v5806 = vld [vmem:[%s1095 + $0x188] sm:$0xf]
        %v5807 = vld [vmem:[%s1095 + $0x18c] sm:$0xf]
        %v5808 = vld [vmem:[%s1095 + $0x190] sm:$0xf]
        %v5809 = vld [vmem:[%s1095 + $0x194] sm:$0xf]
        %v5810 = vld [vmem:[%s1095 + $0x198] sm:$0xf]
        %v5811 = vld [vmem:[%s1095 + $0x19c] sm:$0xf]
        %v5812 = vld [vmem:[%s1095 + $0x1a0] sm:$0xf]
        %v5813 = vld [vmem:[%s1095 + $0x1a4] sm:$0xf]
        %v5814 = vld [vmem:[%s1095 + $0x1a8] sm:$0xf]
        %v5815 = vld [vmem:[%s1095 + $0x1ac] sm:$0xf]
        %v5816 = vld [vmem:[%s1095 + $0x1b0] sm:$0xf]
        %v5817 = vld [vmem:[%s1095 + $0x1b4] sm:$0xf]
        %v5818 = vld [vmem:[%s1095 + $0x1b8] sm:$0xf]
        %v5819 = vld [vmem:[%s1095 + $0x1bc] sm:$0xf]
        %v5820 = vld [vmem:[%s1095 + $0x1c0] sm:$0xf]
        %v5821 = vld [vmem:[%s1095 + $0x1c4] sm:$0xf]
        %v5822 = vld [vmem:[%s1095 + $0x1c8] sm:$0xf]
        %v5823 = vld [vmem:[%s1095 + $0x1cc] sm:$0xf]
        %v5824 = vld [vmem:[%s1095 + $0x1d0] sm:$0xf]
        %v5825 = vld [vmem:[%s1095 + $0x1d4] sm:$0xf]
        %v5826 = vld [vmem:[%s1095 + $0x1d8] sm:$0xf]
        %v5827 = vld [vmem:[%s1095 + $0x1dc] sm:$0xf]
        %v5828 = vld [vmem:[%s1095 + $0x1e0] sm:$0xf]
        %v5829 = vld [vmem:[%s1095 + $0x1e4] sm:$0xf]
        %v5830 = vld [vmem:[%s1095 + $0x1e8] sm:$0xf]
        %v5831 = vld [vmem:[%s1095 + $0x1ec] sm:$0xf]
        %v5832 = vld [vmem:[%s1095 + $0x1f0] sm:$0xf]
        %v5833 = vld [vmem:[%s1095 + $0x1f4] sm:$0xf]
        %v5834 = vld [vmem:[%s1095 + $0x1f8] sm:$0xf]
        %v5835 = vld [vmem:[%s1095 + $0x1fc] sm:$0xf]
        %v5836 = vld [vmem:[%s1095 + $0x200] sm:$0xf]
        %v5837 = vld [vmem:[%s1095 + $0x204] sm:$0xf]
        %v5838 = vld [vmem:[%s1095 + $0x208] sm:$0xf]
        %v5839 = vld [vmem:[%s1095 + $0x20c] sm:$0xf]
        %v5840 = vld [vmem:[%s1095 + $0x210] sm:$0xf]
        %v5841 = vld [vmem:[%s1095 + $0x214] sm:$0xf]
        %v5842 = vld [vmem:[%s1095 + $0x218] sm:$0xf]
        %v5843 = vld [vmem:[%s1095 + $0x21c] sm:$0xf]
        %v5844 = vld [vmem:[%s1095 + $0x220] sm:$0xf]
        %v5845 = vld [vmem:[%s1095 + $0x224] sm:$0xf]
        %v5846 = vld [vmem:[%s1095 + $0x228] sm:$0xf]
        %v5847 = vld [vmem:[%s1095 + $0x22c] sm:$0xf]
        %v5848 = vld [vmem:[%s1095 + $0x230] sm:$0xf]
        %v5849 = vld [vmem:[%s1095 + $0x234] sm:$0xf]
        %v5850 = vld [vmem:[%s1095 + $0x238] sm:$0xf]
        %v5851 = vld [vmem:[%s1095 + $0x23c] sm:$0xf]
        %v5852 = vld [vmem:[%s1095 + $0x240] sm:$0xf]
        %v5853 = vld [vmem:[%s1095 + $0x244] sm:$0xf]
        %v5854 = vld [vmem:[%s1095 + $0x248] sm:$0xf]
        %v5855 = vld [vmem:[%s1095 + $0x24c] sm:$0xf]
        %v5856 = vld [vmem:[%s1095 + $0x250] sm:$0xf]
        %v5857 = vld [vmem:[%s1095 + $0x254] sm:$0xf]
        %v5858 = vld [vmem:[%s1095 + $0x258] sm:$0xf]
        %v5859 = vld [vmem:[%s1095 + $0x25c] sm:$0xf]
        %v5860 = vld [vmem:[%s1095 + $0x260] sm:$0xf]
        %v5861 = vld [vmem:[%s1095 + $0x264] sm:$0xf]
        %v5862 = vld [vmem:[%s1095 + $0x268] sm:$0xf]
        %v5863 = vld [vmem:[%s1095 + $0x26c] sm:$0xf]
        %v5864 = vld [vmem:[%s1095 + $0x270] sm:$0xf]
        %v5865 = vld [vmem:[%s1095 + $0x274] sm:$0xf]
        %v5866 = vld [vmem:[%s1095 + $0x278] sm:$0xf]
        %v5867 = vld [vmem:[%s1095 + $0x27c] sm:$0xf]
        %v5868 = vld [vmem:[%s1095 + $0x280] sm:$0xf]
        %v5869 = vld [vmem:[%s1095 + $0x284] sm:$0xf]
        %v5870 = vld [vmem:[%s1095 + $0x288] sm:$0xf]
        %v5871 = vld [vmem:[%s1095 + $0x28c] sm:$0xf]
        %v5872 = vld [vmem:[%s1095 + $0x290] sm:$0xf]
        %v5873 = vld [vmem:[%s1095 + $0x294] sm:$0xf]
        %v5874 = vld [vmem:[%s1095 + $0x298] sm:$0xf]
        %v5875 = vld [vmem:[%s1095 + $0x29c] sm:$0xf]
        %v5876 = vld [vmem:[%s1095 + $0x2a0] sm:$0xf]
        %v5877 = vld [vmem:[%s1095 + $0x2a4] sm:$0xf]
        %v5878 = vld [vmem:[%s1095 + $0x2a8] sm:$0xf]
        %v5879 = vld [vmem:[%s1095 + $0x2ac] sm:$0xf]
        %v5880 = vld [vmem:[%s1095 + $0x2b0] sm:$0xf]
        %v5881 = vld [vmem:[%s1095 + $0x2b4] sm:$0xf]
        %v5882 = vld [vmem:[%s1095 + $0x2b8] sm:$0xf]
        %v5883 = vld [vmem:[%s1095 + $0x2bc] sm:$0xf]
        %v5884 = vld [vmem:[%s1095 + $0x2c0] sm:$0xf]
        %v5885 = vld [vmem:[%s1095 + $0x2c4] sm:$0xf]
        %v5886 = vld [vmem:[%s1095 + $0x2c8] sm:$0xf]
        %v5887 = vld [vmem:[%s1095 + $0x2cc] sm:$0xf]
        %v5888 = vld [vmem:[%s1095 + $0x2d0] sm:$0xf]
        %v5889 = vld [vmem:[%s1095 + $0x2d4] sm:$0xf]
        %v5890 = vld [vmem:[%s1095 + $0x2d8] sm:$0xf]
        %v5891 = vld [vmem:[%s1095 + $0x2dc] sm:$0xf]
        %v5892 = vld [vmem:[%s1095 + $0x2e0] sm:$0xf]
        %v5893 = vld [vmem:[%s1095 + $0x2e4] sm:$0xf]
        %v5894 = vld [vmem:[%s1095 + $0x2e8] sm:$0xf]
        %v5895 = vld [vmem:[%s1095 + $0x2ec] sm:$0xf]
        %v5896 = vld [vmem:[%s1095 + $0x2f0] sm:$0xf]
        %v5897 = vld [vmem:[%s1095 + $0x2f4] sm:$0xf]
        %v5898 = vld [vmem:[%s1095 + $0x2f8] sm:$0xf]
        %v5899 = vld [vmem:[%s1095 + $0x2fc] sm:$0xf]
        %v5900 = vld [vmem:[%s1095 + $0x300] sm:$0xf]
        %v5901 = vld [vmem:[%s1095 + $0x304] sm:$0xf]
        %v5902 = vld [vmem:[%s1095 + $0x308] sm:$0xf]
        %v5903 = vld [vmem:[%s1095 + $0x30c] sm:$0xf]
        %v5904 = vld [vmem:[%s1095 + $0x310] sm:$0xf]
        %v5905 = vld [vmem:[%s1095 + $0x314] sm:$0xf]
        %v5906 = vld [vmem:[%s1095 + $0x318] sm:$0xf]
        %v5907 = vld [vmem:[%s1095 + $0x31c] sm:$0xf]
        %v5908 = vld [vmem:[%s1095 + $0x320] sm:$0xf]
        %v5909 = vld [vmem:[%s1095 + $0x324] sm:$0xf]
        %v5910 = vld [vmem:[%s1095 + $0x328] sm:$0xf]
        %v5911 = vld [vmem:[%s1095 + $0x32c] sm:$0xf]
        %v5912 = vld [vmem:[%s1095 + $0x330] sm:$0xf]
        %v5913 = vld [vmem:[%s1095 + $0x334] sm:$0xf]
        %v5914 = vld [vmem:[%s1095 + $0x338] sm:$0xf]
        %v5915 = vld [vmem:[%s1095 + $0x33c] sm:$0xf]
        %v5916 = vld [vmem:[%s1095 + $0x340] sm:$0xf]
        %v5917 = vld [vmem:[%s1095 + $0x344] sm:$0xf]
        %v5918 = vld [vmem:[%s1095 + $0x348] sm:$0xf]
        %v5919 = vld [vmem:[%s1095 + $0x34c] sm:$0xf]
        %v5920 = vld [vmem:[%s1095 + $0x350] sm:$0xf]
        %v5921 = vld [vmem:[%s1095 + $0x354] sm:$0xf]
        %v5922 = vld [vmem:[%s1095 + $0x358] sm:$0xf]
        %v5923 = vld [vmem:[%s1095 + $0x35c] sm:$0xf]
        %v5924 = vld [vmem:[%s1095 + $0x360] sm:$0xf]
        %v5925 = vld [vmem:[%s1095 + $0x364] sm:$0xf]
        %v5926 = vld [vmem:[%s1095 + $0x368] sm:$0xf]
        %v5927 = vld [vmem:[%s1095 + $0x36c] sm:$0xf]
        %v5928 = vld [vmem:[%s1095 + $0x370] sm:$0xf]
        %v5929 = vld [vmem:[%s1095 + $0x374] sm:$0xf]
        %v5930 = vld [vmem:[%s1095 + $0x378] sm:$0xf]
        %v5931 = vld [vmem:[%s1095 + $0x37c] sm:$0xf]
        %v5932 = vld [vmem:[%s1095 + $0x380] sm:$0xf]
        %v5933 = vld [vmem:[%s1095 + $0x384] sm:$0xf]
        %v5934 = vld [vmem:[%s1095 + $0x388] sm:$0xf]
        %v5935 = vld [vmem:[%s1095 + $0x38c] sm:$0xf]
        %v5936 = vld [vmem:[%s1095 + $0x390] sm:$0xf]
        %v5937 = vld [vmem:[%s1095 + $0x394] sm:$0xf]
        %v5938 = vld [vmem:[%s1095 + $0x398] sm:$0xf]
        %v5939 = vld [vmem:[%s1095 + $0x39c] sm:$0xf]
        %v5940 = vld [vmem:[%s1095 + $0x3a0] sm:$0xf]
        %v5941 = vld [vmem:[%s1095 + $0x3a4] sm:$0xf]
        %v5942 = vld [vmem:[%s1095 + $0x3a8] sm:$0xf]
        %v5943 = vld [vmem:[%s1095 + $0x3ac] sm:$0xf]
        %v5944 = vld [vmem:[%s1095 + $0x3b0] sm:$0xf]
        %v5945 = vld [vmem:[%s1095 + $0x3b4] sm:$0xf]
        %v5946 = vld [vmem:[%s1095 + $0x3b8] sm:$0xf]
        %v5947 = vld [vmem:[%s1095 + $0x3bc] sm:$0xf]
        %v5948 = vld [vmem:[%s1095 + $0x3c0] sm:$0xf]
        %v5949 = vld [vmem:[%s1095 + $0x3c4] sm:$0xf]
        %v5950 = vld [vmem:[%s1095 + $0x3c8] sm:$0xf]
        %v5951 = vld [vmem:[%s1095 + $0x3cc] sm:$0xf]
        %v5952 = vld [vmem:[%s1095 + $0x3d0] sm:$0xf]
        %v5953 = vld [vmem:[%s1095 + $0x3d4] sm:$0xf]
        %v5954 = vld [vmem:[%s1095 + $0x3d8] sm:$0xf]
        %v5955 = vld [vmem:[%s1095 + $0x3dc] sm:$0xf]
        %v5956 = vld [vmem:[%s1095 + $0x3e0] sm:$0xf]
        %v5957 = vld [vmem:[%s1095 + $0x3e4] sm:$0xf]
        %v5958 = vld [vmem:[%s1095 + $0x3e8] sm:$0xf]
        %v5959 = vld [vmem:[%s1095 + $0x3ec] sm:$0xf]
        %v5960 = vld [vmem:[%s1095 + $0x3f0] sm:$0xf]
        %v5961 = vld [vmem:[%s1095 + $0x3f4] sm:$0xf]
        %v5962 = vld [vmem:[%s1095 + $0x3f8] sm:$0xf]
        %v5963 = vld [vmem:[%s1095 + $0x3fc] sm:$0xf]
        %v5964 = vld [vmem:[%s1098] sm:$0x1]
        %v5966 = vlaneseq
        %v5967 = vshrl.u32 %v5966, 7
        %v5968 = vsub.s32 0, %v5967
        %v5969 = vrot.slane %v5964, %v5968
        %v6227 = vunpack.c.l.b16 %v5708
        %v6228 = vunpack.c.l.b16 %v5709
        %v6229 = vunpack.c.l.b16 %v5710
        %v6230 = vunpack.c.l.b16 %v5711
        %v6231 = vunpack.c.l.b16 %v5712
        %v6232 = vunpack.c.l.b16 %v5713
        %v6233 = vunpack.c.l.b16 %v5714
        %v6234 = vunpack.c.l.b16 %v5715
        %v6235 = vunpack.c.l.b16 %v5716
        %v6236 = vunpack.c.l.b16 %v5717
        %v6237 = vunpack.c.l.b16 %v5718
        %v6238 = vunpack.c.l.b16 %v5719
        %v6239 = vunpack.c.l.b16 %v5720
        %v6240 = vunpack.c.l.b16 %v5721
        %v6241 = vunpack.c.l.b16 %v5722
        %v6242 = vunpack.c.l.b16 %v5723
        %v6243 = vunpack.c.l.b16 %v5724
        %v6244 = vunpack.c.l.b16 %v5725
        %v6245 = vunpack.c.l.b16 %v5726
        %v6246 = vunpack.c.l.b16 %v5727
        %v6247 = vunpack.c.l.b16 %v5728
        %v6248 = vunpack.c.l.b16 %v5729
        %v6249 = vunpack.c.l.b16 %v5730
        %v6250 = vunpack.c.l.b16 %v5731
        %v6251 = vunpack.c.l.b16 %v5732
        %v6252 = vunpack.c.l.b16 %v5733
        %v6253 = vunpack.c.l.b16 %v5734
        %v6254 = vunpack.c.l.b16 %v5735
        %v6255 = vunpack.c.l.b16 %v5736
        %v6256 = vunpack.c.l.b16 %v5737
        %v6257 = vunpack.c.l.b16 %v5738
        %v6258 = vunpack.c.l.b16 %v5739
        %v6259 = vunpack.c.l.b16 %v5740
        %v6260 = vunpack.c.l.b16 %v5741
        %v6261 = vunpack.c.l.b16 %v5742
        %v6262 = vunpack.c.l.b16 %v5743
        %v6263 = vunpack.c.l.b16 %v5744
        %v6264 = vunpack.c.l.b16 %v5745
        %v6265 = vunpack.c.l.b16 %v5746
        %v6266 = vunpack.c.l.b16 %v5747
        %v6267 = vunpack.c.l.b16 %v5748
        %v6268 = vunpack.c.l.b16 %v5749
        %v6269 = vunpack.c.l.b16 %v5750
        %v6270 = vunpack.c.l.b16 %v5751
        %v6271 = vunpack.c.l.b16 %v5752
        %v6272 = vunpack.c.l.b16 %v5753
        %v6273 = vunpack.c.l.b16 %v5754
        %v6274 = vunpack.c.l.b16 %v5755
        %v6275 = vunpack.c.l.b16 %v5756
        %v6276 = vunpack.c.l.b16 %v5757
        %v6277 = vunpack.c.l.b16 %v5758
        %v6278 = vunpack.c.l.b16 %v5759
        %v6279 = vunpack.c.l.b16 %v5760
        %v6280 = vunpack.c.l.b16 %v5761
        %v6281 = vunpack.c.l.b16 %v5762
        %v6282 = vunpack.c.l.b16 %v5763
        %v6283 = vunpack.c.l.b16 %v5764
        %v6284 = vunpack.c.l.b16 %v5765
        %v6285 = vunpack.c.l.b16 %v5766
        %v6286 = vunpack.c.l.b16 %v5767
        %v6287 = vunpack.c.l.b16 %v5768
        %v6288 = vunpack.c.l.b16 %v5769
        %v6289 = vunpack.c.l.b16 %v5770
        %v6290 = vunpack.c.l.b16 %v5771
        %v6291 = vunpack.c.l.b16 %v5772
        %v6292 = vunpack.c.l.b16 %v5773
        %v6293 = vunpack.c.l.b16 %v5774
        %v6294 = vunpack.c.l.b16 %v5775
        %v6295 = vunpack.c.l.b16 %v5776
        %v6296 = vunpack.c.l.b16 %v5777
        %v6297 = vunpack.c.l.b16 %v5778
        %v6298 = vunpack.c.l.b16 %v5779
        %v6299 = vunpack.c.l.b16 %v5780
        %v6300 = vunpack.c.l.b16 %v5781
        %v6301 = vunpack.c.l.b16 %v5782
        %v6302 = vunpack.c.l.b16 %v5783
        %v6303 = vunpack.c.l.b16 %v5784
        %v6304 = vunpack.c.l.b16 %v5785
        %v6305 = vunpack.c.l.b16 %v5786
        %v6306 = vunpack.c.l.b16 %v5787
        %v6307 = vunpack.c.l.b16 %v5788
        %v6308 = vunpack.c.l.b16 %v5789
        %v6309 = vunpack.c.l.b16 %v5790
        %v6310 = vunpack.c.l.b16 %v5791
        %v6311 = vunpack.c.l.b16 %v5792
        %v6312 = vunpack.c.l.b16 %v5793
        %v6313 = vunpack.c.l.b16 %v5794
        %v6314 = vunpack.c.l.b16 %v5795
        %v6315 = vunpack.c.l.b16 %v5796
        %v6316 = vunpack.c.l.b16 %v5797
        %v6317 = vunpack.c.l.b16 %v5798
        %v6318 = vunpack.c.l.b16 %v5799
        %v6319 = vunpack.c.l.b16 %v5800
        %v6320 = vunpack.c.l.b16 %v5801
        %v6321 = vunpack.c.l.b16 %v5802
        %v6322 = vunpack.c.l.b16 %v5803
        %v6323 = vunpack.c.l.b16 %v5804
        %v6324 = vunpack.c.l.b16 %v5805
        %v6325 = vunpack.c.l.b16 %v5806
        %v6326 = vunpack.c.l.b16 %v5807
        %v6327 = vunpack.c.l.b16 %v5808
        %v6328 = vunpack.c.l.b16 %v5809
        %v6329 = vunpack.c.l.b16 %v5810
        %v6330 = vunpack.c.l.b16 %v5811
        %v6331 = vunpack.c.l.b16 %v5812
        %v6332 = vunpack.c.l.b16 %v5813
        %v6333 = vunpack.c.l.b16 %v5814
        %v6334 = vunpack.c.l.b16 %v5815
        %v6335 = vunpack.c.l.b16 %v5816
        %v6336 = vunpack.c.l.b16 %v5817
        %v6337 = vunpack.c.l.b16 %v5818
        %v6338 = vunpack.c.l.b16 %v5819
        %v6339 = vunpack.c.l.b16 %v5820
        %v6340 = vunpack.c.l.b16 %v5821
        %v6341 = vunpack.c.l.b16 %v5822
        %v6342 = vunpack.c.l.b16 %v5823
        %v6343 = vunpack.c.l.b16 %v5824
        %v6344 = vunpack.c.l.b16 %v5825
        %v6345 = vunpack.c.l.b16 %v5826
        %v6346 = vunpack.c.l.b16 %v5827
        %v6347 = vunpack.c.l.b16 %v5828
        %v6348 = vunpack.c.l.b16 %v5829
        %v6349 = vunpack.c.l.b16 %v5830
        %v6350 = vunpack.c.l.b16 %v5831
        %v6351 = vunpack.c.l.b16 %v5832
        %v6352 = vunpack.c.l.b16 %v5833
        %v6353 = vunpack.c.l.b16 %v5834
        %v6354 = vunpack.c.l.b16 %v5835
        %v6355 = vunpack.c.l.b16 %v5836
        %v6356 = vunpack.c.l.b16 %v5837
        %v6357 = vunpack.c.l.b16 %v5838
        %v6358 = vunpack.c.l.b16 %v5839
        %v6359 = vunpack.c.l.b16 %v5840
        %v6360 = vunpack.c.l.b16 %v5841
        %v6361 = vunpack.c.l.b16 %v5842
        %v6362 = vunpack.c.l.b16 %v5843
        %v6363 = vunpack.c.l.b16 %v5844
        %v6364 = vunpack.c.l.b16 %v5845
        %v6365 = vunpack.c.l.b16 %v5846
        %v6366 = vunpack.c.l.b16 %v5847
        %v6367 = vunpack.c.l.b16 %v5848
        %v6368 = vunpack.c.l.b16 %v5849
        %v6369 = vunpack.c.l.b16 %v5850
        %v6370 = vunpack.c.l.b16 %v5851
        %v6371 = vunpack.c.l.b16 %v5852
        %v6372 = vunpack.c.l.b16 %v5853
        %v6373 = vunpack.c.l.b16 %v5854
        %v6374 = vunpack.c.l.b16 %v5855
        %v6375 = vunpack.c.l.b16 %v5856
        %v6376 = vunpack.c.l.b16 %v5857
        %v6377 = vunpack.c.l.b16 %v5858
        %v6378 = vunpack.c.l.b16 %v5859
        %v6379 = vunpack.c.l.b16 %v5860
        %v6380 = vunpack.c.l.b16 %v5861
        %v6381 = vunpack.c.l.b16 %v5862
        %v6382 = vunpack.c.l.b16 %v5863
        %v6383 = vunpack.c.l.b16 %v5864
        %v6384 = vunpack.c.l.b16 %v5865
        %v6385 = vunpack.c.l.b16 %v5866
        %v6386 = vunpack.c.l.b16 %v5867
        %v6387 = vunpack.c.l.b16 %v5868
        %v6388 = vunpack.c.l.b16 %v5869
        %v6389 = vunpack.c.l.b16 %v5870
        %v6390 = vunpack.c.l.b16 %v5871
        %v6391 = vunpack.c.l.b16 %v5872
        %v6392 = vunpack.c.l.b16 %v5873
        %v6393 = vunpack.c.l.b16 %v5874
        %v6394 = vunpack.c.l.b16 %v5875
        %v6395 = vunpack.c.l.b16 %v5876
        %v6396 = vunpack.c.l.b16 %v5877
        %v6397 = vunpack.c.l.b16 %v5878
        %v6398 = vunpack.c.l.b16 %v5879
        %v6399 = vunpack.c.l.b16 %v5880
        %v6400 = vunpack.c.l.b16 %v5881
        %v6401 = vunpack.c.l.b16 %v5882
        %v6402 = vunpack.c.l.b16 %v5883
        %v6403 = vunpack.c.l.b16 %v5884
        %v6404 = vunpack.c.l.b16 %v5885
        %v6405 = vunpack.c.l.b16 %v5886
        %v6406 = vunpack.c.l.b16 %v5887
        %v6407 = vunpack.c.l.b16 %v5888
        %v6408 = vunpack.c.l.b16 %v5889
        %v6409 = vunpack.c.l.b16 %v5890
        %v6410 = vunpack.c.l.b16 %v5891
        %v6411 = vunpack.c.l.b16 %v5892
        %v6412 = vunpack.c.l.b16 %v5893
        %v6413 = vunpack.c.l.b16 %v5894
        %v6414 = vunpack.c.l.b16 %v5895
        %v6415 = vunpack.c.l.b16 %v5896
        %v6416 = vunpack.c.l.b16 %v5897
        %v6417 = vunpack.c.l.b16 %v5898
        %v6418 = vunpack.c.l.b16 %v5899
        %v6419 = vunpack.c.l.b16 %v5900
        %v6420 = vunpack.c.l.b16 %v5901
        %v6421 = vunpack.c.l.b16 %v5902
        %v6422 = vunpack.c.l.b16 %v5903
        %v6423 = vunpack.c.l.b16 %v5904
        %v6424 = vunpack.c.l.b16 %v5905
        %v6425 = vunpack.c.l.b16 %v5906
        %v6426 = vunpack.c.l.b16 %v5907
        %v6427 = vunpack.c.l.b16 %v5908
        %v6428 = vunpack.c.l.b16 %v5909
        %v6429 = vunpack.c.l.b16 %v5910
        %v6430 = vunpack.c.l.b16 %v5911
        %v6431 = vunpack.c.l.b16 %v5912
        %v6432 = vunpack.c.l.b16 %v5913
        %v6433 = vunpack.c.l.b16 %v5914
        %v6434 = vunpack.c.l.b16 %v5915
        %v6435 = vunpack.c.l.b16 %v5916
        %v6436 = vunpack.c.l.b16 %v5917
        %v6437 = vunpack.c.l.b16 %v5918
        %v6438 = vunpack.c.l.b16 %v5919
        %v6439 = vunpack.c.l.b16 %v5920
        %v6440 = vunpack.c.l.b16 %v5921
        %v6441 = vunpack.c.l.b16 %v5922
        %v6442 = vunpack.c.l.b16 %v5923
        %v6443 = vunpack.c.l.b16 %v5924
        %v6444 = vunpack.c.l.b16 %v5925
        %v6445 = vunpack.c.l.b16 %v5926
        %v6446 = vunpack.c.l.b16 %v5927
        %v6447 = vunpack.c.l.b16 %v5928
        %v6448 = vunpack.c.l.b16 %v5929
        %v6449 = vunpack.c.l.b16 %v5930
        %v6450 = vunpack.c.l.b16 %v5931
        %v6451 = vunpack.c.l.b16 %v5932
        %v6452 = vunpack.c.l.b16 %v5933
        %v6453 = vunpack.c.l.b16 %v5934
        %v6454 = vunpack.c.l.b16 %v5935
        %v6455 = vunpack.c.l.b16 %v5936
        %v6456 = vunpack.c.l.b16 %v5937
        %v6457 = vunpack.c.l.b16 %v5938
        %v6458 = vunpack.c.l.b16 %v5939
        %v6459 = vunpack.c.l.b16 %v5940
        %v6460 = vunpack.c.l.b16 %v5941
        %v6461 = vunpack.c.l.b16 %v5942
        %v6462 = vunpack.c.l.b16 %v5943
        %v6463 = vunpack.c.l.b16 %v5944
        %v6464 = vunpack.c.l.b16 %v5945
        %v6465 = vunpack.c.l.b16 %v5946
        %v6466 = vunpack.c.l.b16 %v5947
        %v6467 = vunpack.c.l.b16 %v5948
        %v6468 = vunpack.c.l.b16 %v5949
        %v6469 = vunpack.c.l.b16 %v5950
        %v6470 = vunpack.c.l.b16 %v5951
        %v6471 = vunpack.c.l.b16 %v5952
        %v6472 = vunpack.c.l.b16 %v5953
        %v6473 = vunpack.c.l.b16 %v5954
        %v6474 = vunpack.c.l.b16 %v5955
        %v6475 = vunpack.c.l.b16 %v5956
        %v6476 = vunpack.c.l.b16 %v5957
        %v6477 = vunpack.c.l.b16 %v5958
        %v6478 = vunpack.c.l.b16 %v5959
        %v6479 = vunpack.c.l.b16 %v5960
        %v6480 = vunpack.c.l.b16 %v5961
        %v6481 = vunpack.c.l.b16 %v5962
        %v6482 = vunpack.c.l.b16 %v5963
        %v6483 = vpack.c.b16 %v6228, %v6227
        %v6484 = vpack.c.b16 %v6230, %v6229
        %v6485 = vpack.c.b16 %v6232, %v6231
        %v6486 = vpack.c.b16 %v6234, %v6233
        %v6487 = vpack.c.b16 %v6236, %v6235
        %v6488 = vpack.c.b16 %v6238, %v6237
        %v6489 = vpack.c.b16 %v6240, %v6239
        %v6490 = vpack.c.b16 %v6242, %v6241
        %v6491 = vpack.c.b16 %v6244, %v6243
        %v6492 = vpack.c.b16 %v6246, %v6245
        %v6493 = vpack.c.b16 %v6248, %v6247
        %v6494 = vpack.c.b16 %v6250, %v6249
        %v6495 = vpack.c.b16 %v6252, %v6251
        %v6496 = vpack.c.b16 %v6254, %v6253
        %v6497 = vpack.c.b16 %v6256, %v6255
        %v6498 = vpack.c.b16 %v6258, %v6257
        %v6499 = vpack.c.b16 %v6260, %v6259
        %v6500 = vpack.c.b16 %v6262, %v6261
        %v6501 = vpack.c.b16 %v6264, %v6263
        %v6502 = vpack.c.b16 %v6266, %v6265
        %v6503 = vpack.c.b16 %v6268, %v6267
        %v6504 = vpack.c.b16 %v6270, %v6269
        %v6505 = vpack.c.b16 %v6272, %v6271
        %v6506 = vpack.c.b16 %v6274, %v6273
        %v6507 = vpack.c.b16 %v6276, %v6275
        %v6508 = vpack.c.b16 %v6278, %v6277
        %v6509 = vpack.c.b16 %v6280, %v6279
        %v6510 = vpack.c.b16 %v6282, %v6281
        %v6511 = vpack.c.b16 %v6284, %v6283
        %v6512 = vpack.c.b16 %v6286, %v6285
        %v6513 = vpack.c.b16 %v6288, %v6287
        %v6514 = vpack.c.b16 %v6290, %v6289
        %v6515 = vpack.c.b16 %v6292, %v6291
        %v6516 = vpack.c.b16 %v6294, %v6293
        %v6517 = vpack.c.b16 %v6296, %v6295
        %v6518 = vpack.c.b16 %v6298, %v6297
        %v6519 = vpack.c.b16 %v6300, %v6299
        %v6520 = vpack.c.b16 %v6302, %v6301
        %v6521 = vpack.c.b16 %v6304, %v6303
        %v6522 = vpack.c.b16 %v6306, %v6305
        %v6523 = vpack.c.b16 %v6308, %v6307
        %v6524 = vpack.c.b16 %v6310, %v6309
        %v6525 = vpack.c.b16 %v6312, %v6311
        %v6526 = vpack.c.b16 %v6314, %v6313
        %v6527 = vpack.c.b16 %v6316, %v6315
        %v6528 = vpack.c.b16 %v6318, %v6317
        %v6529 = vpack.c.b16 %v6320, %v6319
        %v6530 = vpack.c.b16 %v6322, %v6321
        %v6531 = vpack.c.b16 %v6324, %v6323
        %v6532 = vpack.c.b16 %v6326, %v6325
        %v6533 = vpack.c.b16 %v6328, %v6327
        %v6534 = vpack.c.b16 %v6330, %v6329
        %v6535 = vpack.c.b16 %v6332, %v6331
        %v6536 = vpack.c.b16 %v6334, %v6333
        %v6537 = vpack.c.b16 %v6336, %v6335
        %v6538 = vpack.c.b16 %v6338, %v6337
        %v6539 = vpack.c.b16 %v6340, %v6339
        %v6540 = vpack.c.b16 %v6342, %v6341
        %v6541 = vpack.c.b16 %v6344, %v6343
        %v6542 = vpack.c.b16 %v6346, %v6345
        %v6543 = vpack.c.b16 %v6348, %v6347
        %v6544 = vpack.c.b16 %v6350, %v6349
        %v6545 = vpack.c.b16 %v6352, %v6351
        %v6546 = vpack.c.b16 %v6354, %v6353
        %v6547 = vpack.c.b16 %v6356, %v6355
        %v6548 = vpack.c.b16 %v6358, %v6357
        %v6549 = vpack.c.b16 %v6360, %v6359
        %v6550 = vpack.c.b16 %v6362, %v6361
        %v6551 = vpack.c.b16 %v6364, %v6363
        %v6552 = vpack.c.b16 %v6366, %v6365
        %v6553 = vpack.c.b16 %v6368, %v6367
        %v6554 = vpack.c.b16 %v6370, %v6369
        %v6555 = vpack.c.b16 %v6372, %v6371
        %v6556 = vpack.c.b16 %v6374, %v6373
        %v6557 = vpack.c.b16 %v6376, %v6375
        %v6558 = vpack.c.b16 %v6378, %v6377
        %v6559 = vpack.c.b16 %v6380, %v6379
        %v6560 = vpack.c.b16 %v6382, %v6381
        %v6561 = vpack.c.b16 %v6384, %v6383
        %v6562 = vpack.c.b16 %v6386, %v6385
        %v6563 = vpack.c.b16 %v6388, %v6387
        %v6564 = vpack.c.b16 %v6390, %v6389
        %v6565 = vpack.c.b16 %v6392, %v6391
        %v6566 = vpack.c.b16 %v6394, %v6393
        %v6567 = vpack.c.b16 %v6396, %v6395
        %v6568 = vpack.c.b16 %v6398, %v6397
        %v6569 = vpack.c.b16 %v6400, %v6399
        %v6570 = vpack.c.b16 %v6402, %v6401
        %v6571 = vpack.c.b16 %v6404, %v6403
        %v6572 = vpack.c.b16 %v6406, %v6405
        %v6573 = vpack.c.b16 %v6408, %v6407
        %v6574 = vpack.c.b16 %v6410, %v6409
        %v6575 = vpack.c.b16 %v6412, %v6411
        %v6576 = vpack.c.b16 %v6414, %v6413
        %v6577 = vpack.c.b16 %v6416, %v6415
        %v6578 = vpack.c.b16 %v6418, %v6417
        %v6579 = vpack.c.b16 %v6420, %v6419
        %v6580 = vpack.c.b16 %v6422, %v6421
        %v6581 = vpack.c.b16 %v6424, %v6423
        %v6582 = vpack.c.b16 %v6426, %v6425
        %v6583 = vpack.c.b16 %v6428, %v6427
        %v6584 = vpack.c.b16 %v6430, %v6429
        %v6585 = vpack.c.b16 %v6432, %v6431
        %v6586 = vpack.c.b16 %v6434, %v6433
        %v6587 = vpack.c.b16 %v6436, %v6435
        %v6588 = vpack.c.b16 %v6438, %v6437
        %v6589 = vpack.c.b16 %v6440, %v6439
        %v6590 = vpack.c.b16 %v6442, %v6441
        %v6591 = vpack.c.b16 %v6444, %v6443
        %v6592 = vpack.c.b16 %v6446, %v6445
        %v6593 = vpack.c.b16 %v6448, %v6447
        %v6594 = vpack.c.b16 %v6450, %v6449
        %v6595 = vpack.c.b16 %v6452, %v6451
        %v6596 = vpack.c.b16 %v6454, %v6453
        %v6597 = vpack.c.b16 %v6456, %v6455
        %v6598 = vpack.c.b16 %v6458, %v6457
        %v6599 = vpack.c.b16 %v6460, %v6459
        %v6600 = vpack.c.b16 %v6462, %v6461
        %v6601 = vpack.c.b16 %v6464, %v6463
        %v6602 = vpack.c.b16 %v6466, %v6465
        %v6603 = vpack.c.b16 %v6468, %v6467
        %v6604 = vpack.c.b16 %v6470, %v6469
        %v6605 = vpack.c.b16 %v6472, %v6471
        %v6606 = vpack.c.b16 %v6474, %v6473
        %v6607 = vpack.c.b16 %v6476, %v6475
        %v6608 = vpack.c.b16 %v6478, %v6477
        %v6609 = vpack.c.b16 %v6480, %v6479
        %v6610 = vpack.c.b16 %v6482, %v6481
        %6739 = vmatprep.subr.bf16.mxu0 0
        %6740 = vmatpush1.bf16.msra.mxu0 %v6483
        %6741 = vmatprep.subr.bf16.mxu0 0
        %6742 = vmatpush1.bf16.msra.mxu0 %v6484
        %6743 = vmatprep.subr.bf16.mxu0 0
        %6744 = vmatpush1.bf16.msra.mxu0 %v6485
        %6745 = vmatprep.subr.bf16.mxu0 0
        %6746 = vmatpush1.bf16.msra.mxu0 %v6486
        %6747 = vmatprep.subr.bf16.mxu0 0
        %6748 = vmatpush1.bf16.msra.mxu0 %v6487
        %6749 = vmatprep.subr.bf16.mxu0 0
        %6750 = vmatpush1.bf16.msra.mxu0 %v6488
        %6751 = vmatprep.subr.bf16.mxu0 0
        %6752 = vmatpush1.bf16.msra.mxu0 %v6489
        %6753 = vmatprep.subr.bf16.mxu0 0
        %6754 = vmatpush1.bf16.msra.mxu0 %v6490
        %6755 = vmatprep.subr.bf16.mxu0 0
        %6756 = vmatpush1.bf16.msra.mxu0 %v6491
        %6757 = vmatprep.subr.bf16.mxu0 0
        %6758 = vmatpush1.bf16.msra.mxu0 %v6492
        %6759 = vmatprep.subr.bf16.mxu0 0
        %6760 = vmatpush1.bf16.msra.mxu0 %v6493
        %6761 = vmatprep.subr.bf16.mxu0 0
        %6762 = vmatpush1.bf16.msra.mxu0 %v6494
        %6763 = vmatprep.subr.bf16.mxu0 0
        %6764 = vmatpush1.bf16.msra.mxu0 %v6495
        %6765 = vmatprep.subr.bf16.mxu0 0
        %6766 = vmatpush1.bf16.msra.mxu0 %v6496
        %6767 = vmatprep.subr.bf16.mxu0 0
        %6768 = vmatpush1.bf16.msra.mxu0 %v6497
        %6769 = vmatprep.subr.bf16.mxu0 0
        %6770 = vmatpush1.bf16.msra.mxu0 %v6498
        %6771 = vmatprep.mubr.bf16.mxu0 %v5693
        %6772 = vmatmul.mubr.bf16.gmra.mrb[0].mxu0 %v5692
        %v6773 = vpop.f32.mrb[0].mxu0
        %v6774 = vadd.f32 %v5969, %v6773
        %v6775 = vpop.f32.mrb[0].mxu0
        %v6776 = vpop.f32.mrb[0].mxu0
        %v6777 = vadd.f32 %v5969, %v6776
        %v6778 = vpop.f32.mrb[0].mxu0
        %6779 = vdwg.mxu0
        %6780 = vmatprep.subr.bf16.mxu0 0
        %6781 = vmatpush1.bf16.msra.mxu0 %v6499
        %6782 = vmatprep.subr.bf16.mxu0 0
        %6783 = vmatpush1.bf16.msra.mxu0 %v6500
        %6784 = vmatprep.subr.bf16.mxu0 0
        %6785 = vmatpush1.bf16.msra.mxu0 %v6501
        %6786 = vmatprep.subr.bf16.mxu0 0
        %6787 = vmatpush1.bf16.msra.mxu0 %v6502
        %6788 = vmatprep.subr.bf16.mxu0 0
        %6789 = vmatpush1.bf16.msra.mxu0 %v6503
        %6790 = vmatprep.subr.bf16.mxu0 0
        %6791 = vmatpush1.bf16.msra.mxu0 %v6504
        %6792 = vmatprep.subr.bf16.mxu0 0
        %6793 = vmatpush1.bf16.msra.mxu0 %v6505
        %6794 = vmatprep.subr.bf16.mxu0 0
        %6795 = vmatpush1.bf16.msra.mxu0 %v6506
        %6796 = vmatprep.subr.bf16.mxu0 0
        %6797 = vmatpush1.bf16.msra.mxu0 %v6507
        %6798 = vmatprep.subr.bf16.mxu0 0
        %6799 = vmatpush1.bf16.msra.mxu0 %v6508
        %6800 = vmatprep.subr.bf16.mxu0 0
        %6801 = vmatpush1.bf16.msra.mxu0 %v6509
        %6802 = vmatprep.subr.bf16.mxu0 0
        %6803 = vmatpush1.bf16.msra.mxu0 %v6510
        %6804 = vmatprep.subr.bf16.mxu0 0
        %6805 = vmatpush1.bf16.msra.mxu0 %v6511
        %6806 = vmatprep.subr.bf16.mxu0 0
        %6807 = vmatpush1.bf16.msra.mxu0 %v6512
        %6808 = vmatprep.subr.bf16.mxu0 0
        %6809 = vmatpush1.bf16.msra.mxu0 %v6513
        %6810 = vmatprep.subr.bf16.mxu0 0
        %6811 = vmatpush1.bf16.msra.mxu0 %v6514
        %6812 = vmatprep.mubr.bf16.mxu0 %v5695
        %6813 = vmatmul.mubr.bf16.gmra.mrb[0].mxu0 %v5694
        %v6814 = vpop.f32.mrb[0].mxu0
        %v6815 = vadd.f32 %v6774, %v6814
        %v6816 = vpop.f32.mrb[0].mxu0
        %v6817 = vpop.f32.mrb[0].mxu0
        %v6818 = vadd.f32 %v6777, %v6817
        %v6819 = vpop.f32.mrb[0].mxu0
        %6820 = vdwg.mxu0
        %6821 = vmatprep.subr.bf16.mxu0 0
        %6822 = vmatpush1.bf16.msra.mxu0 %v6515
        %6823 = vmatprep.subr.bf16.mxu0 0
        %6824 = vmatpush1.bf16.msra.mxu0 %v6516
        %6825 = vmatprep.subr.bf16.mxu0 0
        %6826 = vmatpush1.bf16.msra.mxu0 %v6517
        %6827 = vmatprep.subr.bf16.mxu0 0
        %6828 = vmatpush1.bf16.msra.mxu0 %v6518
        %6829 = vmatprep.subr.bf16.mxu0 0
        %6830 = vmatpush1.bf16.msra.mxu0 %v6519
        %6831 = vmatprep.subr.bf16.mxu0 0
        %6832 = vmatpush1.bf16.msra.mxu0 %v6520
        %6833 = vmatprep.subr.bf16.mxu0 0
        %6834 = vmatpush1.bf16.msra.mxu0 %v6521
        %6835 = vmatprep.subr.bf16.mxu0 0
        %6836 = vmatpush1.bf16.msra.mxu0 %v6522
        %6837 = vmatprep.subr.bf16.mxu0 0
        %6838 = vmatpush1.bf16.msra.mxu0 %v6523
        %6839 = vmatprep.subr.bf16.mxu0 0
        %6840 = vmatpush1.bf16.msra.mxu0 %v6524
        %6841 = vmatprep.subr.bf16.mxu0 0
        %6842 = vmatpush1.bf16.msra.mxu0 %v6525
        %6843 = vmatprep.subr.bf16.mxu0 0
        %6844 = vmatpush1.bf16.msra.mxu0 %v6526
        %6845 = vmatprep.subr.bf16.mxu0 0
        %6846 = vmatpush1.bf16.msra.mxu0 %v6527
        %6847 = vmatprep.subr.bf16.mxu0 0
        %6848 = vmatpush1.bf16.msra.mxu0 %v6528
        %6849 = vmatprep.subr.bf16.mxu0 0
        %6850 = vmatpush1.bf16.msra.mxu0 %v6529
        %6851 = vmatprep.subr.bf16.mxu0 0
        %6852 = vmatpush1.bf16.msra.mxu0 %v6530
        %6853 = vmatprep.mubr.bf16.mxu0 %v5697
        %6854 = vmatmul.mubr.bf16.gmra.mrb[0].mxu0 %v5696
        %v6855 = vpop.f32.mrb[0].mxu0
        %v6856 = vadd.f32 %v6815, %v6855
        %v6857 = vpop.f32.mrb[0].mxu0
        %v6858 = vpop.f32.mrb[0].mxu0
        %v6859 = vadd.f32 %v6818, %v6858
        %v6860 = vpop.f32.mrb[0].mxu0
        %6861 = vdwg.mxu0
        %6862 = vmatprep.subr.bf16.mxu0 0
        %6863 = vmatpush1.bf16.msra.mxu0 %v6531
        %6864 = vmatprep.subr.bf16.mxu0 0
        %6865 = vmatpush1.bf16.msra.mxu0 %v6532
        %6866 = vmatprep.subr.bf16.mxu0 0
        %6867 = vmatpush1.bf16.msra.mxu0 %v6533
        %6868 = vmatprep.subr.bf16.mxu0 0
        %6869 = vmatpush1.bf16.msra.mxu0 %v6534
        %6870 = vmatprep.subr.bf16.mxu0 0
        %6871 = vmatpush1.bf16.msra.mxu0 %v6535
        %6872 = vmatprep.subr.bf16.mxu0 0
        %6873 = vmatpush1.bf16.msra.mxu0 %v6536
        %6874 = vmatprep.subr.bf16.mxu0 0
        %6875 = vmatpush1.bf16.msra.mxu0 %v6537
        %6876 = vmatprep.subr.bf16.mxu0 0
        %6877 = vmatpush1.bf16.msra.mxu0 %v6538
        %6878 = vmatprep.subr.bf16.mxu0 0
        %6879 = vmatpush1.bf16.msra.mxu0 %v6539
        %6880 = vmatprep.subr.bf16.mxu0 0
        %6881 = vmatpush1.bf16.msra.mxu0 %v6540
        %6882 = vmatprep.subr.bf16.mxu0 0
        %6883 = vmatpush1.bf16.msra.mxu0 %v6541
        %6884 = vmatprep.subr.bf16.mxu0 0
        %6885 = vmatpush1.bf16.msra.mxu0 %v6542
        %6886 = vmatprep.subr.bf16.mxu0 0
        %6887 = vmatpush1.bf16.msra.mxu0 %v6543
        %6888 = vmatprep.subr.bf16.mxu0 0
        %6889 = vmatpush1.bf16.msra.mxu0 %v6544
        %6890 = vmatprep.subr.bf16.mxu0 0
        %6891 = vmatpush1.bf16.msra.mxu0 %v6545
        %6892 = vmatprep.subr.bf16.mxu0 0
        %6893 = vmatpush1.bf16.msra.mxu0 %v6546
        %6894 = vmatprep.mubr.bf16.mxu0 %v5699
        %6895 = vmatmul.mubr.bf16.gmra.mrb[0].mxu0 %v5698
        %v6896 = vpop.f32.mrb[0].mxu0
        %v6897 = vadd.f32 %v6856, %v6896
        %v6898 = vpop.f32.mrb[0].mxu0
        %v6899 = vpop.f32.mrb[0].mxu0
        %v6900 = vadd.f32 %v6859, %v6899
        %v6901 = vpop.f32.mrb[0].mxu0
        %6902 = vdwg.mxu0
        %6903 = vmatprep.subr.bf16.mxu0 0
        %6904 = vmatpush1.bf16.msra.mxu0 %v6547
        %6905 = vmatprep.subr.bf16.mxu0 0
        %6906 = vmatpush1.bf16.msra.mxu0 %v6548
        %6907 = vmatprep.subr.bf16.mxu0 0
        %6908 = vmatpush1.bf16.msra.mxu0 %v6549
        %6909 = vmatprep.subr.bf16.mxu0 0
        %6910 = vmatpush1.bf16.msra.mxu0 %v6550
        %6911 = vmatprep.subr.bf16.mxu0 0
        %6912 = vmatpush1.bf16.msra.mxu0 %v6551
        %6913 = vmatprep.subr.bf16.mxu0 0
        %6914 = vmatpush1.bf16.msra.mxu0 %v6552
        %6915 = vmatprep.subr.bf16.mxu0 0
        %6916 = vmatpush1.bf16.msra.mxu0 %v6553
        %6917 = vmatprep.subr.bf16.mxu0 0
        %6918 = vmatpush1.bf16.msra.mxu0 %v6554
        %6919 = vmatprep.subr.bf16.mxu0 0
        %6920 = vmatpush1.bf16.msra.mxu0 %v6555
        %6921 = vmatprep.subr.bf16.mxu0 0
        %6922 = vmatpush1.bf16.msra.mxu0 %v6556
        %6923 = vmatprep.subr.bf16.mxu0 0
        %6924 = vmatpush1.bf16.msra.mxu0 %v6557
        %6925 = vmatprep.subr.bf16.mxu0 0
        %6926 = vmatpush1.bf16.msra.mxu0 %v6558
        %6927 = vmatprep.subr.bf16.mxu0 0
        %6928 = vmatpush1.bf16.msra.mxu0 %v6559
        %6929 = vmatprep.subr.bf16.mxu0 0
        %6930 = vmatpush1.bf16.msra.mxu0 %v6560
        %6931 = vmatprep.subr.bf16.mxu0 0
        %6932 = vmatpush1.bf16.msra.mxu0 %v6561
        %6933 = vmatprep.subr.bf16.mxu0 0
        %6934 = vmatpush1.bf16.msra.mxu0 %v6562
        %6935 = vmatprep.mubr.bf16.mxu0 %v5701
        %6936 = vmatmul.mubr.bf16.gmra.mrb[0].mxu0 %v5700
        %v6937 = vpop.f32.mrb[0].mxu0
        %v6938 = vadd.f32 %v6897, %v6937
        %v6939 = vpop.f32.mrb[0].mxu0
        %v6940 = vpop.f32.mrb[0].mxu0
        %v6941 = vadd.f32 %v6900, %v6940
        %v6942 = vpop.f32.mrb[0].mxu0
        %6943 = vdwg.mxu0
        %6944 = vmatprep.subr.bf16.mxu0 0
        %6945 = vmatpush1.bf16.msra.mxu0 %v6563
        %6946 = vmatprep.subr.bf16.mxu0 0
        %6947 = vmatpush1.bf16.msra.mxu0 %v6564
        %6948 = vmatprep.subr.bf16.mxu0 0
        %6949 = vmatpush1.bf16.msra.mxu0 %v6565
        %6950 = vmatprep.subr.bf16.mxu0 0
        %6951 = vmatpush1.bf16.msra.mxu0 %v6566
        %6952 = vmatprep.subr.bf16.mxu0 0
        %6953 = vmatpush1.bf16.msra.mxu0 %v6567
        %6954 = vmatprep.subr.bf16.mxu0 0
        %6955 = vmatpush1.bf16.msra.mxu0 %v6568
        %6956 = vmatprep.subr.bf16.mxu0 0
        %6957 = vmatpush1.bf16.msra.mxu0 %v6569
        %6958 = vmatprep.subr.bf16.mxu0 0
        %6959 = vmatpush1.bf16.msra.mxu0 %v6570
        %6960 = vmatprep.subr.bf16.mxu0 0
        %6961 = vmatpush1.bf16.msra.mxu0 %v6571
        %6962 = vmatprep.subr.bf16.mxu0 0
        %6963 = vmatpush1.bf16.msra.mxu0 %v6572
        %6964 = vmatprep.subr.bf16.mxu0 0
        %6965 = vmatpush1.bf16.msra.mxu0 %v6573
        %6966 = vmatprep.subr.bf16.mxu0 0
        %6967 = vmatpush1.bf16.msra.mxu0 %v6574
        %6968 = vmatprep.subr.bf16.mxu0 0
        %6969 = vmatpush1.bf16.msra.mxu0 %v6575
        %6970 = vmatprep.subr.bf16.mxu0 0
        %6971 = vmatpush1.bf16.msra.mxu0 %v6576
        %6972 = vmatprep.subr.bf16.mxu0 0
        %6973 = vmatpush1.bf16.msra.mxu0 %v6577
        %6974 = vmatprep.subr.bf16.mxu0 0
        %6975 = vmatpush1.bf16.msra.mxu0 %v6578
        %6976 = vmatprep.mubr.bf16.mxu0 %v5703
        %6977 = vmatmul.mubr.bf16.gmra.mrb[0].mxu0 %v5702
        %v6978 = vpop.f32.mrb[0].mxu0
        %v6979 = vadd.f32 %v6938, %v6978
        %v6980 = vpop.f32.mrb[0].mxu0
        %v6981 = vpop.f32.mrb[0].mxu0
        %v6982 = vadd.f32 %v6941, %v6981
        %v6983 = vpop.f32.mrb[0].mxu0
        %6984 = vdwg.mxu0
        %6985 = vmatprep.subr.bf16.mxu0 0
        %6986 = vmatpush1.bf16.msra.mxu0 %v6579
        %6987 = vmatprep.subr.bf16.mxu0 0
        %6988 = vmatpush1.bf16.msra.mxu0 %v6580
        %6989 = vmatprep.subr.bf16.mxu0 0
        %6990 = vmatpush1.bf16.msra.mxu0 %v6581
        %6991 = vmatprep.subr.bf16.mxu0 0
        %6992 = vmatpush1.bf16.msra.mxu0 %v6582
        %6993 = vmatprep.subr.bf16.mxu0 0
        %6994 = vmatpush1.bf16.msra.mxu0 %v6583
        %6995 = vmatprep.subr.bf16.mxu0 0
        %6996 = vmatpush1.bf16.msra.mxu0 %v6584
        %6997 = vmatprep.subr.bf16.mxu0 0
        %6998 = vmatpush1.bf16.msra.mxu0 %v6585
        %6999 = vmatprep.subr.bf16.mxu0 0
        %7000 = vmatpush1.bf16.msra.mxu0 %v6586
        %7001 = vmatprep.subr.bf16.mxu0 0
        %7002 = vmatpush1.bf16.msra.mxu0 %v6587
        %7003 = vmatprep.subr.bf16.mxu0 0
        %7004 = vmatpush1.bf16.msra.mxu0 %v6588
        %7005 = vmatprep.subr.bf16.mxu0 0
        %7006 = vmatpush1.bf16.msra.mxu0 %v6589
        %7007 = vmatprep.subr.bf16.mxu0 0
        %7008 = vmatpush1.bf16.msra.mxu0 %v6590
        %7009 = vmatprep.subr.bf16.mxu0 0
        %7010 = vmatpush1.bf16.msra.mxu0 %v6591
        %7011 = vmatprep.subr.bf16.mxu0 0
        %7012 = vmatpush1.bf16.msra.mxu0 %v6592
        %7013 = vmatprep.subr.bf16.mxu0 0
        %7014 = vmatpush1.bf16.msra.mxu0 %v6593
        %7015 = vmatprep.subr.bf16.mxu0 0
        %7016 = vmatpush1.bf16.msra.mxu0 %v6594
        %7017 = vmatprep.mubr.bf16.mxu0 %v5705
        %7018 = vmatmul.mubr.bf16.gmra.mrb[0].mxu0 %v5704
        %v7019 = vpop.f32.mrb[0].mxu0
        %v7020 = vadd.f32 %v6979, %v7019
        %v7021 = vpop.f32.mrb[0].mxu0
        %v7022 = vpop.f32.mrb[0].mxu0
        %v7023 = vadd.f32 %v6982, %v7022
        %v7024 = vpop.f32.mrb[0].mxu0
        %7025 = vdwg.mxu0
        %7026 = vmatprep.subr.bf16.mxu0 0
        %7027 = vmatpush1.bf16.msra.mxu0 %v6595
        %7028 = vmatprep.subr.bf16.mxu0 0
        %7029 = vmatpush1.bf16.msra.mxu0 %v6596
        %7030 = vmatprep.subr.bf16.mxu0 0
        %7031 = vmatpush1.bf16.msra.mxu0 %v6597
        %7032 = vmatprep.subr.bf16.mxu0 0
        %7033 = vmatpush1.bf16.msra.mxu0 %v6598
        %7034 = vmatprep.subr.bf16.mxu0 0
        %7035 = vmatpush1.bf16.msra.mxu0 %v6599
        %7036 = vmatprep.subr.bf16.mxu0 0
        %7037 = vmatpush1.bf16.msra.mxu0 %v6600
        %7038 = vmatprep.subr.bf16.mxu0 0
        %7039 = vmatpush1.bf16.msra.mxu0 %v6601
        %7040 = vmatprep.subr.bf16.mxu0 0
        %7041 = vmatpush1.bf16.msra.mxu0 %v6602
        %7042 = vmatprep.subr.bf16.mxu0 0
        %7043 = vmatpush1.bf16.msra.mxu0 %v6603
        %7044 = vmatprep.subr.bf16.mxu0 0
        %7045 = vmatpush1.bf16.msra.mxu0 %v6604
        %7046 = vmatprep.subr.bf16.mxu0 0
        %7047 = vmatpush1.bf16.msra.mxu0 %v6605
        %7048 = vmatprep.subr.bf16.mxu0 0
        %7049 = vmatpush1.bf16.msra.mxu0 %v6606
        %7050 = vmatprep.subr.bf16.mxu0 0
        %7051 = vmatpush1.bf16.msra.mxu0 %v6607
        %7052 = vmatprep.subr.bf16.mxu0 0
        %7053 = vmatpush1.bf16.msra.mxu0 %v6608
        %7054 = vmatprep.subr.bf16.mxu0 0
        %7055 = vmatpush1.bf16.msra.mxu0 %v6609
        %7056 = vmatprep.subr.bf16.mxu0 0
        %7057 = vmatpush1.bf16.msra.mxu0 %v6610
        %7058 = vmatprep.mubr.bf16.mxu0 %v5707
        %7059 = vmatmul.mubr.bf16.gmra.mrb[0].mxu0 %v5706
        %v7060 = vpop.f32.mrb[0].mxu0
        %v7061 = vadd.f32 %v7020, %v7060
        %v7062 = vpop.f32.mrb[0].mxu0
        %v7063 = vpop.f32.mrb[0].mxu0
        %v7064 = vadd.f32 %v7023, %v7063
        %v7065 = vpop.f32.mrb[0].mxu0
        %7066 = vdwg.mxu0
        %v7067 = vadd.f32 %v5034, %v7061
        %v7068 = vadd.f32 %v5035, %v7064
        %v7069 = vld [vmem:[%s1113] sm:$0x1]
        %v7070 = vld [vmem:[%s1116] sm:$0x1]
        %v7071 = vsel %vm1167, %v7067, 0.0
        %7072 = vadd.xlane.f32.xlu0 %v7071
        %v7073 = vpop.xlane.xlu0 %7072
        %v7074 = vsel %vm1167, %v7068, 0.0
        %7075 = vadd.xlane.f32.xlu0 %v7074
        %v7076 = vpop.xlane.xlu0 %7075
        %v7077 = vmul.f32 %v7073, %v3049
        %v7078 = vmul.f32 %v7076, %v3049
        %v7079 = vsub.f32 %v7067, %v7077
        %v7080 = vsub.f32 %v7068, %v7078
        %v7081 = vmul.f32 %v7079, %v7079
        %v7082 = vmul.f32 %v7080, %v7080
        %v7083 = vsel %vm1167, %v7081, 0.0
        %7084 = vadd.xlane.f32.xlu0 %v7083
        %v7085 = vpop.xlane.xlu0 %7084
        %v7086 = vsel %vm1167, %v7082, 0.0
        %7087 = vadd.xlane.f32.xlu0 %v7086
        %v7088 = vpop.xlane.xlu0 %7087
        %v7089 = vmul.f32 %v7085, %v3049
        %v7090 = vmul.f32 %v7088, %v3049
        %v7091 = vadd.f32 %v7089, 1e-05
        %v7092 = vadd.f32 %v7090, 1e-05
        %v7093 = vrsqrt.pop %v7091
        %v7094 = vrsqrt.pop %v7092
        %v7095 = vmul.f32 %v7079, %v7093
        %v7096 = vmul.f32 %v7080, %v7094
        %v7098 = vlaneseq
        %v7099 = vshrl.u32 %v7098, 7
        %v7100 = vsub.s32 0, %v7099
        %v7101 = vrot.slane %v7069, %v7100
        %v7103 = vmul.f32 %v7095, %v7101
        %v7104 = vmul.f32 %v7096, %v7101
        %v7106 = vlaneseq
        %v7107 = vshrl.u32 %v7106, 7
        %v7108 = vsub.s32 0, %v7107
        %v7109 = vrot.slane %v7070, %v7108
        %v7111 = vadd.f32 %v7103, %v7109
        %v7112 = vadd.f32 %v7104, %v7109
        %7113 = vst.msk [vmem:[#allocation2] sm:$0xff] %vm1167, %v7111
        %7114 = vst.msk [vmem:[#allocation2 + $0x8] sm:$0xff] %vm1167, %v7112
        %p7115 = scmp.eq.s32.totalorder %s38, 1
        // Predicated region
        $region129: #{tpu_custom_call.1} parent=123 // pred_check
          %p7116 = pneg %p7115
        $region130: #{tpu_custom_call.1} parent=123 // pred_check_branch
          %7118 = sbr.rel (%p7116) target = $region132
        $region131: #{tpu_custom_call.1} parent=123 // pred_region
          %7119 = vst.msk [vmem:[#allocation3] sm:$0xff] %vm1167, %v7111
          %7120 = vst.msk [vmem:[#allocation3 + $0x8] sm:$0xff] %vm1167, %v7112
        $region132: #{tpu_custom_call.1} parent=123 // pred_fallthru
          _
        // Predicated region
        $region133: #{tpu_custom_call.1} parent=123 // pred_check
          %p7121 = pneg %p707
        $region134: #{tpu_custom_call.1} parent=123 // pred_check_branch
          %7123 = sbr.rel (%p7121) target = $region136
        $region135: #{tpu_custom_call.1} parent=123 // pred_region
          %s7125 = ssub.s32 256, 256
          %7126 = vsyncadd [#allocation4], %s7125
          %s7127 = sshll.u32 [#allocation3], 4
          %s7128 = int_to_ptr.vmem [resolvable:$true] %s7127
          %7133 = dma.vmem_to_hbm [thread:$0]  %s7128, 256, %s26, [#allocation4], 128, 128, 8
        $region136: #{tpu_custom_call.1} parent=123 // pred_fallthru
          _
        // Predicated region
        $region137: #{tpu_custom_call.1} parent=123 // pred_check
          %p7134 = pneg %p707
        $region138: #{tpu_custom_call.1} parent=123 // pred_check_branch
          %7136 = sbr.rel (%p7134) target = $region140
        $region139: #{tpu_custom_call.1} parent=123 // pred_region
          %7137 = dma.done [#allocation4], 256
        $region140: #{tpu_custom_call.1} parent=123 // pred_fallthru
          _
      $region124: #{tpu_custom_call.1} parent=5 // pred_fallthru
        _
      %p7138 = scmp.le.s32.totalorder 2, %s33
      // Predicated region
      $region141: #{tpu_custom_call.1} parent=5 // pred_check
        %p7139 = pneg %p7138
      $region142: #{tpu_custom_call.1} parent=5 // pred_check_branch
        %7141 = sbr.rel (%p7139) target = $region144
      $region143: #{tpu_custom_call.1} parent=5 // pred_region
        %s7142 = ssub.s32 %s33, 2
      $region144: #{tpu_custom_call.1} parent=5 // pred_fallthru
        _
    $region6: #{tpu_custom_call.1} parent=1 // loop_footer
      %s37 = sadd.s32 1, %s33
    $region7: #{tpu_custom_call.1} parent=1 // loop_footer_branch
      %32 = sbr.rel target = $region3
    $region8: #{tpu_custom_call.1} parent=1 // loop_exit
      _
    %7143 = vsyncpa [#allocation4], 1
    %s7144 = scalar_lea.sflag [#allocation4], 1
    %7145 = vsyncpa %s7144, 1

</llo_original>
